<compile_context>
chip_gen: v7x
topology: tpu7x:2x2x1
jax: 0.10.0
libtpu: 0.0.40
codegen_flags: <defaults>
</compile_context>

<pallas_src>
import functools

import jax
import jax.numpy as jnp
from jax.experimental import pallas as pl
from jax.experimental.pallas import tpu as pltpu


# ----------------------------- Pallas kernels -----------------------------

def feature_kernel(x_ref, wl_ref, bl_ref, a1_ref, b1_ref, a2_ref, b2_ref, o_ref):
    """attention -> conv_first + ELU -> (avg-pool + primary conv) as 2 matmuls."""
    x = x_ref[0]                                            # [E, T]
    mx = jnp.max(x, axis=1, keepdims=True)                  # MaxPool1d(T) -> [E, 1]
    av = jnp.mean(x, axis=1, keepdims=True)                 # AvgPool1d(T) -> [E, 1]
    # shared Linear applied to both pooled vectors, algebraically fused:
    # chan_attn = W @ (mx + av) + 2*b
    a = (jnp.dot(wl_ref[...], mx + av, preferred_element_type=jnp.float32)
         + 2.0 * bl_ref[...])                               # [E, 1]
    xa = x * jax.nn.sigmoid(a)                              # [E, T]
    # conv_first (stride-2 over time), all 16 channels in one banded matmul.
    z = (jnp.dot(xa, a1_ref[...], preferred_element_type=jnp.float32)
         + b1_ref[...])                                     # [E, 16*T1]
    z = jnp.where(z > 0, z, jnp.exp(jnp.minimum(z, 0.0)) - 1.0)   # ELU(alpha=1)
    # AvgPool2d((1,2),(1,2)) and the PrimaryCapsule conv folded into one matrix.
    o_ref[0] = (jnp.dot(z, a2_ref[...], preferred_element_type=jnp.float32)
                + b2_ref[...])                              # [E, 16*T3]


def capsule_fc_kernel(u_ref, wc_ref, fcw_ref, fcb_ref, o_ref, *, routings):
    """squash -> x_hat -> dynamic routing -> Conv1d(16,1,16) fc -> sigmoid."""
    u = u_ref[0]                                            # [I, N]
    # squash over the capsule (I) dimension
    n2 = jnp.sum(u * u, axis=0, keepdims=True)              # [1, N]
    u = u * (n2 * pl.reciprocal((1.0 + n2) * (jnp.sqrt(n2) + 1e-8), approx=True))
    wc = wc_ref[...]                                        # [O, D, I, N]
    # x_hat[o, d, n] = sum_i wc[o, d, i, n] * u[i, n]
    x_hat = jnp.sum(wc * u[None, None, :, :], axis=2)       # [O, D, N]
    n_out = wc.shape[0]
    n_in = wc.shape[3]
    b = jnp.zeros((n_out, 1, n_in), jnp.float32)            # routing logits [O, 1, N]
    v = None
    for it in range(routings):
        bmax = jnp.max(b, axis=0, keepdims=True)            # softmax over out-caps
        e = jnp.exp(b - bmax)
        c = e * pl.reciprocal(jnp.sum(e, axis=0, keepdims=True), approx=True)
        s = jnp.sum(c * x_hat, axis=2, keepdims=True)       # [O, D, 1]
        sn2 = jnp.sum(s * s, axis=1, keepdims=True)         # [O, 1, 1]
        v = s * (sn2 * pl.reciprocal((1.0 + sn2) * (jnp.sqrt(sn2) + 1e-8), approx=True))
        if it < routings - 1:
            b = b + jnp.sum(v * x_hat, axis=1, keepdims=True)     # [O, 1, N]
    # fc: Conv1d(16, 1, 16) == full contraction over (out_caps, out_dim).
    t = jnp.sum(v * fcw_ref[...], axis=1, keepdims=True)    # [O, 1, 1]
    t = jnp.sum(t, axis=0, keepdims=True)                   # [1, 1, 1]
    o_ref[...] = jax.nn.sigmoid(t + fcb_ref[...])


# ------------------------------ forward pass ------------------------------

def mtca_capsnet_forward(x, params, *, kernel_caps, num_caps, routings=3):
    B, E, T = x.shape
    KC = kernel_caps
    C1 = C2 = 16
    T1 = (T - KC) // 2 + 1            # Conv2d(1,16,(1,KC),stride=(1,2))
    T2 = T1 // 2                      # AvgPool2d((1,2),(1,2))
    T3 = T2 - KC + 1                  # Conv2d(16,16,(1,KC),stride=1)
    n_in_caps = C2 * E * T3 // num_caps
    f32 = jnp.float32
    x = x.astype(f32)

    # ---- fused attention + conv_first + ELU + avg-pool + primary conv ----
    y3 = pl.pallas_call(
        feature_kernel,
        out_shape=jax.ShapeDtypeStruct((B, E, C2 * T3), f32),
        grid=(B,),
        in_specs=[
            pl.BlockSpec((1, E, T), lambda b: (b, 0, 0)),
            pl.BlockSpec((E, E), lambda b: (0, 0)),
            pl.BlockSpec((E, 1), lambda b: (0, 0)),
            pl.BlockSpec((T, C1 * T1), lambda b: (0, 0)),
            pl.BlockSpec((1, C1 * T1), lambda b: (0, 0)),
            pl.BlockSpec((C1 * T1, C2 * T3), lambda b: (0, 0)),
            pl.BlockSpec((1, C2 * T3), lambda b: (0, 0)),
        ],
        out_specs=pl.BlockSpec((1, E, C2 * T3), lambda b: (b, 0, 0)),
        compiler_params=pltpu.CompilerParams(dimension_semantics=("parallel",)),
    )(x, params["wl"], params["bl"], params["a1"], params["b1row"],
      params["a2p"], params["b2row"])

    # NCHW capsule regroup (matches torch `.view(B, -1, num_caps)`); ~3 KB glue.
    u = jnp.transpose(y3.reshape(B, E, C2, T3), (0, 2, 1, 3))        # [B, C2, E, T3]
    u = jnp.transpose(u.reshape(B, n_in_caps, num_caps), (0, 2, 1))  # [B, I, N]

    # ---- fused DenseCapsule routing + fc + sigmoid ----
    O, D = params["wct"].shape[0], params["wct"].shape[1]
    out = pl.pallas_call(
        functools.partial(capsule_fc_kernel, routings=routings),
        out_shape=jax.ShapeDtypeStruct((B, 1, 1), f32),
        grid=(B,),
        in_specs=[
            pl.BlockSpec((1, num_caps, n_in_caps), lambda b: (b, 0, 0)),
            pl.BlockSpec((O, D, num_caps, n_in_caps), lambda b: (0, 0, 0, 0)),
            pl.BlockSpec((O, D, 1), lambda b: (0, 0, 0)),
            pl.BlockSpec((1, 1, 1), lambda b: (0, 0, 0)),
        ],
        out_specs=pl.BlockSpec((1, 1, 1), lambda b: (b, 0, 0)),
        compiler_params=pltpu.CompilerParams(dimension_semantics=("parallel",)),
    )(u, params["wct"], params["fcw3"], params["fcb3"])
    return jnp.squeeze(out)                                          # torch.squeeze -> [B]


# --------------------------- deterministic params ---------------------------

def init_params(key, *, E, T, kernel_caps, num_caps):
    """Draws raw weights, then pre-bakes conv/pool banded matrices and the
    capsule-weight transpose so the forward pass does zero per-call layout work."""
    KC = kernel_caps
    C1, C2, O, D = 16, 16, 16, 16
    T1 = (T - KC) // 2 + 1
    T2 = T1 // 2
    T3 = T2 - KC + 1
    N = C2 * E * T3 // num_caps
    f32 = jnp.float32
    ks = jax.random.split(key, 9)
    wl = 0.2 * jax.random.normal(ks[0], (E, E), f32)                 # Linear(E, E) weight
    bl = 0.1 * jax.random.normal(ks[1], (E, 1), f32)                 # Linear(E, E) bias
    w1 = 0.2 * jax.random.normal(ks[2], (C1, KC), f32)               # Conv2d(1,16,(1,KC)) weight
    b1 = 0.1 * jax.random.normal(ks[3], (C1,), f32)
    w2 = 0.05 * jax.random.normal(ks[4], (C2, C1, KC), f32)          # Conv2d(16,16,(1,KC)) weight
    b2 = 0.1 * jax.random.normal(ks[5], (C2,), f32)
    wc = 0.01 * jax.random.normal(ks[6], (O, N, D, num_caps), f32)   # DenseCapsule [O,N,D,I]
    fcw = 0.2 * jax.random.normal(ks[7], (O, D), f32)                # Conv1d(16,1,16) weight[0]
    fcb = 0.1 * jax.random.normal(ks[8], (1,), f32)

    # conv_first as a banded [T, C1*T1] matrix: A1[t, c*T1+t1] = w1[c, t-2*t1]
    t = jnp.arange(T)[:, None]
    t1 = jnp.arange(T1)[None, :]
    k1 = t - 2 * t1
    m1 = jnp.where((k1 >= 0) & (k1 < KC), w1[:, jnp.clip(k1, 0, KC - 1)], 0.0)   # [C1,T,T1]
    a1 = jnp.transpose(m1, (1, 0, 2)).reshape(T, C1 * T1)

    # AvgPool2d((1,2),(1,2)) folded with the PrimaryCapsule conv: A2p = P @ A2
    p1 = jnp.arange(T1)[:, None]
    p2 = jnp.arange(T2)[None, :]
    pool = 0.5 * ((p1 == 2 * p2) | (p1 == 2 * p2 + 1)).astype(f32)               # [T1,T2]
    pfull = jnp.kron(jnp.eye(C1, dtype=f32), pool)                               # [C1*T1,C1*T2]
    q2 = jnp.arange(T2)[:, None]
    q3 = jnp.arange(T3)[None, :]
    k2 = q2 - q3
    m2 = jnp.where((k2 >= 0) & (k2 < KC), w2[:, :, jnp.clip(k2, 0, KC - 1)], 0.0)  # [C2,C1,T2,T3]
    a2 = jnp.transpose(m2, (1, 2, 0, 3)).reshape(C1 * T2, C2 * T3)
    a2p = pfull @ a2                                                              # [C1*T1,C2*T3]

    return {
        "wl": wl, "bl": bl,
        "a1": a1, "b1row": jnp.repeat(b1, T1)[None, :],               # [1, C1*T1]
        "a2p": a2p, "b2row": jnp.repeat(b2, T3)[None, :],             # [1, C2*T3]
        "wct": jnp.transpose(wc, (0, 2, 3, 1)),                       # [O, D, I, N]
        "fcw3": fcw[:, :, None],                                      # [O, D, 1]
        "fcb3": fcb.reshape(1, 1, 1),                                 # [1, 1, 1]
    }


if __name__ == "__main__":
    # small shapes consistent with the module: batch=2, electrode_chan=4, time_samples=64
    B, E, T = 2, 4, 64
    KC, NUM_CAPS = 9, 8
    key = jax.random.PRNGKey(0)
    kx, kp = jax.random.split(key)
    x = jax.random.normal(kx, (B, E, T), jnp.float32)
    params = init_params(kp, E=E, T=T, kernel_caps=KC, num_caps=NUM_CAPS)
    fwd = jax.jit(functools.partial(mtca_capsnet_forward, kernel_caps=KC, num_caps=NUM_CAPS))
    out = fwd(x, params)
    jax.block_until_ready(out)
    assert out.shape == (B,)
    print("KERNEL_OK")
</pallas_src>

<mosaic_0001>
module attributes {stable_mosaic.version = 11 : i64} {
  func.func @feature_kernel(%arg0: i32, %arg1: memref<1x4x64xf32, #tpu.memory_space<vmem>>, %arg2: memref<4x4xf32, #tpu.memory_space<vmem>>, %arg3: memref<4x1xf32, #tpu.memory_space<vmem>>, %arg4: memref<64x448xf32, #tpu.memory_space<vmem>>, %arg5: memref<1x448xf32, #tpu.memory_space<vmem>>, %arg6: memref<448x96xf32, #tpu.memory_space<vmem>>, %arg7: memref<1x96xf32, #tpu.memory_space<vmem>>, %arg8: memref<1x4x96xf32, #tpu.memory_space<vmem>>) attributes {dimension_semantics = [#tpu.dimension_semantics<parallel>], iteration_bounds = array<i64: 2>, scalar_prefetch = 0 : i64, scratch_operands = 0 : i64, tpu.core_type = #tpu.core_type<tc>, window_params = [{transform_indices = @transform_0, window_bounds = array<i64: 1, 4, 64>}, {pipeline_mode = #tpu.pipeline_mode<synchronous>, transform_indices = @transform_1, window_bounds = array<i64: 4, 4>}, {pipeline_mode = #tpu.pipeline_mode<synchronous>, transform_indices = @transform_2, window_bounds = array<i64: 4, 1>}, {pipeline_mode = #tpu.pipeline_mode<synchronous>, transform_indices = @transform_3, window_bounds = array<i64: 64, 448>}, {pipeline_mode = #tpu.pipeline_mode<synchronous>, transform_indices = @transform_4, window_bounds = array<i64: 1, 448>}, {pipeline_mode = #tpu.pipeline_mode<synchronous>, transform_indices = @transform_5, window_bounds = array<i64: 448, 96>}, {pipeline_mode = #tpu.pipeline_mode<synchronous>, transform_indices = @transform_6, window_bounds = array<i64: 1, 96>}, {transform_indices = @transform_7, window_bounds = array<i64: 1, 4, 96>}]} {
    %c0 = arith.constant 0 : index
    %c0_0 = arith.constant 0 : index
    %c0_1 = arith.constant 0 : index
    %0 = vector.load %arg1[%c0, %c0_0, %c0_1] : memref<1x4x64xf32, #tpu.memory_space<vmem>>, vector<1x4x64xf32>
    %1 = vector.shape_cast %0 : vector<1x4x64xf32> to vector<4x64xf32>
    %cst = arith.constant dense<0xFF800000> : vector<4xf32>
    %2 = vector.multi_reduction <maximumf>, %1, %cst [1] : vector<4x64xf32> to vector<4xf32>
    %3 = vector.shape_cast %2 : vector<4xf32> to vector<4x1xf32>
    %cst_2 = arith.constant dense<0.000000e+00> : vector<4xf32>
    %4 = vector.multi_reduction <add>, %1, %cst_2 [1] : vector<4x64xf32> to vector<4xf32>
    %5 = vector.shape_cast %4 : vector<4xf32> to vector<4x1xf32>
    %cst_3 = arith.constant 6.400000e+01 : f32
    %6 = vector.broadcast %cst_3 : f32 to vector<4x1xf32>
    %7 = arith.divf %5, %6 : vector<4x1xf32>
    %c0_4 = arith.constant 0 : index
    %c0_5 = arith.constant 0 : index
    %8 = vector.load %arg2[%c0_4, %c0_5] : memref<4x4xf32, #tpu.memory_space<vmem>>, vector<4x4xf32>
    %9 = arith.addf %3, %7 : vector<4x1xf32>
    %cst_6 = arith.constant dense<0.000000e+00> : vector<4x1xf32>
    %10 = tpu.matmul %8, %9, %cst_6 {dimension_numbers = #tpu.dot_dimension_numbers<[1], [0], [0], [1], [0, 0, 1, 1], [], []>} : vector<4x4xf32>, vector<4x1xf32>, vector<4x1xf32> -> vector<4x1xf32>
    %c0_7 = arith.constant 0 : index
    %c0_8 = arith.constant 0 : index
    %11 = vector.load %arg3[%c0_7, %c0_8] : memref<4x1xf32, #tpu.memory_space<vmem>>, vector<4x1xf32>
    %cst_9 = arith.constant 2.000000e+00 : f32
    %12 = vector.broadcast %cst_9 : f32 to vector<4x1xf32>
    %13 = arith.mulf %12, %11 : vector<4x1xf32>
    %14 = arith.addf %10, %13 : vector<4x1xf32>
    %15 = arith.negf %14 : vector<4x1xf32>
    %16 = math.exp %15 : vector<4x1xf32>
    %cst_10 = arith.constant 1.000000e+00 : f32
    %17 = vector.broadcast %cst_10 : f32 to vector<4x1xf32>
    %18 = arith.addf %17, %16 : vector<4x1xf32>
    %19 = arith.divf %17, %18 : vector<4x1xf32>
    %20 = vector.broadcast %19 : vector<4x1xf32> to vector<4x64xf32>
    %21 = arith.mulf %1, %20 : vector<4x64xf32>
    %c0_11 = arith.constant 0 : index
    %c0_12 = arith.constant 0 : index
    %22 = vector.load %arg4[%c0_11, %c0_12] : memref<64x448xf32, #tpu.memory_space<vmem>>, vector<64x448xf32>
    %cst_13 = arith.constant dense<0.000000e+00> : vector<4x448xf32>
    %23 = tpu.matmul %21, %22, %cst_13 {dimension_numbers = #tpu.dot_dimension_numbers<[1], [0], [0], [1], [0, 0, 1, 1], [], []>} : vector<4x64xf32>, vector<64x448xf32>, vector<4x448xf32> -> vector<4x448xf32>
    %c0_14 = arith.constant 0 : index
    %c0_15 = arith.constant 0 : index
    %24 = vector.load %arg5[%c0_14, %c0_15] : memref<1x448xf32, #tpu.memory_space<vmem>>, vector<1x448xf32>
    %25 = vector.broadcast %24 : vector<1x448xf32> to vector<4x448xf32>
    %26 = arith.addf %23, %25 : vector<4x448xf32>
    %cst_16 = arith.constant 0.000000e+00 : f32
    %27 = vector.broadcast %cst_16 : f32 to vector<4x448xf32>
    %28 = arith.cmpf ogt, %26, %27 : vector<4x448xf32>
    %cst_17 = arith.constant 0.000000e+00 : f32
    %29 = vector.broadcast %cst_17 : f32 to vector<4x448xf32>
    %30 = arith.minimumf %26, %29 : vector<4x448xf32>
    %31 = math.exp %30 : vector<4x448xf32>
    %cst_18 = arith.constant 1.000000e+00 : f32
    %32 = vector.broadcast %cst_18 : f32 to vector<4x448xf32>
    %33 = arith.subf %31, %32 : vector<4x448xf32>
    %34 = arith.select %28, %26, %33 : vector<4x448xi1>, vector<4x448xf32>
    %c0_19 = arith.constant 0 : index
    %c0_20 = arith.constant 0 : index
    %35 = vector.load %arg6[%c0_19, %c0_20] : memref<448x96xf32, #tpu.memory_space<vmem>>, vector<448x96xf32>
    %cst_21 = arith.constant dense<0.000000e+00> : vector<4x96xf32>
    %36 = tpu.matmul %34, %35, %cst_21 {dimension_numbers = #tpu.dot_dimension_numbers<[1], [0], [0], [1], [0, 0, 1, 1], [], []>} : vector<4x448xf32>, vector<448x96xf32>, vector<4x96xf32> -> vector<4x96xf32>
    %c0_22 = arith.constant 0 : index
    %c0_23 = arith.constant 0 : index
    %37 = vector.load %arg7[%c0_22, %c0_23] : memref<1x96xf32, #tpu.memory_space<vmem>>, vector<1x96xf32>
    %38 = vector.broadcast %37 : vector<1x96xf32> to vector<4x96xf32>
    %39 = arith.addf %36, %38 : vector<4x96xf32>
    %c0_24 = arith.constant 0 : index
    %c0_25 = arith.constant 0 : index
    %c0_26 = arith.constant 0 : index
    %40 = vector.load %arg8[%c0_24, %c0_25, %c0_26] : memref<1x4x96xf32, #tpu.memory_space<vmem>>, vector<1x4x96xf32>
    %41 = vector.shape_cast %40 : vector<1x4x96xf32> to vector<4x96xf32>
    %42 = vector.shape_cast %39 : vector<4x96xf32> to vector<1x4x96xf32>
    tpu.vector_store %arg8[%c0_24, %c0_25, %c0_26], %42 {strides = array<i32>} : memref<1x4x96xf32, #tpu.memory_space<vmem>>, vector<1x4x96xf32>,
    return
  }
  func.func @transform_0(%arg0: i32) -> (i32, i32, i32) {
    %c0_i32 = arith.constant 0 : i32
    %c0_i32_0 = arith.constant 0 : i32
    %c0_i32_1 = arith.constant 0 : i32
    return %arg0, %c0_i32, %c0_i32_0 : i32, i32, i32
  }
  func.func @transform_1(%arg0: i32) -> (i32, i32) {
    %c0_i32 = arith.constant 0 : i32
    %c0_i32_0 = arith.constant 0 : i32
    %c0_i32_1 = arith.constant 0 : i32
    return %c0_i32, %c0_i32_0 : i32, i32
  }
  func.func @transform_2(%arg0: i32) -> (i32, i32) {
    %c0_i32 = arith.constant 0 : i32
    %c0_i32_0 = arith.constant 0 : i32
    %c0_i32_1 = arith.constant 0 : i32
    return %c0_i32, %c0_i32_0 : i32, i32
  }
  func.func @transform_3(%arg0: i32) -> (i32, i32) {
    %c0_i32 = arith.constant 0 : i32
    %c0_i32_0 = arith.constant 0 : i32
    %c0_i32_1 = arith.constant 0 : i32
    return %c0_i32, %c0_i32_0 : i32, i32
  }
  func.func @transform_4(%arg0: i32) -> (i32, i32) {
    %c0_i32 = arith.constant 0 : i32
    %c0_i32_0 = arith.constant 0 : i32
    %c0_i32_1 = arith.constant 0 : i32
    return %c0_i32, %c0_i32_0 : i32, i32
  }
  func.func @transform_5(%arg0: i32) -> (i32, i32) {
    %c0_i32 = arith.constant 0 : i32
    %c0_i32_0 = arith.constant 0 : i32
    %c0_i32_1 = arith.constant 0 : i32
    return %c0_i32, %c0_i32_0 : i32, i32
  }
  func.func @transform_6(%arg0: i32) -> (i32, i32) {
    %c0_i32 = arith.constant 0 : i32
    %c0_i32_0 = arith.constant 0 : i32
    %c0_i32_1 = arith.constant 0 : i32
    return %c0_i32, %c0_i32_0 : i32, i32
  }
  func.func @transform_7(%arg0: i32) -> (i32, i32, i32) {
    %c0_i32 = arith.constant 0 : i32
    %c0_i32_0 = arith.constant 0 : i32
    %c0_i32_1 = arith.constant 0 : i32
    return %arg0, %c0_i32, %c0_i32_0 : i32, i32, i32
  }
}

module attributes {stable_mosaic.version = 11 : i64} {
  func.func @capsule_fc_kernel(%arg0: i32, %arg1: memref<1x8x48xf32, #tpu.memory_space<vmem>>, %arg2: memref<16x16x8x48xf32, #tpu.memory_space<vmem>>, %arg3: memref<16x16x1xf32, #tpu.memory_space<vmem>>, %arg4: memref<1x1x1xf32, #tpu.memory_space<vmem>>, %arg5: memref<1x1x1xf32, #tpu.memory_space<vmem>>) attributes {dimension_semantics = [#tpu.dimension_semantics<parallel>], iteration_bounds = array<i64: 2>, scalar_prefetch = 0 : i64, scratch_operands = 0 : i64, tpu.core_type = #tpu.core_type<tc>, window_params = [{transform_indices = @transform_0, window_bounds = array<i64: 1, 8, 48>}, {pipeline_mode = #tpu.pipeline_mode<synchronous>, transform_indices = @transform_1, window_bounds = array<i64: 16, 16, 8, 48>}, {pipeline_mode = #tpu.pipeline_mode<synchronous>, transform_indices = @transform_2, window_bounds = array<i64: 16, 16, 1>}, {pipeline_mode = #tpu.pipeline_mode<synchronous>, transform_indices = @transform_3, window_bounds = array<i64: 1, 1, 1>}, {transform_indices = @transform_4, window_bounds = array<i64: 1, 1, 1>}]} {
    %c0 = arith.constant 0 : index
    %c0_0 = arith.constant 0 : index
    %c0_1 = arith.constant 0 : index
    %0 = vector.load %arg1[%c0, %c0_0, %c0_1] : memref<1x8x48xf32, #tpu.memory_space<vmem>>, vector<1x8x48xf32>
    %1 = vector.shape_cast %0 : vector<1x8x48xf32> to vector<8x48xf32>
    %2 = arith.mulf %1, %1 : vector<8x48xf32>
    %cst = arith.constant dense<0.000000e+00> : vector<48xf32>
    %3 = vector.multi_reduction <add>, %2, %cst [0] : vector<8x48xf32> to vector<48xf32>
    %4 = vector.shape_cast %3 : vector<48xf32> to vector<1x48xf32>
    %cst_2 = arith.constant 1.000000e+00 : f32
    %5 = vector.broadcast %cst_2 : f32 to vector<1x48xf32>
    %6 = arith.addf %5, %4 : vector<1x48xf32>
    %7 = math.sqrt %4 : vector<1x48xf32>
    %cst_3 = arith.constant 9.99999993E-9 : f32
    %8 = vector.broadcast %cst_3 : f32 to vector<1x48xf32>
    %9 = arith.addf %7, %8 : vector<1x48xf32>
    %10 = arith.mulf %6, %9 : vector<1x48xf32>
    %11 = tpu.reciprocal %10 {approx = true} : vector<1x48xf32> -> vector<1x48xf32>
    %12 = arith.mulf %4, %11 : vector<1x48xf32>
    %13 = vector.broadcast %12 : vector<1x48xf32> to vector<8x48xf32>
    %14 = arith.mulf %1, %13 : vector<8x48xf32>
    %c0_4 = arith.constant 0 : index
    %c0_5 = arith.constant 0 : index
    %c0_6 = arith.constant 0 : index
    %c0_7 = arith.constant 0 : index
    %15 = vector.load %arg2[%c0_4, %c0_5, %c0_6, %c0_7] : memref<16x16x8x48xf32, #tpu.memory_space<vmem>>, vector<16x16x8x48xf32>
    %16 = vector.shape_cast %14 : vector<8x48xf32> to vector<1x1x8x48xf32>
    %17 = vector.broadcast %16 : vector<1x1x8x48xf32> to vector<16x16x8x48xf32>
    %18 = arith.mulf %15, %17 : vector<16x16x8x48xf32>
    %cst_8 = arith.constant dense<0.000000e+00> : vector<16x16x48xf32>
    %19 = vector.multi_reduction <add>, %18, %cst_8 [2] : vector<16x16x8x48xf32> to vector<16x16x48xf32>
    %cst_9 = arith.constant 0.000000e+00 : f32
    %20 = vector.broadcast %cst_9 : f32 to vector<16x1x48xf32>
    %cst_10 = arith.constant dense<0xFF800000> : vector<1x48xf32>
    %21 = vector.multi_reduction <maximumf>, %20, %cst_10 [0] : vector<16x1x48xf32> to vector<1x48xf32>
    %22 = vector.shape_cast %21 : vector<1x48xf32> to vector<1x1x48xf32>
    %23 = vector.broadcast %22 : vector<1x1x48xf32> to vector<16x1x48xf32>
    %24 = arith.subf %20, %23 : vector<16x1x48xf32>
    %25 = math.exp %24 : vector<16x1x48xf32>
    %cst_11 = arith.constant dense<0.000000e+00> : vector<1x48xf32>
    %26 = vector.multi_reduction <add>, %25, %cst_11 [0] : vector<16x1x48xf32> to vector<1x48xf32>
    %27 = vector.shape_cast %26 : vector<1x48xf32> to vector<1x1x48xf32>
    %28 = tpu.reciprocal %27 {approx = true} : vector<1x1x48xf32> -> vector<1x1x48xf32>
    %29 = vector.broadcast %28 : vector<1x1x48xf32> to vector<16x1x48xf32>
    %30 = arith.mulf %25, %29 : vector<16x1x48xf32>
    %31 = vector.broadcast %30 : vector<16x1x48xf32> to vector<16x16x48xf32>
    %32 = arith.mulf %31, %19 : vector<16x16x48xf32>
    %cst_12 = arith.constant dense<0.000000e+00> : vector<16x16xf32>
    %33 = vector.multi_reduction <add>, %32, %cst_12 [2] : vector<16x16x48xf32> to vector<16x16xf32>
    %34 = vector.shape_cast %33 : vector<16x16xf32> to vector<16x16x1xf32>
    %35 = arith.mulf %34, %34 : vector<16x16x1xf32>
    %cst_13 = arith.constant dense<0.000000e+00> : vector<16x1xf32>
    %36 = vector.multi_reduction <add>, %35, %cst_13 [1] : vector<16x16x1xf32> to vector<16x1xf32>
    %37 = vector.shape_cast %36 : vector<16x1xf32> to vector<16x1x1xf32>
    %cst_14 = arith.constant 1.000000e+00 : f32
    %38 = vector.broadcast %cst_14 : f32 to vector<16x1x1xf32>
    %39 = arith.addf %38, %37 : vector<16x1x1xf32>
    %40 = math.sqrt %37 : vector<16x1x1xf32>
    %cst_15 = arith.constant 9.99999993E-9 : f32
    %41 = vector.broadcast %cst_15 : f32 to vector<16x1x1xf32>
    %42 = arith.addf %40, %41 : vector<16x1x1xf32>
    %43 = arith.mulf %39, %42 : vector<16x1x1xf32>
    %44 = tpu.reciprocal %43 {approx = true} : vector<16x1x1xf32> -> vector<16x1x1xf32>
    %45 = arith.mulf %37, %44 : vector<16x1x1xf32>
    %46 = vector.broadcast %45 : vector<16x1x1xf32> to vector<16x16x1xf32>
    %47 = arith.mulf %34, %46 : vector<16x16x1xf32>
    %48 = vector.broadcast %47 : vector<16x16x1xf32> to vector<16x16x48xf32>
    %49 = arith.mulf %48, %19 : vector<16x16x48xf32>
    %cst_16 = arith.constant dense<0.000000e+00> : vector<16x48xf32>
    %50 = vector.multi_reduction <add>, %49, %cst_16 [1] : vector<16x16x48xf32> to vector<16x48xf32>
    %51 = vector.shape_cast %50 : vector<16x48xf32> to vector<16x1x48xf32>
    %52 = arith.addf %20, %51 : vector<16x1x48xf32>
    %cst_17 = arith.constant dense<0xFF800000> : vector<1x48xf32>
    %53 = vector.multi_reduction <maximumf>, %52, %cst_17 [0] : vector<16x1x48xf32> to vector<1x48xf32>
    %54 = vector.shape_cast %53 : vector<1x48xf32> to vector<1x1x48xf32>
    %55 = vector.broadcast %54 : vector<1x1x48xf32> to vector<16x1x48xf32>
    %56 = arith.subf %52, %55 : vector<16x1x48xf32>
    %57 = math.exp %56 : vector<16x1x48xf32>
    %cst_18 = arith.constant dense<0.000000e+00> : vector<1x48xf32>
    %58 = vector.multi_reduction <add>, %57, %cst_18 [0] : vector<16x1x48xf32> to vector<1x48xf32>
    %59 = vector.shape_cast %58 : vector<1x48xf32> to vector<1x1x48xf32>
    %60 = tpu.reciprocal %59 {approx = true} : vector<1x1x48xf32> -> vector<1x1x48xf32>
    %61 = vector.broadcast %60 : vector<1x1x48xf32> to vector<16x1x48xf32>
    %62 = arith.mulf %57, %61 : vector<16x1x48xf32>
    %63 = vector.broadcast %62 : vector<16x1x48xf32> to vector<16x16x48xf32>
    %64 = arith.mulf %63, %19 : vector<16x16x48xf32>
    %cst_19 = arith.constant dense<0.000000e+00> : vector<16x16xf32>
    %65 = vector.multi_reduction <add>, %64, %cst_19 [2] : vector<16x16x48xf32> to vector<16x16xf32>
    %66 = vector.shape_cast %65 : vector<16x16xf32> to vector<16x16x1xf32>
    %67 = arith.mulf %66, %66 : vector<16x16x1xf32>
    %cst_20 = arith.constant dense<0.000000e+00> : vector<16x1xf32>
    %68 = vector.multi_reduction <add>, %67, %cst_20 [1] : vector<16x16x1xf32> to vector<16x1xf32>
    %69 = vector.shape_cast %68 : vector<16x1xf32> to vector<16x1x1xf32>
    %cst_21 = arith.constant 1.000000e+00 : f32
    %70 = vector.broadcast %cst_21 : f32 to vector<16x1x1xf32>
    %71 = arith.addf %70, %69 : vector<16x1x1xf32>
    %72 = math.sqrt %69 : vector<16x1x1xf32>
    %cst_22 = arith.constant 9.99999993E-9 : f32
    %73 = vector.broadcast %cst_22 : f32 to vector<16x1x1xf32>
    %74 = arith.addf %72, %73 : vector<16x1x1xf32>
    %75 = arith.mulf %71, %74 : vector<16x1x1xf32>
    %76 = tpu.reciprocal %75 {approx = true} : vector<16x1x1xf32> -> vector<16x1x1xf32>
    %77 = arith.mulf %69, %76 : vector<16x1x1xf32>
    %78 = vector.broadcast %77 : vector<16x1x1xf32> to vector<16x16x1xf32>
    %79 = arith.mulf %66, %78 : vector<16x16x1xf32>
    %80 = vector.broadcast %79 : vector<16x16x1xf32> to vector<16x16x48xf32>
    %81 = arith.mulf %80, %19 : vector<16x16x48xf32>
    %cst_23 = arith.constant dense<0.000000e+00> : vector<16x48xf32>
    %82 = vector.multi_reduction <add>, %81, %cst_23 [1] : vector<16x16x48xf32> to vector<16x48xf32>
    %83 = vector.shape_cast %82 : vector<16x48xf32> to vector<16x1x48xf32>
    %84 = arith.addf %52, %83 : vector<16x1x48xf32>
    %cst_24 = arith.constant dense<0xFF800000> : vector<1x48xf32>
    %85 = vector.multi_reduction <maximumf>, %84, %cst_24 [0] : vector<16x1x48xf32> to vector<1x48xf32>
    %86 = vector.shape_cast %85 : vector<1x48xf32> to vector<1x1x48xf32>
    %87 = vector.broadcast %86 : vector<1x1x48xf32> to vector<16x1x48xf32>
    %88 = arith.subf %84, %87 : vector<16x1x48xf32>
    %89 = math.exp %88 : vector<16x1x48xf32>
    %cst_25 = arith.constant dense<0.000000e+00> : vector<1x48xf32>
    %90 = vector.multi_reduction <add>, %89, %cst_25 [0] : vector<16x1x48xf32> to vector<1x48xf32>
    %91 = vector.shape_cast %90 : vector<1x48xf32> to vector<1x1x48xf32>
    %92 = tpu.reciprocal %91 {approx = true} : vector<1x1x48xf32> -> vector<1x1x48xf32>
    %93 = vector.broadcast %92 : vector<1x1x48xf32> to vector<16x1x48xf32>
    %94 = arith.mulf %89, %93 : vector<16x1x48xf32>
    %95 = vector.broadcast %94 : vector<16x1x48xf32> to vector<16x16x48xf32>
    %96 = arith.mulf %95, %19 : vector<16x16x48xf32>
    %cst_26 = arith.constant dense<0.000000e+00> : vector<16x16xf32>
    %97 = vector.multi_reduction <add>, %96, %cst_26 [2] : vector<16x16x48xf32> to vector<16x16xf32>
    %98 = vector.shape_cast %97 : vector<16x16xf32> to vector<16x16x1xf32>
    %99 = arith.mulf %98, %98 : vector<16x16x1xf32>
    %cst_27 = arith.constant dense<0.000000e+00> : vector<16x1xf32>
    %100 = vector.multi_reduction <add>, %99, %cst_27 [1] : vector<16x16x1xf32> to vector<16x1xf32>
    %101 = vector.shape_cast %100 : vector<16x1xf32> to vector<16x1x1xf32>
    %cst_28 = arith.constant 1.000000e+00 : f32
    %102 = vector.broadcast %cst_28 : f32 to vector<16x1x1xf32>
    %103 = arith.addf %102, %101 : vector<16x1x1xf32>
    %104 = math.sqrt %101 : vector<16x1x1xf32>
    %cst_29 = arith.constant 9.99999993E-9 : f32
    %105 = vector.broadcast %cst_29 : f32 to vector<16x1x1xf32>
    %106 = arith.addf %104, %105 : vector<16x1x1xf32>
    %107 = arith.mulf %103, %106 : vector<16x1x1xf32>
    %108 = tpu.reciprocal %107 {approx = true} : vector<16x1x1xf32> -> vector<16x1x1xf32>
    %109 = arith.mulf %101, %108 : vector<16x1x1xf32>
    %110 = vector.broadcast %109 : vector<16x1x1xf32> to vector<16x16x1xf32>
    %111 = arith.mulf %98, %110 : vector<16x16x1xf32>
    %c0_30 = arith.constant 0 : index
    %c0_31 = arith.constant 0 : index
    %c0_32 = arith.constant 0 : index
    %112 = vector.load %arg3[%c0_30, %c0_31, %c0_32] : memref<16x16x1xf32, #tpu.memory_space<vmem>>, vector<16x16x1xf32>
    %113 = arith.mulf %111, %112 : vector<16x16x1xf32>
    %cst_33 = arith.constant dense<0.000000e+00> : vector<16x1xf32>
    %114 = vector.multi_reduction <add>, %113, %cst_33 [1] : vector<16x16x1xf32> to vector<16x1xf32>
    %115 = vector.shape_cast %114 : vector<16x1xf32> to vector<16x1x1xf32>
    %cst_34 = arith.constant dense<0.000000e+00> : vector<1x1xf32>
    %116 = vector.multi_reduction <add>, %115, %cst_34 [0] : vector<16x1x1xf32> to vector<1x1xf32>
    %117 = vector.shape_cast %116 : vector<1x1xf32> to vector<1x1x1xf32>
    %c0_35 = arith.constant 0 : index
    %c0_36 = arith.constant 0 : index
    %c0_37 = arith.constant 0 : index
    %118 = vector.load %arg4[%c0_35, %c0_36, %c0_37] : memref<1x1x1xf32, #tpu.memory_space<vmem>>, vector<1x1x1xf32>
    %119 = arith.addf %117, %118 : vector<1x1x1xf32>
    %120 = arith.negf %119 : vector<1x1x1xf32>
    %121 = math.exp %120 : vector<1x1x1xf32>
    %cst_38 = arith.constant 1.000000e+00 : f32
    %122 = vector.broadcast %cst_38 : f32 to vector<1x1x1xf32>
    %123 = arith.addf %122, %121 : vector<1x1x1xf32>
    %124 = arith.divf %122, %123 : vector<1x1x1xf32>
    %c0_39 = arith.constant 0 : index
    %c0_40 = arith.constant 0 : index
    %c0_41 = arith.constant 0 : index
    %125 = vector.load %arg5[%c0_39, %c0_40, %c0_41] : memref<1x1x1xf32, #tpu.memory_space<vmem>>, vector<1x1x1xf32>
    tpu.vector_store %arg5[%c0_39, %c0_40, %c0_41], %124 {strides = array<i32>} : memref<1x1x1xf32, #tpu.memory_space<vmem>>, vector<1x1x1xf32>,
    return
  }
  func.func @transform_0(%arg0: i32) -> (i32, i32, i32) {
    %c0_i32 = arith.constant 0 : i32
    %c0_i32_0 = arith.constant 0 : i32
    %c0_i32_1 = arith.constant 0 : i32
    return %arg0, %c0_i32, %c0_i32_0 : i32, i32, i32
  }
  func.func @transform_1(%arg0: i32) -> (i32, i32, i32, i32) {
    %c0_i32 = arith.constant 0 : i32
    %c0_i32_0 = arith.constant 0 : i32
    %c0_i32_1 = arith.constant 0 : i32
    %c0_i32_2 = arith.constant 0 : i32
    %c0_i32_3 = arith.constant 0 : i32
    return %c0_i32, %c0_i32_0, %c0_i32_1, %c0_i32_2 : i32, i32, i32, i32
  }
  func.func @transform_2(%arg0: i32) -> (i32, i32, i32) {
    %c0_i32 = arith.constant 0 : i32
    %c0_i32_0 = arith.constant 0 : i32
    %c0_i32_1 = arith.constant 0 : i32
    %c0_i32_2 = arith.constant 0 : i32
    return %c0_i32, %c0_i32_0, %c0_i32_1 : i32, i32, i32
  }
  func.func @transform_3(%arg0: i32) -> (i32, i32, i32) {
    %c0_i32 = arith.constant 0 : i32
    %c0_i32_0 = arith.constant 0 : i32
    %c0_i32_1 = arith.constant 0 : i32
    %c0_i32_2 = arith.constant 0 : i32
    return %c0_i32, %c0_i32_0, %c0_i32_1 : i32, i32, i32
  }
  func.func @transform_4(%arg0: i32) -> (i32, i32, i32) {
    %c0_i32 = arith.constant 0 : i32
    %c0_i32_0 = arith.constant 0 : i32
    %c0_i32_1 = arith.constant 0 : i32
    return %arg0, %c0_i32, %c0_i32_0 : i32, i32, i32
  }
}

</mosaic_0001>

<llo_original>
// kernel: mtca_capsnet_forward.2
$region0: #{mtca_capsnet_forward.2}
  #allocation0 [shape = 'u32[]', space=smem, size = 0x4, offset = 0x4, fixed_abs, tag = 'smem constant byte address 0x4 - core index']
  #allocation1 [shape = 'u32[144,128]{1,0:T(1,128)}', space=vmem, size = 0x12000, scoped, tag = 'internal scratch']
  %s0 = inlined_call_operand.vmem [shape: f32[2,4,64], index: 0, kind: input, shape index: {}]
  %s1 = inlined_call_operand.vmem [shape: f32[4,4], index: 1, kind: input, shape index: {}]
  %s2 = inlined_call_operand.vmem [shape: f32[4,1], index: 2, kind: input, shape index: {}]
  %s3 = inlined_call_operand.vmem [shape: f32[64,448], index: 3, kind: input, shape index: {}]
  %s4 = inlined_call_operand.vmem [shape: f32[1,448], index: 4, kind: input, shape index: {}]
  %s5 = inlined_call_operand.vmem [shape: f32[448,96], index: 5, kind: input, shape index: {}]
  %s6 = inlined_call_operand.vmem [shape: f32[1,96], index: 6, kind: input, shape index: {}]
  %s7 = inlined_call_operand.vmem [shape: f32[2,4,96], index: 7, kind: output, shape index: {}]
  %s8 = sld [smem:[#allocation0]]
  $region61: #{mtca_capsnet_forward.2} parent=0
    _
  %s10 = ssub.s32 1, %s8
  %s11 = scalar_select 0, %s10, %s8
  loop: start=0, step=1, limit=4
  $region2: #{mtca_capsnet_forward.2} parent=0 // loop_pre_header
    _
  $region3: #{mtca_capsnet_forward.2} parent=0 // loop_header
    %s13 = sphi 0, %s17
    %p14 = scmp.ge.s32.totalorder %s13, 4
    %s23 = sphi 0, %s25
    %s26 = sphi 0, %s23
    %s27 = sphi 0, %s26
    %s43 = sphi 0, %s27
    %s47 = sphi 0, %s47
    %s49 = sphi 0, %s47
    %s50 = sphi 0, %s49
    %s64 = sphi 0, %s50
    %s68 = sphi 0, %s68
    %s70 = sphi 0, %s68
    %s71 = sphi 0, %s70
    %s85 = sphi 0, %s71
    %s89 = sphi 0, %s89
    %s91 = sphi 0, %s89
    %s92 = sphi 0, %s91
    %s106 = sphi 0, %s92
    %s110 = sphi 0, %s110
    %s112 = sphi 0, %s110
    %s113 = sphi 0, %s112
    %s127 = sphi 0, %s113
    %s131 = sphi 0, %s131
    %s133 = sphi 0, %s131
    %s134 = sphi 0, %s133
    %s148 = sphi 0, %s134
    %s152 = sphi 0, %s152
    %s154 = sphi 0, %s152
    %s155 = sphi 0, %s154
    %s169 = sphi 0, %s155
    %s175 = sphi 0, %s177
    %s178 = sphi 0, %s175
    %s179 = sphi 0, %s178
    %s195 = sphi 0, %s179
  $region4: #{mtca_capsnet_forward.2} parent=0 // loop_header_branch
    %16 = sbr.rel (%p14) target = $region8
  $region5: #{mtca_capsnet_forward.2} parent=0 // loop_body
    %s18 = ssub.s32 %s13, 1
    %s19 = ssub.s32 %s13, 2
    %s20 = sadd.s32 %s13, 1
    %s21 = ssub.s32 %s13, %s20
    %p22 = scmp.eq.s32.totalorder %s21, 0
    %s24 = sadd.s32 %s23, 1
    %s25 = scalar_select %p22, %s23, %s24
    %p28 = pneg %p22
    %p29 = scmp.eq.s32.totalorder %s13, 1
    %p30 = por %p28, %p29
    %p31 = scmp.ne.s32.totalorder %s23, %s26
    %p32 = scmp.eq.s32.totalorder %s13, 0
    %p33 = por %p31, %p32
    %p34 = scmp.ne.s32.totalorder %s23, %s26
    %p35 = scmp.eq.s32.totalorder %s18, 1
    %p36 = por %p34, %p35
    %p37 = scmp.ne.s32.totalorder %s26, %s27
    %p38 = scmp.eq.s32.totalorder %s18, 0
    %p39 = por %p37, %p38
    %p40 = scmp.ne.s32.totalorder %s26, %s27
    %p41 = scmp.eq.s32.totalorder %s19, 1
    %p42 = por %p40, %p41
    %p44 = scmp.ne.s32.totalorder %s27, %s43
    %p45 = scmp.eq.s32.totalorder %s19, 0
    %p46 = por %p44, %p45
    %s48 = sadd.s32 %s47, 1
    %p51 = scmp.eq.s32.totalorder %s13, 1
    %p52 = scmp.ne.s32.totalorder %s47, %s49
    %p53 = scmp.eq.s32.totalorder %s13, 0
    %p54 = por %p52, %p53
    %p55 = scmp.ne.s32.totalorder %s47, %s49
    %p56 = scmp.eq.s32.totalorder %s18, 1
    %p57 = por %p55, %p56
    %p58 = scmp.ne.s32.totalorder %s49, %s50
    %p59 = scmp.eq.s32.totalorder %s18, 0
    %p60 = por %p58, %p59
    %p61 = scmp.ne.s32.totalorder %s49, %s50
    %p62 = scmp.eq.s32.totalorder %s19, 1
    %p63 = por %p61, %p62
    %p65 = scmp.ne.s32.totalorder %s50, %s64
    %p66 = scmp.eq.s32.totalorder %s19, 0
    %p67 = por %p65, %p66
    %s69 = sadd.s32 %s68, 1
    %p72 = scmp.eq.s32.totalorder %s13, 1
    %p73 = scmp.ne.s32.totalorder %s68, %s70
    %p74 = scmp.eq.s32.totalorder %s13, 0
    %p75 = por %p73, %p74
    %p76 = scmp.ne.s32.totalorder %s68, %s70
    %p77 = scmp.eq.s32.totalorder %s18, 1
    %p78 = por %p76, %p77
    %p79 = scmp.ne.s32.totalorder %s70, %s71
    %p80 = scmp.eq.s32.totalorder %s18, 0
    %p81 = por %p79, %p80
    %p82 = scmp.ne.s32.totalorder %s70, %s71
    %p83 = scmp.eq.s32.totalorder %s19, 1
    %p84 = por %p82, %p83
    %p86 = scmp.ne.s32.totalorder %s71, %s85
    %p87 = scmp.eq.s32.totalorder %s19, 0
    %p88 = por %p86, %p87
    %s90 = sadd.s32 %s89, 1
    %p93 = scmp.eq.s32.totalorder %s13, 1
    %p94 = scmp.ne.s32.totalorder %s89, %s91
    %p95 = scmp.eq.s32.totalorder %s13, 0
    %p96 = por %p94, %p95
    %p97 = scmp.ne.s32.totalorder %s89, %s91
    %p98 = scmp.eq.s32.totalorder %s18, 1
    %p99 = por %p97, %p98
    %p100 = scmp.ne.s32.totalorder %s91, %s92
    %p101 = scmp.eq.s32.totalorder %s18, 0
    %p102 = por %p100, %p101
    %p103 = scmp.ne.s32.totalorder %s91, %s92
    %p104 = scmp.eq.s32.totalorder %s19, 1
    %p105 = por %p103, %p104
    %p107 = scmp.ne.s32.totalorder %s92, %s106
    %p108 = scmp.eq.s32.totalorder %s19, 0
    %p109 = por %p107, %p108
    %s111 = sadd.s32 %s110, 1
    %p114 = scmp.eq.s32.totalorder %s13, 1
    %p115 = scmp.ne.s32.totalorder %s110, %s112
    %p116 = scmp.eq.s32.totalorder %s13, 0
    %p117 = por %p115, %p116
    %p118 = scmp.ne.s32.totalorder %s110, %s112
    %p119 = scmp.eq.s32.totalorder %s18, 1
    %p120 = por %p118, %p119
    %p121 = scmp.ne.s32.totalorder %s112, %s113
    %p122 = scmp.eq.s32.totalorder %s18, 0
    %p123 = por %p121, %p122
    %p124 = scmp.ne.s32.totalorder %s112, %s113
    %p125 = scmp.eq.s32.totalorder %s19, 1
    %p126 = por %p124, %p125
    %p128 = scmp.ne.s32.totalorder %s113, %s127
    %p129 = scmp.eq.s32.totalorder %s19, 0
    %p130 = por %p128, %p129
    %s132 = sadd.s32 %s131, 1
    %p135 = scmp.eq.s32.totalorder %s13, 1
    %p136 = scmp.ne.s32.totalorder %s131, %s133
    %p137 = scmp.eq.s32.totalorder %s13, 0
    %p138 = por %p136, %p137
    %p139 = scmp.ne.s32.totalorder %s131, %s133
    %p140 = scmp.eq.s32.totalorder %s18, 1
    %p141 = por %p139, %p140
    %p142 = scmp.ne.s32.totalorder %s133, %s134
    %p143 = scmp.eq.s32.totalorder %s18, 0
    %p144 = por %p142, %p143
    %p145 = scmp.ne.s32.totalorder %s133, %s134
    %p146 = scmp.eq.s32.totalorder %s19, 1
    %p147 = por %p145, %p146
    %p149 = scmp.ne.s32.totalorder %s134, %s148
    %p150 = scmp.eq.s32.totalorder %s19, 0
    %p151 = por %p149, %p150
    %s153 = sadd.s32 %s152, 1
    %p156 = scmp.eq.s32.totalorder %s13, 1
    %p157 = scmp.ne.s32.totalorder %s152, %s154
    %p158 = scmp.eq.s32.totalorder %s13, 0
    %p159 = por %p157, %p158
    %p160 = scmp.ne.s32.totalorder %s152, %s154
    %p161 = scmp.eq.s32.totalorder %s18, 1
    %p162 = por %p160, %p161
    %p163 = scmp.ne.s32.totalorder %s154, %s155
    %p164 = scmp.eq.s32.totalorder %s18, 0
    %p165 = por %p163, %p164
    %p166 = scmp.ne.s32.totalorder %s154, %s155
    %p167 = scmp.eq.s32.totalorder %s19, 1
    %p168 = por %p166, %p167
    %p170 = scmp.ne.s32.totalorder %s155, %s169
    %p171 = scmp.eq.s32.totalorder %s19, 0
    %p172 = por %p170, %p171
    %s173 = ssub.s32 %s13, %s20
    %p174 = scmp.eq.s32.totalorder %s173, 0
    %s176 = sadd.s32 %s175, 1
    %s177 = scalar_select %p174, %s175, %s176
    %p180 = pneg %p174
    %p181 = scmp.eq.s32.totalorder %s13, 1
    %p182 = por %p180, %p181
    %p183 = scmp.ne.s32.totalorder %s175, %s178
    %p184 = scmp.eq.s32.totalorder %s13, 0
    %p185 = por %p183, %p184
    %p186 = scmp.ne.s32.totalorder %s175, %s178
    %p187 = scmp.eq.s32.totalorder %s18, 1
    %p188 = por %p186, %p187
    %p189 = scmp.ne.s32.totalorder %s178, %s179
    %p190 = scmp.eq.s32.totalorder %s18, 0
    %p191 = por %p189, %p190
    %p192 = scmp.ne.s32.totalorder %s178, %s179
    %p193 = scmp.eq.s32.totalorder %s19, 1
    %p194 = por %p192, %p193
    %p196 = scmp.ne.s32.totalorder %s179, %s195
    %p197 = scmp.eq.s32.totalorder %s19, 0
    %p198 = por %p196, %p197
    %p199 = scmp.le.s32.totalorder 1, %s13
    %p200 = scmp.lt.s32.totalorder %s13, 3
    %p201 = pnand %p199, %p200
    %p202 = pneg %p201
    // Predicated region
    $region9: #{mtca_capsnet_forward.2} parent=5 // pred_check
      _
    $region10: #{mtca_capsnet_forward.2} parent=5 // pred_check_branch
      %204 = sbr.rel (%p201) target = $region12
    $region11: #{mtca_capsnet_forward.2} parent=5 // pred_region
      %s205 = ssub.s32 %s13, 1
      // Predicated region
      $region13: #{mtca_capsnet_forward.2} parent=11 // pred_check
        %p206 = pneg %p60
      $region14: #{mtca_capsnet_forward.2} parent=11 // pred_check_branch
        %208 = sbr.rel (%p206) target = $region16
      $region15: #{mtca_capsnet_forward.2} parent=11 // pred_region
        _
      $region16: #{mtca_capsnet_forward.2} parent=11 // pred_fallthru
        _
      // Predicated region
      $region17: #{mtca_capsnet_forward.2} parent=11 // pred_check
        %p209 = pneg %p81
      $region18: #{mtca_capsnet_forward.2} parent=11 // pred_check_branch
        %211 = sbr.rel (%p209) target = $region20
      $region19: #{mtca_capsnet_forward.2} parent=11 // pred_region
        _
      $region20: #{mtca_capsnet_forward.2} parent=11 // pred_fallthru
        _
      // Predicated region
      $region21: #{mtca_capsnet_forward.2} parent=11 // pred_check
        %p212 = pneg %p102
      $region22: #{mtca_capsnet_forward.2} parent=11 // pred_check_branch
        %214 = sbr.rel (%p212) target = $region24
      $region23: #{mtca_capsnet_forward.2} parent=11 // pred_region
        _
      $region24: #{mtca_capsnet_forward.2} parent=11 // pred_fallthru
        _
      // Predicated region
      $region25: #{mtca_capsnet_forward.2} parent=11 // pred_check
        %p215 = pneg %p123
      $region26: #{mtca_capsnet_forward.2} parent=11 // pred_check_branch
        %217 = sbr.rel (%p215) target = $region28
      $region27: #{mtca_capsnet_forward.2} parent=11 // pred_region
        _
      $region28: #{mtca_capsnet_forward.2} parent=11 // pred_fallthru
        _
      // Predicated region
      $region29: #{mtca_capsnet_forward.2} parent=11 // pred_check
        %p218 = pneg %p144
      $region30: #{mtca_capsnet_forward.2} parent=11 // pred_check_branch
        %220 = sbr.rel (%p218) target = $region32
      $region31: #{mtca_capsnet_forward.2} parent=11 // pred_region
        _
      $region32: #{mtca_capsnet_forward.2} parent=11 // pred_fallthru
        _
      // Predicated region
      $region33: #{mtca_capsnet_forward.2} parent=11 // pred_check
        %p221 = pneg %p165
      $region34: #{mtca_capsnet_forward.2} parent=11 // pred_check_branch
        %223 = sbr.rel (%p221) target = $region36
      $region35: #{mtca_capsnet_forward.2} parent=11 // pred_region
        _
      $region36: #{mtca_capsnet_forward.2} parent=11 // pred_fallthru
        _
    $region12: #{mtca_capsnet_forward.2} parent=5 // pred_fallthru
      _
    %p224 = scmp.lt.s32.totalorder %s13, 2
    // Predicated region
    $region37: #{mtca_capsnet_forward.2} parent=5 // pred_check
      %p225 = pneg %p224
    $region38: #{mtca_capsnet_forward.2} parent=5 // pred_check_branch
      %227 = sbr.rel (%p225) target = $region40
    $region39: #{mtca_capsnet_forward.2} parent=5 // pred_region
      // Predicated region
      $region41: #{mtca_capsnet_forward.2} parent=39 // pred_check
        %p228 = pneg %p33
      $region42: #{mtca_capsnet_forward.2} parent=39 // pred_check_branch
        %230 = sbr.rel (%p228) target = $region44
      $region43: #{mtca_capsnet_forward.2} parent=39 // pred_region
        %p231 = scmp.lt.s32.totalorder %s13, 1
        %s232 = scalar_select %p231, %s13, 1
        %s233 = smul.addr %s232, 4
        %s234 = scalar_lea.vmem %s0, %s233
      $region44: #{mtca_capsnet_forward.2} parent=39 // pred_fallthru
        _
    $region40: #{mtca_capsnet_forward.2} parent=5 // pred_fallthru
      _
    %p235 = scmp.le.s32.totalorder 1, %s13
    %p236 = scmp.lt.s32.totalorder %s13, 3
    %p237 = pnand %p235, %p236
    %p238 = pneg %p237
    // Predicated region
    $region45: #{mtca_capsnet_forward.2} parent=5 // pred_check
      _
    $region46: #{mtca_capsnet_forward.2} parent=5 // pred_check_branch
      %240 = sbr.rel (%p237) target = $region48
    $region47: #{mtca_capsnet_forward.2} parent=5 // pred_region
      %s241 = ssub.s32 %s13, 1
      %p242 = scmp.lt.s32.totalorder %s18, 1
      %s243 = scalar_select %p242, %s18, 1
      %s244 = smul.addr %s243, 4
      %s245 = scalar_lea.vmem %s0, %s244
      %p246 = pneg %p39
      %p247 = pneg %p36
      %p248 = pneg %p60
      %p249 = pneg %p57
      %p250 = pneg %p81
      %p251 = pneg %p78
      %p252 = pneg %p102
      %p253 = pneg %p99
      %p254 = pneg %p123
      %p255 = pneg %p120
      %p256 = pneg %p144
      %p257 = pneg %p141
      %p258 = pneg %p165
      %p259 = pneg %p162
      %p260 = pneg %p191
      %p261 = pneg %p188
      %p262 = scmp.lt.s32.totalorder %s18, 1
      %s263 = scalar_select %p262, %s18, 1
      %s264 = smul.addr %s263, 4
      %s265 = scalar_lea.vmem %s7, %s264
      %p266 = scmp.lt.s32.totalorder %s18, 1
      %s267 = scalar_select %p266, %s18, 1
      %s268 = smul.addr %s267, 4
      %s269 = scalar_lea.vmem %s0, %s268
      %p270 = scmp.lt.s32.totalorder %s18, 1
      %s271 = scalar_select %p270, %s18, 1
      %s272 = smul.addr %s271, 4
      %s273 = scalar_lea.vmem %s7, %s272
      %v274 = vld [vmem:[%s269] sm:$0xf]
      %vm275 = vcmask 519168
      %v276 = vsel %vm275, %v274, -inf
      %277 = vmax.xlane.f32.xlu0 %v276
      %v278 = vpop.xlane.xlu0 %277
      %v279 = vsel %vm275, %v274, 0.0
      %280 = vadd.xlane.f32.xlu0 %v279
      %v281 = vpop.xlane.xlu0 %280
      %v282 = vrcp.pop 64.0
      %v283 = vmul.f32 %v281, %v282
      %v284 = vld [vmem:[%s1] sm:$0xf]
      %v285 = vadd.f32 %v278, %v283
      %v286 = vld [vmem:[%s2] sm:$0xf]
      %v287 = vmul.f32 %v286, 2.0
      %vm288 = vcmask 31744
      %v290 = vsel %vm288, %v284, 0
      %vm292 = vcmask 1043456
      %v294 = vsel %vm292, %v285, 0
      %296 = vmatprep.subr.mxu0 0.0
      %297 = vmatpush1.msra.mxu0 %v294
      %298 = vmatprep.subr.mxu0 0.0
      %299 = vmatpush1.msra.mxu0 0.0
      %300 = vmatprep.subr.mxu0 0.0
      %301 = vmatpush1.msra.mxu0 0.0
      %302 = vmatprep.subr.mxu0 0.0
      %303 = vmatpush1.msra.mxu0 0.0
      %304 = vmatprep.subr.mxu0 0.0
      %305 = vmatpush1.msra.mxu0 0.0
      %306 = vmatprep.subr.mxu0 0.0
      %307 = vmatpush1.msra.mxu0 0.0
      %308 = vmatprep.subr.mxu0 0.0
      %309 = vmatpush1.msra.mxu0 0.0
      %310 = vmatprep.subr.mxu0 0.0
      %311 = vmatpush1.msra.mxu0 0.0
      %312 = vmatprep.subr.mxu0 0.0
      %313 = vmatpush1.msra.mxu0 0.0
      %314 = vmatprep.subr.mxu0 0.0
      %315 = vmatpush1.msra.mxu0 0.0
      %316 = vmatprep.subr.mxu0 0.0
      %317 = vmatpush1.msra.mxu0 0.0
      %318 = vmatprep.subr.mxu0 0.0
      %319 = vmatpush1.msra.mxu0 0.0
      %320 = vmatprep.subr.mxu0 0.0
      %321 = vmatpush1.msra.mxu0 0.0
      %322 = vmatprep.subr.mxu0 0.0
      %323 = vmatpush1.msra.mxu0 0.0
      %324 = vmatprep.subr.mxu0 0.0
      %325 = vmatpush1.msra.mxu0 0.0
      %326 = vmatprep.subr.mxu0 0.0
      %327 = vmatpush1.msra.mxu0 0.0
      %328 = vmatprep.subr.mxu0 0.0
      %329 = vmatpush1.msra.mxu0 0.0
      %330 = vmatprep.subr.mxu0 0.0
      %331 = vmatpush1.msra.mxu0 0.0
      %332 = vmatprep.subr.mxu0 0.0
      %333 = vmatpush1.msra.mxu0 0.0
      %334 = vmatprep.subr.mxu0 0.0
      %335 = vmatpush1.msra.mxu0 0.0
      %336 = vmatprep.subr.mxu0 0.0
      %337 = vmatpush1.msra.mxu0 0.0
      %338 = vmatprep.subr.mxu0 0.0
      %339 = vmatpush1.msra.mxu0 0.0
      %340 = vmatprep.subr.mxu0 0.0
      %341 = vmatpush1.msra.mxu0 0.0
      %342 = vmatprep.subr.mxu0 0.0
      %343 = vmatpush1.msra.mxu0 0.0
      %344 = vmatprep.subr.mxu0 0.0
      %345 = vmatpush1.msra.mxu0 0.0
      %346 = vmatprep.subr.mxu0 0.0
      %347 = vmatpush1.msra.mxu0 0.0
      %348 = vmatprep.subr.mxu0 0.0
      %349 = vmatpush1.msra.mxu0 0.0
      %350 = vmatprep.subr.mxu0 0.0
      %351 = vmatpush1.msra.mxu0 0.0
      %352 = vmatprep.subr.mxu0 0.0
      %353 = vmatpush1.msra.mxu0 0.0
      %354 = vmatprep.subr.mxu0 0.0
      %355 = vmatpush1.msra.mxu0 0.0
      %356 = vmatprep.subr.mxu0 0.0
      %357 = vmatpush1.msra.mxu0 0.0
      %358 = vmatprep.subr.mxu0 0.0
      %359 = vmatpush1.msra.mxu0 0.0
      %360 = vmatprep.mubr.f32.mxu0 0.0
      %361 = vmatmul.mubr.f32.gmra.mrb[0].mxu0 %v290
      %v362 = vpop.f32.mrb[0].mxu0
      %v363 = vadd.f32 %v287, %v362
      %v364 = vpop.f32.mrb[0].mxu0
      %365 = vdwg.mxu0
      %v366 = vxor.u32 %v363, 2147483648
      %v367 = vmul.f32 %v366, 1.442695
      %v368 = vpow.pop %v367
      %v369 = vadd.f32 %v368, 1.0
      %v370 = vrcp.pop %v369
      %v371 = vmul.f32 1.0, %v370
      %373 = vset.pattern.permute.xlu0 0
      %374 = vperm.xlu0 %373, %v371
      %v375 = vpop.permute.xlu0 %374
      %v377 = vmul.f32 %v274, %v375
      %v378 = vld [vmem:[%s3] sm:$0xff]
      %v379 = vld [vmem:[%s3 + $0x8] sm:$0xff]
      %v380 = vld [vmem:[%s3 + $0x10] sm:$0xff]
      %v381 = vld [vmem:[%s3 + $0x18] sm:$0xff]
      %v382 = vld [vmem:[%s3 + $0x20] sm:$0xff]
      %v383 = vld [vmem:[%s3 + $0x28] sm:$0xff]
      %v384 = vld [vmem:[%s3 + $0x30] sm:$0xff]
      %v385 = vld [vmem:[%s3 + $0x38] sm:$0xff]
      %v386 = vld [vmem:[%s3 + $0x40] sm:$0xff]
      %v387 = vld [vmem:[%s3 + $0x48] sm:$0xff]
      %v388 = vld [vmem:[%s3 + $0x50] sm:$0xff]
      %v389 = vld [vmem:[%s3 + $0x58] sm:$0xff]
      %v390 = vld [vmem:[%s3 + $0x60] sm:$0xff]
      %v391 = vld [vmem:[%s3 + $0x68] sm:$0xff]
      %v392 = vld [vmem:[%s3 + $0x70] sm:$0xff]
      %v393 = vld [vmem:[%s3 + $0x78] sm:$0xff]
      %v394 = vld [vmem:[%s3 + $0x80] sm:$0xff]
      %v395 = vld [vmem:[%s3 + $0x88] sm:$0xff]
      %v396 = vld [vmem:[%s3 + $0x90] sm:$0xff]
      %v397 = vld [vmem:[%s3 + $0x98] sm:$0xff]
      %v398 = vld [vmem:[%s3 + $0xa0] sm:$0xff]
      %v399 = vld [vmem:[%s3 + $0xa8] sm:$0xff]
      %v400 = vld [vmem:[%s3 + $0xb0] sm:$0xff]
      %v401 = vld [vmem:[%s3 + $0xb8] sm:$0xff]
      %v402 = vld [vmem:[%s3 + $0xc0] sm:$0xff]
      %v403 = vld [vmem:[%s3 + $0xc8] sm:$0xff]
      %v404 = vld [vmem:[%s3 + $0xd0] sm:$0xff]
      %v405 = vld [vmem:[%s3 + $0xd8] sm:$0xff]
      %v406 = vld [vmem:[%s3 + $0xe0] sm:$0xff]
      %v407 = vld [vmem:[%s3 + $0xe8] sm:$0xff]
      %v408 = vld [vmem:[%s3 + $0xf0] sm:$0xff]
      %v409 = vld [vmem:[%s3 + $0xf8] sm:$0xff]
      %v410 = vld [vmem:[%s4] sm:$0xf]
      %v412 = vlaneseq
      %v413 = vshrl.u32 %v412, 7
      %v414 = vsub.s32 0, %v413
      %v415 = vrot.slane %v410, %v414
      %v416 = vlaneseq
      %v417 = vshrl.u32 %v416, 7
      %v418 = vsub.s32 1, %v417
      %v419 = vrot.slane %v410, %v418
      %v420 = vlaneseq
      %v421 = vshrl.u32 %v420, 7
      %v422 = vsub.s32 2, %v421
      %v423 = vrot.slane %v410, %v422
      %v424 = vlaneseq
      %v425 = vshrl.u32 %v424, 7
      %v426 = vsub.s32 3, %v425
      %v427 = vrot.slane %v410, %v426
      %vm432 = vcmask 523264
      %v434 = vsel %vm432, %v377, 0
      %436 = vmatprep.subr.mxu0 %v379
      %437 = vmatpush1.msra.mxu0 %v378
      %438 = vmatprep.subr.mxu0 %v383
      %439 = vmatpush1.msra.mxu0 %v382
      %440 = vmatprep.subr.mxu0 %v387
      %441 = vmatpush1.msra.mxu0 %v386
      %442 = vmatprep.subr.mxu0 %v391
      %443 = vmatpush1.msra.mxu0 %v390
      %444 = vmatprep.subr.mxu0 %v395
      %445 = vmatpush1.msra.mxu0 %v394
      %446 = vmatprep.subr.mxu0 %v399
      %447 = vmatpush1.msra.mxu0 %v398
      %448 = vmatprep.subr.mxu0 %v403
      %449 = vmatpush1.msra.mxu0 %v402
      %450 = vmatprep.subr.mxu0 %v407
      %451 = vmatpush1.msra.mxu0 %v406
      %452 = vmatprep.subr.mxu0 0.0
      %453 = vmatpush1.msra.mxu0 0.0
      %454 = vmatprep.subr.mxu0 0.0
      %455 = vmatpush1.msra.mxu0 0.0
      %456 = vmatprep.subr.mxu0 0.0
      %457 = vmatpush1.msra.mxu0 0.0
      %458 = vmatprep.subr.mxu0 0.0
      %459 = vmatpush1.msra.mxu0 0.0
      %460 = vmatprep.subr.mxu0 0.0
      %461 = vmatpush1.msra.mxu0 0.0
      %462 = vmatprep.subr.mxu0 0.0
      %463 = vmatpush1.msra.mxu0 0.0
      %464 = vmatprep.subr.mxu0 0.0
      %465 = vmatpush1.msra.mxu0 0.0
      %466 = vmatprep.subr.mxu0 0.0
      %467 = vmatpush1.msra.mxu0 0.0
      %468 = vmatprep.subr.mxu0 0.0
      %469 = vmatpush1.msra.mxu0 0.0
      %470 = vmatprep.subr.mxu0 0.0
      %471 = vmatpush1.msra.mxu0 0.0
      %472 = vmatprep.subr.mxu0 0.0
      %473 = vmatpush1.msra.mxu0 0.0
      %474 = vmatprep.subr.mxu0 0.0
      %475 = vmatpush1.msra.mxu0 0.0
      %476 = vmatprep.subr.mxu0 0.0
      %477 = vmatpush1.msra.mxu0 0.0
      %478 = vmatprep.subr.mxu0 0.0
      %479 = vmatpush1.msra.mxu0 0.0
      %480 = vmatprep.subr.mxu0 0.0
      %481 = vmatpush1.msra.mxu0 0.0
      %482 = vmatprep.subr.mxu0 0.0
      %483 = vmatpush1.msra.mxu0 0.0
      %484 = vmatprep.subr.mxu0 0.0
      %485 = vmatpush1.msra.mxu0 0.0
      %486 = vmatprep.subr.mxu0 0.0
      %487 = vmatpush1.msra.mxu0 0.0
      %488 = vmatprep.subr.mxu0 0.0
      %489 = vmatpush1.msra.mxu0 0.0
      %490 = vmatprep.subr.mxu0 0.0
      %491 = vmatpush1.msra.mxu0 0.0
      %492 = vmatprep.subr.mxu0 0.0
      %493 = vmatpush1.msra.mxu0 0.0
      %494 = vmatprep.subr.mxu0 0.0
      %495 = vmatpush1.msra.mxu0 0.0
      %496 = vmatprep.subr.mxu0 0.0
      %497 = vmatpush1.msra.mxu0 0.0
      %498 = vmatprep.subr.mxu0 0.0
      %499 = vmatpush1.msra.mxu0 0.0
      %500 = vmatprep.mubr.f32.mxu0 0.0
      %501 = vmatmul.mubr.f32.gmra.mrb[0].mxu0 %v434
      %v502 = vpop.f32.mrb[0].mxu0
      %v503 = vadd.f32 %v415, %v502
      %v504 = vpop.f32.mrb[0].mxu0
      %v505 = vadd.f32 %v419, %v504
      %506 = vdwg.mxu0
      %507 = vmatprep.subr.mxu0 %v381
      %508 = vmatpush1.msra.mxu0 %v380
      %509 = vmatprep.subr.mxu0 %v385
      %510 = vmatpush1.msra.mxu0 %v384
      %511 = vmatprep.subr.mxu0 %v389
      %512 = vmatpush1.msra.mxu0 %v388
      %513 = vmatprep.subr.mxu0 %v393
      %514 = vmatpush1.msra.mxu0 %v392
      %515 = vmatprep.subr.mxu0 %v397
      %516 = vmatpush1.msra.mxu0 %v396
      %517 = vmatprep.subr.mxu0 %v401
      %518 = vmatpush1.msra.mxu0 %v400
      %519 = vmatprep.subr.mxu0 %v405
      %520 = vmatpush1.msra.mxu0 %v404
      %521 = vmatprep.subr.mxu0 %v409
      %522 = vmatpush1.msra.mxu0 %v408
      %523 = vmatprep.subr.mxu0 0.0
      %524 = vmatpush1.msra.mxu0 0.0
      %525 = vmatprep.subr.mxu0 0.0
      %526 = vmatpush1.msra.mxu0 0.0
      %527 = vmatprep.subr.mxu0 0.0
      %528 = vmatpush1.msra.mxu0 0.0
      %529 = vmatprep.subr.mxu0 0.0
      %530 = vmatpush1.msra.mxu0 0.0
      %531 = vmatprep.subr.mxu0 0.0
      %532 = vmatpush1.msra.mxu0 0.0
      %533 = vmatprep.subr.mxu0 0.0
      %534 = vmatpush1.msra.mxu0 0.0
      %535 = vmatprep.subr.mxu0 0.0
      %536 = vmatpush1.msra.mxu0 0.0
      %537 = vmatprep.subr.mxu0 0.0
      %538 = vmatpush1.msra.mxu0 0.0
      %539 = vmatprep.subr.mxu0 0.0
      %540 = vmatpush1.msra.mxu0 0.0
      %541 = vmatprep.subr.mxu0 0.0
      %542 = vmatpush1.msra.mxu0 0.0
      %543 = vmatprep.subr.mxu0 0.0
      %544 = vmatpush1.msra.mxu0 0.0
      %545 = vmatprep.subr.mxu0 0.0
      %546 = vmatpush1.msra.mxu0 0.0
      %547 = vmatprep.subr.mxu0 0.0
      %548 = vmatpush1.msra.mxu0 0.0
      %549 = vmatprep.subr.mxu0 0.0
      %550 = vmatpush1.msra.mxu0 0.0
      %551 = vmatprep.subr.mxu0 0.0
      %552 = vmatpush1.msra.mxu0 0.0
      %553 = vmatprep.subr.mxu0 0.0
      %554 = vmatpush1.msra.mxu0 0.0
      %555 = vmatprep.subr.mxu0 0.0
      %556 = vmatpush1.msra.mxu0 0.0
      %557 = vmatprep.subr.mxu0 0.0
      %558 = vmatpush1.msra.mxu0 0.0
      %559 = vmatprep.subr.mxu0 0.0
      %560 = vmatpush1.msra.mxu0 0.0
      %561 = vmatprep.subr.mxu0 0.0
      %562 = vmatpush1.msra.mxu0 0.0
      %563 = vmatprep.subr.mxu0 0.0
      %564 = vmatpush1.msra.mxu0 0.0
      %565 = vmatprep.subr.mxu0 0.0
      %566 = vmatpush1.msra.mxu0 0.0
      %567 = vmatprep.subr.mxu0 0.0
      %568 = vmatpush1.msra.mxu0 0.0
      %569 = vmatprep.subr.mxu0 0.0
      %570 = vmatpush1.msra.mxu0 0.0
      %571 = vmatprep.mubr.f32.mxu0 0.0
      %572 = vmatmul.mubr.f32.gmra.mrb[0].mxu0 %v434
      %v573 = vpop.f32.mrb[0].mxu0
      %v574 = vadd.f32 %v423, %v573
      %v575 = vpop.f32.mrb[0].mxu0
      %v576 = vadd.f32 %v427, %v575
      %577 = vdwg.mxu0
      %vm578 = vcmp.gt.f32.partialorder %v503, 0.0
      %vm579 = vcmp.gt.f32.partialorder %v505, 0.0
      %vm580 = vcmp.gt.f32.partialorder %v574, 0.0
      %vm581 = vcmp.gt.f32.partialorder %v576, 0.0
      %v582 = vmin.f32 %v503, 0.0
      %v583 = vmin.f32 %v505, 0.0
      %v584 = vmin.f32 %v574, 0.0
      %v585 = vmin.f32 %v576, 0.0
      %v586 = vmul.f32 %v582, 1.442695
      %v587 = vpow.pop %v586
      %v588 = vmul.f32 %v583, 1.442695
      %v589 = vpow.pop %v588
      %v590 = vmul.f32 %v584, 1.442695
      %v591 = vpow.pop %v590
      %v592 = vmul.f32 %v585, 1.442695
      %v593 = vpow.pop %v592
      %v594 = vsub.f32 %v587, 1.0
      %v595 = vsub.f32 %v589, 1.0
      %v596 = vsub.f32 %v591, 1.0
      %v597 = vsub.f32 %v593, 1.0
      %v598 = vsel %vm578, %v503, %v594
      %v599 = vsel %vm579, %v505, %v595
      %v600 = vsel %vm580, %v574, %v596
      %v601 = vsel %vm581, %v576, %v597
      %v602 = vld [vmem:[%s5] sm:$0xff]
      %v603 = vld [vmem:[%s5 + $0x8] sm:$0xff]
      %v604 = vld [vmem:[%s5 + $0x10] sm:$0xff]
      %v605 = vld [vmem:[%s5 + $0x18] sm:$0xff]
      %v606 = vld [vmem:[%s5 + $0x20] sm:$0xff]
      %v607 = vld [vmem:[%s5 + $0x28] sm:$0xff]
      %v608 = vld [vmem:[%s5 + $0x30] sm:$0xff]
      %v609 = vld [vmem:[%s5 + $0x38] sm:$0xff]
      %v610 = vld [vmem:[%s5 + $0x40] sm:$0xff]
      %v611 = vld [vmem:[%s5 + $0x48] sm:$0xff]
      %v612 = vld [vmem:[%s5 + $0x50] sm:$0xff]
      %v613 = vld [vmem:[%s5 + $0x58] sm:$0xff]
      %v614 = vld [vmem:[%s5 + $0x60] sm:$0xff]
      %v615 = vld [vmem:[%s5 + $0x68] sm:$0xff]
      %v616 = vld [vmem:[%s5 + $0x70] sm:$0xff]
      %v617 = vld [vmem:[%s5 + $0x78] sm:$0xff]
      %v618 = vld [vmem:[%s5 + $0x80] sm:$0xff]
      %v619 = vld [vmem:[%s5 + $0x88] sm:$0xff]
      %v620 = vld [vmem:[%s5 + $0x90] sm:$0xff]
      %v621 = vld [vmem:[%s5 + $0x98] sm:$0xff]
      %v622 = vld [vmem:[%s5 + $0xa0] sm:$0xff]
      %v623 = vld [vmem:[%s5 + $0xa8] sm:$0xff]
      %v624 = vld [vmem:[%s5 + $0xb0] sm:$0xff]
      %v625 = vld [vmem:[%s5 + $0xb8] sm:$0xff]
      %v626 = vld [vmem:[%s5 + $0xc0] sm:$0xff]
      %v627 = vld [vmem:[%s5 + $0xc8] sm:$0xff]
      %v628 = vld [vmem:[%s5 + $0xd0] sm:$0xff]
      %v629 = vld [vmem:[%s5 + $0xd8] sm:$0xff]
      %v630 = vld [vmem:[%s5 + $0xe0] sm:$0xff]
      %v631 = vld [vmem:[%s5 + $0xe8] sm:$0xff]
      %v632 = vld [vmem:[%s5 + $0xf0] sm:$0xff]
      %v633 = vld [vmem:[%s5 + $0xf8] sm:$0xff]
      %v634 = vld [vmem:[%s5 + $0x100] sm:$0xff]
      %v635 = vld [vmem:[%s5 + $0x108] sm:$0xff]
      %v636 = vld [vmem:[%s5 + $0x110] sm:$0xff]
      %v637 = vld [vmem:[%s5 + $0x118] sm:$0xff]
      %v638 = vld [vmem:[%s5 + $0x120] sm:$0xff]
      %v639 = vld [vmem:[%s5 + $0x128] sm:$0xff]
      %v640 = vld [vmem:[%s5 + $0x130] sm:$0xff]
      %v641 = vld [vmem:[%s5 + $0x138] sm:$0xff]
      %v642 = vld [vmem:[%s5 + $0x140] sm:$0xff]
      %v643 = vld [vmem:[%s5 + $0x148] sm:$0xff]
      %v644 = vld [vmem:[%s5 + $0x150] sm:$0xff]
      %v645 = vld [vmem:[%s5 + $0x158] sm:$0xff]
      %v646 = vld [vmem:[%s5 + $0x160] sm:$0xff]
      %v647 = vld [vmem:[%s5 + $0x168] sm:$0xff]
      %v648 = vld [vmem:[%s5 + $0x170] sm:$0xff]
      %v649 = vld [vmem:[%s5 + $0x178] sm:$0xff]
      %v650 = vld [vmem:[%s5 + $0x180] sm:$0xff]
      %v651 = vld [vmem:[%s5 + $0x188] sm:$0xff]
      %v652 = vld [vmem:[%s5 + $0x190] sm:$0xff]
      %v653 = vld [vmem:[%s5 + $0x198] sm:$0xff]
      %v654 = vld [vmem:[%s5 + $0x1a0] sm:$0xff]
      %v655 = vld [vmem:[%s5 + $0x1a8] sm:$0xff]
      %v656 = vld [vmem:[%s5 + $0x1b0] sm:$0xff]
      %v657 = vld [vmem:[%s5 + $0x1b8] sm:$0xff]
      %v658 = vld [vmem:[%s6] sm:$0x1]
      %v660 = vlaneseq
      %v661 = vshrl.u32 %v660, 7
      %v662 = vsub.s32 0, %v661
      %v663 = vrot.slane %v658, %v662
      %v666 = vsel %vm432, %v601, 0
      %668 = vmatprep.subr.mxu0 0.0
      %669 = vmatpush1.msra.mxu0 %v602
      %670 = vmatprep.subr.mxu0 0.0
      %671 = vmatpush1.msra.mxu0 %v603
      %672 = vmatprep.subr.mxu0 0.0
      %673 = vmatpush1.msra.mxu0 %v604
      %674 = vmatprep.subr.mxu0 0.0
      %675 = vmatpush1.msra.mxu0 %v605
      %676 = vmatprep.subr.mxu0 0.0
      %677 = vmatpush1.msra.mxu0 %v606
      %678 = vmatprep.subr.mxu0 0.0
      %679 = vmatpush1.msra.mxu0 %v607
      %680 = vmatprep.subr.mxu0 0.0
      %681 = vmatpush1.msra.mxu0 %v608
      %682 = vmatprep.subr.mxu0 0.0
      %683 = vmatpush1.msra.mxu0 %v609
      %684 = vmatprep.subr.mxu0 0.0
      %685 = vmatpush1.msra.mxu0 %v610
      %686 = vmatprep.subr.mxu0 0.0
      %687 = vmatpush1.msra.mxu0 %v611
      %688 = vmatprep.subr.mxu0 0.0
      %689 = vmatpush1.msra.mxu0 %v612
      %690 = vmatprep.subr.mxu0 0.0
      %691 = vmatpush1.msra.mxu0 %v613
      %692 = vmatprep.subr.mxu0 0.0
      %693 = vmatpush1.msra.mxu0 %v614
      %694 = vmatprep.subr.mxu0 0.0
      %695 = vmatpush1.msra.mxu0 %v615
      %696 = vmatprep.subr.mxu0 0.0
      %697 = vmatpush1.msra.mxu0 %v616
      %698 = vmatprep.subr.mxu0 0.0
      %699 = vmatpush1.msra.mxu0 %v617
      %700 = vmatprep.subr.mxu0 0.0
      %701 = vmatpush1.msra.mxu0 %v618
      %702 = vmatprep.subr.mxu0 0.0
      %703 = vmatpush1.msra.mxu0 %v619
      %704 = vmatprep.subr.mxu0 0.0
      %705 = vmatpush1.msra.mxu0 %v620
      %706 = vmatprep.subr.mxu0 0.0
      %707 = vmatpush1.msra.mxu0 %v621
      %708 = vmatprep.subr.mxu0 0.0
      %709 = vmatpush1.msra.mxu0 %v622
      %710 = vmatprep.subr.mxu0 0.0
      %711 = vmatpush1.msra.mxu0 %v623
      %712 = vmatprep.subr.mxu0 0.0
      %713 = vmatpush1.msra.mxu0 %v624
      %714 = vmatprep.subr.mxu0 0.0
      %715 = vmatpush1.msra.mxu0 %v625
      %716 = vmatprep.subr.mxu0 0.0
      %717 = vmatpush1.msra.mxu0 %v626
      %718 = vmatprep.subr.mxu0 0.0
      %719 = vmatpush1.msra.mxu0 %v627
      %720 = vmatprep.subr.mxu0 0.0
      %721 = vmatpush1.msra.mxu0 %v628
      %722 = vmatprep.subr.mxu0 0.0
      %723 = vmatpush1.msra.mxu0 %v629
      %724 = vmatprep.subr.mxu0 0.0
      %725 = vmatpush1.msra.mxu0 %v630
      %726 = vmatprep.subr.mxu0 0.0
      %727 = vmatpush1.msra.mxu0 %v631
      %728 = vmatprep.subr.mxu0 0.0
      %729 = vmatpush1.msra.mxu0 %v632
      %730 = vmatprep.subr.mxu0 0.0
      %731 = vmatpush1.msra.mxu0 %v633
      %732 = vmatprep.mubr.f32.mxu0 %v599
      %733 = vmatmul.mubr.f32.gmra.mrb[0].mxu0 %v598
      %v734 = vpop.f32.mrb[0].mxu0
      %v735 = vadd.f32 %v663, %v734
      %v736 = vpop.f32.mrb[0].mxu0
      %737 = vdwg.mxu0
      %738 = vmatprep.subr.mxu0 0.0
      %739 = vmatpush1.msra.mxu0 %v634
      %740 = vmatprep.subr.mxu0 0.0
      %741 = vmatpush1.msra.mxu0 %v635
      %742 = vmatprep.subr.mxu0 0.0
      %743 = vmatpush1.msra.mxu0 %v636
      %744 = vmatprep.subr.mxu0 0.0
      %745 = vmatpush1.msra.mxu0 %v637
      %746 = vmatprep.subr.mxu0 0.0
      %747 = vmatpush1.msra.mxu0 %v638
      %748 = vmatprep.subr.mxu0 0.0
      %749 = vmatpush1.msra.mxu0 %v639
      %750 = vmatprep.subr.mxu0 0.0
      %751 = vmatpush1.msra.mxu0 %v640
      %752 = vmatprep.subr.mxu0 0.0
      %753 = vmatpush1.msra.mxu0 %v641
      %754 = vmatprep.subr.mxu0 0.0
      %755 = vmatpush1.msra.mxu0 %v642
      %756 = vmatprep.subr.mxu0 0.0
      %757 = vmatpush1.msra.mxu0 %v643
      %758 = vmatprep.subr.mxu0 0.0
      %759 = vmatpush1.msra.mxu0 %v644
      %760 = vmatprep.subr.mxu0 0.0
      %761 = vmatpush1.msra.mxu0 %v645
      %762 = vmatprep.subr.mxu0 0.0
      %763 = vmatpush1.msra.mxu0 %v646
      %764 = vmatprep.subr.mxu0 0.0
      %765 = vmatpush1.msra.mxu0 %v647
      %766 = vmatprep.subr.mxu0 0.0
      %767 = vmatpush1.msra.mxu0 %v648
      %768 = vmatprep.subr.mxu0 0.0
      %769 = vmatpush1.msra.mxu0 %v649
      %770 = vmatprep.subr.mxu0 0.0
      %771 = vmatpush1.msra.mxu0 %v650
      %772 = vmatprep.subr.mxu0 0.0
      %773 = vmatpush1.msra.mxu0 %v651
      %774 = vmatprep.subr.mxu0 0.0
      %775 = vmatpush1.msra.mxu0 %v652
      %776 = vmatprep.subr.mxu0 0.0
      %777 = vmatpush1.msra.mxu0 %v653
      %778 = vmatprep.subr.mxu0 0.0
      %779 = vmatpush1.msra.mxu0 %v654
      %780 = vmatprep.subr.mxu0 0.0
      %781 = vmatpush1.msra.mxu0 %v655
      %782 = vmatprep.subr.mxu0 0.0
      %783 = vmatpush1.msra.mxu0 %v656
      %784 = vmatprep.subr.mxu0 0.0
      %785 = vmatpush1.msra.mxu0 %v657
      %786 = vmatprep.subr.mxu0 0.0
      %787 = vmatpush1.msra.mxu0 0.0
      %788 = vmatprep.subr.mxu0 0.0
      %789 = vmatpush1.msra.mxu0 0.0
      %790 = vmatprep.subr.mxu0 0.0
      %791 = vmatpush1.msra.mxu0 0.0
      %792 = vmatprep.subr.mxu0 0.0
      %793 = vmatpush1.msra.mxu0 0.0
      %794 = vmatprep.subr.mxu0 0.0
      %795 = vmatpush1.msra.mxu0 0.0
      %796 = vmatprep.subr.mxu0 0.0
      %797 = vmatpush1.msra.mxu0 0.0
      %798 = vmatprep.subr.mxu0 0.0
      %799 = vmatpush1.msra.mxu0 0.0
      %800 = vmatprep.subr.mxu0 0.0
      %801 = vmatpush1.msra.mxu0 0.0
      %802 = vmatprep.mubr.f32.mxu0 %v666
      %803 = vmatmul.mubr.f32.gmra.mrb[0].mxu0 %v600
      %v804 = vpop.f32.mrb[0].mxu0
      %v805 = vadd.f32 %v735, %v804
      %v806 = vpop.f32.mrb[0].mxu0
      %807 = vdwg.mxu0
      %vm808 = vcmask 781312
      %809 = vst.msk [vmem:[%s273] sm:$0xf] %vm808, %v805
      %p810 = scmp.lt.s32.totalorder %s18, 1
      %s811 = scalar_select %p810, %s18, 1
      %s812 = smul.addr %s811, 4
      %s813 = scalar_lea.vmem %s7, %s812
      // Predicated region
      $region49: #{mtca_capsnet_forward.2} parent=47 // pred_check
        %p814 = pneg %p188
      $region50: #{mtca_capsnet_forward.2} parent=47 // pred_check_branch
        %816 = sbr.rel (%p814) target = $region52
      $region51: #{mtca_capsnet_forward.2} parent=47 // pred_region
        _
      $region52: #{mtca_capsnet_forward.2} parent=47 // pred_fallthru
        _
    $region48: #{mtca_capsnet_forward.2} parent=5 // pred_fallthru
      _
    %p817 = scmp.le.s32.totalorder 2, %s13
    // Predicated region
    $region53: #{mtca_capsnet_forward.2} parent=5 // pred_check
      %p818 = pneg %p817
    $region54: #{mtca_capsnet_forward.2} parent=5 // pred_check_branch
      %820 = sbr.rel (%p818) target = $region56
    $region55: #{mtca_capsnet_forward.2} parent=5 // pred_region
      %s821 = ssub.s32 %s13, 2
      // Predicated region
      $region57: #{mtca_capsnet_forward.2} parent=55 // pred_check
        %p822 = pneg %p194
      $region58: #{mtca_capsnet_forward.2} parent=55 // pred_check_branch
        %824 = sbr.rel (%p822) target = $region60
      $region59: #{mtca_capsnet_forward.2} parent=55 // pred_region
        %p825 = scmp.lt.s32.totalorder %s19, 1
        %s826 = scalar_select %p825, %s19, 1
        %s827 = smul.addr %s826, 4
        %s828 = scalar_lea.vmem %s7, %s827
      $region60: #{mtca_capsnet_forward.2} parent=55 // pred_fallthru
        _
    $region56: #{mtca_capsnet_forward.2} parent=5 // pred_fallthru
      _
  $region6: #{mtca_capsnet_forward.2} parent=0 // loop_footer
    %s17 = sadd.s32 1, %s13
  $region7: #{mtca_capsnet_forward.2} parent=0 // loop_footer_branch
    %12 = sbr.rel target = $region3
  $region8: #{mtca_capsnet_forward.2} parent=0 // loop_exit
    _

// kernel: mtca_capsnet_forward.3
$region0: #{mtca_capsnet_forward.3}
  #allocation0 [shape = 'u32[]', space=smem, size = 0x4, offset = 0x4, fixed_abs, tag = 'smem constant byte address 0x4 - core index']
  #allocation1 [shape = 'u32[144,128]{1,0:T(1,128)}', space=vmem, size = 0x12000, scoped, tag = 'internal scratch']
  #allocation2 [shape = 'f32[1,1,1]{2,1,0:T(1,128)S(1)}', space=vmem, size = 0x200, scoped, tag = 'scoped memory for mtca_capsnet_forward.3']
  %s0 = inlined_call_operand.vmem [shape: f32[2,8,48], index: 0, kind: input, shape index: {}]
  %s1 = inlined_call_operand.vmem [shape: f32[16,16,8,48], index: 1, kind: input, shape index: {}]
  %s2 = inlined_call_operand.vmem [shape: f32[16,16,1], index: 2, kind: input, shape index: {}]
  %s3 = inlined_call_operand.<no memory space> [shape: f32[1,1,1], index: 3, kind: input, shape index: {}]
  %s4 = inlined_call_operand.vmem [shape: f32[2,1,1], index: 4, kind: output, shape index: {}]
  %s5 = sld [smem:[#allocation0]]
  $region49: #{mtca_capsnet_forward.3} parent=0
    _
  %s7 = ssub.s32 1, %s5
  %s8 = scalar_select 0, %s7, %s5
  %v9 = vstv %s3
  %10 = vst [vmem:[#allocation2] sm:$0x1] %v9
  loop: start=0, step=1, limit=4
  $region2: #{mtca_capsnet_forward.3} parent=0 // loop_pre_header
    _
  $region3: #{mtca_capsnet_forward.3} parent=0 // loop_header
    %s12 = sphi 0, %s16
    %p13 = scmp.ge.s32.totalorder %s12, 4
    %s22 = sphi 0, %s24
    %s25 = sphi 0, %s22
    %s26 = sphi 0, %s25
    %s42 = sphi 0, %s26
    %s46 = sphi 0, %s46
    %s48 = sphi 0, %s46
    %s49 = sphi 0, %s48
    %s63 = sphi 0, %s49
    %s67 = sphi 0, %s67
    %s69 = sphi 0, %s67
    %s70 = sphi 0, %s69
    %s84 = sphi 0, %s70
    %s88 = sphi 0, %s88
    %s90 = sphi 0, %s88
    %s91 = sphi 0, %s90
    %s105 = sphi 0, %s91
    %s111 = sphi 0, %s113
    %s114 = sphi 0, %s111
    %s115 = sphi 0, %s114
    %s131 = sphi 0, %s115
  $region4: #{mtca_capsnet_forward.3} parent=0 // loop_header_branch
    %15 = sbr.rel (%p13) target = $region8
  $region5: #{mtca_capsnet_forward.3} parent=0 // loop_body
    %s17 = ssub.s32 %s12, 1
    %s18 = ssub.s32 %s12, 2
    %s19 = sadd.s32 %s12, 1
    %s20 = ssub.s32 %s12, %s19
    %p21 = scmp.eq.s32.totalorder %s20, 0
    %s23 = sadd.s32 %s22, 1
    %s24 = scalar_select %p21, %s22, %s23
    %p27 = pneg %p21
    %p28 = scmp.eq.s32.totalorder %s12, 1
    %p29 = por %p27, %p28
    %p30 = scmp.ne.s32.totalorder %s22, %s25
    %p31 = scmp.eq.s32.totalorder %s12, 0
    %p32 = por %p30, %p31
    %p33 = scmp.ne.s32.totalorder %s22, %s25
    %p34 = scmp.eq.s32.totalorder %s17, 1
    %p35 = por %p33, %p34
    %p36 = scmp.ne.s32.totalorder %s25, %s26
    %p37 = scmp.eq.s32.totalorder %s17, 0
    %p38 = por %p36, %p37
    %p39 = scmp.ne.s32.totalorder %s25, %s26
    %p40 = scmp.eq.s32.totalorder %s18, 1
    %p41 = por %p39, %p40
    %p43 = scmp.ne.s32.totalorder %s26, %s42
    %p44 = scmp.eq.s32.totalorder %s18, 0
    %p45 = por %p43, %p44
    %s47 = sadd.s32 %s46, 1
    %p50 = scmp.eq.s32.totalorder %s12, 1
    %p51 = scmp.ne.s32.totalorder %s46, %s48
    %p52 = scmp.eq.s32.totalorder %s12, 0
    %p53 = por %p51, %p52
    %p54 = scmp.ne.s32.totalorder %s46, %s48
    %p55 = scmp.eq.s32.totalorder %s17, 1
    %p56 = por %p54, %p55
    %p57 = scmp.ne.s32.totalorder %s48, %s49
    %p58 = scmp.eq.s32.totalorder %s17, 0
    %p59 = por %p57, %p58
    %p60 = scmp.ne.s32.totalorder %s48, %s49
    %p61 = scmp.eq.s32.totalorder %s18, 1
    %p62 = por %p60, %p61
    %p64 = scmp.ne.s32.totalorder %s49, %s63
    %p65 = scmp.eq.s32.totalorder %s18, 0
    %p66 = por %p64, %p65
    %s68 = sadd.s32 %s67, 1
    %p71 = scmp.eq.s32.totalorder %s12, 1
    %p72 = scmp.ne.s32.totalorder %s67, %s69
    %p73 = scmp.eq.s32.totalorder %s12, 0
    %p74 = por %p72, %p73
    %p75 = scmp.ne.s32.totalorder %s67, %s69
    %p76 = scmp.eq.s32.totalorder %s17, 1
    %p77 = por %p75, %p76
    %p78 = scmp.ne.s32.totalorder %s69, %s70
    %p79 = scmp.eq.s32.totalorder %s17, 0
    %p80 = por %p78, %p79
    %p81 = scmp.ne.s32.totalorder %s69, %s70
    %p82 = scmp.eq.s32.totalorder %s18, 1
    %p83 = por %p81, %p82
    %p85 = scmp.ne.s32.totalorder %s70, %s84
    %p86 = scmp.eq.s32.totalorder %s18, 0
    %p87 = por %p85, %p86
    %s89 = sadd.s32 %s88, 1
    %p92 = scmp.eq.s32.totalorder %s12, 1
    %p93 = scmp.ne.s32.totalorder %s88, %s90
    %p94 = scmp.eq.s32.totalorder %s12, 0
    %p95 = por %p93, %p94
    %p96 = scmp.ne.s32.totalorder %s88, %s90
    %p97 = scmp.eq.s32.totalorder %s17, 1
    %p98 = por %p96, %p97
    %p99 = scmp.ne.s32.totalorder %s90, %s91
    %p100 = scmp.eq.s32.totalorder %s17, 0
    %p101 = por %p99, %p100
    %p102 = scmp.ne.s32.totalorder %s90, %s91
    %p103 = scmp.eq.s32.totalorder %s18, 1
    %p104 = por %p102, %p103
    %p106 = scmp.ne.s32.totalorder %s91, %s105
    %p107 = scmp.eq.s32.totalorder %s18, 0
    %p108 = por %p106, %p107
    %s109 = ssub.s32 %s12, %s19
    %p110 = scmp.eq.s32.totalorder %s109, 0
    %s112 = sadd.s32 %s111, 1
    %s113 = scalar_select %p110, %s111, %s112
    %p116 = pneg %p110
    %p117 = scmp.eq.s32.totalorder %s12, 1
    %p118 = por %p116, %p117
    %p119 = scmp.ne.s32.totalorder %s111, %s114
    %p120 = scmp.eq.s32.totalorder %s12, 0
    %p121 = por %p119, %p120
    %p122 = scmp.ne.s32.totalorder %s111, %s114
    %p123 = scmp.eq.s32.totalorder %s17, 1
    %p124 = por %p122, %p123
    %p125 = scmp.ne.s32.totalorder %s114, %s115
    %p126 = scmp.eq.s32.totalorder %s17, 0
    %p127 = por %p125, %p126
    %p128 = scmp.ne.s32.totalorder %s114, %s115
    %p129 = scmp.eq.s32.totalorder %s18, 1
    %p130 = por %p128, %p129
    %p132 = scmp.ne.s32.totalorder %s115, %s131
    %p133 = scmp.eq.s32.totalorder %s18, 0
    %p134 = por %p132, %p133
    %p135 = scmp.le.s32.totalorder 1, %s12
    %p136 = scmp.lt.s32.totalorder %s12, 3
    %p137 = pnand %p135, %p136
    %p138 = pneg %p137
    // Predicated region
    $region9: #{mtca_capsnet_forward.3} parent=5 // pred_check
      _
    $region10: #{mtca_capsnet_forward.3} parent=5 // pred_check_branch
      %140 = sbr.rel (%p137) target = $region12
    $region11: #{mtca_capsnet_forward.3} parent=5 // pred_region
      %s141 = ssub.s32 %s12, 1
      // Predicated region
      $region13: #{mtca_capsnet_forward.3} parent=11 // pred_check
        %p142 = pneg %p59
      $region14: #{mtca_capsnet_forward.3} parent=11 // pred_check_branch
        %144 = sbr.rel (%p142) target = $region16
      $region15: #{mtca_capsnet_forward.3} parent=11 // pred_region
        _
      $region16: #{mtca_capsnet_forward.3} parent=11 // pred_fallthru
        _
      // Predicated region
      $region17: #{mtca_capsnet_forward.3} parent=11 // pred_check
        %p145 = pneg %p80
      $region18: #{mtca_capsnet_forward.3} parent=11 // pred_check_branch
        %147 = sbr.rel (%p145) target = $region20
      $region19: #{mtca_capsnet_forward.3} parent=11 // pred_region
        _
      $region20: #{mtca_capsnet_forward.3} parent=11 // pred_fallthru
        _
      // Predicated region
      $region21: #{mtca_capsnet_forward.3} parent=11 // pred_check
        %p148 = pneg %p101
      $region22: #{mtca_capsnet_forward.3} parent=11 // pred_check_branch
        %150 = sbr.rel (%p148) target = $region24
      $region23: #{mtca_capsnet_forward.3} parent=11 // pred_region
        _
      $region24: #{mtca_capsnet_forward.3} parent=11 // pred_fallthru
        _
    $region12: #{mtca_capsnet_forward.3} parent=5 // pred_fallthru
      _
    %p151 = scmp.lt.s32.totalorder %s12, 2
    // Predicated region
    $region25: #{mtca_capsnet_forward.3} parent=5 // pred_check
      %p152 = pneg %p151
    $region26: #{mtca_capsnet_forward.3} parent=5 // pred_check_branch
      %154 = sbr.rel (%p152) target = $region28
    $region27: #{mtca_capsnet_forward.3} parent=5 // pred_region
      // Predicated region
      $region29: #{mtca_capsnet_forward.3} parent=27 // pred_check
        %p155 = pneg %p32
      $region30: #{mtca_capsnet_forward.3} parent=27 // pred_check_branch
        %157 = sbr.rel (%p155) target = $region32
      $region31: #{mtca_capsnet_forward.3} parent=27 // pred_region
        %p158 = scmp.lt.s32.totalorder %s12, 1
        %s159 = scalar_select %p158, %s12, 1
        %s160 = smul.addr %s159, 8
        %s161 = scalar_lea.vmem %s0, %s160
      $region32: #{mtca_capsnet_forward.3} parent=27 // pred_fallthru
        _
    $region28: #{mtca_capsnet_forward.3} parent=5 // pred_fallthru
      _
    %p162 = scmp.le.s32.totalorder 1, %s12
    %p163 = scmp.lt.s32.totalorder %s12, 3
    %p164 = pnand %p162, %p163
    %p165 = pneg %p164
    // Predicated region
    $region33: #{mtca_capsnet_forward.3} parent=5 // pred_check
      _
    $region34: #{mtca_capsnet_forward.3} parent=5 // pred_check_branch
      %167 = sbr.rel (%p164) target = $region36
    $region35: #{mtca_capsnet_forward.3} parent=5 // pred_region
      %s168 = ssub.s32 %s12, 1
      %p169 = scmp.lt.s32.totalorder %s17, 1
      %s170 = scalar_select %p169, %s17, 1
      %s171 = smul.addr %s170, 8
      %s172 = scalar_lea.vmem %s0, %s171
      %p173 = pneg %p38
      %p174 = pneg %p35
      %p175 = pneg %p59
      %p176 = pneg %p56
      %p177 = pneg %p80
      %p178 = pneg %p77
      %p179 = pneg %p101
      %p180 = pneg %p98
      %p181 = pneg %p127
      %p182 = pneg %p124
      %p183 = scmp.lt.s32.totalorder %s17, 1
      %s184 = scalar_select %p183, %s17, 1
      %s185 = scalar_lea.vmem %s4, %s184
      %p186 = scmp.lt.s32.totalorder %s17, 1
      %s187 = scalar_select %p186, %s17, 1
      %s188 = smul.addr %s187, 8
      %s189 = scalar_lea.vmem %s0, %s188
      %p190 = scmp.lt.s32.totalorder %s17, 1
      %s191 = scalar_select %p190, %s17, 1
      %s192 = scalar_lea.vmem %s4, %s191
      %v193 = vld [vmem:[%s189] sm:$0xff]
      %v194 = vmul.f32 %v193, %v193
      %vm195 = vcmask 392192
      %v196 = vsel %vm195, %v194, 0.0
      %v197 = vrot.slane %v196, 4
      %v198 = vadd.f32 %v196, %v197
      %v199 = vrot.slane %v198, 2
      %v200 = vadd.f32 %v198, %v199
      %v201 = vrot.slane %v200, 1
      %v202 = vadd.f32 %v200, %v201
      %v203 = vadd.f32 %v202, 1.0
      %v204 = vrsqrt.pop %v202
      %v205 = vmul.f32 %v202, %v204
      %vm206 = vcmp.eq.f32.partialorder %v202, inf
      %v207 = vsel %vm206, %v202, %v205
      %vm208 = vcmp.eq.f32.partialorder %v202, 0.0
      %v209 = vand.u32 %v202, 2147483648
      %v210 = vsel %vm208, %v209, %v207
      %v211 = vadd.f32 %v210, 1e-08
      %v212 = vmul.f32 %v203, %v211
      %v213 = vrcp.pop %v212
      %v214 = vmul.f32 %v202, %v213
      %v215 = vmul.f32 %v193, %v214
      %v216 = vld [vmem:[%s1] sm:$0xff]
      %v217 = vld [vmem:[%s1 + $0x8] sm:$0xff]
      %v218 = vld [vmem:[%s1 + $0x10] sm:$0xff]
      %v219 = vld [vmem:[%s1 + $0x18] sm:$0xff]
      %v220 = vld [vmem:[%s1 + $0x20] sm:$0xff]
      %v221 = vld [vmem:[%s1 + $0x28] sm:$0xff]
      %v222 = vld [vmem:[%s1 + $0x30] sm:$0xff]
      %v223 = vld [vmem:[%s1 + $0x38] sm:$0xff]
      %v224 = vld [vmem:[%s1 + $0x40] sm:$0xff]
      %v225 = vld [vmem:[%s1 + $0x48] sm:$0xff]
      %v226 = vld [vmem:[%s1 + $0x50] sm:$0xff]
      %v227 = vld [vmem:[%s1 + $0x58] sm:$0xff]
      %v228 = vld [vmem:[%s1 + $0x60] sm:$0xff]
      %v229 = vld [vmem:[%s1 + $0x68] sm:$0xff]
      %v230 = vld [vmem:[%s1 + $0x70] sm:$0xff]
      %v231 = vld [vmem:[%s1 + $0x78] sm:$0xff]
      %v232 = vld [vmem:[%s1 + $0x80] sm:$0xff]
      %v233 = vld [vmem:[%s1 + $0x88] sm:$0xff]
      %v234 = vld [vmem:[%s1 + $0x90] sm:$0xff]
      %v235 = vld [vmem:[%s1 + $0x98] sm:$0xff]
      %v236 = vld [vmem:[%s1 + $0xa0] sm:$0xff]
      %v237 = vld [vmem:[%s1 + $0xa8] sm:$0xff]
      %v238 = vld [vmem:[%s1 + $0xb0] sm:$0xff]
      %v239 = vld [vmem:[%s1 + $0xb8] sm:$0xff]
      %v240 = vld [vmem:[%s1 + $0xc0] sm:$0xff]
      %v241 = vld [vmem:[%s1 + $0xc8] sm:$0xff]
      %v242 = vld [vmem:[%s1 + $0xd0] sm:$0xff]
      %v243 = vld [vmem:[%s1 + $0xd8] sm:$0xff]
      %v244 = vld [vmem:[%s1 + $0xe0] sm:$0xff]
      %v245 = vld [vmem:[%s1 + $0xe8] sm:$0xff]
      %v246 = vld [vmem:[%s1 + $0xf0] sm:$0xff]
      %v247 = vld [vmem:[%s1 + $0xf8] sm:$0xff]
      %v248 = vld [vmem:[%s1 + $0x100] sm:$0xff]
      %v249 = vld [vmem:[%s1 + $0x108] sm:$0xff]
      %v250 = vld [vmem:[%s1 + $0x110] sm:$0xff]
      %v251 = vld [vmem:[%s1 + $0x118] sm:$0xff]
      %v252 = vld [vmem:[%s1 + $0x120] sm:$0xff]
      %v253 = vld [vmem:[%s1 + $0x128] sm:$0xff]
      %v254 = vld [vmem:[%s1 + $0x130] sm:$0xff]
      %v255 = vld [vmem:[%s1 + $0x138] sm:$0xff]
      %v256 = vld [vmem:[%s1 + $0x140] sm:$0xff]
      %v257 = vld [vmem:[%s1 + $0x148] sm:$0xff]
      %v258 = vld [vmem:[%s1 + $0x150] sm:$0xff]
      %v259 = vld [vmem:[%s1 + $0x158] sm:$0xff]
      %v260 = vld [vmem:[%s1 + $0x160] sm:$0xff]
      %v261 = vld [vmem:[%s1 + $0x168] sm:$0xff]
      %v262 = vld [vmem:[%s1 + $0x170] sm:$0xff]
      %v263 = vld [vmem:[%s1 + $0x178] sm:$0xff]
      %v264 = vld [vmem:[%s1 + $0x180] sm:$0xff]
      %v265 = vld [vmem:[%s1 + $0x188] sm:$0xff]
      %v266 = vld [vmem:[%s1 + $0x190] sm:$0xff]
      %v267 = vld [vmem:[%s1 + $0x198] sm:$0xff]
      %v268 = vld [vmem:[%s1 + $0x1a0] sm:$0xff]
      %v269 = vld [vmem:[%s1 + $0x1a8] sm:$0xff]
      %v270 = vld [vmem:[%s1 + $0x1b0] sm:$0xff]
      %v271 = vld [vmem:[%s1 + $0x1b8] sm:$0xff]
      %v272 = vld [vmem:[%s1 + $0x1c0] sm:$0xff]
      %v273 = vld [vmem:[%s1 + $0x1c8] sm:$0xff]
      %v274 = vld [vmem:[%s1 + $0x1d0] sm:$0xff]
      %v275 = vld [vmem:[%s1 + $0x1d8] sm:$0xff]
      %v276 = vld [vmem:[%s1 + $0x1e0] sm:$0xff]
      %v277 = vld [vmem:[%s1 + $0x1e8] sm:$0xff]
      %v278 = vld [vmem:[%s1 + $0x1f0] sm:$0xff]
      %v279 = vld [vmem:[%s1 + $0x1f8] sm:$0xff]
      %v280 = vld [vmem:[%s1 + $0x200] sm:$0xff]
      %v281 = vld [vmem:[%s1 + $0x208] sm:$0xff]
      %v282 = vld [vmem:[%s1 + $0x210] sm:$0xff]
      %v283 = vld [vmem:[%s1 + $0x218] sm:$0xff]
      %v284 = vld [vmem:[%s1 + $0x220] sm:$0xff]
      %v285 = vld [vmem:[%s1 + $0x228] sm:$0xff]
      %v286 = vld [vmem:[%s1 + $0x230] sm:$0xff]
      %v287 = vld [vmem:[%s1 + $0x238] sm:$0xff]
      %v288 = vld [vmem:[%s1 + $0x240] sm:$0xff]
      %v289 = vld [vmem:[%s1 + $0x248] sm:$0xff]
      %v290 = vld [vmem:[%s1 + $0x250] sm:$0xff]
      %v291 = vld [vmem:[%s1 + $0x258] sm:$0xff]
      %v292 = vld [vmem:[%s1 + $0x260] sm:$0xff]
      %v293 = vld [vmem:[%s1 + $0x268] sm:$0xff]
      %v294 = vld [vmem:[%s1 + $0x270] sm:$0xff]
      %v295 = vld [vmem:[%s1 + $0x278] sm:$0xff]
      %v296 = vld [vmem:[%s1 + $0x280] sm:$0xff]
      %v297 = vld [vmem:[%s1 + $0x288] sm:$0xff]
      %v298 = vld [vmem:[%s1 + $0x290] sm:$0xff]
      %v299 = vld [vmem:[%s1 + $0x298] sm:$0xff]
      %v300 = vld [vmem:[%s1 + $0x2a0] sm:$0xff]
      %v301 = vld [vmem:[%s1 + $0x2a8] sm:$0xff]
      %v302 = vld [vmem:[%s1 + $0x2b0] sm:$0xff]
      %v303 = vld [vmem:[%s1 + $0x2b8] sm:$0xff]
      %v304 = vld [vmem:[%s1 + $0x2c0] sm:$0xff]
      %v305 = vld [vmem:[%s1 + $0x2c8] sm:$0xff]
      %v306 = vld [vmem:[%s1 + $0x2d0] sm:$0xff]
      %v307 = vld [vmem:[%s1 + $0x2d8] sm:$0xff]
      %v308 = vld [vmem:[%s1 + $0x2e0] sm:$0xff]
      %v309 = vld [vmem:[%s1 + $0x2e8] sm:$0xff]
      %v310 = vld [vmem:[%s1 + $0x2f0] sm:$0xff]
      %v311 = vld [vmem:[%s1 + $0x2f8] sm:$0xff]
      %v312 = vld [vmem:[%s1 + $0x300] sm:$0xff]
      %v313 = vld [vmem:[%s1 + $0x308] sm:$0xff]
      %v314 = vld [vmem:[%s1 + $0x310] sm:$0xff]
      %v315 = vld [vmem:[%s1 + $0x318] sm:$0xff]
      %v316 = vld [vmem:[%s1 + $0x320] sm:$0xff]
      %v317 = vld [vmem:[%s1 + $0x328] sm:$0xff]
      %v318 = vld [vmem:[%s1 + $0x330] sm:$0xff]
      %v319 = vld [vmem:[%s1 + $0x338] sm:$0xff]
      %v320 = vld [vmem:[%s1 + $0x340] sm:$0xff]
      %v321 = vld [vmem:[%s1 + $0x348] sm:$0xff]
      %v322 = vld [vmem:[%s1 + $0x350] sm:$0xff]
      %v323 = vld [vmem:[%s1 + $0x358] sm:$0xff]
      %v324 = vld [vmem:[%s1 + $0x360] sm:$0xff]
      %v325 = vld [vmem:[%s1 + $0x368] sm:$0xff]
      %v326 = vld [vmem:[%s1 + $0x370] sm:$0xff]
      %v327 = vld [vmem:[%s1 + $0x378] sm:$0xff]
      %v328 = vld [vmem:[%s1 + $0x380] sm:$0xff]
      %v329 = vld [vmem:[%s1 + $0x388] sm:$0xff]
      %v330 = vld [vmem:[%s1 + $0x390] sm:$0xff]
      %v331 = vld [vmem:[%s1 + $0x398] sm:$0xff]
      %v332 = vld [vmem:[%s1 + $0x3a0] sm:$0xff]
      %v333 = vld [vmem:[%s1 + $0x3a8] sm:$0xff]
      %v334 = vld [vmem:[%s1 + $0x3b0] sm:$0xff]
      %v335 = vld [vmem:[%s1 + $0x3b8] sm:$0xff]
      %v336 = vld [vmem:[%s1 + $0x3c0] sm:$0xff]
      %v337 = vld [vmem:[%s1 + $0x3c8] sm:$0xff]
      %v338 = vld [vmem:[%s1 + $0x3d0] sm:$0xff]
      %v339 = vld [vmem:[%s1 + $0x3d8] sm:$0xff]
      %v340 = vld [vmem:[%s1 + $0x3e0] sm:$0xff]
      %v341 = vld [vmem:[%s1 + $0x3e8] sm:$0xff]
      %v342 = vld [vmem:[%s1 + $0x3f0] sm:$0xff]
      %v343 = vld [vmem:[%s1 + $0x3f8] sm:$0xff]
      %v344 = vld [vmem:[%s1 + $0x400] sm:$0xff]
      %v345 = vld [vmem:[%s1 + $0x408] sm:$0xff]
      %v346 = vld [vmem:[%s1 + $0x410] sm:$0xff]
      %v347 = vld [vmem:[%s1 + $0x418] sm:$0xff]
      %v348 = vld [vmem:[%s1 + $0x420] sm:$0xff]
      %v349 = vld [vmem:[%s1 + $0x428] sm:$0xff]
      %v350 = vld [vmem:[%s1 + $0x430] sm:$0xff]
      %v351 = vld [vmem:[%s1 + $0x438] sm:$0xff]
      %v352 = vld [vmem:[%s1 + $0x440] sm:$0xff]
      %v353 = vld [vmem:[%s1 + $0x448] sm:$0xff]
      %v354 = vld [vmem:[%s1 + $0x450] sm:$0xff]
      %v355 = vld [vmem:[%s1 + $0x458] sm:$0xff]
      %v356 = vld [vmem:[%s1 + $0x460] sm:$0xff]
      %v357 = vld [vmem:[%s1 + $0x468] sm:$0xff]
      %v358 = vld [vmem:[%s1 + $0x470] sm:$0xff]
      %v359 = vld [vmem:[%s1 + $0x478] sm:$0xff]
      %v360 = vld [vmem:[%s1 + $0x480] sm:$0xff]
      %v361 = vld [vmem:[%s1 + $0x488] sm:$0xff]
      %v362 = vld [vmem:[%s1 + $0x490] sm:$0xff]
      %v363 = vld [vmem:[%s1 + $0x498] sm:$0xff]
      %v364 = vld [vmem:[%s1 + $0x4a0] sm:$0xff]
      %v365 = vld [vmem:[%s1 + $0x4a8] sm:$0xff]
      %v366 = vld [vmem:[%s1 + $0x4b0] sm:$0xff]
      %v367 = vld [vmem:[%s1 + $0x4b8] sm:$0xff]
      %v368 = vld [vmem:[%s1 + $0x4c0] sm:$0xff]
      %v369 = vld [vmem:[%s1 + $0x4c8] sm:$0xff]
      %v370 = vld [vmem:[%s1 + $0x4d0] sm:$0xff]
      %v371 = vld [vmem:[%s1 + $0x4d8] sm:$0xff]
      %v372 = vld [vmem:[%s1 + $0x4e0] sm:$0xff]
      %v373 = vld [vmem:[%s1 + $0x4e8] sm:$0xff]
      %v374 = vld [vmem:[%s1 + $0x4f0] sm:$0xff]
      %v375 = vld [vmem:[%s1 + $0x4f8] sm:$0xff]
      %v376 = vld [vmem:[%s1 + $0x500] sm:$0xff]
      %v377 = vld [vmem:[%s1 + $0x508] sm:$0xff]
      %v378 = vld [vmem:[%s1 + $0x510] sm:$0xff]
      %v379 = vld [vmem:[%s1 + $0x518] sm:$0xff]
      %v380 = vld [vmem:[%s1 + $0x520] sm:$0xff]
      %v381 = vld [vmem:[%s1 + $0x528] sm:$0xff]
      %v382 = vld [vmem:[%s1 + $0x530] sm:$0xff]
      %v383 = vld [vmem:[%s1 + $0x538] sm:$0xff]
      %v384 = vld [vmem:[%s1 + $0x540] sm:$0xff]
      %v385 = vld [vmem:[%s1 + $0x548] sm:$0xff]
      %v386 = vld [vmem:[%s1 + $0x550] sm:$0xff]
      %v387 = vld [vmem:[%s1 + $0x558] sm:$0xff]
      %v388 = vld [vmem:[%s1 + $0x560] sm:$0xff]
      %v389 = vld [vmem:[%s1 + $0x568] sm:$0xff]
      %v390 = vld [vmem:[%s1 + $0x570] sm:$0xff]
      %v391 = vld [vmem:[%s1 + $0x578] sm:$0xff]
      %v392 = vld [vmem:[%s1 + $0x580] sm:$0xff]
      %v393 = vld [vmem:[%s1 + $0x588] sm:$0xff]
      %v394 = vld [vmem:[%s1 + $0x590] sm:$0xff]
      %v395 = vld [vmem:[%s1 + $0x598] sm:$0xff]
      %v396 = vld [vmem:[%s1 + $0x5a0] sm:$0xff]
      %v397 = vld [vmem:[%s1 + $0x5a8] sm:$0xff]
      %v398 = vld [vmem:[%s1 + $0x5b0] sm:$0xff]
      %v399 = vld [vmem:[%s1 + $0x5b8] sm:$0xff]
      %v400 = vld [vmem:[%s1 + $0x5c0] sm:$0xff]
      %v401 = vld [vmem:[%s1 + $0x5c8] sm:$0xff]
      %v402 = vld [vmem:[%s1 + $0x5d0] sm:$0xff]
      %v403 = vld [vmem:[%s1 + $0x5d8] sm:$0xff]
      %v404 = vld [vmem:[%s1 + $0x5e0] sm:$0xff]
      %v405 = vld [vmem:[%s1 + $0x5e8] sm:$0xff]
      %v406 = vld [vmem:[%s1 + $0x5f0] sm:$0xff]
      %v407 = vld [vmem:[%s1 + $0x5f8] sm:$0xff]
      %v408 = vld [vmem:[%s1 + $0x600] sm:$0xff]
      %v409 = vld [vmem:[%s1 + $0x608] sm:$0xff]
      %v410 = vld [vmem:[%s1 + $0x610] sm:$0xff]
      %v411 = vld [vmem:[%s1 + $0x618] sm:$0xff]
      %v412 = vld [vmem:[%s1 + $0x620] sm:$0xff]
      %v413 = vld [vmem:[%s1 + $0x628] sm:$0xff]
      %v414 = vld [vmem:[%s1 + $0x630] sm:$0xff]
      %v415 = vld [vmem:[%s1 + $0x638] sm:$0xff]
      %v416 = vld [vmem:[%s1 + $0x640] sm:$0xff]
      %v417 = vld [vmem:[%s1 + $0x648] sm:$0xff]
      %v418 = vld [vmem:[%s1 + $0x650] sm:$0xff]
      %v419 = vld [vmem:[%s1 + $0x658] sm:$0xff]
      %v420 = vld [vmem:[%s1 + $0x660] sm:$0xff]
      %v421 = vld [vmem:[%s1 + $0x668] sm:$0xff]
      %v422 = vld [vmem:[%s1 + $0x670] sm:$0xff]
      %v423 = vld [vmem:[%s1 + $0x678] sm:$0xff]
      %v424 = vld [vmem:[%s1 + $0x680] sm:$0xff]
      %v425 = vld [vmem:[%s1 + $0x688] sm:$0xff]
      %v426 = vld [vmem:[%s1 + $0x690] sm:$0xff]
      %v427 = vld [vmem:[%s1 + $0x698] sm:$0xff]
      %v428 = vld [vmem:[%s1 + $0x6a0] sm:$0xff]
      %v429 = vld [vmem:[%s1 + $0x6a8] sm:$0xff]
      %v430 = vld [vmem:[%s1 + $0x6b0] sm:$0xff]
      %v431 = vld [vmem:[%s1 + $0x6b8] sm:$0xff]
      %v432 = vld [vmem:[%s1 + $0x6c0] sm:$0xff]
      %v433 = vld [vmem:[%s1 + $0x6c8] sm:$0xff]
      %v434 = vld [vmem:[%s1 + $0x6d0] sm:$0xff]
      %v435 = vld [vmem:[%s1 + $0x6d8] sm:$0xff]
      %v436 = vld [vmem:[%s1 + $0x6e0] sm:$0xff]
      %v437 = vld [vmem:[%s1 + $0x6e8] sm:$0xff]
      %v438 = vld [vmem:[%s1 + $0x6f0] sm:$0xff]
      %v439 = vld [vmem:[%s1 + $0x6f8] sm:$0xff]
      %v440 = vld [vmem:[%s1 + $0x700] sm:$0xff]
      %v441 = vld [vmem:[%s1 + $0x708] sm:$0xff]
      %v442 = vld [vmem:[%s1 + $0x710] sm:$0xff]
      %v443 = vld [vmem:[%s1 + $0x718] sm:$0xff]
      %v444 = vld [vmem:[%s1 + $0x720] sm:$0xff]
      %v445 = vld [vmem:[%s1 + $0x728] sm:$0xff]
      %v446 = vld [vmem:[%s1 + $0x730] sm:$0xff]
      %v447 = vld [vmem:[%s1 + $0x738] sm:$0xff]
      %v448 = vld [vmem:[%s1 + $0x740] sm:$0xff]
      %v449 = vld [vmem:[%s1 + $0x748] sm:$0xff]
      %v450 = vld [vmem:[%s1 + $0x750] sm:$0xff]
      %v451 = vld [vmem:[%s1 + $0x758] sm:$0xff]
      %v452 = vld [vmem:[%s1 + $0x760] sm:$0xff]
      %v453 = vld [vmem:[%s1 + $0x768] sm:$0xff]
      %v454 = vld [vmem:[%s1 + $0x770] sm:$0xff]
      %v455 = vld [vmem:[%s1 + $0x778] sm:$0xff]
      %v456 = vld [vmem:[%s1 + $0x780] sm:$0xff]
      %v457 = vld [vmem:[%s1 + $0x788] sm:$0xff]
      %v458 = vld [vmem:[%s1 + $0x790] sm:$0xff]
      %v459 = vld [vmem:[%s1 + $0x798] sm:$0xff]
      %v460 = vld [vmem:[%s1 + $0x7a0] sm:$0xff]
      %v461 = vld [vmem:[%s1 + $0x7a8] sm:$0xff]
      %v462 = vld [vmem:[%s1 + $0x7b0] sm:$0xff]
      %v463 = vld [vmem:[%s1 + $0x7b8] sm:$0xff]
      %v464 = vld [vmem:[%s1 + $0x7c0] sm:$0xff]
      %v465 = vld [vmem:[%s1 + $0x7c8] sm:$0xff]
      %v466 = vld [vmem:[%s1 + $0x7d0] sm:$0xff]
      %v467 = vld [vmem:[%s1 + $0x7d8] sm:$0xff]
      %v468 = vld [vmem:[%s1 + $0x7e0] sm:$0xff]
      %v469 = vld [vmem:[%s1 + $0x7e8] sm:$0xff]
      %v470 = vld [vmem:[%s1 + $0x7f0] sm:$0xff]
      %v471 = vld [vmem:[%s1 + $0x7f8] sm:$0xff]
      %v472 = vmul.f32 %v216, %v215
      %v473 = vmul.f32 %v217, %v215
      %v474 = vmul.f32 %v218, %v215
      %v475 = vmul.f32 %v219, %v215
      %v476 = vmul.f32 %v220, %v215
      %v477 = vmul.f32 %v221, %v215
      %v478 = vmul.f32 %v222, %v215
      %v479 = vmul.f32 %v223, %v215
      %v480 = vmul.f32 %v224, %v215
      %v481 = vmul.f32 %v225, %v215
      %v482 = vmul.f32 %v226, %v215
      %v483 = vmul.f32 %v227, %v215
      %v484 = vmul.f32 %v228, %v215
      %v485 = vmul.f32 %v229, %v215
      %v486 = vmul.f32 %v230, %v215
      %v487 = vmul.f32 %v231, %v215
      %v488 = vmul.f32 %v232, %v215
      %v489 = vmul.f32 %v233, %v215
      %v490 = vmul.f32 %v234, %v215
      %v491 = vmul.f32 %v235, %v215
      %v492 = vmul.f32 %v236, %v215
      %v493 = vmul.f32 %v237, %v215
      %v494 = vmul.f32 %v238, %v215
      %v495 = vmul.f32 %v239, %v215
      %v496 = vmul.f32 %v240, %v215
      %v497 = vmul.f32 %v241, %v215
      %v498 = vmul.f32 %v242, %v215
      %v499 = vmul.f32 %v243, %v215
      %v500 = vmul.f32 %v244, %v215
      %v501 = vmul.f32 %v245, %v215
      %v502 = vmul.f32 %v246, %v215
      %v503 = vmul.f32 %v247, %v215
      %v504 = vmul.f32 %v248, %v215
      %v505 = vmul.f32 %v249, %v215
      %v506 = vmul.f32 %v250, %v215
      %v507 = vmul.f32 %v251, %v215
      %v508 = vmul.f32 %v252, %v215
      %v509 = vmul.f32 %v253, %v215
      %v510 = vmul.f32 %v254, %v215
      %v511 = vmul.f32 %v255, %v215
      %v512 = vmul.f32 %v256, %v215
      %v513 = vmul.f32 %v257, %v215
      %v514 = vmul.f32 %v258, %v215
      %v515 = vmul.f32 %v259, %v215
      %v516 = vmul.f32 %v260, %v215
      %v517 = vmul.f32 %v261, %v215
      %v518 = vmul.f32 %v262, %v215
      %v519 = vmul.f32 %v263, %v215
      %v520 = vmul.f32 %v264, %v215
      %v521 = vmul.f32 %v265, %v215
      %v522 = vmul.f32 %v266, %v215
      %v523 = vmul.f32 %v267, %v215
      %v524 = vmul.f32 %v268, %v215
      %v525 = vmul.f32 %v269, %v215
      %v526 = vmul.f32 %v270, %v215
      %v527 = vmul.f32 %v271, %v215
      %v528 = vmul.f32 %v272, %v215
      %v529 = vmul.f32 %v273, %v215
      %v530 = vmul.f32 %v274, %v215
      %v531 = vmul.f32 %v275, %v215
      %v532 = vmul.f32 %v276, %v215
      %v533 = vmul.f32 %v277, %v215
      %v534 = vmul.f32 %v278, %v215
      %v535 = vmul.f32 %v279, %v215
      %v536 = vmul.f32 %v280, %v215
      %v537 = vmul.f32 %v281, %v215
      %v538 = vmul.f32 %v282, %v215
      %v539 = vmul.f32 %v283, %v215
      %v540 = vmul.f32 %v284, %v215
      %v541 = vmul.f32 %v285, %v215
      %v542 = vmul.f32 %v286, %v215
      %v543 = vmul.f32 %v287, %v215
      %v544 = vmul.f32 %v288, %v215
      %v545 = vmul.f32 %v289, %v215
      %v546 = vmul.f32 %v290, %v215
      %v547 = vmul.f32 %v291, %v215
      %v548 = vmul.f32 %v292, %v215
      %v549 = vmul.f32 %v293, %v215
      %v550 = vmul.f32 %v294, %v215
      %v551 = vmul.f32 %v295, %v215
      %v552 = vmul.f32 %v296, %v215
      %v553 = vmul.f32 %v297, %v215
      %v554 = vmul.f32 %v298, %v215
      %v555 = vmul.f32 %v299, %v215
      %v556 = vmul.f32 %v300, %v215
      %v557 = vmul.f32 %v301, %v215
      %v558 = vmul.f32 %v302, %v215
      %v559 = vmul.f32 %v303, %v215
      %v560 = vmul.f32 %v304, %v215
      %v561 = vmul.f32 %v305, %v215
      %v562 = vmul.f32 %v306, %v215
      %v563 = vmul.f32 %v307, %v215
      %v564 = vmul.f32 %v308, %v215
      %v565 = vmul.f32 %v309, %v215
      %v566 = vmul.f32 %v310, %v215
      %v567 = vmul.f32 %v311, %v215
      %v568 = vmul.f32 %v312, %v215
      %v569 = vmul.f32 %v313, %v215
      %v570 = vmul.f32 %v314, %v215
      %v571 = vmul.f32 %v315, %v215
      %v572 = vmul.f32 %v316, %v215
      %v573 = vmul.f32 %v317, %v215
      %v574 = vmul.f32 %v318, %v215
      %v575 = vmul.f32 %v319, %v215
      %v576 = vmul.f32 %v320, %v215
      %v577 = vmul.f32 %v321, %v215
      %v578 = vmul.f32 %v322, %v215
      %v579 = vmul.f32 %v323, %v215
      %v580 = vmul.f32 %v324, %v215
      %v581 = vmul.f32 %v325, %v215
      %v582 = vmul.f32 %v326, %v215
      %v583 = vmul.f32 %v327, %v215
      %v584 = vmul.f32 %v328, %v215
      %v585 = vmul.f32 %v329, %v215
      %v586 = vmul.f32 %v330, %v215
      %v587 = vmul.f32 %v331, %v215
      %v588 = vmul.f32 %v332, %v215
      %v589 = vmul.f32 %v333, %v215
      %v590 = vmul.f32 %v334, %v215
      %v591 = vmul.f32 %v335, %v215
      %v592 = vmul.f32 %v336, %v215
      %v593 = vmul.f32 %v337, %v215
      %v594 = vmul.f32 %v338, %v215
      %v595 = vmul.f32 %v339, %v215
      %v596 = vmul.f32 %v340, %v215
      %v597 = vmul.f32 %v341, %v215
      %v598 = vmul.f32 %v342, %v215
      %v599 = vmul.f32 %v343, %v215
      %v600 = vmul.f32 %v344, %v215
      %v601 = vmul.f32 %v345, %v215
      %v602 = vmul.f32 %v346, %v215
      %v603 = vmul.f32 %v347, %v215
      %v604 = vmul.f32 %v348, %v215
      %v605 = vmul.f32 %v349, %v215
      %v606 = vmul.f32 %v350, %v215
      %v607 = vmul.f32 %v351, %v215
      %v608 = vmul.f32 %v352, %v215
      %v609 = vmul.f32 %v353, %v215
      %v610 = vmul.f32 %v354, %v215
      %v611 = vmul.f32 %v355, %v215
      %v612 = vmul.f32 %v356, %v215
      %v613 = vmul.f32 %v357, %v215
      %v614 = vmul.f32 %v358, %v215
      %v615 = vmul.f32 %v359, %v215
      %v616 = vmul.f32 %v360, %v215
      %v617 = vmul.f32 %v361, %v215
      %v618 = vmul.f32 %v362, %v215
      %v619 = vmul.f32 %v363, %v215
      %v620 = vmul.f32 %v364, %v215
      %v621 = vmul.f32 %v365, %v215
      %v622 = vmul.f32 %v366, %v215
      %v623 = vmul.f32 %v367, %v215
      %v624 = vmul.f32 %v368, %v215
      %v625 = vmul.f32 %v369, %v215
      %v626 = vmul.f32 %v370, %v215
      %v627 = vmul.f32 %v371, %v215
      %v628 = vmul.f32 %v372, %v215
      %v629 = vmul.f32 %v373, %v215
      %v630 = vmul.f32 %v374, %v215
      %v631 = vmul.f32 %v375, %v215
      %v632 = vmul.f32 %v376, %v215
      %v633 = vmul.f32 %v377, %v215
      %v634 = vmul.f32 %v378, %v215
      %v635 = vmul.f32 %v379, %v215
      %v636 = vmul.f32 %v380, %v215
      %v637 = vmul.f32 %v381, %v215
      %v638 = vmul.f32 %v382, %v215
      %v639 = vmul.f32 %v383, %v215
      %v640 = vmul.f32 %v384, %v215
      %v641 = vmul.f32 %v385, %v215
      %v642 = vmul.f32 %v386, %v215
      %v643 = vmul.f32 %v387, %v215
      %v644 = vmul.f32 %v388, %v215
      %v645 = vmul.f32 %v389, %v215
      %v646 = vmul.f32 %v390, %v215
      %v647 = vmul.f32 %v391, %v215
      %v648 = vmul.f32 %v392, %v215
      %v649 = vmul.f32 %v393, %v215
      %v650 = vmul.f32 %v394, %v215
      %v651 = vmul.f32 %v395, %v215
      %v652 = vmul.f32 %v396, %v215
      %v653 = vmul.f32 %v397, %v215
      %v654 = vmul.f32 %v398, %v215
      %v655 = vmul.f32 %v399, %v215
      %v656 = vmul.f32 %v400, %v215
      %v657 = vmul.f32 %v401, %v215
      %v658 = vmul.f32 %v402, %v215
      %v659 = vmul.f32 %v403, %v215
      %v660 = vmul.f32 %v404, %v215
      %v661 = vmul.f32 %v405, %v215
      %v662 = vmul.f32 %v406, %v215
      %v663 = vmul.f32 %v407, %v215
      %v664 = vmul.f32 %v408, %v215
      %v665 = vmul.f32 %v409, %v215
      %v666 = vmul.f32 %v410, %v215
      %v667 = vmul.f32 %v411, %v215
      %v668 = vmul.f32 %v412, %v215
      %v669 = vmul.f32 %v413, %v215
      %v670 = vmul.f32 %v414, %v215
      %v671 = vmul.f32 %v415, %v215
      %v672 = vmul.f32 %v416, %v215
      %v673 = vmul.f32 %v417, %v215
      %v674 = vmul.f32 %v418, %v215
      %v675 = vmul.f32 %v419, %v215
      %v676 = vmul.f32 %v420, %v215
      %v677 = vmul.f32 %v421, %v215
      %v678 = vmul.f32 %v422, %v215
      %v679 = vmul.f32 %v423, %v215
      %v680 = vmul.f32 %v424, %v215
      %v681 = vmul.f32 %v425, %v215
      %v682 = vmul.f32 %v426, %v215
      %v683 = vmul.f32 %v427, %v215
      %v684 = vmul.f32 %v428, %v215
      %v685 = vmul.f32 %v429, %v215
      %v686 = vmul.f32 %v430, %v215
      %v687 = vmul.f32 %v431, %v215
      %v688 = vmul.f32 %v432, %v215
      %v689 = vmul.f32 %v433, %v215
      %v690 = vmul.f32 %v434, %v215
      %v691 = vmul.f32 %v435, %v215
      %v692 = vmul.f32 %v436, %v215
      %v693 = vmul.f32 %v437, %v215
      %v694 = vmul.f32 %v438, %v215
      %v695 = vmul.f32 %v439, %v215
      %v696 = vmul.f32 %v440, %v215
      %v697 = vmul.f32 %v441, %v215
      %v698 = vmul.f32 %v442, %v215
      %v699 = vmul.f32 %v443, %v215
      %v700 = vmul.f32 %v444, %v215
      %v701 = vmul.f32 %v445, %v215
      %v702 = vmul.f32 %v446, %v215
      %v703 = vmul.f32 %v447, %v215
      %v704 = vmul.f32 %v448, %v215
      %v705 = vmul.f32 %v449, %v215
      %v706 = vmul.f32 %v450, %v215
      %v707 = vmul.f32 %v451, %v215
      %v708 = vmul.f32 %v452, %v215
      %v709 = vmul.f32 %v453, %v215
      %v710 = vmul.f32 %v454, %v215
      %v711 = vmul.f32 %v455, %v215
      %v712 = vmul.f32 %v456, %v215
      %v713 = vmul.f32 %v457, %v215
      %v714 = vmul.f32 %v458, %v215
      %v715 = vmul.f32 %v459, %v215
      %v716 = vmul.f32 %v460, %v215
      %v717 = vmul.f32 %v461, %v215
      %v718 = vmul.f32 %v462, %v215
      %v719 = vmul.f32 %v463, %v215
      %v720 = vmul.f32 %v464, %v215
      %v721 = vmul.f32 %v465, %v215
      %v722 = vmul.f32 %v466, %v215
      %v723 = vmul.f32 %v467, %v215
      %v724 = vmul.f32 %v468, %v215
      %v725 = vmul.f32 %v469, %v215
      %v726 = vmul.f32 %v470, %v215
      %v727 = vmul.f32 %v471, %v215
      %v728 = vsel %vm195, %v472, 0.0
      %v729 = vrot.slane %v728, 4
      %v730 = vadd.f32 %v728, %v729
      %v731 = vrot.slane %v730, 2
      %v732 = vadd.f32 %v730, %v731
      %v733 = vrot.slane %v732, 1
      %v734 = vadd.f32 %v732, %v733
      %v735 = vsel %vm195, %v473, 0.0
      %v736 = vrot.slane %v735, 4
      %v737 = vadd.f32 %v735, %v736
      %v738 = vrot.slane %v737, 2
      %v739 = vadd.f32 %v737, %v738
      %v740 = vrot.slane %v739, 1
      %v741 = vadd.f32 %v739, %v740
      %v742 = vsel %vm195, %v474, 0.0
      %v743 = vrot.slane %v742, 4
      %v744 = vadd.f32 %v742, %v743
      %v745 = vrot.slane %v744, 2
      %v746 = vadd.f32 %v744, %v745
      %v747 = vrot.slane %v746, 1
      %v748 = vadd.f32 %v746, %v747
      %v749 = vsel %vm195, %v475, 0.0
      %v750 = vrot.slane %v749, 4
      %v751 = vadd.f32 %v749, %v750
      %v752 = vrot.slane %v751, 2
      %v753 = vadd.f32 %v751, %v752
      %v754 = vrot.slane %v753, 1
      %v755 = vadd.f32 %v753, %v754
      %v756 = vsel %vm195, %v476, 0.0
      %v757 = vrot.slane %v756, 4
      %v758 = vadd.f32 %v756, %v757
      %v759 = vrot.slane %v758, 2
      %v760 = vadd.f32 %v758, %v759
      %v761 = vrot.slane %v760, 1
      %v762 = vadd.f32 %v760, %v761
      %v763 = vsel %vm195, %v477, 0.0
      %v764 = vrot.slane %v763, 4
      %v765 = vadd.f32 %v763, %v764
      %v766 = vrot.slane %v765, 2
      %v767 = vadd.f32 %v765, %v766
      %v768 = vrot.slane %v767, 1
      %v769 = vadd.f32 %v767, %v768
      %v770 = vsel %vm195, %v478, 0.0
      %v771 = vrot.slane %v770, 4
      %v772 = vadd.f32 %v770, %v771
      %v773 = vrot.slane %v772, 2
      %v774 = vadd.f32 %v772, %v773
      %v775 = vrot.slane %v774, 1
      %v776 = vadd.f32 %v774, %v775
      %v777 = vsel %vm195, %v479, 0.0
      %v778 = vrot.slane %v777, 4
      %v779 = vadd.f32 %v777, %v778
      %v780 = vrot.slane %v779, 2
      %v781 = vadd.f32 %v779, %v780
      %v782 = vrot.slane %v781, 1
      %v783 = vadd.f32 %v781, %v782
      %v784 = vsel %vm195, %v480, 0.0
      %v785 = vrot.slane %v784, 4
      %v786 = vadd.f32 %v784, %v785
      %v787 = vrot.slane %v786, 2
      %v788 = vadd.f32 %v786, %v787
      %v789 = vrot.slane %v788, 1
      %v790 = vadd.f32 %v788, %v789
      %v791 = vsel %vm195, %v481, 0.0
      %v792 = vrot.slane %v791, 4
      %v793 = vadd.f32 %v791, %v792
      %v794 = vrot.slane %v793, 2
      %v795 = vadd.f32 %v793, %v794
      %v796 = vrot.slane %v795, 1
      %v797 = vadd.f32 %v795, %v796
      %v798 = vsel %vm195, %v482, 0.0
      %v799 = vrot.slane %v798, 4
      %v800 = vadd.f32 %v798, %v799
      %v801 = vrot.slane %v800, 2
      %v802 = vadd.f32 %v800, %v801
      %v803 = vrot.slane %v802, 1
      %v804 = vadd.f32 %v802, %v803
      %v805 = vsel %vm195, %v483, 0.0
      %v806 = vrot.slane %v805, 4
      %v807 = vadd.f32 %v805, %v806
      %v808 = vrot.slane %v807, 2
      %v809 = vadd.f32 %v807, %v808
      %v810 = vrot.slane %v809, 1
      %v811 = vadd.f32 %v809, %v810
      %v812 = vsel %vm195, %v484, 0.0
      %v813 = vrot.slane %v812, 4
      %v814 = vadd.f32 %v812, %v813
      %v815 = vrot.slane %v814, 2
      %v816 = vadd.f32 %v814, %v815
      %v817 = vrot.slane %v816, 1
      %v818 = vadd.f32 %v816, %v817
      %v819 = vsel %vm195, %v485, 0.0
      %v820 = vrot.slane %v819, 4
      %v821 = vadd.f32 %v819, %v820
      %v822 = vrot.slane %v821, 2
      %v823 = vadd.f32 %v821, %v822
      %v824 = vrot.slane %v823, 1
      %v825 = vadd.f32 %v823, %v824
      %v826 = vsel %vm195, %v486, 0.0
      %v827 = vrot.slane %v826, 4
      %v828 = vadd.f32 %v826, %v827
      %v829 = vrot.slane %v828, 2
      %v830 = vadd.f32 %v828, %v829
      %v831 = vrot.slane %v830, 1
      %v832 = vadd.f32 %v830, %v831
      %v833 = vsel %vm195, %v487, 0.0
      %v834 = vrot.slane %v833, 4
      %v835 = vadd.f32 %v833, %v834
      %v836 = vrot.slane %v835, 2
      %v837 = vadd.f32 %v835, %v836
      %v838 = vrot.slane %v837, 1
      %v839 = vadd.f32 %v837, %v838
      %v840 = vsel %vm195, %v488, 0.0
      %v841 = vrot.slane %v840, 4
      %v842 = vadd.f32 %v840, %v841
      %v843 = vrot.slane %v842, 2
      %v844 = vadd.f32 %v842, %v843
      %v845 = vrot.slane %v844, 1
      %v846 = vadd.f32 %v844, %v845
      %v847 = vsel %vm195, %v489, 0.0
      %v848 = vrot.slane %v847, 4
      %v849 = vadd.f32 %v847, %v848
      %v850 = vrot.slane %v849, 2
      %v851 = vadd.f32 %v849, %v850
      %v852 = vrot.slane %v851, 1
      %v853 = vadd.f32 %v851, %v852
      %v854 = vsel %vm195, %v490, 0.0
      %v855 = vrot.slane %v854, 4
      %v856 = vadd.f32 %v854, %v855
      %v857 = vrot.slane %v856, 2
      %v858 = vadd.f32 %v856, %v857
      %v859 = vrot.slane %v858, 1
      %v860 = vadd.f32 %v858, %v859
      %v861 = vsel %vm195, %v491, 0.0
      %v862 = vrot.slane %v861, 4
      %v863 = vadd.f32 %v861, %v862
      %v864 = vrot.slane %v863, 2
      %v865 = vadd.f32 %v863, %v864
      %v866 = vrot.slane %v865, 1
      %v867 = vadd.f32 %v865, %v866
      %v868 = vsel %vm195, %v492, 0.0
      %v869 = vrot.slane %v868, 4
      %v870 = vadd.f32 %v868, %v869
      %v871 = vrot.slane %v870, 2
      %v872 = vadd.f32 %v870, %v871
      %v873 = vrot.slane %v872, 1
      %v874 = vadd.f32 %v872, %v873
      %v875 = vsel %vm195, %v493, 0.0
      %v876 = vrot.slane %v875, 4
      %v877 = vadd.f32 %v875, %v876
      %v878 = vrot.slane %v877, 2
      %v879 = vadd.f32 %v877, %v878
      %v880 = vrot.slane %v879, 1
      %v881 = vadd.f32 %v879, %v880
      %v882 = vsel %vm195, %v494, 0.0
      %v883 = vrot.slane %v882, 4
      %v884 = vadd.f32 %v882, %v883
      %v885 = vrot.slane %v884, 2
      %v886 = vadd.f32 %v884, %v885
      %v887 = vrot.slane %v886, 1
      %v888 = vadd.f32 %v886, %v887
      %v889 = vsel %vm195, %v495, 0.0
      %v890 = vrot.slane %v889, 4
      %v891 = vadd.f32 %v889, %v890
      %v892 = vrot.slane %v891, 2
      %v893 = vadd.f32 %v891, %v892
      %v894 = vrot.slane %v893, 1
      %v895 = vadd.f32 %v893, %v894
      %v896 = vsel %vm195, %v496, 0.0
      %v897 = vrot.slane %v896, 4
      %v898 = vadd.f32 %v896, %v897
      %v899 = vrot.slane %v898, 2
      %v900 = vadd.f32 %v898, %v899
      %v901 = vrot.slane %v900, 1
      %v902 = vadd.f32 %v900, %v901
      %v903 = vsel %vm195, %v497, 0.0
      %v904 = vrot.slane %v903, 4
      %v905 = vadd.f32 %v903, %v904
      %v906 = vrot.slane %v905, 2
      %v907 = vadd.f32 %v905, %v906
      %v908 = vrot.slane %v907, 1
      %v909 = vadd.f32 %v907, %v908
      %v910 = vsel %vm195, %v498, 0.0
      %v911 = vrot.slane %v910, 4
      %v912 = vadd.f32 %v910, %v911
      %v913 = vrot.slane %v912, 2
      %v914 = vadd.f32 %v912, %v913
      %v915 = vrot.slane %v914, 1
      %v916 = vadd.f32 %v914, %v915
      %v917 = vsel %vm195, %v499, 0.0
      %v918 = vrot.slane %v917, 4
      %v919 = vadd.f32 %v917, %v918
      %v920 = vrot.slane %v919, 2
      %v921 = vadd.f32 %v919, %v920
      %v922 = vrot.slane %v921, 1
      %v923 = vadd.f32 %v921, %v922
      %v924 = vsel %vm195, %v500, 0.0
      %v925 = vrot.slane %v924, 4
      %v926 = vadd.f32 %v924, %v925
      %v927 = vrot.slane %v926, 2
      %v928 = vadd.f32 %v926, %v927
      %v929 = vrot.slane %v928, 1
      %v930 = vadd.f32 %v928, %v929
      %v931 = vsel %vm195, %v501, 0.0
      %v932 = vrot.slane %v931, 4
      %v933 = vadd.f32 %v931, %v932
      %v934 = vrot.slane %v933, 2
      %v935 = vadd.f32 %v933, %v934
      %v936 = vrot.slane %v935, 1
      %v937 = vadd.f32 %v935, %v936
      %v938 = vsel %vm195, %v502, 0.0
      %v939 = vrot.slane %v938, 4
      %v940 = vadd.f32 %v938, %v939
      %v941 = vrot.slane %v940, 2
      %v942 = vadd.f32 %v940, %v941
      %v943 = vrot.slane %v942, 1
      %v944 = vadd.f32 %v942, %v943
      %v945 = vsel %vm195, %v503, 0.0
      %v946 = vrot.slane %v945, 4
      %v947 = vadd.f32 %v945, %v946
      %v948 = vrot.slane %v947, 2
      %v949 = vadd.f32 %v947, %v948
      %v950 = vrot.slane %v949, 1
      %v951 = vadd.f32 %v949, %v950
      %v952 = vsel %vm195, %v504, 0.0
      %v953 = vrot.slane %v952, 4
      %v954 = vadd.f32 %v952, %v953
      %v955 = vrot.slane %v954, 2
      %v956 = vadd.f32 %v954, %v955
      %v957 = vrot.slane %v956, 1
      %v958 = vadd.f32 %v956, %v957
      %v959 = vsel %vm195, %v505, 0.0
      %v960 = vrot.slane %v959, 4
      %v961 = vadd.f32 %v959, %v960
      %v962 = vrot.slane %v961, 2
      %v963 = vadd.f32 %v961, %v962
      %v964 = vrot.slane %v963, 1
      %v965 = vadd.f32 %v963, %v964
      %v966 = vsel %vm195, %v506, 0.0
      %v967 = vrot.slane %v966, 4
      %v968 = vadd.f32 %v966, %v967
      %v969 = vrot.slane %v968, 2
      %v970 = vadd.f32 %v968, %v969
      %v971 = vrot.slane %v970, 1
      %v972 = vadd.f32 %v970, %v971
      %v973 = vsel %vm195, %v507, 0.0
      %v974 = vrot.slane %v973, 4
      %v975 = vadd.f32 %v973, %v974
      %v976 = vrot.slane %v975, 2
      %v977 = vadd.f32 %v975, %v976
      %v978 = vrot.slane %v977, 1
      %v979 = vadd.f32 %v977, %v978
      %v980 = vsel %vm195, %v508, 0.0
      %v981 = vrot.slane %v980, 4
      %v982 = vadd.f32 %v980, %v981
      %v983 = vrot.slane %v982, 2
      %v984 = vadd.f32 %v982, %v983
      %v985 = vrot.slane %v984, 1
      %v986 = vadd.f32 %v984, %v985
      %v987 = vsel %vm195, %v509, 0.0
      %v988 = vrot.slane %v987, 4
      %v989 = vadd.f32 %v987, %v988
      %v990 = vrot.slane %v989, 2
      %v991 = vadd.f32 %v989, %v990
      %v992 = vrot.slane %v991, 1
      %v993 = vadd.f32 %v991, %v992
      %v994 = vsel %vm195, %v510, 0.0
      %v995 = vrot.slane %v994, 4
      %v996 = vadd.f32 %v994, %v995
      %v997 = vrot.slane %v996, 2
      %v998 = vadd.f32 %v996, %v997
      %v999 = vrot.slane %v998, 1
      %v1000 = vadd.f32 %v998, %v999
      %v1001 = vsel %vm195, %v511, 0.0
      %v1002 = vrot.slane %v1001, 4
      %v1003 = vadd.f32 %v1001, %v1002
      %v1004 = vrot.slane %v1003, 2
      %v1005 = vadd.f32 %v1003, %v1004
      %v1006 = vrot.slane %v1005, 1
      %v1007 = vadd.f32 %v1005, %v1006
      %v1008 = vsel %vm195, %v512, 0.0
      %v1009 = vrot.slane %v1008, 4
      %v1010 = vadd.f32 %v1008, %v1009
      %v1011 = vrot.slane %v1010, 2
      %v1012 = vadd.f32 %v1010, %v1011
      %v1013 = vrot.slane %v1012, 1
      %v1014 = vadd.f32 %v1012, %v1013
      %v1015 = vsel %vm195, %v513, 0.0
      %v1016 = vrot.slane %v1015, 4
      %v1017 = vadd.f32 %v1015, %v1016
      %v1018 = vrot.slane %v1017, 2
      %v1019 = vadd.f32 %v1017, %v1018
      %v1020 = vrot.slane %v1019, 1
      %v1021 = vadd.f32 %v1019, %v1020
      %v1022 = vsel %vm195, %v514, 0.0
      %v1023 = vrot.slane %v1022, 4
      %v1024 = vadd.f32 %v1022, %v1023
      %v1025 = vrot.slane %v1024, 2
      %v1026 = vadd.f32 %v1024, %v1025
      %v1027 = vrot.slane %v1026, 1
      %v1028 = vadd.f32 %v1026, %v1027
      %v1029 = vsel %vm195, %v515, 0.0
      %v1030 = vrot.slane %v1029, 4
      %v1031 = vadd.f32 %v1029, %v1030
      %v1032 = vrot.slane %v1031, 2
      %v1033 = vadd.f32 %v1031, %v1032
      %v1034 = vrot.slane %v1033, 1
      %v1035 = vadd.f32 %v1033, %v1034
      %v1036 = vsel %vm195, %v516, 0.0
      %v1037 = vrot.slane %v1036, 4
      %v1038 = vadd.f32 %v1036, %v1037
      %v1039 = vrot.slane %v1038, 2
      %v1040 = vadd.f32 %v1038, %v1039
      %v1041 = vrot.slane %v1040, 1
      %v1042 = vadd.f32 %v1040, %v1041
      %v1043 = vsel %vm195, %v517, 0.0
      %v1044 = vrot.slane %v1043, 4
      %v1045 = vadd.f32 %v1043, %v1044
      %v1046 = vrot.slane %v1045, 2
      %v1047 = vadd.f32 %v1045, %v1046
      %v1048 = vrot.slane %v1047, 1
      %v1049 = vadd.f32 %v1047, %v1048
      %v1050 = vsel %vm195, %v518, 0.0
      %v1051 = vrot.slane %v1050, 4
      %v1052 = vadd.f32 %v1050, %v1051
      %v1053 = vrot.slane %v1052, 2
      %v1054 = vadd.f32 %v1052, %v1053
      %v1055 = vrot.slane %v1054, 1
      %v1056 = vadd.f32 %v1054, %v1055
      %v1057 = vsel %vm195, %v519, 0.0
      %v1058 = vrot.slane %v1057, 4
      %v1059 = vadd.f32 %v1057, %v1058
      %v1060 = vrot.slane %v1059, 2
      %v1061 = vadd.f32 %v1059, %v1060
      %v1062 = vrot.slane %v1061, 1
      %v1063 = vadd.f32 %v1061, %v1062
      %v1064 = vsel %vm195, %v520, 0.0
      %v1065 = vrot.slane %v1064, 4
      %v1066 = vadd.f32 %v1064, %v1065
      %v1067 = vrot.slane %v1066, 2
      %v1068 = vadd.f32 %v1066, %v1067
      %v1069 = vrot.slane %v1068, 1
      %v1070 = vadd.f32 %v1068, %v1069
      %v1071 = vsel %vm195, %v521, 0.0
      %v1072 = vrot.slane %v1071, 4
      %v1073 = vadd.f32 %v1071, %v1072
      %v1074 = vrot.slane %v1073, 2
      %v1075 = vadd.f32 %v1073, %v1074
      %v1076 = vrot.slane %v1075, 1
      %v1077 = vadd.f32 %v1075, %v1076
      %v1078 = vsel %vm195, %v522, 0.0
      %v1079 = vrot.slane %v1078, 4
      %v1080 = vadd.f32 %v1078, %v1079
      %v1081 = vrot.slane %v1080, 2
      %v1082 = vadd.f32 %v1080, %v1081
      %v1083 = vrot.slane %v1082, 1
      %v1084 = vadd.f32 %v1082, %v1083
      %v1085 = vsel %vm195, %v523, 0.0
      %v1086 = vrot.slane %v1085, 4
      %v1087 = vadd.f32 %v1085, %v1086
      %v1088 = vrot.slane %v1087, 2
      %v1089 = vadd.f32 %v1087, %v1088
      %v1090 = vrot.slane %v1089, 1
      %v1091 = vadd.f32 %v1089, %v1090
      %v1092 = vsel %vm195, %v524, 0.0
      %v1093 = vrot.slane %v1092, 4
      %v1094 = vadd.f32 %v1092, %v1093
      %v1095 = vrot.slane %v1094, 2
      %v1096 = vadd.f32 %v1094, %v1095
      %v1097 = vrot.slane %v1096, 1
      %v1098 = vadd.f32 %v1096, %v1097
      %v1099 = vsel %vm195, %v525, 0.0
      %v1100 = vrot.slane %v1099, 4
      %v1101 = vadd.f32 %v1099, %v1100
      %v1102 = vrot.slane %v1101, 2
      %v1103 = vadd.f32 %v1101, %v1102
      %v1104 = vrot.slane %v1103, 1
      %v1105 = vadd.f32 %v1103, %v1104
      %v1106 = vsel %vm195, %v526, 0.0
      %v1107 = vrot.slane %v1106, 4
      %v1108 = vadd.f32 %v1106, %v1107
      %v1109 = vrot.slane %v1108, 2
      %v1110 = vadd.f32 %v1108, %v1109
      %v1111 = vrot.slane %v1110, 1
      %v1112 = vadd.f32 %v1110, %v1111
      %v1113 = vsel %vm195, %v527, 0.0
      %v1114 = vrot.slane %v1113, 4
      %v1115 = vadd.f32 %v1113, %v1114
      %v1116 = vrot.slane %v1115, 2
      %v1117 = vadd.f32 %v1115, %v1116
      %v1118 = vrot.slane %v1117, 1
      %v1119 = vadd.f32 %v1117, %v1118
      %v1120 = vsel %vm195, %v528, 0.0
      %v1121 = vrot.slane %v1120, 4
      %v1122 = vadd.f32 %v1120, %v1121
      %v1123 = vrot.slane %v1122, 2
      %v1124 = vadd.f32 %v1122, %v1123
      %v1125 = vrot.slane %v1124, 1
      %v1126 = vadd.f32 %v1124, %v1125
      %v1127 = vsel %vm195, %v529, 0.0
      %v1128 = vrot.slane %v1127, 4
      %v1129 = vadd.f32 %v1127, %v1128
      %v1130 = vrot.slane %v1129, 2
      %v1131 = vadd.f32 %v1129, %v1130
      %v1132 = vrot.slane %v1131, 1
      %v1133 = vadd.f32 %v1131, %v1132
      %v1134 = vsel %vm195, %v530, 0.0
      %v1135 = vrot.slane %v1134, 4
      %v1136 = vadd.f32 %v1134, %v1135
      %v1137 = vrot.slane %v1136, 2
      %v1138 = vadd.f32 %v1136, %v1137
      %v1139 = vrot.slane %v1138, 1
      %v1140 = vadd.f32 %v1138, %v1139
      %v1141 = vsel %vm195, %v531, 0.0
      %v1142 = vrot.slane %v1141, 4
      %v1143 = vadd.f32 %v1141, %v1142
      %v1144 = vrot.slane %v1143, 2
      %v1145 = vadd.f32 %v1143, %v1144
      %v1146 = vrot.slane %v1145, 1
      %v1147 = vadd.f32 %v1145, %v1146
      %v1148 = vsel %vm195, %v532, 0.0
      %v1149 = vrot.slane %v1148, 4
      %v1150 = vadd.f32 %v1148, %v1149
      %v1151 = vrot.slane %v1150, 2
      %v1152 = vadd.f32 %v1150, %v1151
      %v1153 = vrot.slane %v1152, 1
      %v1154 = vadd.f32 %v1152, %v1153
      %v1155 = vsel %vm195, %v533, 0.0
      %v1156 = vrot.slane %v1155, 4
      %v1157 = vadd.f32 %v1155, %v1156
      %v1158 = vrot.slane %v1157, 2
      %v1159 = vadd.f32 %v1157, %v1158
      %v1160 = vrot.slane %v1159, 1
      %v1161 = vadd.f32 %v1159, %v1160
      %v1162 = vsel %vm195, %v534, 0.0
      %v1163 = vrot.slane %v1162, 4
      %v1164 = vadd.f32 %v1162, %v1163
      %v1165 = vrot.slane %v1164, 2
      %v1166 = vadd.f32 %v1164, %v1165
      %v1167 = vrot.slane %v1166, 1
      %v1168 = vadd.f32 %v1166, %v1167
      %v1169 = vsel %vm195, %v535, 0.0
      %v1170 = vrot.slane %v1169, 4
      %v1171 = vadd.f32 %v1169, %v1170
      %v1172 = vrot.slane %v1171, 2
      %v1173 = vadd.f32 %v1171, %v1172
      %v1174 = vrot.slane %v1173, 1
      %v1175 = vadd.f32 %v1173, %v1174
      %v1176 = vsel %vm195, %v536, 0.0
      %v1177 = vrot.slane %v1176, 4
      %v1178 = vadd.f32 %v1176, %v1177
      %v1179 = vrot.slane %v1178, 2
      %v1180 = vadd.f32 %v1178, %v1179
      %v1181 = vrot.slane %v1180, 1
      %v1182 = vadd.f32 %v1180, %v1181
      %v1183 = vsel %vm195, %v537, 0.0
      %v1184 = vrot.slane %v1183, 4
      %v1185 = vadd.f32 %v1183, %v1184
      %v1186 = vrot.slane %v1185, 2
      %v1187 = vadd.f32 %v1185, %v1186
      %v1188 = vrot.slane %v1187, 1
      %v1189 = vadd.f32 %v1187, %v1188
      %v1190 = vsel %vm195, %v538, 0.0
      %v1191 = vrot.slane %v1190, 4
      %v1192 = vadd.f32 %v1190, %v1191
      %v1193 = vrot.slane %v1192, 2
      %v1194 = vadd.f32 %v1192, %v1193
      %v1195 = vrot.slane %v1194, 1
      %v1196 = vadd.f32 %v1194, %v1195
      %v1197 = vsel %vm195, %v539, 0.0
      %v1198 = vrot.slane %v1197, 4
      %v1199 = vadd.f32 %v1197, %v1198
      %v1200 = vrot.slane %v1199, 2
      %v1201 = vadd.f32 %v1199, %v1200
      %v1202 = vrot.slane %v1201, 1
      %v1203 = vadd.f32 %v1201, %v1202
      %v1204 = vsel %vm195, %v540, 0.0
      %v1205 = vrot.slane %v1204, 4
      %v1206 = vadd.f32 %v1204, %v1205
      %v1207 = vrot.slane %v1206, 2
      %v1208 = vadd.f32 %v1206, %v1207
      %v1209 = vrot.slane %v1208, 1
      %v1210 = vadd.f32 %v1208, %v1209
      %v1211 = vsel %vm195, %v541, 0.0
      %v1212 = vrot.slane %v1211, 4
      %v1213 = vadd.f32 %v1211, %v1212
      %v1214 = vrot.slane %v1213, 2
      %v1215 = vadd.f32 %v1213, %v1214
      %v1216 = vrot.slane %v1215, 1
      %v1217 = vadd.f32 %v1215, %v1216
      %v1218 = vsel %vm195, %v542, 0.0
      %v1219 = vrot.slane %v1218, 4
      %v1220 = vadd.f32 %v1218, %v1219
      %v1221 = vrot.slane %v1220, 2
      %v1222 = vadd.f32 %v1220, %v1221
      %v1223 = vrot.slane %v1222, 1
      %v1224 = vadd.f32 %v1222, %v1223
      %v1225 = vsel %vm195, %v543, 0.0
      %v1226 = vrot.slane %v1225, 4
      %v1227 = vadd.f32 %v1225, %v1226
      %v1228 = vrot.slane %v1227, 2
      %v1229 = vadd.f32 %v1227, %v1228
      %v1230 = vrot.slane %v1229, 1
      %v1231 = vadd.f32 %v1229, %v1230
      %v1232 = vsel %vm195, %v544, 0.0
      %v1233 = vrot.slane %v1232, 4
      %v1234 = vadd.f32 %v1232, %v1233
      %v1235 = vrot.slane %v1234, 2
      %v1236 = vadd.f32 %v1234, %v1235
      %v1237 = vrot.slane %v1236, 1
      %v1238 = vadd.f32 %v1236, %v1237
      %v1239 = vsel %vm195, %v545, 0.0
      %v1240 = vrot.slane %v1239, 4
      %v1241 = vadd.f32 %v1239, %v1240
      %v1242 = vrot.slane %v1241, 2
      %v1243 = vadd.f32 %v1241, %v1242
      %v1244 = vrot.slane %v1243, 1
      %v1245 = vadd.f32 %v1243, %v1244
      %v1246 = vsel %vm195, %v546, 0.0
      %v1247 = vrot.slane %v1246, 4
      %v1248 = vadd.f32 %v1246, %v1247
      %v1249 = vrot.slane %v1248, 2
      %v1250 = vadd.f32 %v1248, %v1249
      %v1251 = vrot.slane %v1250, 1
      %v1252 = vadd.f32 %v1250, %v1251
      %v1253 = vsel %vm195, %v547, 0.0
      %v1254 = vrot.slane %v1253, 4
      %v1255 = vadd.f32 %v1253, %v1254
      %v1256 = vrot.slane %v1255, 2
      %v1257 = vadd.f32 %v1255, %v1256
      %v1258 = vrot.slane %v1257, 1
      %v1259 = vadd.f32 %v1257, %v1258
      %v1260 = vsel %vm195, %v548, 0.0
      %v1261 = vrot.slane %v1260, 4
      %v1262 = vadd.f32 %v1260, %v1261
      %v1263 = vrot.slane %v1262, 2
      %v1264 = vadd.f32 %v1262, %v1263
      %v1265 = vrot.slane %v1264, 1
      %v1266 = vadd.f32 %v1264, %v1265
      %v1267 = vsel %vm195, %v549, 0.0
      %v1268 = vrot.slane %v1267, 4
      %v1269 = vadd.f32 %v1267, %v1268
      %v1270 = vrot.slane %v1269, 2
      %v1271 = vadd.f32 %v1269, %v1270
      %v1272 = vrot.slane %v1271, 1
      %v1273 = vadd.f32 %v1271, %v1272
      %v1274 = vsel %vm195, %v550, 0.0
      %v1275 = vrot.slane %v1274, 4
      %v1276 = vadd.f32 %v1274, %v1275
      %v1277 = vrot.slane %v1276, 2
      %v1278 = vadd.f32 %v1276, %v1277
      %v1279 = vrot.slane %v1278, 1
      %v1280 = vadd.f32 %v1278, %v1279
      %v1281 = vsel %vm195, %v551, 0.0
      %v1282 = vrot.slane %v1281, 4
      %v1283 = vadd.f32 %v1281, %v1282
      %v1284 = vrot.slane %v1283, 2
      %v1285 = vadd.f32 %v1283, %v1284
      %v1286 = vrot.slane %v1285, 1
      %v1287 = vadd.f32 %v1285, %v1286
      %v1288 = vsel %vm195, %v552, 0.0
      %v1289 = vrot.slane %v1288, 4
      %v1290 = vadd.f32 %v1288, %v1289
      %v1291 = vrot.slane %v1290, 2
      %v1292 = vadd.f32 %v1290, %v1291
      %v1293 = vrot.slane %v1292, 1
      %v1294 = vadd.f32 %v1292, %v1293
      %v1295 = vsel %vm195, %v553, 0.0
      %v1296 = vrot.slane %v1295, 4
      %v1297 = vadd.f32 %v1295, %v1296
      %v1298 = vrot.slane %v1297, 2
      %v1299 = vadd.f32 %v1297, %v1298
      %v1300 = vrot.slane %v1299, 1
      %v1301 = vadd.f32 %v1299, %v1300
      %v1302 = vsel %vm195, %v554, 0.0
      %v1303 = vrot.slane %v1302, 4
      %v1304 = vadd.f32 %v1302, %v1303
      %v1305 = vrot.slane %v1304, 2
      %v1306 = vadd.f32 %v1304, %v1305
      %v1307 = vrot.slane %v1306, 1
      %v1308 = vadd.f32 %v1306, %v1307
      %v1309 = vsel %vm195, %v555, 0.0
      %v1310 = vrot.slane %v1309, 4
      %v1311 = vadd.f32 %v1309, %v1310
      %v1312 = vrot.slane %v1311, 2
      %v1313 = vadd.f32 %v1311, %v1312
      %v1314 = vrot.slane %v1313, 1
      %v1315 = vadd.f32 %v1313, %v1314
      %v1316 = vsel %vm195, %v556, 0.0
      %v1317 = vrot.slane %v1316, 4
      %v1318 = vadd.f32 %v1316, %v1317
      %v1319 = vrot.slane %v1318, 2
      %v1320 = vadd.f32 %v1318, %v1319
      %v1321 = vrot.slane %v1320, 1
      %v1322 = vadd.f32 %v1320, %v1321
      %v1323 = vsel %vm195, %v557, 0.0
      %v1324 = vrot.slane %v1323, 4
      %v1325 = vadd.f32 %v1323, %v1324
      %v1326 = vrot.slane %v1325, 2
      %v1327 = vadd.f32 %v1325, %v1326
      %v1328 = vrot.slane %v1327, 1
      %v1329 = vadd.f32 %v1327, %v1328
      %v1330 = vsel %vm195, %v558, 0.0
      %v1331 = vrot.slane %v1330, 4
      %v1332 = vadd.f32 %v1330, %v1331
      %v1333 = vrot.slane %v1332, 2
      %v1334 = vadd.f32 %v1332, %v1333
      %v1335 = vrot.slane %v1334, 1
      %v1336 = vadd.f32 %v1334, %v1335
      %v1337 = vsel %vm195, %v559, 0.0
      %v1338 = vrot.slane %v1337, 4
      %v1339 = vadd.f32 %v1337, %v1338
      %v1340 = vrot.slane %v1339, 2
      %v1341 = vadd.f32 %v1339, %v1340
      %v1342 = vrot.slane %v1341, 1
      %v1343 = vadd.f32 %v1341, %v1342
      %v1344 = vsel %vm195, %v560, 0.0
      %v1345 = vrot.slane %v1344, 4
      %v1346 = vadd.f32 %v1344, %v1345
      %v1347 = vrot.slane %v1346, 2
      %v1348 = vadd.f32 %v1346, %v1347
      %v1349 = vrot.slane %v1348, 1
      %v1350 = vadd.f32 %v1348, %v1349
      %v1351 = vsel %vm195, %v561, 0.0
      %v1352 = vrot.slane %v1351, 4
      %v1353 = vadd.f32 %v1351, %v1352
      %v1354 = vrot.slane %v1353, 2
      %v1355 = vadd.f32 %v1353, %v1354
      %v1356 = vrot.slane %v1355, 1
      %v1357 = vadd.f32 %v1355, %v1356
      %v1358 = vsel %vm195, %v562, 0.0
      %v1359 = vrot.slane %v1358, 4
      %v1360 = vadd.f32 %v1358, %v1359
      %v1361 = vrot.slane %v1360, 2
      %v1362 = vadd.f32 %v1360, %v1361
      %v1363 = vrot.slane %v1362, 1
      %v1364 = vadd.f32 %v1362, %v1363
      %v1365 = vsel %vm195, %v563, 0.0
      %v1366 = vrot.slane %v1365, 4
      %v1367 = vadd.f32 %v1365, %v1366
      %v1368 = vrot.slane %v1367, 2
      %v1369 = vadd.f32 %v1367, %v1368
      %v1370 = vrot.slane %v1369, 1
      %v1371 = vadd.f32 %v1369, %v1370
      %v1372 = vsel %vm195, %v564, 0.0
      %v1373 = vrot.slane %v1372, 4
      %v1374 = vadd.f32 %v1372, %v1373
      %v1375 = vrot.slane %v1374, 2
      %v1376 = vadd.f32 %v1374, %v1375
      %v1377 = vrot.slane %v1376, 1
      %v1378 = vadd.f32 %v1376, %v1377
      %v1379 = vsel %vm195, %v565, 0.0
      %v1380 = vrot.slane %v1379, 4
      %v1381 = vadd.f32 %v1379, %v1380
      %v1382 = vrot.slane %v1381, 2
      %v1383 = vadd.f32 %v1381, %v1382
      %v1384 = vrot.slane %v1383, 1
      %v1385 = vadd.f32 %v1383, %v1384
      %v1386 = vsel %vm195, %v566, 0.0
      %v1387 = vrot.slane %v1386, 4
      %v1388 = vadd.f32 %v1386, %v1387
      %v1389 = vrot.slane %v1388, 2
      %v1390 = vadd.f32 %v1388, %v1389
      %v1391 = vrot.slane %v1390, 1
      %v1392 = vadd.f32 %v1390, %v1391
      %v1393 = vsel %vm195, %v567, 0.0
      %v1394 = vrot.slane %v1393, 4
      %v1395 = vadd.f32 %v1393, %v1394
      %v1396 = vrot.slane %v1395, 2
      %v1397 = vadd.f32 %v1395, %v1396
      %v1398 = vrot.slane %v1397, 1
      %v1399 = vadd.f32 %v1397, %v1398
      %v1400 = vsel %vm195, %v568, 0.0
      %v1401 = vrot.slane %v1400, 4
      %v1402 = vadd.f32 %v1400, %v1401
      %v1403 = vrot.slane %v1402, 2
      %v1404 = vadd.f32 %v1402, %v1403
      %v1405 = vrot.slane %v1404, 1
      %v1406 = vadd.f32 %v1404, %v1405
      %v1407 = vsel %vm195, %v569, 0.0
      %v1408 = vrot.slane %v1407, 4
      %v1409 = vadd.f32 %v1407, %v1408
      %v1410 = vrot.slane %v1409, 2
      %v1411 = vadd.f32 %v1409, %v1410
      %v1412 = vrot.slane %v1411, 1
      %v1413 = vadd.f32 %v1411, %v1412
      %v1414 = vsel %vm195, %v570, 0.0
      %v1415 = vrot.slane %v1414, 4
      %v1416 = vadd.f32 %v1414, %v1415
      %v1417 = vrot.slane %v1416, 2
      %v1418 = vadd.f32 %v1416, %v1417
      %v1419 = vrot.slane %v1418, 1
      %v1420 = vadd.f32 %v1418, %v1419
      %v1421 = vsel %vm195, %v571, 0.0
      %v1422 = vrot.slane %v1421, 4
      %v1423 = vadd.f32 %v1421, %v1422
      %v1424 = vrot.slane %v1423, 2
      %v1425 = vadd.f32 %v1423, %v1424
      %v1426 = vrot.slane %v1425, 1
      %v1427 = vadd.f32 %v1425, %v1426
      %v1428 = vsel %vm195, %v572, 0.0
      %v1429 = vrot.slane %v1428, 4
      %v1430 = vadd.f32 %v1428, %v1429
      %v1431 = vrot.slane %v1430, 2
      %v1432 = vadd.f32 %v1430, %v1431
      %v1433 = vrot.slane %v1432, 1
      %v1434 = vadd.f32 %v1432, %v1433
      %v1435 = vsel %vm195, %v573, 0.0
      %v1436 = vrot.slane %v1435, 4
      %v1437 = vadd.f32 %v1435, %v1436
      %v1438 = vrot.slane %v1437, 2
      %v1439 = vadd.f32 %v1437, %v1438
      %v1440 = vrot.slane %v1439, 1
      %v1441 = vadd.f32 %v1439, %v1440
      %v1442 = vsel %vm195, %v574, 0.0
      %v1443 = vrot.slane %v1442, 4
      %v1444 = vadd.f32 %v1442, %v1443
      %v1445 = vrot.slane %v1444, 2
      %v1446 = vadd.f32 %v1444, %v1445
      %v1447 = vrot.slane %v1446, 1
      %v1448 = vadd.f32 %v1446, %v1447
      %v1449 = vsel %vm195, %v575, 0.0
      %v1450 = vrot.slane %v1449, 4
      %v1451 = vadd.f32 %v1449, %v1450
      %v1452 = vrot.slane %v1451, 2
      %v1453 = vadd.f32 %v1451, %v1452
      %v1454 = vrot.slane %v1453, 1
      %v1455 = vadd.f32 %v1453, %v1454
      %v1456 = vsel %vm195, %v576, 0.0
      %v1457 = vrot.slane %v1456, 4
      %v1458 = vadd.f32 %v1456, %v1457
      %v1459 = vrot.slane %v1458, 2
      %v1460 = vadd.f32 %v1458, %v1459
      %v1461 = vrot.slane %v1460, 1
      %v1462 = vadd.f32 %v1460, %v1461
      %v1463 = vsel %vm195, %v577, 0.0
      %v1464 = vrot.slane %v1463, 4
      %v1465 = vadd.f32 %v1463, %v1464
      %v1466 = vrot.slane %v1465, 2
      %v1467 = vadd.f32 %v1465, %v1466
      %v1468 = vrot.slane %v1467, 1
      %v1469 = vadd.f32 %v1467, %v1468
      %v1470 = vsel %vm195, %v578, 0.0
      %v1471 = vrot.slane %v1470, 4
      %v1472 = vadd.f32 %v1470, %v1471
      %v1473 = vrot.slane %v1472, 2
      %v1474 = vadd.f32 %v1472, %v1473
      %v1475 = vrot.slane %v1474, 1
      %v1476 = vadd.f32 %v1474, %v1475
      %v1477 = vsel %vm195, %v579, 0.0
      %v1478 = vrot.slane %v1477, 4
      %v1479 = vadd.f32 %v1477, %v1478
      %v1480 = vrot.slane %v1479, 2
      %v1481 = vadd.f32 %v1479, %v1480
      %v1482 = vrot.slane %v1481, 1
      %v1483 = vadd.f32 %v1481, %v1482
      %v1484 = vsel %vm195, %v580, 0.0
      %v1485 = vrot.slane %v1484, 4
      %v1486 = vadd.f32 %v1484, %v1485
      %v1487 = vrot.slane %v1486, 2
      %v1488 = vadd.f32 %v1486, %v1487
      %v1489 = vrot.slane %v1488, 1
      %v1490 = vadd.f32 %v1488, %v1489
      %v1491 = vsel %vm195, %v581, 0.0
      %v1492 = vrot.slane %v1491, 4
      %v1493 = vadd.f32 %v1491, %v1492
      %v1494 = vrot.slane %v1493, 2
      %v1495 = vadd.f32 %v1493, %v1494
      %v1496 = vrot.slane %v1495, 1
      %v1497 = vadd.f32 %v1495, %v1496
      %v1498 = vsel %vm195, %v582, 0.0
      %v1499 = vrot.slane %v1498, 4
      %v1500 = vadd.f32 %v1498, %v1499
      %v1501 = vrot.slane %v1500, 2
      %v1502 = vadd.f32 %v1500, %v1501
      %v1503 = vrot.slane %v1502, 1
      %v1504 = vadd.f32 %v1502, %v1503
      %v1505 = vsel %vm195, %v583, 0.0
      %v1506 = vrot.slane %v1505, 4
      %v1507 = vadd.f32 %v1505, %v1506
      %v1508 = vrot.slane %v1507, 2
      %v1509 = vadd.f32 %v1507, %v1508
      %v1510 = vrot.slane %v1509, 1
      %v1511 = vadd.f32 %v1509, %v1510
      %v1512 = vsel %vm195, %v584, 0.0
      %v1513 = vrot.slane %v1512, 4
      %v1514 = vadd.f32 %v1512, %v1513
      %v1515 = vrot.slane %v1514, 2
      %v1516 = vadd.f32 %v1514, %v1515
      %v1517 = vrot.slane %v1516, 1
      %v1518 = vadd.f32 %v1516, %v1517
      %v1519 = vsel %vm195, %v585, 0.0
      %v1520 = vrot.slane %v1519, 4
      %v1521 = vadd.f32 %v1519, %v1520
      %v1522 = vrot.slane %v1521, 2
      %v1523 = vadd.f32 %v1521, %v1522
      %v1524 = vrot.slane %v1523, 1
      %v1525 = vadd.f32 %v1523, %v1524
      %v1526 = vsel %vm195, %v586, 0.0
      %v1527 = vrot.slane %v1526, 4
      %v1528 = vadd.f32 %v1526, %v1527
      %v1529 = vrot.slane %v1528, 2
      %v1530 = vadd.f32 %v1528, %v1529
      %v1531 = vrot.slane %v1530, 1
      %v1532 = vadd.f32 %v1530, %v1531
      %v1533 = vsel %vm195, %v587, 0.0
      %v1534 = vrot.slane %v1533, 4
      %v1535 = vadd.f32 %v1533, %v1534
      %v1536 = vrot.slane %v1535, 2
      %v1537 = vadd.f32 %v1535, %v1536
      %v1538 = vrot.slane %v1537, 1
      %v1539 = vadd.f32 %v1537, %v1538
      %v1540 = vsel %vm195, %v588, 0.0
      %v1541 = vrot.slane %v1540, 4
      %v1542 = vadd.f32 %v1540, %v1541
      %v1543 = vrot.slane %v1542, 2
      %v1544 = vadd.f32 %v1542, %v1543
      %v1545 = vrot.slane %v1544, 1
      %v1546 = vadd.f32 %v1544, %v1545
      %v1547 = vsel %vm195, %v589, 0.0
      %v1548 = vrot.slane %v1547, 4
      %v1549 = vadd.f32 %v1547, %v1548
      %v1550 = vrot.slane %v1549, 2
      %v1551 = vadd.f32 %v1549, %v1550
      %v1552 = vrot.slane %v1551, 1
      %v1553 = vadd.f32 %v1551, %v1552
      %v1554 = vsel %vm195, %v590, 0.0
      %v1555 = vrot.slane %v1554, 4
      %v1556 = vadd.f32 %v1554, %v1555
      %v1557 = vrot.slane %v1556, 2
      %v1558 = vadd.f32 %v1556, %v1557
      %v1559 = vrot.slane %v1558, 1
      %v1560 = vadd.f32 %v1558, %v1559
      %v1561 = vsel %vm195, %v591, 0.0
      %v1562 = vrot.slane %v1561, 4
      %v1563 = vadd.f32 %v1561, %v1562
      %v1564 = vrot.slane %v1563, 2
      %v1565 = vadd.f32 %v1563, %v1564
      %v1566 = vrot.slane %v1565, 1
      %v1567 = vadd.f32 %v1565, %v1566
      %v1568 = vsel %vm195, %v592, 0.0
      %v1569 = vrot.slane %v1568, 4
      %v1570 = vadd.f32 %v1568, %v1569
      %v1571 = vrot.slane %v1570, 2
      %v1572 = vadd.f32 %v1570, %v1571
      %v1573 = vrot.slane %v1572, 1
      %v1574 = vadd.f32 %v1572, %v1573
      %v1575 = vsel %vm195, %v593, 0.0
      %v1576 = vrot.slane %v1575, 4
      %v1577 = vadd.f32 %v1575, %v1576
      %v1578 = vrot.slane %v1577, 2
      %v1579 = vadd.f32 %v1577, %v1578
      %v1580 = vrot.slane %v1579, 1
      %v1581 = vadd.f32 %v1579, %v1580
      %v1582 = vsel %vm195, %v594, 0.0
      %v1583 = vrot.slane %v1582, 4
      %v1584 = vadd.f32 %v1582, %v1583
      %v1585 = vrot.slane %v1584, 2
      %v1586 = vadd.f32 %v1584, %v1585
      %v1587 = vrot.slane %v1586, 1
      %v1588 = vadd.f32 %v1586, %v1587
      %v1589 = vsel %vm195, %v595, 0.0
      %v1590 = vrot.slane %v1589, 4
      %v1591 = vadd.f32 %v1589, %v1590
      %v1592 = vrot.slane %v1591, 2
      %v1593 = vadd.f32 %v1591, %v1592
      %v1594 = vrot.slane %v1593, 1
      %v1595 = vadd.f32 %v1593, %v1594
      %v1596 = vsel %vm195, %v596, 0.0
      %v1597 = vrot.slane %v1596, 4
      %v1598 = vadd.f32 %v1596, %v1597
      %v1599 = vrot.slane %v1598, 2
      %v1600 = vadd.f32 %v1598, %v1599
      %v1601 = vrot.slane %v1600, 1
      %v1602 = vadd.f32 %v1600, %v1601
      %v1603 = vsel %vm195, %v597, 0.0
      %v1604 = vrot.slane %v1603, 4
      %v1605 = vadd.f32 %v1603, %v1604
      %v1606 = vrot.slane %v1605, 2
      %v1607 = vadd.f32 %v1605, %v1606
      %v1608 = vrot.slane %v1607, 1
      %v1609 = vadd.f32 %v1607, %v1608
      %v1610 = vsel %vm195, %v598, 0.0
      %v1611 = vrot.slane %v1610, 4
      %v1612 = vadd.f32 %v1610, %v1611
      %v1613 = vrot.slane %v1612, 2
      %v1614 = vadd.f32 %v1612, %v1613
      %v1615 = vrot.slane %v1614, 1
      %v1616 = vadd.f32 %v1614, %v1615
      %v1617 = vsel %vm195, %v599, 0.0
      %v1618 = vrot.slane %v1617, 4
      %v1619 = vadd.f32 %v1617, %v1618
      %v1620 = vrot.slane %v1619, 2
      %v1621 = vadd.f32 %v1619, %v1620
      %v1622 = vrot.slane %v1621, 1
      %v1623 = vadd.f32 %v1621, %v1622
      %v1624 = vsel %vm195, %v600, 0.0
      %v1625 = vrot.slane %v1624, 4
      %v1626 = vadd.f32 %v1624, %v1625
      %v1627 = vrot.slane %v1626, 2
      %v1628 = vadd.f32 %v1626, %v1627
      %v1629 = vrot.slane %v1628, 1
      %v1630 = vadd.f32 %v1628, %v1629
      %v1631 = vsel %vm195, %v601, 0.0
      %v1632 = vrot.slane %v1631, 4
      %v1633 = vadd.f32 %v1631, %v1632
      %v1634 = vrot.slane %v1633, 2
      %v1635 = vadd.f32 %v1633, %v1634
      %v1636 = vrot.slane %v1635, 1
      %v1637 = vadd.f32 %v1635, %v1636
      %v1638 = vsel %vm195, %v602, 0.0
      %v1639 = vrot.slane %v1638, 4
      %v1640 = vadd.f32 %v1638, %v1639
      %v1641 = vrot.slane %v1640, 2
      %v1642 = vadd.f32 %v1640, %v1641
      %v1643 = vrot.slane %v1642, 1
      %v1644 = vadd.f32 %v1642, %v1643
      %v1645 = vsel %vm195, %v603, 0.0
      %v1646 = vrot.slane %v1645, 4
      %v1647 = vadd.f32 %v1645, %v1646
      %v1648 = vrot.slane %v1647, 2
      %v1649 = vadd.f32 %v1647, %v1648
      %v1650 = vrot.slane %v1649, 1
      %v1651 = vadd.f32 %v1649, %v1650
      %v1652 = vsel %vm195, %v604, 0.0
      %v1653 = vrot.slane %v1652, 4
      %v1654 = vadd.f32 %v1652, %v1653
      %v1655 = vrot.slane %v1654, 2
      %v1656 = vadd.f32 %v1654, %v1655
      %v1657 = vrot.slane %v1656, 1
      %v1658 = vadd.f32 %v1656, %v1657
      %v1659 = vsel %vm195, %v605, 0.0
      %v1660 = vrot.slane %v1659, 4
      %v1661 = vadd.f32 %v1659, %v1660
      %v1662 = vrot.slane %v1661, 2
      %v1663 = vadd.f32 %v1661, %v1662
      %v1664 = vrot.slane %v1663, 1
      %v1665 = vadd.f32 %v1663, %v1664
      %v1666 = vsel %vm195, %v606, 0.0
      %v1667 = vrot.slane %v1666, 4
      %v1668 = vadd.f32 %v1666, %v1667
      %v1669 = vrot.slane %v1668, 2
      %v1670 = vadd.f32 %v1668, %v1669
      %v1671 = vrot.slane %v1670, 1
      %v1672 = vadd.f32 %v1670, %v1671
      %v1673 = vsel %vm195, %v607, 0.0
      %v1674 = vrot.slane %v1673, 4
      %v1675 = vadd.f32 %v1673, %v1674
      %v1676 = vrot.slane %v1675, 2
      %v1677 = vadd.f32 %v1675, %v1676
      %v1678 = vrot.slane %v1677, 1
      %v1679 = vadd.f32 %v1677, %v1678
      %v1680 = vsel %vm195, %v608, 0.0
      %v1681 = vrot.slane %v1680, 4
      %v1682 = vadd.f32 %v1680, %v1681
      %v1683 = vrot.slane %v1682, 2
      %v1684 = vadd.f32 %v1682, %v1683
      %v1685 = vrot.slane %v1684, 1
      %v1686 = vadd.f32 %v1684, %v1685
      %v1687 = vsel %vm195, %v609, 0.0
      %v1688 = vrot.slane %v1687, 4
      %v1689 = vadd.f32 %v1687, %v1688
      %v1690 = vrot.slane %v1689, 2
      %v1691 = vadd.f32 %v1689, %v1690
      %v1692 = vrot.slane %v1691, 1
      %v1693 = vadd.f32 %v1691, %v1692
      %v1694 = vsel %vm195, %v610, 0.0
      %v1695 = vrot.slane %v1694, 4
      %v1696 = vadd.f32 %v1694, %v1695
      %v1697 = vrot.slane %v1696, 2
      %v1698 = vadd.f32 %v1696, %v1697
      %v1699 = vrot.slane %v1698, 1
      %v1700 = vadd.f32 %v1698, %v1699
      %v1701 = vsel %vm195, %v611, 0.0
      %v1702 = vrot.slane %v1701, 4
      %v1703 = vadd.f32 %v1701, %v1702
      %v1704 = vrot.slane %v1703, 2
      %v1705 = vadd.f32 %v1703, %v1704
      %v1706 = vrot.slane %v1705, 1
      %v1707 = vadd.f32 %v1705, %v1706
      %v1708 = vsel %vm195, %v612, 0.0
      %v1709 = vrot.slane %v1708, 4
      %v1710 = vadd.f32 %v1708, %v1709
      %v1711 = vrot.slane %v1710, 2
      %v1712 = vadd.f32 %v1710, %v1711
      %v1713 = vrot.slane %v1712, 1
      %v1714 = vadd.f32 %v1712, %v1713
      %v1715 = vsel %vm195, %v613, 0.0
      %v1716 = vrot.slane %v1715, 4
      %v1717 = vadd.f32 %v1715, %v1716
      %v1718 = vrot.slane %v1717, 2
      %v1719 = vadd.f32 %v1717, %v1718
      %v1720 = vrot.slane %v1719, 1
      %v1721 = vadd.f32 %v1719, %v1720
      %v1722 = vsel %vm195, %v614, 0.0
      %v1723 = vrot.slane %v1722, 4
      %v1724 = vadd.f32 %v1722, %v1723
      %v1725 = vrot.slane %v1724, 2
      %v1726 = vadd.f32 %v1724, %v1725
      %v1727 = vrot.slane %v1726, 1
      %v1728 = vadd.f32 %v1726, %v1727
      %v1729 = vsel %vm195, %v615, 0.0
      %v1730 = vrot.slane %v1729, 4
      %v1731 = vadd.f32 %v1729, %v1730
      %v1732 = vrot.slane %v1731, 2
      %v1733 = vadd.f32 %v1731, %v1732
      %v1734 = vrot.slane %v1733, 1
      %v1735 = vadd.f32 %v1733, %v1734
      %v1736 = vsel %vm195, %v616, 0.0
      %v1737 = vrot.slane %v1736, 4
      %v1738 = vadd.f32 %v1736, %v1737
      %v1739 = vrot.slane %v1738, 2
      %v1740 = vadd.f32 %v1738, %v1739
      %v1741 = vrot.slane %v1740, 1
      %v1742 = vadd.f32 %v1740, %v1741
      %v1743 = vsel %vm195, %v617, 0.0
      %v1744 = vrot.slane %v1743, 4
      %v1745 = vadd.f32 %v1743, %v1744
      %v1746 = vrot.slane %v1745, 2
      %v1747 = vadd.f32 %v1745, %v1746
      %v1748 = vrot.slane %v1747, 1
      %v1749 = vadd.f32 %v1747, %v1748
      %v1750 = vsel %vm195, %v618, 0.0
      %v1751 = vrot.slane %v1750, 4
      %v1752 = vadd.f32 %v1750, %v1751
      %v1753 = vrot.slane %v1752, 2
      %v1754 = vadd.f32 %v1752, %v1753
      %v1755 = vrot.slane %v1754, 1
      %v1756 = vadd.f32 %v1754, %v1755
      %v1757 = vsel %vm195, %v619, 0.0
      %v1758 = vrot.slane %v1757, 4
      %v1759 = vadd.f32 %v1757, %v1758
      %v1760 = vrot.slane %v1759, 2
      %v1761 = vadd.f32 %v1759, %v1760
      %v1762 = vrot.slane %v1761, 1
      %v1763 = vadd.f32 %v1761, %v1762
      %v1764 = vsel %vm195, %v620, 0.0
      %v1765 = vrot.slane %v1764, 4
      %v1766 = vadd.f32 %v1764, %v1765
      %v1767 = vrot.slane %v1766, 2
      %v1768 = vadd.f32 %v1766, %v1767
      %v1769 = vrot.slane %v1768, 1
      %v1770 = vadd.f32 %v1768, %v1769
      %v1771 = vsel %vm195, %v621, 0.0
      %v1772 = vrot.slane %v1771, 4
      %v1773 = vadd.f32 %v1771, %v1772
      %v1774 = vrot.slane %v1773, 2
      %v1775 = vadd.f32 %v1773, %v1774
      %v1776 = vrot.slane %v1775, 1
      %v1777 = vadd.f32 %v1775, %v1776
      %v1778 = vsel %vm195, %v622, 0.0
      %v1779 = vrot.slane %v1778, 4
      %v1780 = vadd.f32 %v1778, %v1779
      %v1781 = vrot.slane %v1780, 2
      %v1782 = vadd.f32 %v1780, %v1781
      %v1783 = vrot.slane %v1782, 1
      %v1784 = vadd.f32 %v1782, %v1783
      %v1785 = vsel %vm195, %v623, 0.0
      %v1786 = vrot.slane %v1785, 4
      %v1787 = vadd.f32 %v1785, %v1786
      %v1788 = vrot.slane %v1787, 2
      %v1789 = vadd.f32 %v1787, %v1788
      %v1790 = vrot.slane %v1789, 1
      %v1791 = vadd.f32 %v1789, %v1790
      %v1792 = vsel %vm195, %v624, 0.0
      %v1793 = vrot.slane %v1792, 4
      %v1794 = vadd.f32 %v1792, %v1793
      %v1795 = vrot.slane %v1794, 2
      %v1796 = vadd.f32 %v1794, %v1795
      %v1797 = vrot.slane %v1796, 1
      %v1798 = vadd.f32 %v1796, %v1797
      %v1799 = vsel %vm195, %v625, 0.0
      %v1800 = vrot.slane %v1799, 4
      %v1801 = vadd.f32 %v1799, %v1800
      %v1802 = vrot.slane %v1801, 2
      %v1803 = vadd.f32 %v1801, %v1802
      %v1804 = vrot.slane %v1803, 1
      %v1805 = vadd.f32 %v1803, %v1804
      %v1806 = vsel %vm195, %v626, 0.0
      %v1807 = vrot.slane %v1806, 4
      %v1808 = vadd.f32 %v1806, %v1807
      %v1809 = vrot.slane %v1808, 2
      %v1810 = vadd.f32 %v1808, %v1809
      %v1811 = vrot.slane %v1810, 1
      %v1812 = vadd.f32 %v1810, %v1811
      %v1813 = vsel %vm195, %v627, 0.0
      %v1814 = vrot.slane %v1813, 4
      %v1815 = vadd.f32 %v1813, %v1814
      %v1816 = vrot.slane %v1815, 2
      %v1817 = vadd.f32 %v1815, %v1816
      %v1818 = vrot.slane %v1817, 1
      %v1819 = vadd.f32 %v1817, %v1818
      %v1820 = vsel %vm195, %v628, 0.0
      %v1821 = vrot.slane %v1820, 4
      %v1822 = vadd.f32 %v1820, %v1821
      %v1823 = vrot.slane %v1822, 2
      %v1824 = vadd.f32 %v1822, %v1823
      %v1825 = vrot.slane %v1824, 1
      %v1826 = vadd.f32 %v1824, %v1825
      %v1827 = vsel %vm195, %v629, 0.0
      %v1828 = vrot.slane %v1827, 4
      %v1829 = vadd.f32 %v1827, %v1828
      %v1830 = vrot.slane %v1829, 2
      %v1831 = vadd.f32 %v1829, %v1830
      %v1832 = vrot.slane %v1831, 1
      %v1833 = vadd.f32 %v1831, %v1832
      %v1834 = vsel %vm195, %v630, 0.0
      %v1835 = vrot.slane %v1834, 4
      %v1836 = vadd.f32 %v1834, %v1835
      %v1837 = vrot.slane %v1836, 2
      %v1838 = vadd.f32 %v1836, %v1837
      %v1839 = vrot.slane %v1838, 1
      %v1840 = vadd.f32 %v1838, %v1839
      %v1841 = vsel %vm195, %v631, 0.0
      %v1842 = vrot.slane %v1841, 4
      %v1843 = vadd.f32 %v1841, %v1842
      %v1844 = vrot.slane %v1843, 2
      %v1845 = vadd.f32 %v1843, %v1844
      %v1846 = vrot.slane %v1845, 1
      %v1847 = vadd.f32 %v1845, %v1846
      %v1848 = vsel %vm195, %v632, 0.0
      %v1849 = vrot.slane %v1848, 4
      %v1850 = vadd.f32 %v1848, %v1849
      %v1851 = vrot.slane %v1850, 2
      %v1852 = vadd.f32 %v1850, %v1851
      %v1853 = vrot.slane %v1852, 1
      %v1854 = vadd.f32 %v1852, %v1853
      %v1855 = vsel %vm195, %v633, 0.0
      %v1856 = vrot.slane %v1855, 4
      %v1857 = vadd.f32 %v1855, %v1856
      %v1858 = vrot.slane %v1857, 2
      %v1859 = vadd.f32 %v1857, %v1858
      %v1860 = vrot.slane %v1859, 1
      %v1861 = vadd.f32 %v1859, %v1860
      %v1862 = vsel %vm195, %v634, 0.0
      %v1863 = vrot.slane %v1862, 4
      %v1864 = vadd.f32 %v1862, %v1863
      %v1865 = vrot.slane %v1864, 2
      %v1866 = vadd.f32 %v1864, %v1865
      %v1867 = vrot.slane %v1866, 1
      %v1868 = vadd.f32 %v1866, %v1867
      %v1869 = vsel %vm195, %v635, 0.0
      %v1870 = vrot.slane %v1869, 4
      %v1871 = vadd.f32 %v1869, %v1870
      %v1872 = vrot.slane %v1871, 2
      %v1873 = vadd.f32 %v1871, %v1872
      %v1874 = vrot.slane %v1873, 1
      %v1875 = vadd.f32 %v1873, %v1874
      %v1876 = vsel %vm195, %v636, 0.0
      %v1877 = vrot.slane %v1876, 4
      %v1878 = vadd.f32 %v1876, %v1877
      %v1879 = vrot.slane %v1878, 2
      %v1880 = vadd.f32 %v1878, %v1879
      %v1881 = vrot.slane %v1880, 1
      %v1882 = vadd.f32 %v1880, %v1881
      %v1883 = vsel %vm195, %v637, 0.0
      %v1884 = vrot.slane %v1883, 4
      %v1885 = vadd.f32 %v1883, %v1884
      %v1886 = vrot.slane %v1885, 2
      %v1887 = vadd.f32 %v1885, %v1886
      %v1888 = vrot.slane %v1887, 1
      %v1889 = vadd.f32 %v1887, %v1888
      %v1890 = vsel %vm195, %v638, 0.0
      %v1891 = vrot.slane %v1890, 4
      %v1892 = vadd.f32 %v1890, %v1891
      %v1893 = vrot.slane %v1892, 2
      %v1894 = vadd.f32 %v1892, %v1893
      %v1895 = vrot.slane %v1894, 1
      %v1896 = vadd.f32 %v1894, %v1895
      %v1897 = vsel %vm195, %v639, 0.0
      %v1898 = vrot.slane %v1897, 4
      %v1899 = vadd.f32 %v1897, %v1898
      %v1900 = vrot.slane %v1899, 2
      %v1901 = vadd.f32 %v1899, %v1900
      %v1902 = vrot.slane %v1901, 1
      %v1903 = vadd.f32 %v1901, %v1902
      %v1904 = vsel %vm195, %v640, 0.0
      %v1905 = vrot.slane %v1904, 4
      %v1906 = vadd.f32 %v1904, %v1905
      %v1907 = vrot.slane %v1906, 2
      %v1908 = vadd.f32 %v1906, %v1907
      %v1909 = vrot.slane %v1908, 1
      %v1910 = vadd.f32 %v1908, %v1909
      %v1911 = vsel %vm195, %v641, 0.0
      %v1912 = vrot.slane %v1911, 4
      %v1913 = vadd.f32 %v1911, %v1912
      %v1914 = vrot.slane %v1913, 2
      %v1915 = vadd.f32 %v1913, %v1914
      %v1916 = vrot.slane %v1915, 1
      %v1917 = vadd.f32 %v1915, %v1916
      %v1918 = vsel %vm195, %v642, 0.0
      %v1919 = vrot.slane %v1918, 4
      %v1920 = vadd.f32 %v1918, %v1919
      %v1921 = vrot.slane %v1920, 2
      %v1922 = vadd.f32 %v1920, %v1921
      %v1923 = vrot.slane %v1922, 1
      %v1924 = vadd.f32 %v1922, %v1923
      %v1925 = vsel %vm195, %v643, 0.0
      %v1926 = vrot.slane %v1925, 4
      %v1927 = vadd.f32 %v1925, %v1926
      %v1928 = vrot.slane %v1927, 2
      %v1929 = vadd.f32 %v1927, %v1928
      %v1930 = vrot.slane %v1929, 1
      %v1931 = vadd.f32 %v1929, %v1930
      %v1932 = vsel %vm195, %v644, 0.0
      %v1933 = vrot.slane %v1932, 4
      %v1934 = vadd.f32 %v1932, %v1933
      %v1935 = vrot.slane %v1934, 2
      %v1936 = vadd.f32 %v1934, %v1935
      %v1937 = vrot.slane %v1936, 1
      %v1938 = vadd.f32 %v1936, %v1937
      %v1939 = vsel %vm195, %v645, 0.0
      %v1940 = vrot.slane %v1939, 4
      %v1941 = vadd.f32 %v1939, %v1940
      %v1942 = vrot.slane %v1941, 2
      %v1943 = vadd.f32 %v1941, %v1942
      %v1944 = vrot.slane %v1943, 1
      %v1945 = vadd.f32 %v1943, %v1944
      %v1946 = vsel %vm195, %v646, 0.0
      %v1947 = vrot.slane %v1946, 4
      %v1948 = vadd.f32 %v1946, %v1947
      %v1949 = vrot.slane %v1948, 2
      %v1950 = vadd.f32 %v1948, %v1949
      %v1951 = vrot.slane %v1950, 1
      %v1952 = vadd.f32 %v1950, %v1951
      %v1953 = vsel %vm195, %v647, 0.0
      %v1954 = vrot.slane %v1953, 4
      %v1955 = vadd.f32 %v1953, %v1954
      %v1956 = vrot.slane %v1955, 2
      %v1957 = vadd.f32 %v1955, %v1956
      %v1958 = vrot.slane %v1957, 1
      %v1959 = vadd.f32 %v1957, %v1958
      %v1960 = vsel %vm195, %v648, 0.0
      %v1961 = vrot.slane %v1960, 4
      %v1962 = vadd.f32 %v1960, %v1961
      %v1963 = vrot.slane %v1962, 2
      %v1964 = vadd.f32 %v1962, %v1963
      %v1965 = vrot.slane %v1964, 1
      %v1966 = vadd.f32 %v1964, %v1965
      %v1967 = vsel %vm195, %v649, 0.0
      %v1968 = vrot.slane %v1967, 4
      %v1969 = vadd.f32 %v1967, %v1968
      %v1970 = vrot.slane %v1969, 2
      %v1971 = vadd.f32 %v1969, %v1970
      %v1972 = vrot.slane %v1971, 1
      %v1973 = vadd.f32 %v1971, %v1972
      %v1974 = vsel %vm195, %v650, 0.0
      %v1975 = vrot.slane %v1974, 4
      %v1976 = vadd.f32 %v1974, %v1975
      %v1977 = vrot.slane %v1976, 2
      %v1978 = vadd.f32 %v1976, %v1977
      %v1979 = vrot.slane %v1978, 1
      %v1980 = vadd.f32 %v1978, %v1979
      %v1981 = vsel %vm195, %v651, 0.0
      %v1982 = vrot.slane %v1981, 4
      %v1983 = vadd.f32 %v1981, %v1982
      %v1984 = vrot.slane %v1983, 2
      %v1985 = vadd.f32 %v1983, %v1984
      %v1986 = vrot.slane %v1985, 1
      %v1987 = vadd.f32 %v1985, %v1986
      %v1988 = vsel %vm195, %v652, 0.0
      %v1989 = vrot.slane %v1988, 4
      %v1990 = vadd.f32 %v1988, %v1989
      %v1991 = vrot.slane %v1990, 2
      %v1992 = vadd.f32 %v1990, %v1991
      %v1993 = vrot.slane %v1992, 1
      %v1994 = vadd.f32 %v1992, %v1993
      %v1995 = vsel %vm195, %v653, 0.0
      %v1996 = vrot.slane %v1995, 4
      %v1997 = vadd.f32 %v1995, %v1996
      %v1998 = vrot.slane %v1997, 2
      %v1999 = vadd.f32 %v1997, %v1998
      %v2000 = vrot.slane %v1999, 1
      %v2001 = vadd.f32 %v1999, %v2000
      %v2002 = vsel %vm195, %v654, 0.0
      %v2003 = vrot.slane %v2002, 4
      %v2004 = vadd.f32 %v2002, %v2003
      %v2005 = vrot.slane %v2004, 2
      %v2006 = vadd.f32 %v2004, %v2005
      %v2007 = vrot.slane %v2006, 1
      %v2008 = vadd.f32 %v2006, %v2007
      %v2009 = vsel %vm195, %v655, 0.0
      %v2010 = vrot.slane %v2009, 4
      %v2011 = vadd.f32 %v2009, %v2010
      %v2012 = vrot.slane %v2011, 2
      %v2013 = vadd.f32 %v2011, %v2012
      %v2014 = vrot.slane %v2013, 1
      %v2015 = vadd.f32 %v2013, %v2014
      %v2016 = vsel %vm195, %v656, 0.0
      %v2017 = vrot.slane %v2016, 4
      %v2018 = vadd.f32 %v2016, %v2017
      %v2019 = vrot.slane %v2018, 2
      %v2020 = vadd.f32 %v2018, %v2019
      %v2021 = vrot.slane %v2020, 1
      %v2022 = vadd.f32 %v2020, %v2021
      %v2023 = vsel %vm195, %v657, 0.0
      %v2024 = vrot.slane %v2023, 4
      %v2025 = vadd.f32 %v2023, %v2024
      %v2026 = vrot.slane %v2025, 2
      %v2027 = vadd.f32 %v2025, %v2026
      %v2028 = vrot.slane %v2027, 1
      %v2029 = vadd.f32 %v2027, %v2028
      %v2030 = vsel %vm195, %v658, 0.0
      %v2031 = vrot.slane %v2030, 4
      %v2032 = vadd.f32 %v2030, %v2031
      %v2033 = vrot.slane %v2032, 2
      %v2034 = vadd.f32 %v2032, %v2033
      %v2035 = vrot.slane %v2034, 1
      %v2036 = vadd.f32 %v2034, %v2035
      %v2037 = vsel %vm195, %v659, 0.0
      %v2038 = vrot.slane %v2037, 4
      %v2039 = vadd.f32 %v2037, %v2038
      %v2040 = vrot.slane %v2039, 2
      %v2041 = vadd.f32 %v2039, %v2040
      %v2042 = vrot.slane %v2041, 1
      %v2043 = vadd.f32 %v2041, %v2042
      %v2044 = vsel %vm195, %v660, 0.0
      %v2045 = vrot.slane %v2044, 4
      %v2046 = vadd.f32 %v2044, %v2045
      %v2047 = vrot.slane %v2046, 2
      %v2048 = vadd.f32 %v2046, %v2047
      %v2049 = vrot.slane %v2048, 1
      %v2050 = vadd.f32 %v2048, %v2049
      %v2051 = vsel %vm195, %v661, 0.0
      %v2052 = vrot.slane %v2051, 4
      %v2053 = vadd.f32 %v2051, %v2052
      %v2054 = vrot.slane %v2053, 2
      %v2055 = vadd.f32 %v2053, %v2054
      %v2056 = vrot.slane %v2055, 1
      %v2057 = vadd.f32 %v2055, %v2056
      %v2058 = vsel %vm195, %v662, 0.0
      %v2059 = vrot.slane %v2058, 4
      %v2060 = vadd.f32 %v2058, %v2059
      %v2061 = vrot.slane %v2060, 2
      %v2062 = vadd.f32 %v2060, %v2061
      %v2063 = vrot.slane %v2062, 1
      %v2064 = vadd.f32 %v2062, %v2063
      %v2065 = vsel %vm195, %v663, 0.0
      %v2066 = vrot.slane %v2065, 4
      %v2067 = vadd.f32 %v2065, %v2066
      %v2068 = vrot.slane %v2067, 2
      %v2069 = vadd.f32 %v2067, %v2068
      %v2070 = vrot.slane %v2069, 1
      %v2071 = vadd.f32 %v2069, %v2070
      %v2072 = vsel %vm195, %v664, 0.0
      %v2073 = vrot.slane %v2072, 4
      %v2074 = vadd.f32 %v2072, %v2073
      %v2075 = vrot.slane %v2074, 2
      %v2076 = vadd.f32 %v2074, %v2075
      %v2077 = vrot.slane %v2076, 1
      %v2078 = vadd.f32 %v2076, %v2077
      %v2079 = vsel %vm195, %v665, 0.0
      %v2080 = vrot.slane %v2079, 4
      %v2081 = vadd.f32 %v2079, %v2080
      %v2082 = vrot.slane %v2081, 2
      %v2083 = vadd.f32 %v2081, %v2082
      %v2084 = vrot.slane %v2083, 1
      %v2085 = vadd.f32 %v2083, %v2084
      %v2086 = vsel %vm195, %v666, 0.0
      %v2087 = vrot.slane %v2086, 4
      %v2088 = vadd.f32 %v2086, %v2087
      %v2089 = vrot.slane %v2088, 2
      %v2090 = vadd.f32 %v2088, %v2089
      %v2091 = vrot.slane %v2090, 1
      %v2092 = vadd.f32 %v2090, %v2091
      %v2093 = vsel %vm195, %v667, 0.0
      %v2094 = vrot.slane %v2093, 4
      %v2095 = vadd.f32 %v2093, %v2094
      %v2096 = vrot.slane %v2095, 2
      %v2097 = vadd.f32 %v2095, %v2096
      %v2098 = vrot.slane %v2097, 1
      %v2099 = vadd.f32 %v2097, %v2098
      %v2100 = vsel %vm195, %v668, 0.0
      %v2101 = vrot.slane %v2100, 4
      %v2102 = vadd.f32 %v2100, %v2101
      %v2103 = vrot.slane %v2102, 2
      %v2104 = vadd.f32 %v2102, %v2103
      %v2105 = vrot.slane %v2104, 1
      %v2106 = vadd.f32 %v2104, %v2105
      %v2107 = vsel %vm195, %v669, 0.0
      %v2108 = vrot.slane %v2107, 4
      %v2109 = vadd.f32 %v2107, %v2108
      %v2110 = vrot.slane %v2109, 2
      %v2111 = vadd.f32 %v2109, %v2110
      %v2112 = vrot.slane %v2111, 1
      %v2113 = vadd.f32 %v2111, %v2112
      %v2114 = vsel %vm195, %v670, 0.0
      %v2115 = vrot.slane %v2114, 4
      %v2116 = vadd.f32 %v2114, %v2115
      %v2117 = vrot.slane %v2116, 2
      %v2118 = vadd.f32 %v2116, %v2117
      %v2119 = vrot.slane %v2118, 1
      %v2120 = vadd.f32 %v2118, %v2119
      %v2121 = vsel %vm195, %v671, 0.0
      %v2122 = vrot.slane %v2121, 4
      %v2123 = vadd.f32 %v2121, %v2122
      %v2124 = vrot.slane %v2123, 2
      %v2125 = vadd.f32 %v2123, %v2124
      %v2126 = vrot.slane %v2125, 1
      %v2127 = vadd.f32 %v2125, %v2126
      %v2128 = vsel %vm195, %v672, 0.0
      %v2129 = vrot.slane %v2128, 4
      %v2130 = vadd.f32 %v2128, %v2129
      %v2131 = vrot.slane %v2130, 2
      %v2132 = vadd.f32 %v2130, %v2131
      %v2133 = vrot.slane %v2132, 1
      %v2134 = vadd.f32 %v2132, %v2133
      %v2135 = vsel %vm195, %v673, 0.0
      %v2136 = vrot.slane %v2135, 4
      %v2137 = vadd.f32 %v2135, %v2136
      %v2138 = vrot.slane %v2137, 2
      %v2139 = vadd.f32 %v2137, %v2138
      %v2140 = vrot.slane %v2139, 1
      %v2141 = vadd.f32 %v2139, %v2140
      %v2142 = vsel %vm195, %v674, 0.0
      %v2143 = vrot.slane %v2142, 4
      %v2144 = vadd.f32 %v2142, %v2143
      %v2145 = vrot.slane %v2144, 2
      %v2146 = vadd.f32 %v2144, %v2145
      %v2147 = vrot.slane %v2146, 1
      %v2148 = vadd.f32 %v2146, %v2147
      %v2149 = vsel %vm195, %v675, 0.0
      %v2150 = vrot.slane %v2149, 4
      %v2151 = vadd.f32 %v2149, %v2150
      %v2152 = vrot.slane %v2151, 2
      %v2153 = vadd.f32 %v2151, %v2152
      %v2154 = vrot.slane %v2153, 1
      %v2155 = vadd.f32 %v2153, %v2154
      %v2156 = vsel %vm195, %v676, 0.0
      %v2157 = vrot.slane %v2156, 4
      %v2158 = vadd.f32 %v2156, %v2157
      %v2159 = vrot.slane %v2158, 2
      %v2160 = vadd.f32 %v2158, %v2159
      %v2161 = vrot.slane %v2160, 1
      %v2162 = vadd.f32 %v2160, %v2161
      %v2163 = vsel %vm195, %v677, 0.0
      %v2164 = vrot.slane %v2163, 4
      %v2165 = vadd.f32 %v2163, %v2164
      %v2166 = vrot.slane %v2165, 2
      %v2167 = vadd.f32 %v2165, %v2166
      %v2168 = vrot.slane %v2167, 1
      %v2169 = vadd.f32 %v2167, %v2168
      %v2170 = vsel %vm195, %v678, 0.0
      %v2171 = vrot.slane %v2170, 4
      %v2172 = vadd.f32 %v2170, %v2171
      %v2173 = vrot.slane %v2172, 2
      %v2174 = vadd.f32 %v2172, %v2173
      %v2175 = vrot.slane %v2174, 1
      %v2176 = vadd.f32 %v2174, %v2175
      %v2177 = vsel %vm195, %v679, 0.0
      %v2178 = vrot.slane %v2177, 4
      %v2179 = vadd.f32 %v2177, %v2178
      %v2180 = vrot.slane %v2179, 2
      %v2181 = vadd.f32 %v2179, %v2180
      %v2182 = vrot.slane %v2181, 1
      %v2183 = vadd.f32 %v2181, %v2182
      %v2184 = vsel %vm195, %v680, 0.0
      %v2185 = vrot.slane %v2184, 4
      %v2186 = vadd.f32 %v2184, %v2185
      %v2187 = vrot.slane %v2186, 2
      %v2188 = vadd.f32 %v2186, %v2187
      %v2189 = vrot.slane %v2188, 1
      %v2190 = vadd.f32 %v2188, %v2189
      %v2191 = vsel %vm195, %v681, 0.0
      %v2192 = vrot.slane %v2191, 4
      %v2193 = vadd.f32 %v2191, %v2192
      %v2194 = vrot.slane %v2193, 2
      %v2195 = vadd.f32 %v2193, %v2194
      %v2196 = vrot.slane %v2195, 1
      %v2197 = vadd.f32 %v2195, %v2196
      %v2198 = vsel %vm195, %v682, 0.0
      %v2199 = vrot.slane %v2198, 4
      %v2200 = vadd.f32 %v2198, %v2199
      %v2201 = vrot.slane %v2200, 2
      %v2202 = vadd.f32 %v2200, %v2201
      %v2203 = vrot.slane %v2202, 1
      %v2204 = vadd.f32 %v2202, %v2203
      %v2205 = vsel %vm195, %v683, 0.0
      %v2206 = vrot.slane %v2205, 4
      %v2207 = vadd.f32 %v2205, %v2206
      %v2208 = vrot.slane %v2207, 2
      %v2209 = vadd.f32 %v2207, %v2208
      %v2210 = vrot.slane %v2209, 1
      %v2211 = vadd.f32 %v2209, %v2210
      %v2212 = vsel %vm195, %v684, 0.0
      %v2213 = vrot.slane %v2212, 4
      %v2214 = vadd.f32 %v2212, %v2213
      %v2215 = vrot.slane %v2214, 2
      %v2216 = vadd.f32 %v2214, %v2215
      %v2217 = vrot.slane %v2216, 1
      %v2218 = vadd.f32 %v2216, %v2217
      %v2219 = vsel %vm195, %v685, 0.0
      %v2220 = vrot.slane %v2219, 4
      %v2221 = vadd.f32 %v2219, %v2220
      %v2222 = vrot.slane %v2221, 2
      %v2223 = vadd.f32 %v2221, %v2222
      %v2224 = vrot.slane %v2223, 1
      %v2225 = vadd.f32 %v2223, %v2224
      %v2226 = vsel %vm195, %v686, 0.0
      %v2227 = vrot.slane %v2226, 4
      %v2228 = vadd.f32 %v2226, %v2227
      %v2229 = vrot.slane %v2228, 2
      %v2230 = vadd.f32 %v2228, %v2229
      %v2231 = vrot.slane %v2230, 1
      %v2232 = vadd.f32 %v2230, %v2231
      %v2233 = vsel %vm195, %v687, 0.0
      %v2234 = vrot.slane %v2233, 4
      %v2235 = vadd.f32 %v2233, %v2234
      %v2236 = vrot.slane %v2235, 2
      %v2237 = vadd.f32 %v2235, %v2236
      %v2238 = vrot.slane %v2237, 1
      %v2239 = vadd.f32 %v2237, %v2238
      %v2240 = vsel %vm195, %v688, 0.0
      %v2241 = vrot.slane %v2240, 4
      %v2242 = vadd.f32 %v2240, %v2241
      %v2243 = vrot.slane %v2242, 2
      %v2244 = vadd.f32 %v2242, %v2243
      %v2245 = vrot.slane %v2244, 1
      %v2246 = vadd.f32 %v2244, %v2245
      %v2247 = vsel %vm195, %v689, 0.0
      %v2248 = vrot.slane %v2247, 4
      %v2249 = vadd.f32 %v2247, %v2248
      %v2250 = vrot.slane %v2249, 2
      %v2251 = vadd.f32 %v2249, %v2250
      %v2252 = vrot.slane %v2251, 1
      %v2253 = vadd.f32 %v2251, %v2252
      %v2254 = vsel %vm195, %v690, 0.0
      %v2255 = vrot.slane %v2254, 4
      %v2256 = vadd.f32 %v2254, %v2255
      %v2257 = vrot.slane %v2256, 2
      %v2258 = vadd.f32 %v2256, %v2257
      %v2259 = vrot.slane %v2258, 1
      %v2260 = vadd.f32 %v2258, %v2259
      %v2261 = vsel %vm195, %v691, 0.0
      %v2262 = vrot.slane %v2261, 4
      %v2263 = vadd.f32 %v2261, %v2262
      %v2264 = vrot.slane %v2263, 2
      %v2265 = vadd.f32 %v2263, %v2264
      %v2266 = vrot.slane %v2265, 1
      %v2267 = vadd.f32 %v2265, %v2266
      %v2268 = vsel %vm195, %v692, 0.0
      %v2269 = vrot.slane %v2268, 4
      %v2270 = vadd.f32 %v2268, %v2269
      %v2271 = vrot.slane %v2270, 2
      %v2272 = vadd.f32 %v2270, %v2271
      %v2273 = vrot.slane %v2272, 1
      %v2274 = vadd.f32 %v2272, %v2273
      %v2275 = vsel %vm195, %v693, 0.0
      %v2276 = vrot.slane %v2275, 4
      %v2277 = vadd.f32 %v2275, %v2276
      %v2278 = vrot.slane %v2277, 2
      %v2279 = vadd.f32 %v2277, %v2278
      %v2280 = vrot.slane %v2279, 1
      %v2281 = vadd.f32 %v2279, %v2280
      %v2282 = vsel %vm195, %v694, 0.0
      %v2283 = vrot.slane %v2282, 4
      %v2284 = vadd.f32 %v2282, %v2283
      %v2285 = vrot.slane %v2284, 2
      %v2286 = vadd.f32 %v2284, %v2285
      %v2287 = vrot.slane %v2286, 1
      %v2288 = vadd.f32 %v2286, %v2287
      %v2289 = vsel %vm195, %v695, 0.0
      %v2290 = vrot.slane %v2289, 4
      %v2291 = vadd.f32 %v2289, %v2290
      %v2292 = vrot.slane %v2291, 2
      %v2293 = vadd.f32 %v2291, %v2292
      %v2294 = vrot.slane %v2293, 1
      %v2295 = vadd.f32 %v2293, %v2294
      %v2296 = vsel %vm195, %v696, 0.0
      %v2297 = vrot.slane %v2296, 4
      %v2298 = vadd.f32 %v2296, %v2297
      %v2299 = vrot.slane %v2298, 2
      %v2300 = vadd.f32 %v2298, %v2299
      %v2301 = vrot.slane %v2300, 1
      %v2302 = vadd.f32 %v2300, %v2301
      %v2303 = vsel %vm195, %v697, 0.0
      %v2304 = vrot.slane %v2303, 4
      %v2305 = vadd.f32 %v2303, %v2304
      %v2306 = vrot.slane %v2305, 2
      %v2307 = vadd.f32 %v2305, %v2306
      %v2308 = vrot.slane %v2307, 1
      %v2309 = vadd.f32 %v2307, %v2308
      %v2310 = vsel %vm195, %v698, 0.0
      %v2311 = vrot.slane %v2310, 4
      %v2312 = vadd.f32 %v2310, %v2311
      %v2313 = vrot.slane %v2312, 2
      %v2314 = vadd.f32 %v2312, %v2313
      %v2315 = vrot.slane %v2314, 1
      %v2316 = vadd.f32 %v2314, %v2315
      %v2317 = vsel %vm195, %v699, 0.0
      %v2318 = vrot.slane %v2317, 4
      %v2319 = vadd.f32 %v2317, %v2318
      %v2320 = vrot.slane %v2319, 2
      %v2321 = vadd.f32 %v2319, %v2320
      %v2322 = vrot.slane %v2321, 1
      %v2323 = vadd.f32 %v2321, %v2322
      %v2324 = vsel %vm195, %v700, 0.0
      %v2325 = vrot.slane %v2324, 4
      %v2326 = vadd.f32 %v2324, %v2325
      %v2327 = vrot.slane %v2326, 2
      %v2328 = vadd.f32 %v2326, %v2327
      %v2329 = vrot.slane %v2328, 1
      %v2330 = vadd.f32 %v2328, %v2329
      %v2331 = vsel %vm195, %v701, 0.0
      %v2332 = vrot.slane %v2331, 4
      %v2333 = vadd.f32 %v2331, %v2332
      %v2334 = vrot.slane %v2333, 2
      %v2335 = vadd.f32 %v2333, %v2334
      %v2336 = vrot.slane %v2335, 1
      %v2337 = vadd.f32 %v2335, %v2336
      %v2338 = vsel %vm195, %v702, 0.0
      %v2339 = vrot.slane %v2338, 4
      %v2340 = vadd.f32 %v2338, %v2339
      %v2341 = vrot.slane %v2340, 2
      %v2342 = vadd.f32 %v2340, %v2341
      %v2343 = vrot.slane %v2342, 1
      %v2344 = vadd.f32 %v2342, %v2343
      %v2345 = vsel %vm195, %v703, 0.0
      %v2346 = vrot.slane %v2345, 4
      %v2347 = vadd.f32 %v2345, %v2346
      %v2348 = vrot.slane %v2347, 2
      %v2349 = vadd.f32 %v2347, %v2348
      %v2350 = vrot.slane %v2349, 1
      %v2351 = vadd.f32 %v2349, %v2350
      %v2352 = vsel %vm195, %v704, 0.0
      %v2353 = vrot.slane %v2352, 4
      %v2354 = vadd.f32 %v2352, %v2353
      %v2355 = vrot.slane %v2354, 2
      %v2356 = vadd.f32 %v2354, %v2355
      %v2357 = vrot.slane %v2356, 1
      %v2358 = vadd.f32 %v2356, %v2357
      %v2359 = vsel %vm195, %v705, 0.0
      %v2360 = vrot.slane %v2359, 4
      %v2361 = vadd.f32 %v2359, %v2360
      %v2362 = vrot.slane %v2361, 2
      %v2363 = vadd.f32 %v2361, %v2362
      %v2364 = vrot.slane %v2363, 1
      %v2365 = vadd.f32 %v2363, %v2364
      %v2366 = vsel %vm195, %v706, 0.0
      %v2367 = vrot.slane %v2366, 4
      %v2368 = vadd.f32 %v2366, %v2367
      %v2369 = vrot.slane %v2368, 2
      %v2370 = vadd.f32 %v2368, %v2369
      %v2371 = vrot.slane %v2370, 1
      %v2372 = vadd.f32 %v2370, %v2371
      %v2373 = vsel %vm195, %v707, 0.0
      %v2374 = vrot.slane %v2373, 4
      %v2375 = vadd.f32 %v2373, %v2374
      %v2376 = vrot.slane %v2375, 2
      %v2377 = vadd.f32 %v2375, %v2376
      %v2378 = vrot.slane %v2377, 1
      %v2379 = vadd.f32 %v2377, %v2378
      %v2380 = vsel %vm195, %v708, 0.0
      %v2381 = vrot.slane %v2380, 4
      %v2382 = vadd.f32 %v2380, %v2381
      %v2383 = vrot.slane %v2382, 2
      %v2384 = vadd.f32 %v2382, %v2383
      %v2385 = vrot.slane %v2384, 1
      %v2386 = vadd.f32 %v2384, %v2385
      %v2387 = vsel %vm195, %v709, 0.0
      %v2388 = vrot.slane %v2387, 4
      %v2389 = vadd.f32 %v2387, %v2388
      %v2390 = vrot.slane %v2389, 2
      %v2391 = vadd.f32 %v2389, %v2390
      %v2392 = vrot.slane %v2391, 1
      %v2393 = vadd.f32 %v2391, %v2392
      %v2394 = vsel %vm195, %v710, 0.0
      %v2395 = vrot.slane %v2394, 4
      %v2396 = vadd.f32 %v2394, %v2395
      %v2397 = vrot.slane %v2396, 2
      %v2398 = vadd.f32 %v2396, %v2397
      %v2399 = vrot.slane %v2398, 1
      %v2400 = vadd.f32 %v2398, %v2399
      %v2401 = vsel %vm195, %v711, 0.0
      %v2402 = vrot.slane %v2401, 4
      %v2403 = vadd.f32 %v2401, %v2402
      %v2404 = vrot.slane %v2403, 2
      %v2405 = vadd.f32 %v2403, %v2404
      %v2406 = vrot.slane %v2405, 1
      %v2407 = vadd.f32 %v2405, %v2406
      %v2408 = vsel %vm195, %v712, 0.0
      %v2409 = vrot.slane %v2408, 4
      %v2410 = vadd.f32 %v2408, %v2409
      %v2411 = vrot.slane %v2410, 2
      %v2412 = vadd.f32 %v2410, %v2411
      %v2413 = vrot.slane %v2412, 1
      %v2414 = vadd.f32 %v2412, %v2413
      %v2415 = vsel %vm195, %v713, 0.0
      %v2416 = vrot.slane %v2415, 4
      %v2417 = vadd.f32 %v2415, %v2416
      %v2418 = vrot.slane %v2417, 2
      %v2419 = vadd.f32 %v2417, %v2418
      %v2420 = vrot.slane %v2419, 1
      %v2421 = vadd.f32 %v2419, %v2420
      %v2422 = vsel %vm195, %v714, 0.0
      %v2423 = vrot.slane %v2422, 4
      %v2424 = vadd.f32 %v2422, %v2423
      %v2425 = vrot.slane %v2424, 2
      %v2426 = vadd.f32 %v2424, %v2425
      %v2427 = vrot.slane %v2426, 1
      %v2428 = vadd.f32 %v2426, %v2427
      %v2429 = vsel %vm195, %v715, 0.0
      %v2430 = vrot.slane %v2429, 4
      %v2431 = vadd.f32 %v2429, %v2430
      %v2432 = vrot.slane %v2431, 2
      %v2433 = vadd.f32 %v2431, %v2432
      %v2434 = vrot.slane %v2433, 1
      %v2435 = vadd.f32 %v2433, %v2434
      %v2436 = vsel %vm195, %v716, 0.0
      %v2437 = vrot.slane %v2436, 4
      %v2438 = vadd.f32 %v2436, %v2437
      %v2439 = vrot.slane %v2438, 2
      %v2440 = vadd.f32 %v2438, %v2439
      %v2441 = vrot.slane %v2440, 1
      %v2442 = vadd.f32 %v2440, %v2441
      %v2443 = vsel %vm195, %v717, 0.0
      %v2444 = vrot.slane %v2443, 4
      %v2445 = vadd.f32 %v2443, %v2444
      %v2446 = vrot.slane %v2445, 2
      %v2447 = vadd.f32 %v2445, %v2446
      %v2448 = vrot.slane %v2447, 1
      %v2449 = vadd.f32 %v2447, %v2448
      %v2450 = vsel %vm195, %v718, 0.0
      %v2451 = vrot.slane %v2450, 4
      %v2452 = vadd.f32 %v2450, %v2451
      %v2453 = vrot.slane %v2452, 2
      %v2454 = vadd.f32 %v2452, %v2453
      %v2455 = vrot.slane %v2454, 1
      %v2456 = vadd.f32 %v2454, %v2455
      %v2457 = vsel %vm195, %v719, 0.0
      %v2458 = vrot.slane %v2457, 4
      %v2459 = vadd.f32 %v2457, %v2458
      %v2460 = vrot.slane %v2459, 2
      %v2461 = vadd.f32 %v2459, %v2460
      %v2462 = vrot.slane %v2461, 1
      %v2463 = vadd.f32 %v2461, %v2462
      %v2464 = vsel %vm195, %v720, 0.0
      %v2465 = vrot.slane %v2464, 4
      %v2466 = vadd.f32 %v2464, %v2465
      %v2467 = vrot.slane %v2466, 2
      %v2468 = vadd.f32 %v2466, %v2467
      %v2469 = vrot.slane %v2468, 1
      %v2470 = vadd.f32 %v2468, %v2469
      %v2471 = vsel %vm195, %v721, 0.0
      %v2472 = vrot.slane %v2471, 4
      %v2473 = vadd.f32 %v2471, %v2472
      %v2474 = vrot.slane %v2473, 2
      %v2475 = vadd.f32 %v2473, %v2474
      %v2476 = vrot.slane %v2475, 1
      %v2477 = vadd.f32 %v2475, %v2476
      %v2478 = vsel %vm195, %v722, 0.0
      %v2479 = vrot.slane %v2478, 4
      %v2480 = vadd.f32 %v2478, %v2479
      %v2481 = vrot.slane %v2480, 2
      %v2482 = vadd.f32 %v2480, %v2481
      %v2483 = vrot.slane %v2482, 1
      %v2484 = vadd.f32 %v2482, %v2483
      %v2485 = vsel %vm195, %v723, 0.0
      %v2486 = vrot.slane %v2485, 4
      %v2487 = vadd.f32 %v2485, %v2486
      %v2488 = vrot.slane %v2487, 2
      %v2489 = vadd.f32 %v2487, %v2488
      %v2490 = vrot.slane %v2489, 1
      %v2491 = vadd.f32 %v2489, %v2490
      %v2492 = vsel %vm195, %v724, 0.0
      %v2493 = vrot.slane %v2492, 4
      %v2494 = vadd.f32 %v2492, %v2493
      %v2495 = vrot.slane %v2494, 2
      %v2496 = vadd.f32 %v2494, %v2495
      %v2497 = vrot.slane %v2496, 1
      %v2498 = vadd.f32 %v2496, %v2497
      %v2499 = vsel %vm195, %v725, 0.0
      %v2500 = vrot.slane %v2499, 4
      %v2501 = vadd.f32 %v2499, %v2500
      %v2502 = vrot.slane %v2501, 2
      %v2503 = vadd.f32 %v2501, %v2502
      %v2504 = vrot.slane %v2503, 1
      %v2505 = vadd.f32 %v2503, %v2504
      %v2506 = vsel %vm195, %v726, 0.0
      %v2507 = vrot.slane %v2506, 4
      %v2508 = vadd.f32 %v2506, %v2507
      %v2509 = vrot.slane %v2508, 2
      %v2510 = vadd.f32 %v2508, %v2509
      %v2511 = vrot.slane %v2510, 1
      %v2512 = vadd.f32 %v2510, %v2511
      %v2513 = vsel %vm195, %v727, 0.0
      %v2514 = vrot.slane %v2513, 4
      %v2515 = vadd.f32 %v2513, %v2514
      %v2516 = vrot.slane %v2515, 2
      %v2517 = vadd.f32 %v2515, %v2516
      %v2518 = vrot.slane %v2517, 1
      %v2519 = vadd.f32 %v2517, %v2518
      %v2520 = vrcp.pop 16.0
      %v2521 = vmul.f32 %v2520, %v734
      %v2522 = vmul.f32 %v2520, %v741
      %v2523 = vmul.f32 %v2520, %v748
      %v2524 = vmul.f32 %v2520, %v755
      %v2525 = vmul.f32 %v2520, %v762
      %v2526 = vmul.f32 %v2520, %v769
      %v2527 = vmul.f32 %v2520, %v776
      %v2528 = vmul.f32 %v2520, %v783
      %v2529 = vmul.f32 %v2520, %v790
      %v2530 = vmul.f32 %v2520, %v797
      %v2531 = vmul.f32 %v2520, %v804
      %v2532 = vmul.f32 %v2520, %v811
      %v2533 = vmul.f32 %v2520, %v818
      %v2534 = vmul.f32 %v2520, %v825
      %v2535 = vmul.f32 %v2520, %v832
      %v2536 = vmul.f32 %v2520, %v839
      %v2537 = vmul.f32 %v2520, %v846
      %v2538 = vmul.f32 %v2520, %v853
      %v2539 = vmul.f32 %v2520, %v860
      %v2540 = vmul.f32 %v2520, %v867
      %v2541 = vmul.f32 %v2520, %v874
      %v2542 = vmul.f32 %v2520, %v881
      %v2543 = vmul.f32 %v2520, %v888
      %v2544 = vmul.f32 %v2520, %v895
      %v2545 = vmul.f32 %v2520, %v902
      %v2546 = vmul.f32 %v2520, %v909
      %v2547 = vmul.f32 %v2520, %v916
      %v2548 = vmul.f32 %v2520, %v923
      %v2549 = vmul.f32 %v2520, %v930
      %v2550 = vmul.f32 %v2520, %v937
      %v2551 = vmul.f32 %v2520, %v944
      %v2552 = vmul.f32 %v2520, %v951
      %v2553 = vmul.f32 %v2520, %v958
      %v2554 = vmul.f32 %v2520, %v965
      %v2555 = vmul.f32 %v2520, %v972
      %v2556 = vmul.f32 %v2520, %v979
      %v2557 = vmul.f32 %v2520, %v986
      %v2558 = vmul.f32 %v2520, %v993
      %v2559 = vmul.f32 %v2520, %v1000
      %v2560 = vmul.f32 %v2520, %v1007
      %v2561 = vmul.f32 %v2520, %v1014
      %v2562 = vmul.f32 %v2520, %v1021
      %v2563 = vmul.f32 %v2520, %v1028
      %v2564 = vmul.f32 %v2520, %v1035
      %v2565 = vmul.f32 %v2520, %v1042
      %v2566 = vmul.f32 %v2520, %v1049
      %v2567 = vmul.f32 %v2520, %v1056
      %v2568 = vmul.f32 %v2520, %v1063
      %v2569 = vmul.f32 %v2520, %v1070
      %v2570 = vmul.f32 %v2520, %v1077
      %v2571 = vmul.f32 %v2520, %v1084
      %v2572 = vmul.f32 %v2520, %v1091
      %v2573 = vmul.f32 %v2520, %v1098
      %v2574 = vmul.f32 %v2520, %v1105
      %v2575 = vmul.f32 %v2520, %v1112
      %v2576 = vmul.f32 %v2520, %v1119
      %v2577 = vmul.f32 %v2520, %v1126
      %v2578 = vmul.f32 %v2520, %v1133
      %v2579 = vmul.f32 %v2520, %v1140
      %v2580 = vmul.f32 %v2520, %v1147
      %v2581 = vmul.f32 %v2520, %v1154
      %v2582 = vmul.f32 %v2520, %v1161
      %v2583 = vmul.f32 %v2520, %v1168
      %v2584 = vmul.f32 %v2520, %v1175
      %v2585 = vmul.f32 %v2520, %v1182
      %v2586 = vmul.f32 %v2520, %v1189
      %v2587 = vmul.f32 %v2520, %v1196
      %v2588 = vmul.f32 %v2520, %v1203
      %v2589 = vmul.f32 %v2520, %v1210
      %v2590 = vmul.f32 %v2520, %v1217
      %v2591 = vmul.f32 %v2520, %v1224
      %v2592 = vmul.f32 %v2520, %v1231
      %v2593 = vmul.f32 %v2520, %v1238
      %v2594 = vmul.f32 %v2520, %v1245
      %v2595 = vmul.f32 %v2520, %v1252
      %v2596 = vmul.f32 %v2520, %v1259
      %v2597 = vmul.f32 %v2520, %v1266
      %v2598 = vmul.f32 %v2520, %v1273
      %v2599 = vmul.f32 %v2520, %v1280
      %v2600 = vmul.f32 %v2520, %v1287
      %v2601 = vmul.f32 %v2520, %v1294
      %v2602 = vmul.f32 %v2520, %v1301
      %v2603 = vmul.f32 %v2520, %v1308
      %v2604 = vmul.f32 %v2520, %v1315
      %v2605 = vmul.f32 %v2520, %v1322
      %v2606 = vmul.f32 %v2520, %v1329
      %v2607 = vmul.f32 %v2520, %v1336
      %v2608 = vmul.f32 %v2520, %v1343
      %v2609 = vmul.f32 %v2520, %v1350
      %v2610 = vmul.f32 %v2520, %v1357
      %v2611 = vmul.f32 %v2520, %v1364
      %v2612 = vmul.f32 %v2520, %v1371
      %v2613 = vmul.f32 %v2520, %v1378
      %v2614 = vmul.f32 %v2520, %v1385
      %v2615 = vmul.f32 %v2520, %v1392
      %v2616 = vmul.f32 %v2520, %v1399
      %v2617 = vmul.f32 %v2520, %v1406
      %v2618 = vmul.f32 %v2520, %v1413
      %v2619 = vmul.f32 %v2520, %v1420
      %v2620 = vmul.f32 %v2520, %v1427
      %v2621 = vmul.f32 %v2520, %v1434
      %v2622 = vmul.f32 %v2520, %v1441
      %v2623 = vmul.f32 %v2520, %v1448
      %v2624 = vmul.f32 %v2520, %v1455
      %v2625 = vmul.f32 %v2520, %v1462
      %v2626 = vmul.f32 %v2520, %v1469
      %v2627 = vmul.f32 %v2520, %v1476
      %v2628 = vmul.f32 %v2520, %v1483
      %v2629 = vmul.f32 %v2520, %v1490
      %v2630 = vmul.f32 %v2520, %v1497
      %v2631 = vmul.f32 %v2520, %v1504
      %v2632 = vmul.f32 %v2520, %v1511
      %v2633 = vmul.f32 %v2520, %v1518
      %v2634 = vmul.f32 %v2520, %v1525
      %v2635 = vmul.f32 %v2520, %v1532
      %v2636 = vmul.f32 %v2520, %v1539
      %v2637 = vmul.f32 %v2520, %v1546
      %v2638 = vmul.f32 %v2520, %v1553
      %v2639 = vmul.f32 %v2520, %v1560
      %v2640 = vmul.f32 %v2520, %v1567
      %v2641 = vmul.f32 %v2520, %v1574
      %v2642 = vmul.f32 %v2520, %v1581
      %v2643 = vmul.f32 %v2520, %v1588
      %v2644 = vmul.f32 %v2520, %v1595
      %v2645 = vmul.f32 %v2520, %v1602
      %v2646 = vmul.f32 %v2520, %v1609
      %v2647 = vmul.f32 %v2520, %v1616
      %v2648 = vmul.f32 %v2520, %v1623
      %v2649 = vmul.f32 %v2520, %v1630
      %v2650 = vmul.f32 %v2520, %v1637
      %v2651 = vmul.f32 %v2520, %v1644
      %v2652 = vmul.f32 %v2520, %v1651
      %v2653 = vmul.f32 %v2520, %v1658
      %v2654 = vmul.f32 %v2520, %v1665
      %v2655 = vmul.f32 %v2520, %v1672
      %v2656 = vmul.f32 %v2520, %v1679
      %v2657 = vmul.f32 %v2520, %v1686
      %v2658 = vmul.f32 %v2520, %v1693
      %v2659 = vmul.f32 %v2520, %v1700
      %v2660 = vmul.f32 %v2520, %v1707
      %v2661 = vmul.f32 %v2520, %v1714
      %v2662 = vmul.f32 %v2520, %v1721
      %v2663 = vmul.f32 %v2520, %v1728
      %v2664 = vmul.f32 %v2520, %v1735
      %v2665 = vmul.f32 %v2520, %v1742
      %v2666 = vmul.f32 %v2520, %v1749
      %v2667 = vmul.f32 %v2520, %v1756
      %v2668 = vmul.f32 %v2520, %v1763
      %v2669 = vmul.f32 %v2520, %v1770
      %v2670 = vmul.f32 %v2520, %v1777
      %v2671 = vmul.f32 %v2520, %v1784
      %v2672 = vmul.f32 %v2520, %v1791
      %v2673 = vmul.f32 %v2520, %v1798
      %v2674 = vmul.f32 %v2520, %v1805
      %v2675 = vmul.f32 %v2520, %v1812
      %v2676 = vmul.f32 %v2520, %v1819
      %v2677 = vmul.f32 %v2520, %v1826
      %v2678 = vmul.f32 %v2520, %v1833
      %v2679 = vmul.f32 %v2520, %v1840
      %v2680 = vmul.f32 %v2520, %v1847
      %v2681 = vmul.f32 %v2520, %v1854
      %v2682 = vmul.f32 %v2520, %v1861
      %v2683 = vmul.f32 %v2520, %v1868
      %v2684 = vmul.f32 %v2520, %v1875
      %v2685 = vmul.f32 %v2520, %v1882
      %v2686 = vmul.f32 %v2520, %v1889
      %v2687 = vmul.f32 %v2520, %v1896
      %v2688 = vmul.f32 %v2520, %v1903
      %v2689 = vmul.f32 %v2520, %v1910
      %v2690 = vmul.f32 %v2520, %v1917
      %v2691 = vmul.f32 %v2520, %v1924
      %v2692 = vmul.f32 %v2520, %v1931
      %v2693 = vmul.f32 %v2520, %v1938
      %v2694 = vmul.f32 %v2520, %v1945
      %v2695 = vmul.f32 %v2520, %v1952
      %v2696 = vmul.f32 %v2520, %v1959
      %v2697 = vmul.f32 %v2520, %v1966
      %v2698 = vmul.f32 %v2520, %v1973
      %v2699 = vmul.f32 %v2520, %v1980
      %v2700 = vmul.f32 %v2520, %v1987
      %v2701 = vmul.f32 %v2520, %v1994
      %v2702 = vmul.f32 %v2520, %v2001
      %v2703 = vmul.f32 %v2520, %v2008
      %v2704 = vmul.f32 %v2520, %v2015
      %v2705 = vmul.f32 %v2520, %v2022
      %v2706 = vmul.f32 %v2520, %v2029
      %v2707 = vmul.f32 %v2520, %v2036
      %v2708 = vmul.f32 %v2520, %v2043
      %v2709 = vmul.f32 %v2520, %v2050
      %v2710 = vmul.f32 %v2520, %v2057
      %v2711 = vmul.f32 %v2520, %v2064
      %v2712 = vmul.f32 %v2520, %v2071
      %v2713 = vmul.f32 %v2520, %v2078
      %v2714 = vmul.f32 %v2520, %v2085
      %v2715 = vmul.f32 %v2520, %v2092
      %v2716 = vmul.f32 %v2520, %v2099
      %v2717 = vmul.f32 %v2520, %v2106
      %v2718 = vmul.f32 %v2520, %v2113
      %v2719 = vmul.f32 %v2520, %v2120
      %v2720 = vmul.f32 %v2520, %v2127
      %v2721 = vmul.f32 %v2520, %v2134
      %v2722 = vmul.f32 %v2520, %v2141
      %v2723 = vmul.f32 %v2520, %v2148
      %v2724 = vmul.f32 %v2520, %v2155
      %v2725 = vmul.f32 %v2520, %v2162
      %v2726 = vmul.f32 %v2520, %v2169
      %v2727 = vmul.f32 %v2520, %v2176
      %v2728 = vmul.f32 %v2520, %v2183
      %v2729 = vmul.f32 %v2520, %v2190
      %v2730 = vmul.f32 %v2520, %v2197
      %v2731 = vmul.f32 %v2520, %v2204
      %v2732 = vmul.f32 %v2520, %v2211
      %v2733 = vmul.f32 %v2520, %v2218
      %v2734 = vmul.f32 %v2520, %v2225
      %v2735 = vmul.f32 %v2520, %v2232
      %v2736 = vmul.f32 %v2520, %v2239
      %v2737 = vmul.f32 %v2520, %v2246
      %v2738 = vmul.f32 %v2520, %v2253
      %v2739 = vmul.f32 %v2520, %v2260
      %v2740 = vmul.f32 %v2520, %v2267
      %v2741 = vmul.f32 %v2520, %v2274
      %v2742 = vmul.f32 %v2520, %v2281
      %v2743 = vmul.f32 %v2520, %v2288
      %v2744 = vmul.f32 %v2520, %v2295
      %v2745 = vmul.f32 %v2520, %v2302
      %v2746 = vmul.f32 %v2520, %v2309
      %v2747 = vmul.f32 %v2520, %v2316
      %v2748 = vmul.f32 %v2520, %v2323
      %v2749 = vmul.f32 %v2520, %v2330
      %v2750 = vmul.f32 %v2520, %v2337
      %v2751 = vmul.f32 %v2520, %v2344
      %v2752 = vmul.f32 %v2520, %v2351
      %v2753 = vmul.f32 %v2520, %v2358
      %v2754 = vmul.f32 %v2520, %v2365
      %v2755 = vmul.f32 %v2520, %v2372
      %v2756 = vmul.f32 %v2520, %v2379
      %v2757 = vmul.f32 %v2520, %v2386
      %v2758 = vmul.f32 %v2520, %v2393
      %v2759 = vmul.f32 %v2520, %v2400
      %v2760 = vmul.f32 %v2520, %v2407
      %v2761 = vmul.f32 %v2520, %v2414
      %v2762 = vmul.f32 %v2520, %v2421
      %v2763 = vmul.f32 %v2520, %v2428
      %v2764 = vmul.f32 %v2520, %v2435
      %v2765 = vmul.f32 %v2520, %v2442
      %v2766 = vmul.f32 %v2520, %v2449
      %v2767 = vmul.f32 %v2520, %v2456
      %v2768 = vmul.f32 %v2520, %v2463
      %v2769 = vmul.f32 %v2520, %v2470
      %v2770 = vmul.f32 %v2520, %v2477
      %v2771 = vmul.f32 %v2520, %v2484
      %v2772 = vmul.f32 %v2520, %v2491
      %v2773 = vmul.f32 %v2520, %v2498
      %v2774 = vmul.f32 %v2520, %v2505
      %v2775 = vmul.f32 %v2520, %v2512
      %v2776 = vmul.f32 %v2520, %v2519
      %vm3033 = vcmask 1041409
      %v3034 = vsel %vm3033, %v2522, %v2521
      %vm3035 = vcmask 1042434
      %v3036 = vsel %vm3035, %v2523, %v3034
      %vm3037 = vcmask 1043459
      %v3038 = vsel %vm3037, %v2524, %v3036
      %vm3039 = vcmask 1044484
      %v3040 = vsel %vm3039, %v2525, %v3038
      %vm3041 = vcmask 1045509
      %v3042 = vsel %vm3041, %v2526, %v3040
      %vm3043 = vcmask 1046534
      %v3044 = vsel %vm3043, %v2527, %v3042
      %vm3045 = vcmask 1047559
      %v3046 = vsel %vm3045, %v2528, %v3044
      %v3047 = vsel %vm3033, %v2530, %v2529
      %v3048 = vsel %vm3035, %v2531, %v3047
      %v3049 = vsel %vm3037, %v2532, %v3048
      %v3050 = vsel %vm3039, %v2533, %v3049
      %v3051 = vsel %vm3041, %v2534, %v3050
      %v3052 = vsel %vm3043, %v2535, %v3051
      %v3053 = vsel %vm3045, %v2536, %v3052
      %v3054 = vsel %vm3033, %v2538, %v2537
      %v3055 = vsel %vm3035, %v2539, %v3054
      %v3056 = vsel %vm3037, %v2540, %v3055
      %v3057 = vsel %vm3039, %v2541, %v3056
      %v3058 = vsel %vm3041, %v2542, %v3057
      %v3059 = vsel %vm3043, %v2543, %v3058
      %v3060 = vsel %vm3045, %v2544, %v3059
      %v3061 = vsel %vm3033, %v2546, %v2545
      %v3062 = vsel %vm3035, %v2547, %v3061
      %v3063 = vsel %vm3037, %v2548, %v3062
      %v3064 = vsel %vm3039, %v2549, %v3063
      %v3065 = vsel %vm3041, %v2550, %v3064
      %v3066 = vsel %vm3043, %v2551, %v3065
      %v3067 = vsel %vm3045, %v2552, %v3066
      %v3068 = vsel %vm3033, %v2554, %v2553
      %v3069 = vsel %vm3035, %v2555, %v3068
      %v3070 = vsel %vm3037, %v2556, %v3069
      %v3071 = vsel %vm3039, %v2557, %v3070
      %v3072 = vsel %vm3041, %v2558, %v3071
      %v3073 = vsel %vm3043, %v2559, %v3072
      %v3074 = vsel %vm3045, %v2560, %v3073
      %v3075 = vsel %vm3033, %v2562, %v2561
      %v3076 = vsel %vm3035, %v2563, %v3075
      %v3077 = vsel %vm3037, %v2564, %v3076
      %v3078 = vsel %vm3039, %v2565, %v3077
      %v3079 = vsel %vm3041, %v2566, %v3078
      %v3080 = vsel %vm3043, %v2567, %v3079
      %v3081 = vsel %vm3045, %v2568, %v3080
      %v3082 = vsel %vm3033, %v2570, %v2569
      %v3083 = vsel %vm3035, %v2571, %v3082
      %v3084 = vsel %vm3037, %v2572, %v3083
      %v3085 = vsel %vm3039, %v2573, %v3084
      %v3086 = vsel %vm3041, %v2574, %v3085
      %v3087 = vsel %vm3043, %v2575, %v3086
      %v3088 = vsel %vm3045, %v2576, %v3087
      %v3089 = vsel %vm3033, %v2578, %v2577
      %v3090 = vsel %vm3035, %v2579, %v3089
      %v3091 = vsel %vm3037, %v2580, %v3090
      %v3092 = vsel %vm3039, %v2581, %v3091
      %v3093 = vsel %vm3041, %v2582, %v3092
      %v3094 = vsel %vm3043, %v2583, %v3093
      %v3095 = vsel %vm3045, %v2584, %v3094
      %v3096 = vsel %vm3033, %v2586, %v2585
      %v3097 = vsel %vm3035, %v2587, %v3096
      %v3098 = vsel %vm3037, %v2588, %v3097
      %v3099 = vsel %vm3039, %v2589, %v3098
      %v3100 = vsel %vm3041, %v2590, %v3099
      %v3101 = vsel %vm3043, %v2591, %v3100
      %v3102 = vsel %vm3045, %v2592, %v3101
      %v3103 = vsel %vm3033, %v2594, %v2593
      %v3104 = vsel %vm3035, %v2595, %v3103
      %v3105 = vsel %vm3037, %v2596, %v3104
      %v3106 = vsel %vm3039, %v2597, %v3105
      %v3107 = vsel %vm3041, %v2598, %v3106
      %v3108 = vsel %vm3043, %v2599, %v3107
      %v3109 = vsel %vm3045, %v2600, %v3108
      %v3110 = vsel %vm3033, %v2602, %v2601
      %v3111 = vsel %vm3035, %v2603, %v3110
      %v3112 = vsel %vm3037, %v2604, %v3111
      %v3113 = vsel %vm3039, %v2605, %v3112
      %v3114 = vsel %vm3041, %v2606, %v3113
      %v3115 = vsel %vm3043, %v2607, %v3114
      %v3116 = vsel %vm3045, %v2608, %v3115
      %v3117 = vsel %vm3033, %v2610, %v2609
      %v3118 = vsel %vm3035, %v2611, %v3117
      %v3119 = vsel %vm3037, %v2612, %v3118
      %v3120 = vsel %vm3039, %v2613, %v3119
      %v3121 = vsel %vm3041, %v2614, %v3120
      %v3122 = vsel %vm3043, %v2615, %v3121
      %v3123 = vsel %vm3045, %v2616, %v3122
      %v3124 = vsel %vm3033, %v2618, %v2617
      %v3125 = vsel %vm3035, %v2619, %v3124
      %v3126 = vsel %vm3037, %v2620, %v3125
      %v3127 = vsel %vm3039, %v2621, %v3126
      %v3128 = vsel %vm3041, %v2622, %v3127
      %v3129 = vsel %vm3043, %v2623, %v3128
      %v3130 = vsel %vm3045, %v2624, %v3129
      %v3131 = vsel %vm3033, %v2626, %v2625
      %v3132 = vsel %vm3035, %v2627, %v3131
      %v3133 = vsel %vm3037, %v2628, %v3132
      %v3134 = vsel %vm3039, %v2629, %v3133
      %v3135 = vsel %vm3041, %v2630, %v3134
      %v3136 = vsel %vm3043, %v2631, %v3135
      %v3137 = vsel %vm3045, %v2632, %v3136
      %v3138 = vsel %vm3033, %v2634, %v2633
      %v3139 = vsel %vm3035, %v2635, %v3138
      %v3140 = vsel %vm3037, %v2636, %v3139
      %v3141 = vsel %vm3039, %v2637, %v3140
      %v3142 = vsel %vm3041, %v2638, %v3141
      %v3143 = vsel %vm3043, %v2639, %v3142
      %v3144 = vsel %vm3045, %v2640, %v3143
      %v3145 = vsel %vm3033, %v2642, %v2641
      %v3146 = vsel %vm3035, %v2643, %v3145
      %v3147 = vsel %vm3037, %v2644, %v3146
      %v3148 = vsel %vm3039, %v2645, %v3147
      %v3149 = vsel %vm3041, %v2646, %v3148
      %v3150 = vsel %vm3043, %v2647, %v3149
      %v3151 = vsel %vm3045, %v2648, %v3150
      %v3152 = vsel %vm3033, %v2650, %v2649
      %v3153 = vsel %vm3035, %v2651, %v3152
      %v3154 = vsel %vm3037, %v2652, %v3153
      %v3155 = vsel %vm3039, %v2653, %v3154
      %v3156 = vsel %vm3041, %v2654, %v3155
      %v3157 = vsel %vm3043, %v2655, %v3156
      %v3158 = vsel %vm3045, %v2656, %v3157
      %v3159 = vsel %vm3033, %v2658, %v2657
      %v3160 = vsel %vm3035, %v2659, %v3159
      %v3161 = vsel %vm3037, %v2660, %v3160
      %v3162 = vsel %vm3039, %v2661, %v3161
      %v3163 = vsel %vm3041, %v2662, %v3162
      %v3164 = vsel %vm3043, %v2663, %v3163
      %v3165 = vsel %vm3045, %v2664, %v3164
      %v3166 = vsel %vm3033, %v2666, %v2665
      %v3167 = vsel %vm3035, %v2667, %v3166
      %v3168 = vsel %vm3037, %v2668, %v3167
      %v3169 = vsel %vm3039, %v2669, %v3168
      %v3170 = vsel %vm3041, %v2670, %v3169
      %v3171 = vsel %vm3043, %v2671, %v3170
      %v3172 = vsel %vm3045, %v2672, %v3171
      %v3173 = vsel %vm3033, %v2674, %v2673
      %v3174 = vsel %vm3035, %v2675, %v3173
      %v3175 = vsel %vm3037, %v2676, %v3174
      %v3176 = vsel %vm3039, %v2677, %v3175
      %v3177 = vsel %vm3041, %v2678, %v3176
      %v3178 = vsel %vm3043, %v2679, %v3177
      %v3179 = vsel %vm3045, %v2680, %v3178
      %v3180 = vsel %vm3033, %v2682, %v2681
      %v3181 = vsel %vm3035, %v2683, %v3180
      %v3182 = vsel %vm3037, %v2684, %v3181
      %v3183 = vsel %vm3039, %v2685, %v3182
      %v3184 = vsel %vm3041, %v2686, %v3183
      %v3185 = vsel %vm3043, %v2687, %v3184
      %v3186 = vsel %vm3045, %v2688, %v3185
      %v3187 = vsel %vm3033, %v2690, %v2689
      %v3188 = vsel %vm3035, %v2691, %v3187
      %v3189 = vsel %vm3037, %v2692, %v3188
      %v3190 = vsel %vm3039, %v2693, %v3189
      %v3191 = vsel %vm3041, %v2694, %v3190
      %v3192 = vsel %vm3043, %v2695, %v3191
      %v3193 = vsel %vm3045, %v2696, %v3192
      %v3194 = vsel %vm3033, %v2698, %v2697
      %v3195 = vsel %vm3035, %v2699, %v3194
      %v3196 = vsel %vm3037, %v2700, %v3195
      %v3197 = vsel %vm3039, %v2701, %v3196
      %v3198 = vsel %vm3041, %v2702, %v3197
      %v3199 = vsel %vm3043, %v2703, %v3198
      %v3200 = vsel %vm3045, %v2704, %v3199
      %v3201 = vsel %vm3033, %v2706, %v2705
      %v3202 = vsel %vm3035, %v2707, %v3201
      %v3203 = vsel %vm3037, %v2708, %v3202
      %v3204 = vsel %vm3039, %v2709, %v3203
      %v3205 = vsel %vm3041, %v2710, %v3204
      %v3206 = vsel %vm3043, %v2711, %v3205
      %v3207 = vsel %vm3045, %v2712, %v3206
      %v3208 = vsel %vm3033, %v2714, %v2713
      %v3209 = vsel %vm3035, %v2715, %v3208
      %v3210 = vsel %vm3037, %v2716, %v3209
      %v3211 = vsel %vm3039, %v2717, %v3210
      %v3212 = vsel %vm3041, %v2718, %v3211
      %v3213 = vsel %vm3043, %v2719, %v3212
      %v3214 = vsel %vm3045, %v2720, %v3213
      %v3215 = vsel %vm3033, %v2722, %v2721
      %v3216 = vsel %vm3035, %v2723, %v3215
      %v3217 = vsel %vm3037, %v2724, %v3216
      %v3218 = vsel %vm3039, %v2725, %v3217
      %v3219 = vsel %vm3041, %v2726, %v3218
      %v3220 = vsel %vm3043, %v2727, %v3219
      %v3221 = vsel %vm3045, %v2728, %v3220
      %v3222 = vsel %vm3033, %v2730, %v2729
      %v3223 = vsel %vm3035, %v2731, %v3222
      %v3224 = vsel %vm3037, %v2732, %v3223
      %v3225 = vsel %vm3039, %v2733, %v3224
      %v3226 = vsel %vm3041, %v2734, %v3225
      %v3227 = vsel %vm3043, %v2735, %v3226
      %v3228 = vsel %vm3045, %v2736, %v3227
      %v3229 = vsel %vm3033, %v2738, %v2737
      %v3230 = vsel %vm3035, %v2739, %v3229
      %v3231 = vsel %vm3037, %v2740, %v3230
      %v3232 = vsel %vm3039, %v2741, %v3231
      %v3233 = vsel %vm3041, %v2742, %v3232
      %v3234 = vsel %vm3043, %v2743, %v3233
      %v3235 = vsel %vm3045, %v2744, %v3234
      %v3236 = vsel %vm3033, %v2746, %v2745
      %v3237 = vsel %vm3035, %v2747, %v3236
      %v3238 = vsel %vm3037, %v2748, %v3237
      %v3239 = vsel %vm3039, %v2749, %v3238
      %v3240 = vsel %vm3041, %v2750, %v3239
      %v3241 = vsel %vm3043, %v2751, %v3240
      %v3242 = vsel %vm3045, %v2752, %v3241
      %v3243 = vsel %vm3033, %v2754, %v2753
      %v3244 = vsel %vm3035, %v2755, %v3243
      %v3245 = vsel %vm3037, %v2756, %v3244
      %v3246 = vsel %vm3039, %v2757, %v3245
      %v3247 = vsel %vm3041, %v2758, %v3246
      %v3248 = vsel %vm3043, %v2759, %v3247
      %v3249 = vsel %vm3045, %v2760, %v3248
      %v3250 = vsel %vm3033, %v2762, %v2761
      %v3251 = vsel %vm3035, %v2763, %v3250
      %v3252 = vsel %vm3037, %v2764, %v3251
      %v3253 = vsel %vm3039, %v2765, %v3252
      %v3254 = vsel %vm3041, %v2766, %v3253
      %v3255 = vsel %vm3043, %v2767, %v3254
      %v3256 = vsel %vm3045, %v2768, %v3255
      %v3257 = vsel %vm3033, %v2770, %v2769
      %v3258 = vsel %vm3035, %v2771, %v3257
      %v3259 = vsel %vm3037, %v2772, %v3258
      %v3260 = vsel %vm3039, %v2773, %v3259
      %v3261 = vsel %vm3041, %v2774, %v3260
      %v3262 = vsel %vm3043, %v2775, %v3261
      %v3263 = vsel %vm3045, %v2776, %v3262
      %v3296 = vsel %vm195, %v3046, 0.0
      %3297 = vadd.xlane.f32.xlu0 %v3296
      %v3298 = vpop.xlane.xlu0 %3297
      %v3299 = vsel %vm195, %v3053, 0.0
      %3300 = vadd.xlane.f32.xlu0 %v3299
      %v3301 = vpop.xlane.xlu0 %3300
      %v3302 = vsel %vm195, %v3060, 0.0
      %3303 = vadd.xlane.f32.xlu0 %v3302
      %v3304 = vpop.xlane.xlu0 %3303
      %v3305 = vsel %vm195, %v3067, 0.0
      %3306 = vadd.xlane.f32.xlu0 %v3305
      %v3307 = vpop.xlane.xlu0 %3306
      %v3308 = vsel %vm195, %v3074, 0.0
      %3309 = vadd.xlane.f32.xlu0 %v3308
      %v3310 = vpop.xlane.xlu0 %3309
      %v3311 = vsel %vm195, %v3081, 0.0
      %3312 = vadd.xlane.f32.xlu0 %v3311
      %v3313 = vpop.xlane.xlu0 %3312
      %v3314 = vsel %vm195, %v3088, 0.0
      %3315 = vadd.xlane.f32.xlu0 %v3314
      %v3316 = vpop.xlane.xlu0 %3315
      %v3317 = vsel %vm195, %v3095, 0.0
      %3318 = vadd.xlane.f32.xlu0 %v3317
      %v3319 = vpop.xlane.xlu0 %3318
      %v3320 = vsel %vm195, %v3102, 0.0
      %3321 = vadd.xlane.f32.xlu0 %v3320
      %v3322 = vpop.xlane.xlu0 %3321
      %v3323 = vsel %vm195, %v3109, 0.0
      %3324 = vadd.xlane.f32.xlu0 %v3323
      %v3325 = vpop.xlane.xlu0 %3324
      %v3326 = vsel %vm195, %v3116, 0.0
      %3327 = vadd.xlane.f32.xlu0 %v3326
      %v3328 = vpop.xlane.xlu0 %3327
      %v3329 = vsel %vm195, %v3123, 0.0
      %3330 = vadd.xlane.f32.xlu0 %v3329
      %v3331 = vpop.xlane.xlu0 %3330
      %v3332 = vsel %vm195, %v3130, 0.0
      %3333 = vadd.xlane.f32.xlu0 %v3332
      %v3334 = vpop.xlane.xlu0 %3333
      %v3335 = vsel %vm195, %v3137, 0.0
      %3336 = vadd.xlane.f32.xlu0 %v3335
      %v3337 = vpop.xlane.xlu0 %3336
      %v3338 = vsel %vm195, %v3144, 0.0
      %3339 = vadd.xlane.f32.xlu0 %v3338
      %v3340 = vpop.xlane.xlu0 %3339
      %v3341 = vsel %vm195, %v3151, 0.0
      %3342 = vadd.xlane.f32.xlu0 %v3341
      %v3343 = vpop.xlane.xlu0 %3342
      %v3344 = vsel %vm195, %v3158, 0.0
      %3345 = vadd.xlane.f32.xlu0 %v3344
      %v3346 = vpop.xlane.xlu0 %3345
      %v3347 = vsel %vm195, %v3165, 0.0
      %3348 = vadd.xlane.f32.xlu0 %v3347
      %v3349 = vpop.xlane.xlu0 %3348
      %v3350 = vsel %vm195, %v3172, 0.0
      %3351 = vadd.xlane.f32.xlu0 %v3350
      %v3352 = vpop.xlane.xlu0 %3351
      %v3353 = vsel %vm195, %v3179, 0.0
      %3354 = vadd.xlane.f32.xlu0 %v3353
      %v3355 = vpop.xlane.xlu0 %3354
      %v3356 = vsel %vm195, %v3186, 0.0
      %3357 = vadd.xlane.f32.xlu0 %v3356
      %v3358 = vpop.xlane.xlu0 %3357
      %v3359 = vsel %vm195, %v3193, 0.0
      %3360 = vadd.xlane.f32.xlu0 %v3359
      %v3361 = vpop.xlane.xlu0 %3360
      %v3362 = vsel %vm195, %v3200, 0.0
      %3363 = vadd.xlane.f32.xlu0 %v3362
      %v3364 = vpop.xlane.xlu0 %3363
      %v3365 = vsel %vm195, %v3207, 0.0
      %3366 = vadd.xlane.f32.xlu0 %v3365
      %v3367 = vpop.xlane.xlu0 %3366
      %v3368 = vsel %vm195, %v3214, 0.0
      %3369 = vadd.xlane.f32.xlu0 %v3368
      %v3370 = vpop.xlane.xlu0 %3369
      %v3371 = vsel %vm195, %v3221, 0.0
      %3372 = vadd.xlane.f32.xlu0 %v3371
      %v3373 = vpop.xlane.xlu0 %3372
      %v3374 = vsel %vm195, %v3228, 0.0
      %3375 = vadd.xlane.f32.xlu0 %v3374
      %v3376 = vpop.xlane.xlu0 %3375
      %v3377 = vsel %vm195, %v3235, 0.0
      %3378 = vadd.xlane.f32.xlu0 %v3377
      %v3379 = vpop.xlane.xlu0 %3378
      %v3380 = vsel %vm195, %v3242, 0.0
      %3381 = vadd.xlane.f32.xlu0 %v3380
      %v3382 = vpop.xlane.xlu0 %3381
      %v3383 = vsel %vm195, %v3249, 0.0
      %3384 = vadd.xlane.f32.xlu0 %v3383
      %v3385 = vpop.xlane.xlu0 %3384
      %v3386 = vsel %vm195, %v3256, 0.0
      %3387 = vadd.xlane.f32.xlu0 %v3386
      %v3388 = vpop.xlane.xlu0 %3387
      %v3389 = vsel %vm195, %v3263, 0.0
      %3390 = vadd.xlane.f32.xlu0 %v3389
      %v3391 = vpop.xlane.xlu0 %3390
      %v3392 = vmul.f32 %v3298, %v3298
      %v3393 = vmul.f32 %v3301, %v3301
      %v3394 = vmul.f32 %v3304, %v3304
      %v3395 = vmul.f32 %v3307, %v3307
      %v3396 = vmul.f32 %v3310, %v3310
      %v3397 = vmul.f32 %v3313, %v3313
      %v3398 = vmul.f32 %v3316, %v3316
      %v3399 = vmul.f32 %v3319, %v3319
      %v3400 = vmul.f32 %v3322, %v3322
      %v3401 = vmul.f32 %v3325, %v3325
      %v3402 = vmul.f32 %v3328, %v3328
      %v3403 = vmul.f32 %v3331, %v3331
      %v3404 = vmul.f32 %v3334, %v3334
      %v3405 = vmul.f32 %v3337, %v3337
      %v3406 = vmul.f32 %v3340, %v3340
      %v3407 = vmul.f32 %v3343, %v3343
      %v3408 = vmul.f32 %v3346, %v3346
      %v3409 = vmul.f32 %v3349, %v3349
      %v3410 = vmul.f32 %v3352, %v3352
      %v3411 = vmul.f32 %v3355, %v3355
      %v3412 = vmul.f32 %v3358, %v3358
      %v3413 = vmul.f32 %v3361, %v3361
      %v3414 = vmul.f32 %v3364, %v3364
      %v3415 = vmul.f32 %v3367, %v3367
      %v3416 = vmul.f32 %v3370, %v3370
      %v3417 = vmul.f32 %v3373, %v3373
      %v3418 = vmul.f32 %v3376, %v3376
      %v3419 = vmul.f32 %v3379, %v3379
      %v3420 = vmul.f32 %v3382, %v3382
      %v3421 = vmul.f32 %v3385, %v3385
      %v3422 = vmul.f32 %v3388, %v3388
      %v3423 = vmul.f32 %v3391, %v3391
      %v3424 = vadd.f32 %v3392, %v3393
      %v3425 = vrot.slane %v3424, 4
      %v3426 = vadd.f32 %v3424, %v3425
      %v3427 = vrot.slane %v3426, 2
      %v3428 = vadd.f32 %v3426, %v3427
      %v3429 = vrot.slane %v3428, 1
      %v3430 = vadd.f32 %v3428, %v3429
      %v3431 = vadd.f32 %v3394, %v3395
      %v3432 = vrot.slane %v3431, 4
      %v3433 = vadd.f32 %v3431, %v3432
      %v3434 = vrot.slane %v3433, 2
      %v3435 = vadd.f32 %v3433, %v3434
      %v3436 = vrot.slane %v3435, 1
      %v3437 = vadd.f32 %v3435, %v3436
      %v3438 = vadd.f32 %v3396, %v3397
      %v3439 = vrot.slane %v3438, 4
      %v3440 = vadd.f32 %v3438, %v3439
      %v3441 = vrot.slane %v3440, 2
      %v3442 = vadd.f32 %v3440, %v3441
      %v3443 = vrot.slane %v3442, 1
      %v3444 = vadd.f32 %v3442, %v3443
      %v3445 = vadd.f32 %v3398, %v3399
      %v3446 = vrot.slane %v3445, 4
      %v3447 = vadd.f32 %v3445, %v3446
      %v3448 = vrot.slane %v3447, 2
      %v3449 = vadd.f32 %v3447, %v3448
      %v3450 = vrot.slane %v3449, 1
      %v3451 = vadd.f32 %v3449, %v3450
      %v3452 = vadd.f32 %v3400, %v3401
      %v3453 = vrot.slane %v3452, 4
      %v3454 = vadd.f32 %v3452, %v3453
      %v3455 = vrot.slane %v3454, 2
      %v3456 = vadd.f32 %v3454, %v3455
      %v3457 = vrot.slane %v3456, 1
      %v3458 = vadd.f32 %v3456, %v3457
      %v3459 = vadd.f32 %v3402, %v3403
      %v3460 = vrot.slane %v3459, 4
      %v3461 = vadd.f32 %v3459, %v3460
      %v3462 = vrot.slane %v3461, 2
      %v3463 = vadd.f32 %v3461, %v3462
      %v3464 = vrot.slane %v3463, 1
      %v3465 = vadd.f32 %v3463, %v3464
      %v3466 = vadd.f32 %v3404, %v3405
      %v3467 = vrot.slane %v3466, 4
      %v3468 = vadd.f32 %v3466, %v3467
      %v3469 = vrot.slane %v3468, 2
      %v3470 = vadd.f32 %v3468, %v3469
      %v3471 = vrot.slane %v3470, 1
      %v3472 = vadd.f32 %v3470, %v3471
      %v3473 = vadd.f32 %v3406, %v3407
      %v3474 = vrot.slane %v3473, 4
      %v3475 = vadd.f32 %v3473, %v3474
      %v3476 = vrot.slane %v3475, 2
      %v3477 = vadd.f32 %v3475, %v3476
      %v3478 = vrot.slane %v3477, 1
      %v3479 = vadd.f32 %v3477, %v3478
      %v3480 = vadd.f32 %v3408, %v3409
      %v3481 = vrot.slane %v3480, 4
      %v3482 = vadd.f32 %v3480, %v3481
      %v3483 = vrot.slane %v3482, 2
      %v3484 = vadd.f32 %v3482, %v3483
      %v3485 = vrot.slane %v3484, 1
      %v3486 = vadd.f32 %v3484, %v3485
      %v3487 = vadd.f32 %v3410, %v3411
      %v3488 = vrot.slane %v3487, 4
      %v3489 = vadd.f32 %v3487, %v3488
      %v3490 = vrot.slane %v3489, 2
      %v3491 = vadd.f32 %v3489, %v3490
      %v3492 = vrot.slane %v3491, 1
      %v3493 = vadd.f32 %v3491, %v3492
      %v3494 = vadd.f32 %v3412, %v3413
      %v3495 = vrot.slane %v3494, 4
      %v3496 = vadd.f32 %v3494, %v3495
      %v3497 = vrot.slane %v3496, 2
      %v3498 = vadd.f32 %v3496, %v3497
      %v3499 = vrot.slane %v3498, 1
      %v3500 = vadd.f32 %v3498, %v3499
      %v3501 = vadd.f32 %v3414, %v3415
      %v3502 = vrot.slane %v3501, 4
      %v3503 = vadd.f32 %v3501, %v3502
      %v3504 = vrot.slane %v3503, 2
      %v3505 = vadd.f32 %v3503, %v3504
      %v3506 = vrot.slane %v3505, 1
      %v3507 = vadd.f32 %v3505, %v3506
      %v3508 = vadd.f32 %v3416, %v3417
      %v3509 = vrot.slane %v3508, 4
      %v3510 = vadd.f32 %v3508, %v3509
      %v3511 = vrot.slane %v3510, 2
      %v3512 = vadd.f32 %v3510, %v3511
      %v3513 = vrot.slane %v3512, 1
      %v3514 = vadd.f32 %v3512, %v3513
      %v3515 = vadd.f32 %v3418, %v3419
      %v3516 = vrot.slane %v3515, 4
      %v3517 = vadd.f32 %v3515, %v3516
      %v3518 = vrot.slane %v3517, 2
      %v3519 = vadd.f32 %v3517, %v3518
      %v3520 = vrot.slane %v3519, 1
      %v3521 = vadd.f32 %v3519, %v3520
      %v3522 = vadd.f32 %v3420, %v3421
      %v3523 = vrot.slane %v3522, 4
      %v3524 = vadd.f32 %v3522, %v3523
      %v3525 = vrot.slane %v3524, 2
      %v3526 = vadd.f32 %v3524, %v3525
      %v3527 = vrot.slane %v3526, 1
      %v3528 = vadd.f32 %v3526, %v3527
      %v3529 = vadd.f32 %v3422, %v3423
      %v3530 = vrot.slane %v3529, 4
      %v3531 = vadd.f32 %v3529, %v3530
      %v3532 = vrot.slane %v3531, 2
      %v3533 = vadd.f32 %v3531, %v3532
      %v3534 = vrot.slane %v3533, 1
      %v3535 = vadd.f32 %v3533, %v3534
      %v3536 = vadd.f32 %v3430, 1.0
      %v3537 = vadd.f32 %v3437, 1.0
      %v3538 = vadd.f32 %v3444, 1.0
      %v3539 = vadd.f32 %v3451, 1.0
      %v3540 = vadd.f32 %v3458, 1.0
      %v3541 = vadd.f32 %v3465, 1.0
      %v3542 = vadd.f32 %v3472, 1.0
      %v3543 = vadd.f32 %v3479, 1.0
      %v3544 = vadd.f32 %v3486, 1.0
      %v3545 = vadd.f32 %v3493, 1.0
      %v3546 = vadd.f32 %v3500, 1.0
      %v3547 = vadd.f32 %v3507, 1.0
      %v3548 = vadd.f32 %v3514, 1.0
      %v3549 = vadd.f32 %v3521, 1.0
      %v3550 = vadd.f32 %v3528, 1.0
      %v3551 = vadd.f32 %v3535, 1.0
      %v3552 = vrsqrt.pop %v3430
      %v3553 = vmul.f32 %v3430, %v3552
      %vm3554 = vcmp.eq.f32.partialorder %v3430, inf
      %v3555 = vsel %vm3554, %v3430, %v3553
      %vm3556 = vcmp.eq.f32.partialorder %v3430, 0.0
      %v3557 = vand.u32 %v3430, 2147483648
      %v3558 = vsel %vm3556, %v3557, %v3555
      %v3559 = vrsqrt.pop %v3437
      %v3560 = vmul.f32 %v3437, %v3559
      %vm3561 = vcmp.eq.f32.partialorder %v3437, inf
      %v3562 = vsel %vm3561, %v3437, %v3560
      %vm3563 = vcmp.eq.f32.partialorder %v3437, 0.0
      %v3564 = vand.u32 %v3437, 2147483648
      %v3565 = vsel %vm3563, %v3564, %v3562
      %v3566 = vrsqrt.pop %v3444
      %v3567 = vmul.f32 %v3444, %v3566
      %vm3568 = vcmp.eq.f32.partialorder %v3444, inf
      %v3569 = vsel %vm3568, %v3444, %v3567
      %vm3570 = vcmp.eq.f32.partialorder %v3444, 0.0
      %v3571 = vand.u32 %v3444, 2147483648
      %v3572 = vsel %vm3570, %v3571, %v3569
      %v3573 = vrsqrt.pop %v3451
      %v3574 = vmul.f32 %v3451, %v3573
      %vm3575 = vcmp.eq.f32.partialorder %v3451, inf
      %v3576 = vsel %vm3575, %v3451, %v3574
      %vm3577 = vcmp.eq.f32.partialorder %v3451, 0.0
      %v3578 = vand.u32 %v3451, 2147483648
      %v3579 = vsel %vm3577, %v3578, %v3576
      %v3580 = vrsqrt.pop %v3458
      %v3581 = vmul.f32 %v3458, %v3580
      %vm3582 = vcmp.eq.f32.partialorder %v3458, inf
      %v3583 = vsel %vm3582, %v3458, %v3581
      %vm3584 = vcmp.eq.f32.partialorder %v3458, 0.0
      %v3585 = vand.u32 %v3458, 2147483648
      %v3586 = vsel %vm3584, %v3585, %v3583
      %v3587 = vrsqrt.pop %v3465
      %v3588 = vmul.f32 %v3465, %v3587
      %vm3589 = vcmp.eq.f32.partialorder %v3465, inf
      %v3590 = vsel %vm3589, %v3465, %v3588
      %vm3591 = vcmp.eq.f32.partialorder %v3465, 0.0
      %v3592 = vand.u32 %v3465, 2147483648
      %v3593 = vsel %vm3591, %v3592, %v3590
      %v3594 = vrsqrt.pop %v3472
      %v3595 = vmul.f32 %v3472, %v3594
      %vm3596 = vcmp.eq.f32.partialorder %v3472, inf
      %v3597 = vsel %vm3596, %v3472, %v3595
      %vm3598 = vcmp.eq.f32.partialorder %v3472, 0.0
      %v3599 = vand.u32 %v3472, 2147483648
      %v3600 = vsel %vm3598, %v3599, %v3597
      %v3601 = vrsqrt.pop %v3479
      %v3602 = vmul.f32 %v3479, %v3601
      %vm3603 = vcmp.eq.f32.partialorder %v3479, inf
      %v3604 = vsel %vm3603, %v3479, %v3602
      %vm3605 = vcmp.eq.f32.partialorder %v3479, 0.0
      %v3606 = vand.u32 %v3479, 2147483648
      %v3607 = vsel %vm3605, %v3606, %v3604
      %v3608 = vrsqrt.pop %v3486
      %v3609 = vmul.f32 %v3486, %v3608
      %vm3610 = vcmp.eq.f32.partialorder %v3486, inf
      %v3611 = vsel %vm3610, %v3486, %v3609
      %vm3612 = vcmp.eq.f32.partialorder %v3486, 0.0
      %v3613 = vand.u32 %v3486, 2147483648
      %v3614 = vsel %vm3612, %v3613, %v3611
      %v3615 = vrsqrt.pop %v3493
      %v3616 = vmul.f32 %v3493, %v3615
      %vm3617 = vcmp.eq.f32.partialorder %v3493, inf
      %v3618 = vsel %vm3617, %v3493, %v3616
      %vm3619 = vcmp.eq.f32.partialorder %v3493, 0.0
      %v3620 = vand.u32 %v3493, 2147483648
      %v3621 = vsel %vm3619, %v3620, %v3618
      %v3622 = vrsqrt.pop %v3500
      %v3623 = vmul.f32 %v3500, %v3622
      %vm3624 = vcmp.eq.f32.partialorder %v3500, inf
      %v3625 = vsel %vm3624, %v3500, %v3623
      %vm3626 = vcmp.eq.f32.partialorder %v3500, 0.0
      %v3627 = vand.u32 %v3500, 2147483648
      %v3628 = vsel %vm3626, %v3627, %v3625
      %v3629 = vrsqrt.pop %v3507
      %v3630 = vmul.f32 %v3507, %v3629
      %vm3631 = vcmp.eq.f32.partialorder %v3507, inf
      %v3632 = vsel %vm3631, %v3507, %v3630
      %vm3633 = vcmp.eq.f32.partialorder %v3507, 0.0
      %v3634 = vand.u32 %v3507, 2147483648
      %v3635 = vsel %vm3633, %v3634, %v3632
      %v3636 = vrsqrt.pop %v3514
      %v3637 = vmul.f32 %v3514, %v3636
      %vm3638 = vcmp.eq.f32.partialorder %v3514, inf
      %v3639 = vsel %vm3638, %v3514, %v3637
      %vm3640 = vcmp.eq.f32.partialorder %v3514, 0.0
      %v3641 = vand.u32 %v3514, 2147483648
      %v3642 = vsel %vm3640, %v3641, %v3639
      %v3643 = vrsqrt.pop %v3521
      %v3644 = vmul.f32 %v3521, %v3643
      %vm3645 = vcmp.eq.f32.partialorder %v3521, inf
      %v3646 = vsel %vm3645, %v3521, %v3644
      %vm3647 = vcmp.eq.f32.partialorder %v3521, 0.0
      %v3648 = vand.u32 %v3521, 2147483648
      %v3649 = vsel %vm3647, %v3648, %v3646
      %v3650 = vrsqrt.pop %v3528
      %v3651 = vmul.f32 %v3528, %v3650
      %vm3652 = vcmp.eq.f32.partialorder %v3528, inf
      %v3653 = vsel %vm3652, %v3528, %v3651
      %vm3654 = vcmp.eq.f32.partialorder %v3528, 0.0
      %v3655 = vand.u32 %v3528, 2147483648
      %v3656 = vsel %vm3654, %v3655, %v3653
      %v3657 = vrsqrt.pop %v3535
      %v3658 = vmul.f32 %v3535, %v3657
      %vm3659 = vcmp.eq.f32.partialorder %v3535, inf
      %v3660 = vsel %vm3659, %v3535, %v3658
      %vm3661 = vcmp.eq.f32.partialorder %v3535, 0.0
      %v3662 = vand.u32 %v3535, 2147483648
      %v3663 = vsel %vm3661, %v3662, %v3660
      %v3664 = vadd.f32 %v3558, 1e-08
      %v3665 = vadd.f32 %v3565, 1e-08
      %v3666 = vadd.f32 %v3572, 1e-08
      %v3667 = vadd.f32 %v3579, 1e-08
      %v3668 = vadd.f32 %v3586, 1e-08
      %v3669 = vadd.f32 %v3593, 1e-08
      %v3670 = vadd.f32 %v3600, 1e-08
      %v3671 = vadd.f32 %v3607, 1e-08
      %v3672 = vadd.f32 %v3614, 1e-08
      %v3673 = vadd.f32 %v3621, 1e-08
      %v3674 = vadd.f32 %v3628, 1e-08
      %v3675 = vadd.f32 %v3635, 1e-08
      %v3676 = vadd.f32 %v3642, 1e-08
      %v3677 = vadd.f32 %v3649, 1e-08
      %v3678 = vadd.f32 %v3656, 1e-08
      %v3679 = vadd.f32 %v3663, 1e-08
      %v3680 = vmul.f32 %v3536, %v3664
      %v3681 = vmul.f32 %v3537, %v3665
      %v3682 = vmul.f32 %v3538, %v3666
      %v3683 = vmul.f32 %v3539, %v3667
      %v3684 = vmul.f32 %v3540, %v3668
      %v3685 = vmul.f32 %v3541, %v3669
      %v3686 = vmul.f32 %v3542, %v3670
      %v3687 = vmul.f32 %v3543, %v3671
      %v3688 = vmul.f32 %v3544, %v3672
      %v3689 = vmul.f32 %v3545, %v3673
      %v3690 = vmul.f32 %v3546, %v3674
      %v3691 = vmul.f32 %v3547, %v3675
      %v3692 = vmul.f32 %v3548, %v3676
      %v3693 = vmul.f32 %v3549, %v3677
      %v3694 = vmul.f32 %v3550, %v3678
      %v3695 = vmul.f32 %v3551, %v3679
      %v3696 = vrcp.pop %v3680
      %v3697 = vrcp.pop %v3681
      %v3698 = vrcp.pop %v3682
      %v3699 = vrcp.pop %v3683
      %v3700 = vrcp.pop %v3684
      %v3701 = vrcp.pop %v3685
      %v3702 = vrcp.pop %v3686
      %v3703 = vrcp.pop %v3687
      %v3704 = vrcp.pop %v3688
      %v3705 = vrcp.pop %v3689
      %v3706 = vrcp.pop %v3690
      %v3707 = vrcp.pop %v3691
      %v3708 = vrcp.pop %v3692
      %v3709 = vrcp.pop %v3693
      %v3710 = vrcp.pop %v3694
      %v3711 = vrcp.pop %v3695
      %v3712 = vmul.f32 %v3430, %v3696
      %v3713 = vmul.f32 %v3437, %v3697
      %v3714 = vmul.f32 %v3444, %v3698
      %v3715 = vmul.f32 %v3451, %v3699
      %v3716 = vmul.f32 %v3458, %v3700
      %v3717 = vmul.f32 %v3465, %v3701
      %v3718 = vmul.f32 %v3472, %v3702
      %v3719 = vmul.f32 %v3479, %v3703
      %v3720 = vmul.f32 %v3486, %v3704
      %v3721 = vmul.f32 %v3493, %v3705
      %v3722 = vmul.f32 %v3500, %v3706
      %v3723 = vmul.f32 %v3507, %v3707
      %v3724 = vmul.f32 %v3514, %v3708
      %v3725 = vmul.f32 %v3521, %v3709
      %v3726 = vmul.f32 %v3528, %v3710
      %v3727 = vmul.f32 %v3535, %v3711
      %v3728 = vmul.f32 %v3298, %v3712
      %v3729 = vmul.f32 %v3301, %v3712
      %v3730 = vmul.f32 %v3304, %v3713
      %v3731 = vmul.f32 %v3307, %v3713
      %v3732 = vmul.f32 %v3310, %v3714
      %v3733 = vmul.f32 %v3313, %v3714
      %v3734 = vmul.f32 %v3316, %v3715
      %v3735 = vmul.f32 %v3319, %v3715
      %v3736 = vmul.f32 %v3322, %v3716
      %v3737 = vmul.f32 %v3325, %v3716
      %v3738 = vmul.f32 %v3328, %v3717
      %v3739 = vmul.f32 %v3331, %v3717
      %v3740 = vmul.f32 %v3334, %v3718
      %v3741 = vmul.f32 %v3337, %v3718
      %v3742 = vmul.f32 %v3340, %v3719
      %v3743 = vmul.f32 %v3343, %v3719
      %v3744 = vmul.f32 %v3346, %v3720
      %v3745 = vmul.f32 %v3349, %v3720
      %v3746 = vmul.f32 %v3352, %v3721
      %v3747 = vmul.f32 %v3355, %v3721
      %v3748 = vmul.f32 %v3358, %v3722
      %v3749 = vmul.f32 %v3361, %v3722
      %v3750 = vmul.f32 %v3364, %v3723
      %v3751 = vmul.f32 %v3367, %v3723
      %v3752 = vmul.f32 %v3370, %v3724
      %v3753 = vmul.f32 %v3373, %v3724
      %v3754 = vmul.f32 %v3376, %v3725
      %v3755 = vmul.f32 %v3379, %v3725
      %v3756 = vmul.f32 %v3382, %v3726
      %v3757 = vmul.f32 %v3385, %v3726
      %v3758 = vmul.f32 %v3388, %v3727
      %v3759 = vmul.f32 %v3391, %v3727
      %v4016 = vsel %vm3033, %v741, %v734
      %v4017 = vsel %vm3035, %v748, %v4016
      %v4018 = vsel %vm3037, %v755, %v4017
      %v4019 = vsel %vm3039, %v762, %v4018
      %v4020 = vsel %vm3041, %v769, %v4019
      %v4021 = vsel %vm3043, %v776, %v4020
      %v4022 = vsel %vm3045, %v783, %v4021
      %v4023 = vsel %vm3033, %v797, %v790
      %v4024 = vsel %vm3035, %v804, %v4023
      %v4025 = vsel %vm3037, %v811, %v4024
      %v4026 = vsel %vm3039, %v818, %v4025
      %v4027 = vsel %vm3041, %v825, %v4026
      %v4028 = vsel %vm3043, %v832, %v4027
      %v4029 = vsel %vm3045, %v839, %v4028
      %v4030 = vsel %vm3033, %v853, %v846
      %v4031 = vsel %vm3035, %v860, %v4030
      %v4032 = vsel %vm3037, %v867, %v4031
      %v4033 = vsel %vm3039, %v874, %v4032
      %v4034 = vsel %vm3041, %v881, %v4033
      %v4035 = vsel %vm3043, %v888, %v4034
      %v4036 = vsel %vm3045, %v895, %v4035
      %v4037 = vsel %vm3033, %v909, %v902
      %v4038 = vsel %vm3035, %v916, %v4037
      %v4039 = vsel %vm3037, %v923, %v4038
      %v4040 = vsel %vm3039, %v930, %v4039
      %v4041 = vsel %vm3041, %v937, %v4040
      %v4042 = vsel %vm3043, %v944, %v4041
      %v4043 = vsel %vm3045, %v951, %v4042
      %v4044 = vsel %vm3033, %v965, %v958
      %v4045 = vsel %vm3035, %v972, %v4044
      %v4046 = vsel %vm3037, %v979, %v4045
      %v4047 = vsel %vm3039, %v986, %v4046
      %v4048 = vsel %vm3041, %v993, %v4047
      %v4049 = vsel %vm3043, %v1000, %v4048
      %v4050 = vsel %vm3045, %v1007, %v4049
      %v4051 = vsel %vm3033, %v1021, %v1014
      %v4052 = vsel %vm3035, %v1028, %v4051
      %v4053 = vsel %vm3037, %v1035, %v4052
      %v4054 = vsel %vm3039, %v1042, %v4053
      %v4055 = vsel %vm3041, %v1049, %v4054
      %v4056 = vsel %vm3043, %v1056, %v4055
      %v4057 = vsel %vm3045, %v1063, %v4056
      %v4058 = vsel %vm3033, %v1077, %v1070
      %v4059 = vsel %vm3035, %v1084, %v4058
      %v4060 = vsel %vm3037, %v1091, %v4059
      %v4061 = vsel %vm3039, %v1098, %v4060
      %v4062 = vsel %vm3041, %v1105, %v4061
      %v4063 = vsel %vm3043, %v1112, %v4062
      %v4064 = vsel %vm3045, %v1119, %v4063
      %v4065 = vsel %vm3033, %v1133, %v1126
      %v4066 = vsel %vm3035, %v1140, %v4065
      %v4067 = vsel %vm3037, %v1147, %v4066
      %v4068 = vsel %vm3039, %v1154, %v4067
      %v4069 = vsel %vm3041, %v1161, %v4068
      %v4070 = vsel %vm3043, %v1168, %v4069
      %v4071 = vsel %vm3045, %v1175, %v4070
      %v4072 = vsel %vm3033, %v1189, %v1182
      %v4073 = vsel %vm3035, %v1196, %v4072
      %v4074 = vsel %vm3037, %v1203, %v4073
      %v4075 = vsel %vm3039, %v1210, %v4074
      %v4076 = vsel %vm3041, %v1217, %v4075
      %v4077 = vsel %vm3043, %v1224, %v4076
      %v4078 = vsel %vm3045, %v1231, %v4077
      %v4079 = vsel %vm3033, %v1245, %v1238
      %v4080 = vsel %vm3035, %v1252, %v4079
      %v4081 = vsel %vm3037, %v1259, %v4080
      %v4082 = vsel %vm3039, %v1266, %v4081
      %v4083 = vsel %vm3041, %v1273, %v4082
      %v4084 = vsel %vm3043, %v1280, %v4083
      %v4085 = vsel %vm3045, %v1287, %v4084
      %v4086 = vsel %vm3033, %v1301, %v1294
      %v4087 = vsel %vm3035, %v1308, %v4086
      %v4088 = vsel %vm3037, %v1315, %v4087
      %v4089 = vsel %vm3039, %v1322, %v4088
      %v4090 = vsel %vm3041, %v1329, %v4089
      %v4091 = vsel %vm3043, %v1336, %v4090
      %v4092 = vsel %vm3045, %v1343, %v4091
      %v4093 = vsel %vm3033, %v1357, %v1350
      %v4094 = vsel %vm3035, %v1364, %v4093
      %v4095 = vsel %vm3037, %v1371, %v4094
      %v4096 = vsel %vm3039, %v1378, %v4095
      %v4097 = vsel %vm3041, %v1385, %v4096
      %v4098 = vsel %vm3043, %v1392, %v4097
      %v4099 = vsel %vm3045, %v1399, %v4098
      %v4100 = vsel %vm3033, %v1413, %v1406
      %v4101 = vsel %vm3035, %v1420, %v4100
      %v4102 = vsel %vm3037, %v1427, %v4101
      %v4103 = vsel %vm3039, %v1434, %v4102
      %v4104 = vsel %vm3041, %v1441, %v4103
      %v4105 = vsel %vm3043, %v1448, %v4104
      %v4106 = vsel %vm3045, %v1455, %v4105
      %v4107 = vsel %vm3033, %v1469, %v1462
      %v4108 = vsel %vm3035, %v1476, %v4107
      %v4109 = vsel %vm3037, %v1483, %v4108
      %v4110 = vsel %vm3039, %v1490, %v4109
      %v4111 = vsel %vm3041, %v1497, %v4110
      %v4112 = vsel %vm3043, %v1504, %v4111
      %v4113 = vsel %vm3045, %v1511, %v4112
      %v4114 = vsel %vm3033, %v1525, %v1518
      %v4115 = vsel %vm3035, %v1532, %v4114
      %v4116 = vsel %vm3037, %v1539, %v4115
      %v4117 = vsel %vm3039, %v1546, %v4116
      %v4118 = vsel %vm3041, %v1553, %v4117
      %v4119 = vsel %vm3043, %v1560, %v4118
      %v4120 = vsel %vm3045, %v1567, %v4119
      %v4121 = vsel %vm3033, %v1581, %v1574
      %v4122 = vsel %vm3035, %v1588, %v4121
      %v4123 = vsel %vm3037, %v1595, %v4122
      %v4124 = vsel %vm3039, %v1602, %v4123
      %v4125 = vsel %vm3041, %v1609, %v4124
      %v4126 = vsel %vm3043, %v1616, %v4125
      %v4127 = vsel %vm3045, %v1623, %v4126
      %v4128 = vsel %vm3033, %v1637, %v1630
      %v4129 = vsel %vm3035, %v1644, %v4128
      %v4130 = vsel %vm3037, %v1651, %v4129
      %v4131 = vsel %vm3039, %v1658, %v4130
      %v4132 = vsel %vm3041, %v1665, %v4131
      %v4133 = vsel %vm3043, %v1672, %v4132
      %v4134 = vsel %vm3045, %v1679, %v4133
      %v4135 = vsel %vm3033, %v1693, %v1686
      %v4136 = vsel %vm3035, %v1700, %v4135
      %v4137 = vsel %vm3037, %v1707, %v4136
      %v4138 = vsel %vm3039, %v1714, %v4137
      %v4139 = vsel %vm3041, %v1721, %v4138
      %v4140 = vsel %vm3043, %v1728, %v4139
      %v4141 = vsel %vm3045, %v1735, %v4140
      %v4142 = vsel %vm3033, %v1749, %v1742
      %v4143 = vsel %vm3035, %v1756, %v4142
      %v4144 = vsel %vm3037, %v1763, %v4143
      %v4145 = vsel %vm3039, %v1770, %v4144
      %v4146 = vsel %vm3041, %v1777, %v4145
      %v4147 = vsel %vm3043, %v1784, %v4146
      %v4148 = vsel %vm3045, %v1791, %v4147
      %v4149 = vsel %vm3033, %v1805, %v1798
      %v4150 = vsel %vm3035, %v1812, %v4149
      %v4151 = vsel %vm3037, %v1819, %v4150
      %v4152 = vsel %vm3039, %v1826, %v4151
      %v4153 = vsel %vm3041, %v1833, %v4152
      %v4154 = vsel %vm3043, %v1840, %v4153
      %v4155 = vsel %vm3045, %v1847, %v4154
      %v4156 = vsel %vm3033, %v1861, %v1854
      %v4157 = vsel %vm3035, %v1868, %v4156
      %v4158 = vsel %vm3037, %v1875, %v4157
      %v4159 = vsel %vm3039, %v1882, %v4158
      %v4160 = vsel %vm3041, %v1889, %v4159
      %v4161 = vsel %vm3043, %v1896, %v4160
      %v4162 = vsel %vm3045, %v1903, %v4161
      %v4163 = vsel %vm3033, %v1917, %v1910
      %v4164 = vsel %vm3035, %v1924, %v4163
      %v4165 = vsel %vm3037, %v1931, %v4164
      %v4166 = vsel %vm3039, %v1938, %v4165
      %v4167 = vsel %vm3041, %v1945, %v4166
      %v4168 = vsel %vm3043, %v1952, %v4167
      %v4169 = vsel %vm3045, %v1959, %v4168
      %v4170 = vsel %vm3033, %v1973, %v1966
      %v4171 = vsel %vm3035, %v1980, %v4170
      %v4172 = vsel %vm3037, %v1987, %v4171
      %v4173 = vsel %vm3039, %v1994, %v4172
      %v4174 = vsel %vm3041, %v2001, %v4173
      %v4175 = vsel %vm3043, %v2008, %v4174
      %v4176 = vsel %vm3045, %v2015, %v4175
      %v4177 = vsel %vm3033, %v2029, %v2022
      %v4178 = vsel %vm3035, %v2036, %v4177
      %v4179 = vsel %vm3037, %v2043, %v4178
      %v4180 = vsel %vm3039, %v2050, %v4179
      %v4181 = vsel %vm3041, %v2057, %v4180
      %v4182 = vsel %vm3043, %v2064, %v4181
      %v4183 = vsel %vm3045, %v2071, %v4182
      %v4184 = vsel %vm3033, %v2085, %v2078
      %v4185 = vsel %vm3035, %v2092, %v4184
      %v4186 = vsel %vm3037, %v2099, %v4185
      %v4187 = vsel %vm3039, %v2106, %v4186
      %v4188 = vsel %vm3041, %v2113, %v4187
      %v4189 = vsel %vm3043, %v2120, %v4188
      %v4190 = vsel %vm3045, %v2127, %v4189
      %v4191 = vsel %vm3033, %v2141, %v2134
      %v4192 = vsel %vm3035, %v2148, %v4191
      %v4193 = vsel %vm3037, %v2155, %v4192
      %v4194 = vsel %vm3039, %v2162, %v4193
      %v4195 = vsel %vm3041, %v2169, %v4194
      %v4196 = vsel %vm3043, %v2176, %v4195
      %v4197 = vsel %vm3045, %v2183, %v4196
      %v4198 = vsel %vm3033, %v2197, %v2190
      %v4199 = vsel %vm3035, %v2204, %v4198
      %v4200 = vsel %vm3037, %v2211, %v4199
      %v4201 = vsel %vm3039, %v2218, %v4200
      %v4202 = vsel %vm3041, %v2225, %v4201
      %v4203 = vsel %vm3043, %v2232, %v4202
      %v4204 = vsel %vm3045, %v2239, %v4203
      %v4205 = vsel %vm3033, %v2253, %v2246
      %v4206 = vsel %vm3035, %v2260, %v4205
      %v4207 = vsel %vm3037, %v2267, %v4206
      %v4208 = vsel %vm3039, %v2274, %v4207
      %v4209 = vsel %vm3041, %v2281, %v4208
      %v4210 = vsel %vm3043, %v2288, %v4209
      %v4211 = vsel %vm3045, %v2295, %v4210
      %v4212 = vsel %vm3033, %v2309, %v2302
      %v4213 = vsel %vm3035, %v2316, %v4212
      %v4214 = vsel %vm3037, %v2323, %v4213
      %v4215 = vsel %vm3039, %v2330, %v4214
      %v4216 = vsel %vm3041, %v2337, %v4215
      %v4217 = vsel %vm3043, %v2344, %v4216
      %v4218 = vsel %vm3045, %v2351, %v4217
      %v4219 = vsel %vm3033, %v2365, %v2358
      %v4220 = vsel %vm3035, %v2372, %v4219
      %v4221 = vsel %vm3037, %v2379, %v4220
      %v4222 = vsel %vm3039, %v2386, %v4221
      %v4223 = vsel %vm3041, %v2393, %v4222
      %v4224 = vsel %vm3043, %v2400, %v4223
      %v4225 = vsel %vm3045, %v2407, %v4224
      %v4226 = vsel %vm3033, %v2421, %v2414
      %v4227 = vsel %vm3035, %v2428, %v4226
      %v4228 = vsel %vm3037, %v2435, %v4227
      %v4229 = vsel %vm3039, %v2442, %v4228
      %v4230 = vsel %vm3041, %v2449, %v4229
      %v4231 = vsel %vm3043, %v2456, %v4230
      %v4232 = vsel %vm3045, %v2463, %v4231
      %v4233 = vsel %vm3033, %v2477, %v2470
      %v4234 = vsel %vm3035, %v2484, %v4233
      %v4235 = vsel %vm3037, %v2491, %v4234
      %v4236 = vsel %vm3039, %v2498, %v4235
      %v4237 = vsel %vm3041, %v2505, %v4236
      %v4238 = vsel %vm3043, %v2512, %v4237
      %v4239 = vsel %vm3045, %v2519, %v4238
      %v4272 = vmul.f32 %v3728, %v4022
      %v4273 = vmul.f32 %v3729, %v4029
      %v4274 = vmul.f32 %v3730, %v4036
      %v4275 = vmul.f32 %v3731, %v4043
      %v4276 = vmul.f32 %v3732, %v4050
      %v4277 = vmul.f32 %v3733, %v4057
      %v4278 = vmul.f32 %v3734, %v4064
      %v4279 = vmul.f32 %v3735, %v4071
      %v4280 = vmul.f32 %v3736, %v4078
      %v4281 = vmul.f32 %v3737, %v4085
      %v4282 = vmul.f32 %v3738, %v4092
      %v4283 = vmul.f32 %v3739, %v4099
      %v4284 = vmul.f32 %v3740, %v4106
      %v4285 = vmul.f32 %v3741, %v4113
      %v4286 = vmul.f32 %v3742, %v4120
      %v4287 = vmul.f32 %v3743, %v4127
      %v4288 = vmul.f32 %v3744, %v4134
      %v4289 = vmul.f32 %v3745, %v4141
      %v4290 = vmul.f32 %v3746, %v4148
      %v4291 = vmul.f32 %v3747, %v4155
      %v4292 = vmul.f32 %v3748, %v4162
      %v4293 = vmul.f32 %v3749, %v4169
      %v4294 = vmul.f32 %v3750, %v4176
      %v4295 = vmul.f32 %v3751, %v4183
      %v4296 = vmul.f32 %v3752, %v4190
      %v4297 = vmul.f32 %v3753, %v4197
      %v4298 = vmul.f32 %v3754, %v4204
      %v4299 = vmul.f32 %v3755, %v4211
      %v4300 = vmul.f32 %v3756, %v4218
      %v4301 = vmul.f32 %v3757, %v4225
      %v4302 = vmul.f32 %v3758, %v4232
      %v4303 = vmul.f32 %v3759, %v4239
      %v4304 = vsel %vm195, %v4272, 0.0
      %v4305 = vsel %vm195, %v4273, 0.0
      %v4306 = vadd.f32 %v4304, %v4305
      %v4307 = vrot.slane %v4306, 4
      %v4308 = vadd.f32 %v4306, %v4307
      %v4309 = vrot.slane %v4308, 2
      %v4310 = vadd.f32 %v4308, %v4309
      %v4311 = vrot.slane %v4310, 1
      %v4312 = vadd.f32 %v4310, %v4311
      %v4313 = vsel %vm195, %v4274, 0.0
      %v4314 = vsel %vm195, %v4275, 0.0
      %v4315 = vadd.f32 %v4313, %v4314
      %v4316 = vrot.slane %v4315, 4
      %v4317 = vadd.f32 %v4315, %v4316
      %v4318 = vrot.slane %v4317, 2
      %v4319 = vadd.f32 %v4317, %v4318
      %v4320 = vrot.slane %v4319, 1
      %v4321 = vadd.f32 %v4319, %v4320
      %v4322 = vsel %vm195, %v4276, 0.0
      %v4323 = vsel %vm195, %v4277, 0.0
      %v4324 = vadd.f32 %v4322, %v4323
      %v4325 = vrot.slane %v4324, 4
      %v4326 = vadd.f32 %v4324, %v4325
      %v4327 = vrot.slane %v4326, 2
      %v4328 = vadd.f32 %v4326, %v4327
      %v4329 = vrot.slane %v4328, 1
      %v4330 = vadd.f32 %v4328, %v4329
      %v4331 = vsel %vm195, %v4278, 0.0
      %v4332 = vsel %vm195, %v4279, 0.0
      %v4333 = vadd.f32 %v4331, %v4332
      %v4334 = vrot.slane %v4333, 4
      %v4335 = vadd.f32 %v4333, %v4334
      %v4336 = vrot.slane %v4335, 2
      %v4337 = vadd.f32 %v4335, %v4336
      %v4338 = vrot.slane %v4337, 1
      %v4339 = vadd.f32 %v4337, %v4338
      %v4340 = vsel %vm195, %v4280, 0.0
      %v4341 = vsel %vm195, %v4281, 0.0
      %v4342 = vadd.f32 %v4340, %v4341
      %v4343 = vrot.slane %v4342, 4
      %v4344 = vadd.f32 %v4342, %v4343
      %v4345 = vrot.slane %v4344, 2
      %v4346 = vadd.f32 %v4344, %v4345
      %v4347 = vrot.slane %v4346, 1
      %v4348 = vadd.f32 %v4346, %v4347
      %v4349 = vsel %vm195, %v4282, 0.0
      %v4350 = vsel %vm195, %v4283, 0.0
      %v4351 = vadd.f32 %v4349, %v4350
      %v4352 = vrot.slane %v4351, 4
      %v4353 = vadd.f32 %v4351, %v4352
      %v4354 = vrot.slane %v4353, 2
      %v4355 = vadd.f32 %v4353, %v4354
      %v4356 = vrot.slane %v4355, 1
      %v4357 = vadd.f32 %v4355, %v4356
      %v4358 = vsel %vm195, %v4284, 0.0
      %v4359 = vsel %vm195, %v4285, 0.0
      %v4360 = vadd.f32 %v4358, %v4359
      %v4361 = vrot.slane %v4360, 4
      %v4362 = vadd.f32 %v4360, %v4361
      %v4363 = vrot.slane %v4362, 2
      %v4364 = vadd.f32 %v4362, %v4363
      %v4365 = vrot.slane %v4364, 1
      %v4366 = vadd.f32 %v4364, %v4365
      %v4367 = vsel %vm195, %v4286, 0.0
      %v4368 = vsel %vm195, %v4287, 0.0
      %v4369 = vadd.f32 %v4367, %v4368
      %v4370 = vrot.slane %v4369, 4
      %v4371 = vadd.f32 %v4369, %v4370
      %v4372 = vrot.slane %v4371, 2
      %v4373 = vadd.f32 %v4371, %v4372
      %v4374 = vrot.slane %v4373, 1
      %v4375 = vadd.f32 %v4373, %v4374
      %v4376 = vsel %vm195, %v4288, 0.0
      %v4377 = vsel %vm195, %v4289, 0.0
      %v4378 = vadd.f32 %v4376, %v4377
      %v4379 = vrot.slane %v4378, 4
      %v4380 = vadd.f32 %v4378, %v4379
      %v4381 = vrot.slane %v4380, 2
      %v4382 = vadd.f32 %v4380, %v4381
      %v4383 = vrot.slane %v4382, 1
      %v4384 = vadd.f32 %v4382, %v4383
      %v4385 = vsel %vm195, %v4290, 0.0
      %v4386 = vsel %vm195, %v4291, 0.0
      %v4387 = vadd.f32 %v4385, %v4386
      %v4388 = vrot.slane %v4387, 4
      %v4389 = vadd.f32 %v4387, %v4388
      %v4390 = vrot.slane %v4389, 2
      %v4391 = vadd.f32 %v4389, %v4390
      %v4392 = vrot.slane %v4391, 1
      %v4393 = vadd.f32 %v4391, %v4392
      %v4394 = vsel %vm195, %v4292, 0.0
      %v4395 = vsel %vm195, %v4293, 0.0
      %v4396 = vadd.f32 %v4394, %v4395
      %v4397 = vrot.slane %v4396, 4
      %v4398 = vadd.f32 %v4396, %v4397
      %v4399 = vrot.slane %v4398, 2
      %v4400 = vadd.f32 %v4398, %v4399
      %v4401 = vrot.slane %v4400, 1
      %v4402 = vadd.f32 %v4400, %v4401
      %v4403 = vsel %vm195, %v4294, 0.0
      %v4404 = vsel %vm195, %v4295, 0.0
      %v4405 = vadd.f32 %v4403, %v4404
      %v4406 = vrot.slane %v4405, 4
      %v4407 = vadd.f32 %v4405, %v4406
      %v4408 = vrot.slane %v4407, 2
      %v4409 = vadd.f32 %v4407, %v4408
      %v4410 = vrot.slane %v4409, 1
      %v4411 = vadd.f32 %v4409, %v4410
      %v4412 = vsel %vm195, %v4296, 0.0
      %v4413 = vsel %vm195, %v4297, 0.0
      %v4414 = vadd.f32 %v4412, %v4413
      %v4415 = vrot.slane %v4414, 4
      %v4416 = vadd.f32 %v4414, %v4415
      %v4417 = vrot.slane %v4416, 2
      %v4418 = vadd.f32 %v4416, %v4417
      %v4419 = vrot.slane %v4418, 1
      %v4420 = vadd.f32 %v4418, %v4419
      %v4421 = vsel %vm195, %v4298, 0.0
      %v4422 = vsel %vm195, %v4299, 0.0
      %v4423 = vadd.f32 %v4421, %v4422
      %v4424 = vrot.slane %v4423, 4
      %v4425 = vadd.f32 %v4423, %v4424
      %v4426 = vrot.slane %v4425, 2
      %v4427 = vadd.f32 %v4425, %v4426
      %v4428 = vrot.slane %v4427, 1
      %v4429 = vadd.f32 %v4427, %v4428
      %v4430 = vsel %vm195, %v4300, 0.0
      %v4431 = vsel %vm195, %v4301, 0.0
      %v4432 = vadd.f32 %v4430, %v4431
      %v4433 = vrot.slane %v4432, 4
      %v4434 = vadd.f32 %v4432, %v4433
      %v4435 = vrot.slane %v4434, 2
      %v4436 = vadd.f32 %v4434, %v4435
      %v4437 = vrot.slane %v4436, 1
      %v4438 = vadd.f32 %v4436, %v4437
      %v4439 = vsel %vm195, %v4302, 0.0
      %v4440 = vsel %vm195, %v4303, 0.0
      %v4441 = vadd.f32 %v4439, %v4440
      %v4442 = vrot.slane %v4441, 4
      %v4443 = vadd.f32 %v4441, %v4442
      %v4444 = vrot.slane %v4443, 2
      %v4445 = vadd.f32 %v4443, %v4444
      %v4446 = vrot.slane %v4445, 1
      %v4447 = vadd.f32 %v4445, %v4446
      %v4448 = vadd.f32 %v4312, 0.0
      %v4449 = vadd.f32 %v4321, 0.0
      %v4450 = vadd.f32 %v4330, 0.0
      %v4451 = vadd.f32 %v4339, 0.0
      %v4452 = vadd.f32 %v4348, 0.0
      %v4453 = vadd.f32 %v4357, 0.0
      %v4454 = vadd.f32 %v4366, 0.0
      %v4455 = vadd.f32 %v4375, 0.0
      %v4456 = vadd.f32 %v4384, 0.0
      %v4457 = vadd.f32 %v4393, 0.0
      %v4458 = vadd.f32 %v4402, 0.0
      %v4459 = vadd.f32 %v4411, 0.0
      %v4460 = vadd.f32 %v4420, 0.0
      %v4461 = vadd.f32 %v4429, 0.0
      %v4462 = vadd.f32 %v4438, 0.0
      %v4463 = vadd.f32 %v4447, 0.0
      %v4464 = vsel %vm195, %v4448, -inf
      %v4465 = vsel %vm195, %v4449, -inf
      %v4466 = vsel %vm195, %v4450, -inf
      %v4467 = vsel %vm195, %v4451, -inf
      %v4468 = vsel %vm195, %v4452, -inf
      %v4469 = vmax.f32 %v4464, %v4468
      %v4470 = vsel %vm195, %v4453, -inf
      %v4471 = vmax.f32 %v4465, %v4470
      %v4472 = vsel %vm195, %v4454, -inf
      %v4473 = vmax.f32 %v4466, %v4472
      %v4474 = vsel %vm195, %v4455, -inf
      %v4475 = vmax.f32 %v4467, %v4474
      %v4476 = vsel %vm195, %v4456, -inf
      %v4477 = vmax.f32 %v4469, %v4476
      %v4478 = vsel %vm195, %v4457, -inf
      %v4479 = vmax.f32 %v4471, %v4478
      %v4480 = vsel %vm195, %v4458, -inf
      %v4481 = vmax.f32 %v4473, %v4480
      %v4482 = vsel %vm195, %v4459, -inf
      %v4483 = vmax.f32 %v4475, %v4482
      %v4484 = vsel %vm195, %v4460, -inf
      %v4485 = vmax.f32 %v4477, %v4484
      %v4486 = vsel %vm195, %v4461, -inf
      %v4487 = vmax.f32 %v4479, %v4486
      %v4488 = vsel %vm195, %v4462, -inf
      %v4489 = vmax.f32 %v4481, %v4488
      %v4490 = vsel %vm195, %v4463, -inf
      %v4491 = vmax.f32 %v4483, %v4490
      %v4492 = vmax.f32 %v4485, %v4487
      %v4493 = vmax.f32 %v4489, %v4491
      %v4494 = vmax.f32 %v4492, %v4493
      %v4495 = vsub.f32 %v4448, %v4494
      %v4496 = vsub.f32 %v4449, %v4494
      %v4497 = vsub.f32 %v4450, %v4494
      %v4498 = vsub.f32 %v4451, %v4494
      %v4499 = vsub.f32 %v4452, %v4494
      %v4500 = vsub.f32 %v4453, %v4494
      %v4501 = vsub.f32 %v4454, %v4494
      %v4502 = vsub.f32 %v4455, %v4494
      %v4503 = vsub.f32 %v4456, %v4494
      %v4504 = vsub.f32 %v4457, %v4494
      %v4505 = vsub.f32 %v4458, %v4494
      %v4506 = vsub.f32 %v4459, %v4494
      %v4507 = vsub.f32 %v4460, %v4494
      %v4508 = vsub.f32 %v4461, %v4494
      %v4509 = vsub.f32 %v4462, %v4494
      %v4510 = vsub.f32 %v4463, %v4494
      %v4511 = vmul.f32 %v4495, 1.442695
      %v4512 = vpow.pop %v4511
      %v4513 = vmul.f32 %v4496, 1.442695
      %v4514 = vpow.pop %v4513
      %v4515 = vmul.f32 %v4497, 1.442695
      %v4516 = vpow.pop %v4515
      %v4517 = vmul.f32 %v4498, 1.442695
      %v4518 = vpow.pop %v4517
      %v4519 = vmul.f32 %v4499, 1.442695
      %v4520 = vpow.pop %v4519
      %v4521 = vmul.f32 %v4500, 1.442695
      %v4522 = vpow.pop %v4521
      %v4523 = vmul.f32 %v4501, 1.442695
      %v4524 = vpow.pop %v4523
      %v4525 = vmul.f32 %v4502, 1.442695
      %v4526 = vpow.pop %v4525
      %v4527 = vmul.f32 %v4503, 1.442695
      %v4528 = vpow.pop %v4527
      %v4529 = vmul.f32 %v4504, 1.442695
      %v4530 = vpow.pop %v4529
      %v4531 = vmul.f32 %v4505, 1.442695
      %v4532 = vpow.pop %v4531
      %v4533 = vmul.f32 %v4506, 1.442695
      %v4534 = vpow.pop %v4533
      %v4535 = vmul.f32 %v4507, 1.442695
      %v4536 = vpow.pop %v4535
      %v4537 = vmul.f32 %v4508, 1.442695
      %v4538 = vpow.pop %v4537
      %v4539 = vmul.f32 %v4509, 1.442695
      %v4540 = vpow.pop %v4539
      %v4541 = vmul.f32 %v4510, 1.442695
      %v4542 = vpow.pop %v4541
      %v4543 = vsel %vm195, %v4512, 0.0
      %v4544 = vsel %vm195, %v4514, 0.0
      %v4545 = vadd.f32 %v4543, %v4544
      %v4546 = vsel %vm195, %v4516, 0.0
      %v4547 = vadd.f32 %v4545, %v4546
      %v4548 = vsel %vm195, %v4518, 0.0
      %v4549 = vadd.f32 %v4547, %v4548
      %v4550 = vsel %vm195, %v4520, 0.0
      %v4551 = vadd.f32 %v4549, %v4550
      %v4552 = vsel %vm195, %v4522, 0.0
      %v4553 = vadd.f32 %v4551, %v4552
      %v4554 = vsel %vm195, %v4524, 0.0
      %v4555 = vadd.f32 %v4553, %v4554
      %v4556 = vsel %vm195, %v4526, 0.0
      %v4557 = vadd.f32 %v4555, %v4556
      %v4558 = vsel %vm195, %v4528, 0.0
      %v4559 = vadd.f32 %v4557, %v4558
      %v4560 = vsel %vm195, %v4530, 0.0
      %v4561 = vadd.f32 %v4559, %v4560
      %v4562 = vsel %vm195, %v4532, 0.0
      %v4563 = vadd.f32 %v4561, %v4562
      %v4564 = vsel %vm195, %v4534, 0.0
      %v4565 = vadd.f32 %v4563, %v4564
      %v4566 = vsel %vm195, %v4536, 0.0
      %v4567 = vadd.f32 %v4565, %v4566
      %v4568 = vsel %vm195, %v4538, 0.0
      %v4569 = vadd.f32 %v4567, %v4568
      %v4570 = vsel %vm195, %v4540, 0.0
      %v4571 = vadd.f32 %v4569, %v4570
      %v4572 = vsel %vm195, %v4542, 0.0
      %v4573 = vadd.f32 %v4571, %v4572
      %v4574 = vrcp.pop %v4573
      %v4575 = vmul.f32 %v4512, %v4574
      %v4576 = vmul.f32 %v4514, %v4574
      %v4577 = vmul.f32 %v4516, %v4574
      %v4578 = vmul.f32 %v4518, %v4574
      %v4579 = vmul.f32 %v4520, %v4574
      %v4580 = vmul.f32 %v4522, %v4574
      %v4581 = vmul.f32 %v4524, %v4574
      %v4582 = vmul.f32 %v4526, %v4574
      %v4583 = vmul.f32 %v4528, %v4574
      %v4584 = vmul.f32 %v4530, %v4574
      %v4585 = vmul.f32 %v4532, %v4574
      %v4586 = vmul.f32 %v4534, %v4574
      %v4587 = vmul.f32 %v4536, %v4574
      %v4588 = vmul.f32 %v4538, %v4574
      %v4589 = vmul.f32 %v4540, %v4574
      %v4590 = vmul.f32 %v4542, %v4574
      %v4591 = vmul.f32 %v4575, %v4022
      %v4592 = vmul.f32 %v4575, %v4029
      %v4593 = vmul.f32 %v4576, %v4036
      %v4594 = vmul.f32 %v4576, %v4043
      %v4595 = vmul.f32 %v4577, %v4050
      %v4596 = vmul.f32 %v4577, %v4057
      %v4597 = vmul.f32 %v4578, %v4064
      %v4598 = vmul.f32 %v4578, %v4071
      %v4599 = vmul.f32 %v4579, %v4078
      %v4600 = vmul.f32 %v4579, %v4085
      %v4601 = vmul.f32 %v4580, %v4092
      %v4602 = vmul.f32 %v4580, %v4099
      %v4603 = vmul.f32 %v4581, %v4106
      %v4604 = vmul.f32 %v4581, %v4113
      %v4605 = vmul.f32 %v4582, %v4120
      %v4606 = vmul.f32 %v4582, %v4127
      %v4607 = vmul.f32 %v4583, %v4134
      %v4608 = vmul.f32 %v4583, %v4141
      %v4609 = vmul.f32 %v4584, %v4148
      %v4610 = vmul.f32 %v4584, %v4155
      %v4611 = vmul.f32 %v4585, %v4162
      %v4612 = vmul.f32 %v4585, %v4169
      %v4613 = vmul.f32 %v4586, %v4176
      %v4614 = vmul.f32 %v4586, %v4183
      %v4615 = vmul.f32 %v4587, %v4190
      %v4616 = vmul.f32 %v4587, %v4197
      %v4617 = vmul.f32 %v4588, %v4204
      %v4618 = vmul.f32 %v4588, %v4211
      %v4619 = vmul.f32 %v4589, %v4218
      %v4620 = vmul.f32 %v4589, %v4225
      %v4621 = vmul.f32 %v4590, %v4232
      %v4622 = vmul.f32 %v4590, %v4239
      %v4623 = vsel %vm195, %v4591, 0.0
      %4624 = vadd.xlane.f32.xlu0 %v4623
      %v4625 = vpop.xlane.xlu0 %4624
      %v4626 = vsel %vm195, %v4592, 0.0
      %4627 = vadd.xlane.f32.xlu0 %v4626
      %v4628 = vpop.xlane.xlu0 %4627
      %v4629 = vsel %vm195, %v4593, 0.0
      %4630 = vadd.xlane.f32.xlu0 %v4629
      %v4631 = vpop.xlane.xlu0 %4630
      %v4632 = vsel %vm195, %v4594, 0.0
      %4633 = vadd.xlane.f32.xlu0 %v4632
      %v4634 = vpop.xlane.xlu0 %4633
      %v4635 = vsel %vm195, %v4595, 0.0
      %4636 = vadd.xlane.f32.xlu0 %v4635
      %v4637 = vpop.xlane.xlu0 %4636
      %v4638 = vsel %vm195, %v4596, 0.0
      %4639 = vadd.xlane.f32.xlu0 %v4638
      %v4640 = vpop.xlane.xlu0 %4639
      %v4641 = vsel %vm195, %v4597, 0.0
      %4642 = vadd.xlane.f32.xlu0 %v4641
      %v4643 = vpop.xlane.xlu0 %4642
      %v4644 = vsel %vm195, %v4598, 0.0
      %4645 = vadd.xlane.f32.xlu0 %v4644
      %v4646 = vpop.xlane.xlu0 %4645
      %v4647 = vsel %vm195, %v4599, 0.0
      %4648 = vadd.xlane.f32.xlu0 %v4647
      %v4649 = vpop.xlane.xlu0 %4648
      %v4650 = vsel %vm195, %v4600, 0.0
      %4651 = vadd.xlane.f32.xlu0 %v4650
      %v4652 = vpop.xlane.xlu0 %4651
      %v4653 = vsel %vm195, %v4601, 0.0
      %4654 = vadd.xlane.f32.xlu0 %v4653
      %v4655 = vpop.xlane.xlu0 %4654
      %v4656 = vsel %vm195, %v4602, 0.0
      %4657 = vadd.xlane.f32.xlu0 %v4656
      %v4658 = vpop.xlane.xlu0 %4657
      %v4659 = vsel %vm195, %v4603, 0.0
      %4660 = vadd.xlane.f32.xlu0 %v4659
      %v4661 = vpop.xlane.xlu0 %4660
      %v4662 = vsel %vm195, %v4604, 0.0
      %4663 = vadd.xlane.f32.xlu0 %v4662
      %v4664 = vpop.xlane.xlu0 %4663
      %v4665 = vsel %vm195, %v4605, 0.0
      %4666 = vadd.xlane.f32.xlu0 %v4665
      %v4667 = vpop.xlane.xlu0 %4666
      %v4668 = vsel %vm195, %v4606, 0.0
      %4669 = vadd.xlane.f32.xlu0 %v4668
      %v4670 = vpop.xlane.xlu0 %4669
      %v4671 = vsel %vm195, %v4607, 0.0
      %4672 = vadd.xlane.f32.xlu0 %v4671
      %v4673 = vpop.xlane.xlu0 %4672
      %v4674 = vsel %vm195, %v4608, 0.0
      %4675 = vadd.xlane.f32.xlu0 %v4674
      %v4676 = vpop.xlane.xlu0 %4675
      %v4677 = vsel %vm195, %v4609, 0.0
      %4678 = vadd.xlane.f32.xlu0 %v4677
      %v4679 = vpop.xlane.xlu0 %4678
      %v4680 = vsel %vm195, %v4610, 0.0
      %4681 = vadd.xlane.f32.xlu0 %v4680
      %v4682 = vpop.xlane.xlu0 %4681
      %v4683 = vsel %vm195, %v4611, 0.0
      %4684 = vadd.xlane.f32.xlu0 %v4683
      %v4685 = vpop.xlane.xlu0 %4684
      %v4686 = vsel %vm195, %v4612, 0.0
      %4687 = vadd.xlane.f32.xlu0 %v4686
      %v4688 = vpop.xlane.xlu0 %4687
      %v4689 = vsel %vm195, %v4613, 0.0
      %4690 = vadd.xlane.f32.xlu0 %v4689
      %v4691 = vpop.xlane.xlu0 %4690
      %v4692 = vsel %vm195, %v4614, 0.0
      %4693 = vadd.xlane.f32.xlu0 %v4692
      %v4694 = vpop.xlane.xlu0 %4693
      %v4695 = vsel %vm195, %v4615, 0.0
      %4696 = vadd.xlane.f32.xlu0 %v4695
      %v4697 = vpop.xlane.xlu0 %4696
      %v4698 = vsel %vm195, %v4616, 0.0
      %4699 = vadd.xlane.f32.xlu0 %v4698
      %v4700 = vpop.xlane.xlu0 %4699
      %v4701 = vsel %vm195, %v4617, 0.0
      %4702 = vadd.xlane.f32.xlu0 %v4701
      %v4703 = vpop.xlane.xlu0 %4702
      %v4704 = vsel %vm195, %v4618, 0.0
      %4705 = vadd.xlane.f32.xlu0 %v4704
      %v4706 = vpop.xlane.xlu0 %4705
      %v4707 = vsel %vm195, %v4619, 0.0
      %4708 = vadd.xlane.f32.xlu0 %v4707
      %v4709 = vpop.xlane.xlu0 %4708
      %v4710 = vsel %vm195, %v4620, 0.0
      %4711 = vadd.xlane.f32.xlu0 %v4710
      %v4712 = vpop.xlane.xlu0 %4711
      %v4713 = vsel %vm195, %v4621, 0.0
      %4714 = vadd.xlane.f32.xlu0 %v4713
      %v4715 = vpop.xlane.xlu0 %4714
      %v4716 = vsel %vm195, %v4622, 0.0
      %4717 = vadd.xlane.f32.xlu0 %v4716
      %v4718 = vpop.xlane.xlu0 %4717
      %v4719 = vmul.f32 %v4625, %v4625
      %v4720 = vmul.f32 %v4628, %v4628
      %v4721 = vmul.f32 %v4631, %v4631
      %v4722 = vmul.f32 %v4634, %v4634
      %v4723 = vmul.f32 %v4637, %v4637
      %v4724 = vmul.f32 %v4640, %v4640
      %v4725 = vmul.f32 %v4643, %v4643
      %v4726 = vmul.f32 %v4646, %v4646
      %v4727 = vmul.f32 %v4649, %v4649
      %v4728 = vmul.f32 %v4652, %v4652
      %v4729 = vmul.f32 %v4655, %v4655
      %v4730 = vmul.f32 %v4658, %v4658
      %v4731 = vmul.f32 %v4661, %v4661
      %v4732 = vmul.f32 %v4664, %v4664
      %v4733 = vmul.f32 %v4667, %v4667
      %v4734 = vmul.f32 %v4670, %v4670
      %v4735 = vmul.f32 %v4673, %v4673
      %v4736 = vmul.f32 %v4676, %v4676
      %v4737 = vmul.f32 %v4679, %v4679
      %v4738 = vmul.f32 %v4682, %v4682
      %v4739 = vmul.f32 %v4685, %v4685
      %v4740 = vmul.f32 %v4688, %v4688
      %v4741 = vmul.f32 %v4691, %v4691
      %v4742 = vmul.f32 %v4694, %v4694
      %v4743 = vmul.f32 %v4697, %v4697
      %v4744 = vmul.f32 %v4700, %v4700
      %v4745 = vmul.f32 %v4703, %v4703
      %v4746 = vmul.f32 %v4706, %v4706
      %v4747 = vmul.f32 %v4709, %v4709
      %v4748 = vmul.f32 %v4712, %v4712
      %v4749 = vmul.f32 %v4715, %v4715
      %v4750 = vmul.f32 %v4718, %v4718
      %v4751 = vadd.f32 %v4719, %v4720
      %v4752 = vrot.slane %v4751, 4
      %v4753 = vadd.f32 %v4751, %v4752
      %v4754 = vrot.slane %v4753, 2
      %v4755 = vadd.f32 %v4753, %v4754
      %v4756 = vrot.slane %v4755, 1
      %v4757 = vadd.f32 %v4755, %v4756
      %v4758 = vadd.f32 %v4721, %v4722
      %v4759 = vrot.slane %v4758, 4
      %v4760 = vadd.f32 %v4758, %v4759
      %v4761 = vrot.slane %v4760, 2
      %v4762 = vadd.f32 %v4760, %v4761
      %v4763 = vrot.slane %v4762, 1
      %v4764 = vadd.f32 %v4762, %v4763
      %v4765 = vadd.f32 %v4723, %v4724
      %v4766 = vrot.slane %v4765, 4
      %v4767 = vadd.f32 %v4765, %v4766
      %v4768 = vrot.slane %v4767, 2
      %v4769 = vadd.f32 %v4767, %v4768
      %v4770 = vrot.slane %v4769, 1
      %v4771 = vadd.f32 %v4769, %v4770
      %v4772 = vadd.f32 %v4725, %v4726
      %v4773 = vrot.slane %v4772, 4
      %v4774 = vadd.f32 %v4772, %v4773
      %v4775 = vrot.slane %v4774, 2
      %v4776 = vadd.f32 %v4774, %v4775
      %v4777 = vrot.slane %v4776, 1
      %v4778 = vadd.f32 %v4776, %v4777
      %v4779 = vadd.f32 %v4727, %v4728
      %v4780 = vrot.slane %v4779, 4
      %v4781 = vadd.f32 %v4779, %v4780
      %v4782 = vrot.slane %v4781, 2
      %v4783 = vadd.f32 %v4781, %v4782
      %v4784 = vrot.slane %v4783, 1
      %v4785 = vadd.f32 %v4783, %v4784
      %v4786 = vadd.f32 %v4729, %v4730
      %v4787 = vrot.slane %v4786, 4
      %v4788 = vadd.f32 %v4786, %v4787
      %v4789 = vrot.slane %v4788, 2
      %v4790 = vadd.f32 %v4788, %v4789
      %v4791 = vrot.slane %v4790, 1
      %v4792 = vadd.f32 %v4790, %v4791
      %v4793 = vadd.f32 %v4731, %v4732
      %v4794 = vrot.slane %v4793, 4
      %v4795 = vadd.f32 %v4793, %v4794
      %v4796 = vrot.slane %v4795, 2
      %v4797 = vadd.f32 %v4795, %v4796
      %v4798 = vrot.slane %v4797, 1
      %v4799 = vadd.f32 %v4797, %v4798
      %v4800 = vadd.f32 %v4733, %v4734
      %v4801 = vrot.slane %v4800, 4
      %v4802 = vadd.f32 %v4800, %v4801
      %v4803 = vrot.slane %v4802, 2
      %v4804 = vadd.f32 %v4802, %v4803
      %v4805 = vrot.slane %v4804, 1
      %v4806 = vadd.f32 %v4804, %v4805
      %v4807 = vadd.f32 %v4735, %v4736
      %v4808 = vrot.slane %v4807, 4
      %v4809 = vadd.f32 %v4807, %v4808
      %v4810 = vrot.slane %v4809, 2
      %v4811 = vadd.f32 %v4809, %v4810
      %v4812 = vrot.slane %v4811, 1
      %v4813 = vadd.f32 %v4811, %v4812
      %v4814 = vadd.f32 %v4737, %v4738
      %v4815 = vrot.slane %v4814, 4
      %v4816 = vadd.f32 %v4814, %v4815
      %v4817 = vrot.slane %v4816, 2
      %v4818 = vadd.f32 %v4816, %v4817
      %v4819 = vrot.slane %v4818, 1
      %v4820 = vadd.f32 %v4818, %v4819
      %v4821 = vadd.f32 %v4739, %v4740
      %v4822 = vrot.slane %v4821, 4
      %v4823 = vadd.f32 %v4821, %v4822
      %v4824 = vrot.slane %v4823, 2
      %v4825 = vadd.f32 %v4823, %v4824
      %v4826 = vrot.slane %v4825, 1
      %v4827 = vadd.f32 %v4825, %v4826
      %v4828 = vadd.f32 %v4741, %v4742
      %v4829 = vrot.slane %v4828, 4
      %v4830 = vadd.f32 %v4828, %v4829
      %v4831 = vrot.slane %v4830, 2
      %v4832 = vadd.f32 %v4830, %v4831
      %v4833 = vrot.slane %v4832, 1
      %v4834 = vadd.f32 %v4832, %v4833
      %v4835 = vadd.f32 %v4743, %v4744
      %v4836 = vrot.slane %v4835, 4
      %v4837 = vadd.f32 %v4835, %v4836
      %v4838 = vrot.slane %v4837, 2
      %v4839 = vadd.f32 %v4837, %v4838
      %v4840 = vrot.slane %v4839, 1
      %v4841 = vadd.f32 %v4839, %v4840
      %v4842 = vadd.f32 %v4745, %v4746
      %v4843 = vrot.slane %v4842, 4
      %v4844 = vadd.f32 %v4842, %v4843
      %v4845 = vrot.slane %v4844, 2
      %v4846 = vadd.f32 %v4844, %v4845
      %v4847 = vrot.slane %v4846, 1
      %v4848 = vadd.f32 %v4846, %v4847
      %v4849 = vadd.f32 %v4747, %v4748
      %v4850 = vrot.slane %v4849, 4
      %v4851 = vadd.f32 %v4849, %v4850
      %v4852 = vrot.slane %v4851, 2
      %v4853 = vadd.f32 %v4851, %v4852
      %v4854 = vrot.slane %v4853, 1
      %v4855 = vadd.f32 %v4853, %v4854
      %v4856 = vadd.f32 %v4749, %v4750
      %v4857 = vrot.slane %v4856, 4
      %v4858 = vadd.f32 %v4856, %v4857
      %v4859 = vrot.slane %v4858, 2
      %v4860 = vadd.f32 %v4858, %v4859
      %v4861 = vrot.slane %v4860, 1
      %v4862 = vadd.f32 %v4860, %v4861
      %v4863 = vadd.f32 %v4757, 1.0
      %v4864 = vadd.f32 %v4764, 1.0
      %v4865 = vadd.f32 %v4771, 1.0
      %v4866 = vadd.f32 %v4778, 1.0
      %v4867 = vadd.f32 %v4785, 1.0
      %v4868 = vadd.f32 %v4792, 1.0
      %v4869 = vadd.f32 %v4799, 1.0
      %v4870 = vadd.f32 %v4806, 1.0
      %v4871 = vadd.f32 %v4813, 1.0
      %v4872 = vadd.f32 %v4820, 1.0
      %v4873 = vadd.f32 %v4827, 1.0
      %v4874 = vadd.f32 %v4834, 1.0
      %v4875 = vadd.f32 %v4841, 1.0
      %v4876 = vadd.f32 %v4848, 1.0
      %v4877 = vadd.f32 %v4855, 1.0
      %v4878 = vadd.f32 %v4862, 1.0
      %v4879 = vrsqrt.pop %v4757
      %v4880 = vmul.f32 %v4757, %v4879
      %vm4881 = vcmp.eq.f32.partialorder %v4757, inf
      %v4882 = vsel %vm4881, %v4757, %v4880
      %vm4883 = vcmp.eq.f32.partialorder %v4757, 0.0
      %v4884 = vand.u32 %v4757, 2147483648
      %v4885 = vsel %vm4883, %v4884, %v4882
      %v4886 = vrsqrt.pop %v4764
      %v4887 = vmul.f32 %v4764, %v4886
      %vm4888 = vcmp.eq.f32.partialorder %v4764, inf
      %v4889 = vsel %vm4888, %v4764, %v4887
      %vm4890 = vcmp.eq.f32.partialorder %v4764, 0.0
      %v4891 = vand.u32 %v4764, 2147483648
      %v4892 = vsel %vm4890, %v4891, %v4889
      %v4893 = vrsqrt.pop %v4771
      %v4894 = vmul.f32 %v4771, %v4893
      %vm4895 = vcmp.eq.f32.partialorder %v4771, inf
      %v4896 = vsel %vm4895, %v4771, %v4894
      %vm4897 = vcmp.eq.f32.partialorder %v4771, 0.0
      %v4898 = vand.u32 %v4771, 2147483648
      %v4899 = vsel %vm4897, %v4898, %v4896
      %v4900 = vrsqrt.pop %v4778
      %v4901 = vmul.f32 %v4778, %v4900
      %vm4902 = vcmp.eq.f32.partialorder %v4778, inf
      %v4903 = vsel %vm4902, %v4778, %v4901
      %vm4904 = vcmp.eq.f32.partialorder %v4778, 0.0
      %v4905 = vand.u32 %v4778, 2147483648
      %v4906 = vsel %vm4904, %v4905, %v4903
      %v4907 = vrsqrt.pop %v4785
      %v4908 = vmul.f32 %v4785, %v4907
      %vm4909 = vcmp.eq.f32.partialorder %v4785, inf
      %v4910 = vsel %vm4909, %v4785, %v4908
      %vm4911 = vcmp.eq.f32.partialorder %v4785, 0.0
      %v4912 = vand.u32 %v4785, 2147483648
      %v4913 = vsel %vm4911, %v4912, %v4910
      %v4914 = vrsqrt.pop %v4792
      %v4915 = vmul.f32 %v4792, %v4914
      %vm4916 = vcmp.eq.f32.partialorder %v4792, inf
      %v4917 = vsel %vm4916, %v4792, %v4915
      %vm4918 = vcmp.eq.f32.partialorder %v4792, 0.0
      %v4919 = vand.u32 %v4792, 2147483648
      %v4920 = vsel %vm4918, %v4919, %v4917
      %v4921 = vrsqrt.pop %v4799
      %v4922 = vmul.f32 %v4799, %v4921
      %vm4923 = vcmp.eq.f32.partialorder %v4799, inf
      %v4924 = vsel %vm4923, %v4799, %v4922
      %vm4925 = vcmp.eq.f32.partialorder %v4799, 0.0
      %v4926 = vand.u32 %v4799, 2147483648
      %v4927 = vsel %vm4925, %v4926, %v4924
      %v4928 = vrsqrt.pop %v4806
      %v4929 = vmul.f32 %v4806, %v4928
      %vm4930 = vcmp.eq.f32.partialorder %v4806, inf
      %v4931 = vsel %vm4930, %v4806, %v4929
      %vm4932 = vcmp.eq.f32.partialorder %v4806, 0.0
      %v4933 = vand.u32 %v4806, 2147483648
      %v4934 = vsel %vm4932, %v4933, %v4931
      %v4935 = vrsqrt.pop %v4813
      %v4936 = vmul.f32 %v4813, %v4935
      %vm4937 = vcmp.eq.f32.partialorder %v4813, inf
      %v4938 = vsel %vm4937, %v4813, %v4936
      %vm4939 = vcmp.eq.f32.partialorder %v4813, 0.0
      %v4940 = vand.u32 %v4813, 2147483648
      %v4941 = vsel %vm4939, %v4940, %v4938
      %v4942 = vrsqrt.pop %v4820
      %v4943 = vmul.f32 %v4820, %v4942
      %vm4944 = vcmp.eq.f32.partialorder %v4820, inf
      %v4945 = vsel %vm4944, %v4820, %v4943
      %vm4946 = vcmp.eq.f32.partialorder %v4820, 0.0
      %v4947 = vand.u32 %v4820, 2147483648
      %v4948 = vsel %vm4946, %v4947, %v4945
      %v4949 = vrsqrt.pop %v4827
      %v4950 = vmul.f32 %v4827, %v4949
      %vm4951 = vcmp.eq.f32.partialorder %v4827, inf
      %v4952 = vsel %vm4951, %v4827, %v4950
      %vm4953 = vcmp.eq.f32.partialorder %v4827, 0.0
      %v4954 = vand.u32 %v4827, 2147483648
      %v4955 = vsel %vm4953, %v4954, %v4952
      %v4956 = vrsqrt.pop %v4834
      %v4957 = vmul.f32 %v4834, %v4956
      %vm4958 = vcmp.eq.f32.partialorder %v4834, inf
      %v4959 = vsel %vm4958, %v4834, %v4957
      %vm4960 = vcmp.eq.f32.partialorder %v4834, 0.0
      %v4961 = vand.u32 %v4834, 2147483648
      %v4962 = vsel %vm4960, %v4961, %v4959
      %v4963 = vrsqrt.pop %v4841
      %v4964 = vmul.f32 %v4841, %v4963
      %vm4965 = vcmp.eq.f32.partialorder %v4841, inf
      %v4966 = vsel %vm4965, %v4841, %v4964
      %vm4967 = vcmp.eq.f32.partialorder %v4841, 0.0
      %v4968 = vand.u32 %v4841, 2147483648
      %v4969 = vsel %vm4967, %v4968, %v4966
      %v4970 = vrsqrt.pop %v4848
      %v4971 = vmul.f32 %v4848, %v4970
      %vm4972 = vcmp.eq.f32.partialorder %v4848, inf
      %v4973 = vsel %vm4972, %v4848, %v4971
      %vm4974 = vcmp.eq.f32.partialorder %v4848, 0.0
      %v4975 = vand.u32 %v4848, 2147483648
      %v4976 = vsel %vm4974, %v4975, %v4973
      %v4977 = vrsqrt.pop %v4855
      %v4978 = vmul.f32 %v4855, %v4977
      %vm4979 = vcmp.eq.f32.partialorder %v4855, inf
      %v4980 = vsel %vm4979, %v4855, %v4978
      %vm4981 = vcmp.eq.f32.partialorder %v4855, 0.0
      %v4982 = vand.u32 %v4855, 2147483648
      %v4983 = vsel %vm4981, %v4982, %v4980
      %v4984 = vrsqrt.pop %v4862
      %v4985 = vmul.f32 %v4862, %v4984
      %vm4986 = vcmp.eq.f32.partialorder %v4862, inf
      %v4987 = vsel %vm4986, %v4862, %v4985
      %vm4988 = vcmp.eq.f32.partialorder %v4862, 0.0
      %v4989 = vand.u32 %v4862, 2147483648
      %v4990 = vsel %vm4988, %v4989, %v4987
      %v4991 = vadd.f32 %v4885, 1e-08
      %v4992 = vadd.f32 %v4892, 1e-08
      %v4993 = vadd.f32 %v4899, 1e-08
      %v4994 = vadd.f32 %v4906, 1e-08
      %v4995 = vadd.f32 %v4913, 1e-08
      %v4996 = vadd.f32 %v4920, 1e-08
      %v4997 = vadd.f32 %v4927, 1e-08
      %v4998 = vadd.f32 %v4934, 1e-08
      %v4999 = vadd.f32 %v4941, 1e-08
      %v5000 = vadd.f32 %v4948, 1e-08
      %v5001 = vadd.f32 %v4955, 1e-08
      %v5002 = vadd.f32 %v4962, 1e-08
      %v5003 = vadd.f32 %v4969, 1e-08
      %v5004 = vadd.f32 %v4976, 1e-08
      %v5005 = vadd.f32 %v4983, 1e-08
      %v5006 = vadd.f32 %v4990, 1e-08
      %v5007 = vmul.f32 %v4863, %v4991
      %v5008 = vmul.f32 %v4864, %v4992
      %v5009 = vmul.f32 %v4865, %v4993
      %v5010 = vmul.f32 %v4866, %v4994
      %v5011 = vmul.f32 %v4867, %v4995
      %v5012 = vmul.f32 %v4868, %v4996
      %v5013 = vmul.f32 %v4869, %v4997
      %v5014 = vmul.f32 %v4870, %v4998
      %v5015 = vmul.f32 %v4871, %v4999
      %v5016 = vmul.f32 %v4872, %v5000
      %v5017 = vmul.f32 %v4873, %v5001
      %v5018 = vmul.f32 %v4874, %v5002
      %v5019 = vmul.f32 %v4875, %v5003
      %v5020 = vmul.f32 %v4876, %v5004
      %v5021 = vmul.f32 %v4877, %v5005
      %v5022 = vmul.f32 %v4878, %v5006
      %v5023 = vrcp.pop %v5007
      %v5024 = vrcp.pop %v5008
      %v5025 = vrcp.pop %v5009
      %v5026 = vrcp.pop %v5010
      %v5027 = vrcp.pop %v5011
      %v5028 = vrcp.pop %v5012
      %v5029 = vrcp.pop %v5013
      %v5030 = vrcp.pop %v5014
      %v5031 = vrcp.pop %v5015
      %v5032 = vrcp.pop %v5016
      %v5033 = vrcp.pop %v5017
      %v5034 = vrcp.pop %v5018
      %v5035 = vrcp.pop %v5019
      %v5036 = vrcp.pop %v5020
      %v5037 = vrcp.pop %v5021
      %v5038 = vrcp.pop %v5022
      %v5039 = vmul.f32 %v4757, %v5023
      %v5040 = vmul.f32 %v4764, %v5024
      %v5041 = vmul.f32 %v4771, %v5025
      %v5042 = vmul.f32 %v4778, %v5026
      %v5043 = vmul.f32 %v4785, %v5027
      %v5044 = vmul.f32 %v4792, %v5028
      %v5045 = vmul.f32 %v4799, %v5029
      %v5046 = vmul.f32 %v4806, %v5030
      %v5047 = vmul.f32 %v4813, %v5031
      %v5048 = vmul.f32 %v4820, %v5032
      %v5049 = vmul.f32 %v4827, %v5033
      %v5050 = vmul.f32 %v4834, %v5034
      %v5051 = vmul.f32 %v4841, %v5035
      %v5052 = vmul.f32 %v4848, %v5036
      %v5053 = vmul.f32 %v4855, %v5037
      %v5054 = vmul.f32 %v4862, %v5038
      %v5055 = vmul.f32 %v4625, %v5039
      %v5056 = vmul.f32 %v4628, %v5039
      %v5057 = vmul.f32 %v4631, %v5040
      %v5058 = vmul.f32 %v4634, %v5040
      %v5059 = vmul.f32 %v4637, %v5041
      %v5060 = vmul.f32 %v4640, %v5041
      %v5061 = vmul.f32 %v4643, %v5042
      %v5062 = vmul.f32 %v4646, %v5042
      %v5063 = vmul.f32 %v4649, %v5043
      %v5064 = vmul.f32 %v4652, %v5043
      %v5065 = vmul.f32 %v4655, %v5044
      %v5066 = vmul.f32 %v4658, %v5044
      %v5067 = vmul.f32 %v4661, %v5045
      %v5068 = vmul.f32 %v4664, %v5045
      %v5069 = vmul.f32 %v4667, %v5046
      %v5070 = vmul.f32 %v4670, %v5046
      %v5071 = vmul.f32 %v4673, %v5047
      %v5072 = vmul.f32 %v4676, %v5047
      %v5073 = vmul.f32 %v4679, %v5048
      %v5074 = vmul.f32 %v4682, %v5048
      %v5075 = vmul.f32 %v4685, %v5049
      %v5076 = vmul.f32 %v4688, %v5049
      %v5077 = vmul.f32 %v4691, %v5050
      %v5078 = vmul.f32 %v4694, %v5050
      %v5079 = vmul.f32 %v4697, %v5051
      %v5080 = vmul.f32 %v4700, %v5051
      %v5081 = vmul.f32 %v4703, %v5052
      %v5082 = vmul.f32 %v4706, %v5052
      %v5083 = vmul.f32 %v4709, %v5053
      %v5084 = vmul.f32 %v4712, %v5053
      %v5085 = vmul.f32 %v4715, %v5054
      %v5086 = vmul.f32 %v4718, %v5054
      %v5087 = vmul.f32 %v5055, %v4022
      %v5088 = vmul.f32 %v5056, %v4029
      %v5089 = vmul.f32 %v5057, %v4036
      %v5090 = vmul.f32 %v5058, %v4043
      %v5091 = vmul.f32 %v5059, %v4050
      %v5092 = vmul.f32 %v5060, %v4057
      %v5093 = vmul.f32 %v5061, %v4064
      %v5094 = vmul.f32 %v5062, %v4071
      %v5095 = vmul.f32 %v5063, %v4078
      %v5096 = vmul.f32 %v5064, %v4085
      %v5097 = vmul.f32 %v5065, %v4092
      %v5098 = vmul.f32 %v5066, %v4099
      %v5099 = vmul.f32 %v5067, %v4106
      %v5100 = vmul.f32 %v5068, %v4113
      %v5101 = vmul.f32 %v5069, %v4120
      %v5102 = vmul.f32 %v5070, %v4127
      %v5103 = vmul.f32 %v5071, %v4134
      %v5104 = vmul.f32 %v5072, %v4141
      %v5105 = vmul.f32 %v5073, %v4148
      %v5106 = vmul.f32 %v5074, %v4155
      %v5107 = vmul.f32 %v5075, %v4162
      %v5108 = vmul.f32 %v5076, %v4169
      %v5109 = vmul.f32 %v5077, %v4176
      %v5110 = vmul.f32 %v5078, %v4183
      %v5111 = vmul.f32 %v5079, %v4190
      %v5112 = vmul.f32 %v5080, %v4197
      %v5113 = vmul.f32 %v5081, %v4204
      %v5114 = vmul.f32 %v5082, %v4211
      %v5115 = vmul.f32 %v5083, %v4218
      %v5116 = vmul.f32 %v5084, %v4225
      %v5117 = vmul.f32 %v5085, %v4232
      %v5118 = vmul.f32 %v5086, %v4239
      %v5119 = vsel %vm195, %v5087, 0.0
      %v5120 = vsel %vm195, %v5088, 0.0
      %v5121 = vadd.f32 %v5119, %v5120
      %v5122 = vrot.slane %v5121, 4
      %v5123 = vadd.f32 %v5121, %v5122
      %v5124 = vrot.slane %v5123, 2
      %v5125 = vadd.f32 %v5123, %v5124
      %v5126 = vrot.slane %v5125, 1
      %v5127 = vadd.f32 %v5125, %v5126
      %v5128 = vsel %vm195, %v5089, 0.0
      %v5129 = vsel %vm195, %v5090, 0.0
      %v5130 = vadd.f32 %v5128, %v5129
      %v5131 = vrot.slane %v5130, 4
      %v5132 = vadd.f32 %v5130, %v5131
      %v5133 = vrot.slane %v5132, 2
      %v5134 = vadd.f32 %v5132, %v5133
      %v5135 = vrot.slane %v5134, 1
      %v5136 = vadd.f32 %v5134, %v5135
      %v5137 = vsel %vm195, %v5091, 0.0
      %v5138 = vsel %vm195, %v5092, 0.0
      %v5139 = vadd.f32 %v5137, %v5138
      %v5140 = vrot.slane %v5139, 4
      %v5141 = vadd.f32 %v5139, %v5140
      %v5142 = vrot.slane %v5141, 2
      %v5143 = vadd.f32 %v5141, %v5142
      %v5144 = vrot.slane %v5143, 1
      %v5145 = vadd.f32 %v5143, %v5144
      %v5146 = vsel %vm195, %v5093, 0.0
      %v5147 = vsel %vm195, %v5094, 0.0
      %v5148 = vadd.f32 %v5146, %v5147
      %v5149 = vrot.slane %v5148, 4
      %v5150 = vadd.f32 %v5148, %v5149
      %v5151 = vrot.slane %v5150, 2
      %v5152 = vadd.f32 %v5150, %v5151
      %v5153 = vrot.slane %v5152, 1
      %v5154 = vadd.f32 %v5152, %v5153
      %v5155 = vsel %vm195, %v5095, 0.0
      %v5156 = vsel %vm195, %v5096, 0.0
      %v5157 = vadd.f32 %v5155, %v5156
      %v5158 = vrot.slane %v5157, 4
      %v5159 = vadd.f32 %v5157, %v5158
      %v5160 = vrot.slane %v5159, 2
      %v5161 = vadd.f32 %v5159, %v5160
      %v5162 = vrot.slane %v5161, 1
      %v5163 = vadd.f32 %v5161, %v5162
      %v5164 = vsel %vm195, %v5097, 0.0
      %v5165 = vsel %vm195, %v5098, 0.0
      %v5166 = vadd.f32 %v5164, %v5165
      %v5167 = vrot.slane %v5166, 4
      %v5168 = vadd.f32 %v5166, %v5167
      %v5169 = vrot.slane %v5168, 2
      %v5170 = vadd.f32 %v5168, %v5169
      %v5171 = vrot.slane %v5170, 1
      %v5172 = vadd.f32 %v5170, %v5171
      %v5173 = vsel %vm195, %v5099, 0.0
      %v5174 = vsel %vm195, %v5100, 0.0
      %v5175 = vadd.f32 %v5173, %v5174
      %v5176 = vrot.slane %v5175, 4
      %v5177 = vadd.f32 %v5175, %v5176
      %v5178 = vrot.slane %v5177, 2
      %v5179 = vadd.f32 %v5177, %v5178
      %v5180 = vrot.slane %v5179, 1
      %v5181 = vadd.f32 %v5179, %v5180
      %v5182 = vsel %vm195, %v5101, 0.0
      %v5183 = vsel %vm195, %v5102, 0.0
      %v5184 = vadd.f32 %v5182, %v5183
      %v5185 = vrot.slane %v5184, 4
      %v5186 = vadd.f32 %v5184, %v5185
      %v5187 = vrot.slane %v5186, 2
      %v5188 = vadd.f32 %v5186, %v5187
      %v5189 = vrot.slane %v5188, 1
      %v5190 = vadd.f32 %v5188, %v5189
      %v5191 = vsel %vm195, %v5103, 0.0
      %v5192 = vsel %vm195, %v5104, 0.0
      %v5193 = vadd.f32 %v5191, %v5192
      %v5194 = vrot.slane %v5193, 4
      %v5195 = vadd.f32 %v5193, %v5194
      %v5196 = vrot.slane %v5195, 2
      %v5197 = vadd.f32 %v5195, %v5196
      %v5198 = vrot.slane %v5197, 1
      %v5199 = vadd.f32 %v5197, %v5198
      %v5200 = vsel %vm195, %v5105, 0.0
      %v5201 = vsel %vm195, %v5106, 0.0
      %v5202 = vadd.f32 %v5200, %v5201
      %v5203 = vrot.slane %v5202, 4
      %v5204 = vadd.f32 %v5202, %v5203
      %v5205 = vrot.slane %v5204, 2
      %v5206 = vadd.f32 %v5204, %v5205
      %v5207 = vrot.slane %v5206, 1
      %v5208 = vadd.f32 %v5206, %v5207
      %v5209 = vsel %vm195, %v5107, 0.0
      %v5210 = vsel %vm195, %v5108, 0.0
      %v5211 = vadd.f32 %v5209, %v5210
      %v5212 = vrot.slane %v5211, 4
      %v5213 = vadd.f32 %v5211, %v5212
      %v5214 = vrot.slane %v5213, 2
      %v5215 = vadd.f32 %v5213, %v5214
      %v5216 = vrot.slane %v5215, 1
      %v5217 = vadd.f32 %v5215, %v5216
      %v5218 = vsel %vm195, %v5109, 0.0
      %v5219 = vsel %vm195, %v5110, 0.0
      %v5220 = vadd.f32 %v5218, %v5219
      %v5221 = vrot.slane %v5220, 4
      %v5222 = vadd.f32 %v5220, %v5221
      %v5223 = vrot.slane %v5222, 2
      %v5224 = vadd.f32 %v5222, %v5223
      %v5225 = vrot.slane %v5224, 1
      %v5226 = vadd.f32 %v5224, %v5225
      %v5227 = vsel %vm195, %v5111, 0.0
      %v5228 = vsel %vm195, %v5112, 0.0
      %v5229 = vadd.f32 %v5227, %v5228
      %v5230 = vrot.slane %v5229, 4
      %v5231 = vadd.f32 %v5229, %v5230
      %v5232 = vrot.slane %v5231, 2
      %v5233 = vadd.f32 %v5231, %v5232
      %v5234 = vrot.slane %v5233, 1
      %v5235 = vadd.f32 %v5233, %v5234
      %v5236 = vsel %vm195, %v5113, 0.0
      %v5237 = vsel %vm195, %v5114, 0.0
      %v5238 = vadd.f32 %v5236, %v5237
      %v5239 = vrot.slane %v5238, 4
      %v5240 = vadd.f32 %v5238, %v5239
      %v5241 = vrot.slane %v5240, 2
      %v5242 = vadd.f32 %v5240, %v5241
      %v5243 = vrot.slane %v5242, 1
      %v5244 = vadd.f32 %v5242, %v5243
      %v5245 = vsel %vm195, %v5115, 0.0
      %v5246 = vsel %vm195, %v5116, 0.0
      %v5247 = vadd.f32 %v5245, %v5246
      %v5248 = vrot.slane %v5247, 4
      %v5249 = vadd.f32 %v5247, %v5248
      %v5250 = vrot.slane %v5249, 2
      %v5251 = vadd.f32 %v5249, %v5250
      %v5252 = vrot.slane %v5251, 1
      %v5253 = vadd.f32 %v5251, %v5252
      %v5254 = vsel %vm195, %v5117, 0.0
      %v5255 = vsel %vm195, %v5118, 0.0
      %v5256 = vadd.f32 %v5254, %v5255
      %v5257 = vrot.slane %v5256, 4
      %v5258 = vadd.f32 %v5256, %v5257
      %v5259 = vrot.slane %v5258, 2
      %v5260 = vadd.f32 %v5258, %v5259
      %v5261 = vrot.slane %v5260, 1
      %v5262 = vadd.f32 %v5260, %v5261
      %v5263 = vadd.f32 %v4448, %v5127
      %v5264 = vadd.f32 %v4449, %v5136
      %v5265 = vadd.f32 %v4450, %v5145
      %v5266 = vadd.f32 %v4451, %v5154
      %v5267 = vadd.f32 %v4452, %v5163
      %v5268 = vadd.f32 %v4453, %v5172
      %v5269 = vadd.f32 %v4454, %v5181
      %v5270 = vadd.f32 %v4455, %v5190
      %v5271 = vadd.f32 %v4456, %v5199
      %v5272 = vadd.f32 %v4457, %v5208
      %v5273 = vadd.f32 %v4458, %v5217
      %v5274 = vadd.f32 %v4459, %v5226
      %v5275 = vadd.f32 %v4460, %v5235
      %v5276 = vadd.f32 %v4461, %v5244
      %v5277 = vadd.f32 %v4462, %v5253
      %v5278 = vadd.f32 %v4463, %v5262
      %v5279 = vsel %vm195, %v5263, -inf
      %v5280 = vsel %vm195, %v5264, -inf
      %v5281 = vsel %vm195, %v5265, -inf
      %v5282 = vsel %vm195, %v5266, -inf
      %v5283 = vsel %vm195, %v5267, -inf
      %v5284 = vmax.f32 %v5279, %v5283
      %v5285 = vsel %vm195, %v5268, -inf
      %v5286 = vmax.f32 %v5280, %v5285
      %v5287 = vsel %vm195, %v5269, -inf
      %v5288 = vmax.f32 %v5281, %v5287
      %v5289 = vsel %vm195, %v5270, -inf
      %v5290 = vmax.f32 %v5282, %v5289
      %v5291 = vsel %vm195, %v5271, -inf
      %v5292 = vmax.f32 %v5284, %v5291
      %v5293 = vsel %vm195, %v5272, -inf
      %v5294 = vmax.f32 %v5286, %v5293
      %v5295 = vsel %vm195, %v5273, -inf
      %v5296 = vmax.f32 %v5288, %v5295
      %v5297 = vsel %vm195, %v5274, -inf
      %v5298 = vmax.f32 %v5290, %v5297
      %v5299 = vsel %vm195, %v5275, -inf
      %v5300 = vmax.f32 %v5292, %v5299
      %v5301 = vsel %vm195, %v5276, -inf
      %v5302 = vmax.f32 %v5294, %v5301
      %v5303 = vsel %vm195, %v5277, -inf
      %v5304 = vmax.f32 %v5296, %v5303
      %v5305 = vsel %vm195, %v5278, -inf
      %v5306 = vmax.f32 %v5298, %v5305
      %v5307 = vmax.f32 %v5300, %v5302
      %v5308 = vmax.f32 %v5304, %v5306
      %v5309 = vmax.f32 %v5307, %v5308
      %v5310 = vsub.f32 %v5263, %v5309
      %v5311 = vsub.f32 %v5264, %v5309
      %v5312 = vsub.f32 %v5265, %v5309
      %v5313 = vsub.f32 %v5266, %v5309
      %v5314 = vsub.f32 %v5267, %v5309
      %v5315 = vsub.f32 %v5268, %v5309
      %v5316 = vsub.f32 %v5269, %v5309
      %v5317 = vsub.f32 %v5270, %v5309
      %v5318 = vsub.f32 %v5271, %v5309
      %v5319 = vsub.f32 %v5272, %v5309
      %v5320 = vsub.f32 %v5273, %v5309
      %v5321 = vsub.f32 %v5274, %v5309
      %v5322 = vsub.f32 %v5275, %v5309
      %v5323 = vsub.f32 %v5276, %v5309
      %v5324 = vsub.f32 %v5277, %v5309
      %v5325 = vsub.f32 %v5278, %v5309
      %v5326 = vmul.f32 %v5310, 1.442695
      %v5327 = vpow.pop %v5326
      %v5328 = vmul.f32 %v5311, 1.442695
      %v5329 = vpow.pop %v5328
      %v5330 = vmul.f32 %v5312, 1.442695
      %v5331 = vpow.pop %v5330
      %v5332 = vmul.f32 %v5313, 1.442695
      %v5333 = vpow.pop %v5332
      %v5334 = vmul.f32 %v5314, 1.442695
      %v5335 = vpow.pop %v5334
      %v5336 = vmul.f32 %v5315, 1.442695
      %v5337 = vpow.pop %v5336
      %v5338 = vmul.f32 %v5316, 1.442695
      %v5339 = vpow.pop %v5338
      %v5340 = vmul.f32 %v5317, 1.442695
      %v5341 = vpow.pop %v5340
      %v5342 = vmul.f32 %v5318, 1.442695
      %v5343 = vpow.pop %v5342
      %v5344 = vmul.f32 %v5319, 1.442695
      %v5345 = vpow.pop %v5344
      %v5346 = vmul.f32 %v5320, 1.442695
      %v5347 = vpow.pop %v5346
      %v5348 = vmul.f32 %v5321, 1.442695
      %v5349 = vpow.pop %v5348
      %v5350 = vmul.f32 %v5322, 1.442695
      %v5351 = vpow.pop %v5350
      %v5352 = vmul.f32 %v5323, 1.442695
      %v5353 = vpow.pop %v5352
      %v5354 = vmul.f32 %v5324, 1.442695
      %v5355 = vpow.pop %v5354
      %v5356 = vmul.f32 %v5325, 1.442695
      %v5357 = vpow.pop %v5356
      %v5358 = vsel %vm195, %v5327, 0.0
      %v5359 = vsel %vm195, %v5329, 0.0
      %v5360 = vadd.f32 %v5358, %v5359
      %v5361 = vsel %vm195, %v5331, 0.0
      %v5362 = vadd.f32 %v5360, %v5361
      %v5363 = vsel %vm195, %v5333, 0.0
      %v5364 = vadd.f32 %v5362, %v5363
      %v5365 = vsel %vm195, %v5335, 0.0
      %v5366 = vadd.f32 %v5364, %v5365
      %v5367 = vsel %vm195, %v5337, 0.0
      %v5368 = vadd.f32 %v5366, %v5367
      %v5369 = vsel %vm195, %v5339, 0.0
      %v5370 = vadd.f32 %v5368, %v5369
      %v5371 = vsel %vm195, %v5341, 0.0
      %v5372 = vadd.f32 %v5370, %v5371
      %v5373 = vsel %vm195, %v5343, 0.0
      %v5374 = vadd.f32 %v5372, %v5373
      %v5375 = vsel %vm195, %v5345, 0.0
      %v5376 = vadd.f32 %v5374, %v5375
      %v5377 = vsel %vm195, %v5347, 0.0
      %v5378 = vadd.f32 %v5376, %v5377
      %v5379 = vsel %vm195, %v5349, 0.0
      %v5380 = vadd.f32 %v5378, %v5379
      %v5381 = vsel %vm195, %v5351, 0.0
      %v5382 = vadd.f32 %v5380, %v5381
      %v5383 = vsel %vm195, %v5353, 0.0
      %v5384 = vadd.f32 %v5382, %v5383
      %v5385 = vsel %vm195, %v5355, 0.0
      %v5386 = vadd.f32 %v5384, %v5385
      %v5387 = vsel %vm195, %v5357, 0.0
      %v5388 = vadd.f32 %v5386, %v5387
      %v5389 = vrcp.pop %v5388
      %v5390 = vmul.f32 %v5327, %v5389
      %v5391 = vmul.f32 %v5329, %v5389
      %v5392 = vmul.f32 %v5331, %v5389
      %v5393 = vmul.f32 %v5333, %v5389
      %v5394 = vmul.f32 %v5335, %v5389
      %v5395 = vmul.f32 %v5337, %v5389
      %v5396 = vmul.f32 %v5339, %v5389
      %v5397 = vmul.f32 %v5341, %v5389
      %v5398 = vmul.f32 %v5343, %v5389
      %v5399 = vmul.f32 %v5345, %v5389
      %v5400 = vmul.f32 %v5347, %v5389
      %v5401 = vmul.f32 %v5349, %v5389
      %v5402 = vmul.f32 %v5351, %v5389
      %v5403 = vmul.f32 %v5353, %v5389
      %v5404 = vmul.f32 %v5355, %v5389
      %v5405 = vmul.f32 %v5357, %v5389
      %v5406 = vmul.f32 %v5390, %v4022
      %v5407 = vmul.f32 %v5390, %v4029
      %v5408 = vmul.f32 %v5391, %v4036
      %v5409 = vmul.f32 %v5391, %v4043
      %v5410 = vmul.f32 %v5392, %v4050
      %v5411 = vmul.f32 %v5392, %v4057
      %v5412 = vmul.f32 %v5393, %v4064
      %v5413 = vmul.f32 %v5393, %v4071
      %v5414 = vmul.f32 %v5394, %v4078
      %v5415 = vmul.f32 %v5394, %v4085
      %v5416 = vmul.f32 %v5395, %v4092
      %v5417 = vmul.f32 %v5395, %v4099
      %v5418 = vmul.f32 %v5396, %v4106
      %v5419 = vmul.f32 %v5396, %v4113
      %v5420 = vmul.f32 %v5397, %v4120
      %v5421 = vmul.f32 %v5397, %v4127
      %v5422 = vmul.f32 %v5398, %v4134
      %v5423 = vmul.f32 %v5398, %v4141
      %v5424 = vmul.f32 %v5399, %v4148
      %v5425 = vmul.f32 %v5399, %v4155
      %v5426 = vmul.f32 %v5400, %v4162
      %v5427 = vmul.f32 %v5400, %v4169
      %v5428 = vmul.f32 %v5401, %v4176
      %v5429 = vmul.f32 %v5401, %v4183
      %v5430 = vmul.f32 %v5402, %v4190
      %v5431 = vmul.f32 %v5402, %v4197
      %v5432 = vmul.f32 %v5403, %v4204
      %v5433 = vmul.f32 %v5403, %v4211
      %v5434 = vmul.f32 %v5404, %v4218
      %v5435 = vmul.f32 %v5404, %v4225
      %v5436 = vmul.f32 %v5405, %v4232
      %v5437 = vmul.f32 %v5405, %v4239
      %v5438 = vsel %vm195, %v5406, 0.0
      %5439 = vadd.xlane.f32.xlu0 %v5438
      %v5440 = vpop.xlane.xlu0 %5439
      %v5441 = vsel %vm195, %v5407, 0.0
      %5442 = vadd.xlane.f32.xlu0 %v5441
      %v5443 = vpop.xlane.xlu0 %5442
      %v5444 = vsel %vm195, %v5408, 0.0
      %5445 = vadd.xlane.f32.xlu0 %v5444
      %v5446 = vpop.xlane.xlu0 %5445
      %v5447 = vsel %vm195, %v5409, 0.0
      %5448 = vadd.xlane.f32.xlu0 %v5447
      %v5449 = vpop.xlane.xlu0 %5448
      %v5450 = vsel %vm195, %v5410, 0.0
      %5451 = vadd.xlane.f32.xlu0 %v5450
      %v5452 = vpop.xlane.xlu0 %5451
      %v5453 = vsel %vm195, %v5411, 0.0
      %5454 = vadd.xlane.f32.xlu0 %v5453
      %v5455 = vpop.xlane.xlu0 %5454
      %v5456 = vsel %vm195, %v5412, 0.0
      %5457 = vadd.xlane.f32.xlu0 %v5456
      %v5458 = vpop.xlane.xlu0 %5457
      %v5459 = vsel %vm195, %v5413, 0.0
      %5460 = vadd.xlane.f32.xlu0 %v5459
      %v5461 = vpop.xlane.xlu0 %5460
      %v5462 = vsel %vm195, %v5414, 0.0
      %5463 = vadd.xlane.f32.xlu0 %v5462
      %v5464 = vpop.xlane.xlu0 %5463
      %v5465 = vsel %vm195, %v5415, 0.0
      %5466 = vadd.xlane.f32.xlu0 %v5465
      %v5467 = vpop.xlane.xlu0 %5466
      %v5468 = vsel %vm195, %v5416, 0.0
      %5469 = vadd.xlane.f32.xlu0 %v5468
      %v5470 = vpop.xlane.xlu0 %5469
      %v5471 = vsel %vm195, %v5417, 0.0
      %5472 = vadd.xlane.f32.xlu0 %v5471
      %v5473 = vpop.xlane.xlu0 %5472
      %v5474 = vsel %vm195, %v5418, 0.0
      %5475 = vadd.xlane.f32.xlu0 %v5474
      %v5476 = vpop.xlane.xlu0 %5475
      %v5477 = vsel %vm195, %v5419, 0.0
      %5478 = vadd.xlane.f32.xlu0 %v5477
      %v5479 = vpop.xlane.xlu0 %5478
      %v5480 = vsel %vm195, %v5420, 0.0
      %5481 = vadd.xlane.f32.xlu0 %v5480
      %v5482 = vpop.xlane.xlu0 %5481
      %v5483 = vsel %vm195, %v5421, 0.0
      %5484 = vadd.xlane.f32.xlu0 %v5483
      %v5485 = vpop.xlane.xlu0 %5484
      %v5486 = vsel %vm195, %v5422, 0.0
      %5487 = vadd.xlane.f32.xlu0 %v5486
      %v5488 = vpop.xlane.xlu0 %5487
      %v5489 = vsel %vm195, %v5423, 0.0
      %5490 = vadd.xlane.f32.xlu0 %v5489
      %v5491 = vpop.xlane.xlu0 %5490
      %v5492 = vsel %vm195, %v5424, 0.0
      %5493 = vadd.xlane.f32.xlu0 %v5492
      %v5494 = vpop.xlane.xlu0 %5493
      %v5495 = vsel %vm195, %v5425, 0.0
      %5496 = vadd.xlane.f32.xlu0 %v5495
      %v5497 = vpop.xlane.xlu0 %5496
      %v5498 = vsel %vm195, %v5426, 0.0
      %5499 = vadd.xlane.f32.xlu0 %v5498
      %v5500 = vpop.xlane.xlu0 %5499
      %v5501 = vsel %vm195, %v5427, 0.0
      %5502 = vadd.xlane.f32.xlu0 %v5501
      %v5503 = vpop.xlane.xlu0 %5502
      %v5504 = vsel %vm195, %v5428, 0.0
      %5505 = vadd.xlane.f32.xlu0 %v5504
      %v5506 = vpop.xlane.xlu0 %5505
      %v5507 = vsel %vm195, %v5429, 0.0
      %5508 = vadd.xlane.f32.xlu0 %v5507
      %v5509 = vpop.xlane.xlu0 %5508
      %v5510 = vsel %vm195, %v5430, 0.0
      %5511 = vadd.xlane.f32.xlu0 %v5510
      %v5512 = vpop.xlane.xlu0 %5511
      %v5513 = vsel %vm195, %v5431, 0.0
      %5514 = vadd.xlane.f32.xlu0 %v5513
      %v5515 = vpop.xlane.xlu0 %5514
      %v5516 = vsel %vm195, %v5432, 0.0
      %5517 = vadd.xlane.f32.xlu0 %v5516
      %v5518 = vpop.xlane.xlu0 %5517
      %v5519 = vsel %vm195, %v5433, 0.0
      %5520 = vadd.xlane.f32.xlu0 %v5519
      %v5521 = vpop.xlane.xlu0 %5520
      %v5522 = vsel %vm195, %v5434, 0.0
      %5523 = vadd.xlane.f32.xlu0 %v5522
      %v5524 = vpop.xlane.xlu0 %5523
      %v5525 = vsel %vm195, %v5435, 0.0
      %5526 = vadd.xlane.f32.xlu0 %v5525
      %v5527 = vpop.xlane.xlu0 %5526
      %v5528 = vsel %vm195, %v5436, 0.0
      %5529 = vadd.xlane.f32.xlu0 %v5528
      %v5530 = vpop.xlane.xlu0 %5529
      %v5531 = vsel %vm195, %v5437, 0.0
      %5532 = vadd.xlane.f32.xlu0 %v5531
      %v5533 = vpop.xlane.xlu0 %5532
      %v5534 = vmul.f32 %v5440, %v5440
      %v5535 = vmul.f32 %v5443, %v5443
      %v5536 = vmul.f32 %v5446, %v5446
      %v5537 = vmul.f32 %v5449, %v5449
      %v5538 = vmul.f32 %v5452, %v5452
      %v5539 = vmul.f32 %v5455, %v5455
      %v5540 = vmul.f32 %v5458, %v5458
      %v5541 = vmul.f32 %v5461, %v5461
      %v5542 = vmul.f32 %v5464, %v5464
      %v5543 = vmul.f32 %v5467, %v5467
      %v5544 = vmul.f32 %v5470, %v5470
      %v5545 = vmul.f32 %v5473, %v5473
      %v5546 = vmul.f32 %v5476, %v5476
      %v5547 = vmul.f32 %v5479, %v5479
      %v5548 = vmul.f32 %v5482, %v5482
      %v5549 = vmul.f32 %v5485, %v5485
      %v5550 = vmul.f32 %v5488, %v5488
      %v5551 = vmul.f32 %v5491, %v5491
      %v5552 = vmul.f32 %v5494, %v5494
      %v5553 = vmul.f32 %v5497, %v5497
      %v5554 = vmul.f32 %v5500, %v5500
      %v5555 = vmul.f32 %v5503, %v5503
      %v5556 = vmul.f32 %v5506, %v5506
      %v5557 = vmul.f32 %v5509, %v5509
      %v5558 = vmul.f32 %v5512, %v5512
      %v5559 = vmul.f32 %v5515, %v5515
      %v5560 = vmul.f32 %v5518, %v5518
      %v5561 = vmul.f32 %v5521, %v5521
      %v5562 = vmul.f32 %v5524, %v5524
      %v5563 = vmul.f32 %v5527, %v5527
      %v5564 = vmul.f32 %v5530, %v5530
      %v5565 = vmul.f32 %v5533, %v5533
      %v5566 = vadd.f32 %v5534, %v5535
      %v5567 = vrot.slane %v5566, 4
      %v5568 = vadd.f32 %v5566, %v5567
      %v5569 = vrot.slane %v5568, 2
      %v5570 = vadd.f32 %v5568, %v5569
      %v5571 = vrot.slane %v5570, 1
      %v5572 = vadd.f32 %v5570, %v5571
      %v5573 = vadd.f32 %v5536, %v5537
      %v5574 = vrot.slane %v5573, 4
      %v5575 = vadd.f32 %v5573, %v5574
      %v5576 = vrot.slane %v5575, 2
      %v5577 = vadd.f32 %v5575, %v5576
      %v5578 = vrot.slane %v5577, 1
      %v5579 = vadd.f32 %v5577, %v5578
      %v5580 = vadd.f32 %v5538, %v5539
      %v5581 = vrot.slane %v5580, 4
      %v5582 = vadd.f32 %v5580, %v5581
      %v5583 = vrot.slane %v5582, 2
      %v5584 = vadd.f32 %v5582, %v5583
      %v5585 = vrot.slane %v5584, 1
      %v5586 = vadd.f32 %v5584, %v5585
      %v5587 = vadd.f32 %v5540, %v5541
      %v5588 = vrot.slane %v5587, 4
      %v5589 = vadd.f32 %v5587, %v5588
      %v5590 = vrot.slane %v5589, 2
      %v5591 = vadd.f32 %v5589, %v5590
      %v5592 = vrot.slane %v5591, 1
      %v5593 = vadd.f32 %v5591, %v5592
      %v5594 = vadd.f32 %v5542, %v5543
      %v5595 = vrot.slane %v5594, 4
      %v5596 = vadd.f32 %v5594, %v5595
      %v5597 = vrot.slane %v5596, 2
      %v5598 = vadd.f32 %v5596, %v5597
      %v5599 = vrot.slane %v5598, 1
      %v5600 = vadd.f32 %v5598, %v5599
      %v5601 = vadd.f32 %v5544, %v5545
      %v5602 = vrot.slane %v5601, 4
      %v5603 = vadd.f32 %v5601, %v5602
      %v5604 = vrot.slane %v5603, 2
      %v5605 = vadd.f32 %v5603, %v5604
      %v5606 = vrot.slane %v5605, 1
      %v5607 = vadd.f32 %v5605, %v5606
      %v5608 = vadd.f32 %v5546, %v5547
      %v5609 = vrot.slane %v5608, 4
      %v5610 = vadd.f32 %v5608, %v5609
      %v5611 = vrot.slane %v5610, 2
      %v5612 = vadd.f32 %v5610, %v5611
      %v5613 = vrot.slane %v5612, 1
      %v5614 = vadd.f32 %v5612, %v5613
      %v5615 = vadd.f32 %v5548, %v5549
      %v5616 = vrot.slane %v5615, 4
      %v5617 = vadd.f32 %v5615, %v5616
      %v5618 = vrot.slane %v5617, 2
      %v5619 = vadd.f32 %v5617, %v5618
      %v5620 = vrot.slane %v5619, 1
      %v5621 = vadd.f32 %v5619, %v5620
      %v5622 = vadd.f32 %v5550, %v5551
      %v5623 = vrot.slane %v5622, 4
      %v5624 = vadd.f32 %v5622, %v5623
      %v5625 = vrot.slane %v5624, 2
      %v5626 = vadd.f32 %v5624, %v5625
      %v5627 = vrot.slane %v5626, 1
      %v5628 = vadd.f32 %v5626, %v5627
      %v5629 = vadd.f32 %v5552, %v5553
      %v5630 = vrot.slane %v5629, 4
      %v5631 = vadd.f32 %v5629, %v5630
      %v5632 = vrot.slane %v5631, 2
      %v5633 = vadd.f32 %v5631, %v5632
      %v5634 = vrot.slane %v5633, 1
      %v5635 = vadd.f32 %v5633, %v5634
      %v5636 = vadd.f32 %v5554, %v5555
      %v5637 = vrot.slane %v5636, 4
      %v5638 = vadd.f32 %v5636, %v5637
      %v5639 = vrot.slane %v5638, 2
      %v5640 = vadd.f32 %v5638, %v5639
      %v5641 = vrot.slane %v5640, 1
      %v5642 = vadd.f32 %v5640, %v5641
      %v5643 = vadd.f32 %v5556, %v5557
      %v5644 = vrot.slane %v5643, 4
      %v5645 = vadd.f32 %v5643, %v5644
      %v5646 = vrot.slane %v5645, 2
      %v5647 = vadd.f32 %v5645, %v5646
      %v5648 = vrot.slane %v5647, 1
      %v5649 = vadd.f32 %v5647, %v5648
      %v5650 = vadd.f32 %v5558, %v5559
      %v5651 = vrot.slane %v5650, 4
      %v5652 = vadd.f32 %v5650, %v5651
      %v5653 = vrot.slane %v5652, 2
      %v5654 = vadd.f32 %v5652, %v5653
      %v5655 = vrot.slane %v5654, 1
      %v5656 = vadd.f32 %v5654, %v5655
      %v5657 = vadd.f32 %v5560, %v5561
      %v5658 = vrot.slane %v5657, 4
      %v5659 = vadd.f32 %v5657, %v5658
      %v5660 = vrot.slane %v5659, 2
      %v5661 = vadd.f32 %v5659, %v5660
      %v5662 = vrot.slane %v5661, 1
      %v5663 = vadd.f32 %v5661, %v5662
      %v5664 = vadd.f32 %v5562, %v5563
      %v5665 = vrot.slane %v5664, 4
      %v5666 = vadd.f32 %v5664, %v5665
      %v5667 = vrot.slane %v5666, 2
      %v5668 = vadd.f32 %v5666, %v5667
      %v5669 = vrot.slane %v5668, 1
      %v5670 = vadd.f32 %v5668, %v5669
      %v5671 = vadd.f32 %v5564, %v5565
      %v5672 = vrot.slane %v5671, 4
      %v5673 = vadd.f32 %v5671, %v5672
      %v5674 = vrot.slane %v5673, 2
      %v5675 = vadd.f32 %v5673, %v5674
      %v5676 = vrot.slane %v5675, 1
      %v5677 = vadd.f32 %v5675, %v5676
      %v5678 = vadd.f32 %v5572, 1.0
      %v5679 = vadd.f32 %v5579, 1.0
      %v5680 = vadd.f32 %v5586, 1.0
      %v5681 = vadd.f32 %v5593, 1.0
      %v5682 = vadd.f32 %v5600, 1.0
      %v5683 = vadd.f32 %v5607, 1.0
      %v5684 = vadd.f32 %v5614, 1.0
      %v5685 = vadd.f32 %v5621, 1.0
      %v5686 = vadd.f32 %v5628, 1.0
      %v5687 = vadd.f32 %v5635, 1.0
      %v5688 = vadd.f32 %v5642, 1.0
      %v5689 = vadd.f32 %v5649, 1.0
      %v5690 = vadd.f32 %v5656, 1.0
      %v5691 = vadd.f32 %v5663, 1.0
      %v5692 = vadd.f32 %v5670, 1.0
      %v5693 = vadd.f32 %v5677, 1.0
      %v5694 = vrsqrt.pop %v5572
      %v5695 = vmul.f32 %v5572, %v5694
      %vm5696 = vcmp.eq.f32.partialorder %v5572, inf
      %v5697 = vsel %vm5696, %v5572, %v5695
      %vm5698 = vcmp.eq.f32.partialorder %v5572, 0.0
      %v5699 = vand.u32 %v5572, 2147483648
      %v5700 = vsel %vm5698, %v5699, %v5697
      %v5701 = vrsqrt.pop %v5579
      %v5702 = vmul.f32 %v5579, %v5701
      %vm5703 = vcmp.eq.f32.partialorder %v5579, inf
      %v5704 = vsel %vm5703, %v5579, %v5702
      %vm5705 = vcmp.eq.f32.partialorder %v5579, 0.0
      %v5706 = vand.u32 %v5579, 2147483648
      %v5707 = vsel %vm5705, %v5706, %v5704
      %v5708 = vrsqrt.pop %v5586
      %v5709 = vmul.f32 %v5586, %v5708
      %vm5710 = vcmp.eq.f32.partialorder %v5586, inf
      %v5711 = vsel %vm5710, %v5586, %v5709
      %vm5712 = vcmp.eq.f32.partialorder %v5586, 0.0
      %v5713 = vand.u32 %v5586, 2147483648
      %v5714 = vsel %vm5712, %v5713, %v5711
      %v5715 = vrsqrt.pop %v5593
      %v5716 = vmul.f32 %v5593, %v5715
      %vm5717 = vcmp.eq.f32.partialorder %v5593, inf
      %v5718 = vsel %vm5717, %v5593, %v5716
      %vm5719 = vcmp.eq.f32.partialorder %v5593, 0.0
      %v5720 = vand.u32 %v5593, 2147483648
      %v5721 = vsel %vm5719, %v5720, %v5718
      %v5722 = vrsqrt.pop %v5600
      %v5723 = vmul.f32 %v5600, %v5722
      %vm5724 = vcmp.eq.f32.partialorder %v5600, inf
      %v5725 = vsel %vm5724, %v5600, %v5723
      %vm5726 = vcmp.eq.f32.partialorder %v5600, 0.0
      %v5727 = vand.u32 %v5600, 2147483648
      %v5728 = vsel %vm5726, %v5727, %v5725
      %v5729 = vrsqrt.pop %v5607
      %v5730 = vmul.f32 %v5607, %v5729
      %vm5731 = vcmp.eq.f32.partialorder %v5607, inf
      %v5732 = vsel %vm5731, %v5607, %v5730
      %vm5733 = vcmp.eq.f32.partialorder %v5607, 0.0
      %v5734 = vand.u32 %v5607, 2147483648
      %v5735 = vsel %vm5733, %v5734, %v5732
      %v5736 = vrsqrt.pop %v5614
      %v5737 = vmul.f32 %v5614, %v5736
      %vm5738 = vcmp.eq.f32.partialorder %v5614, inf
      %v5739 = vsel %vm5738, %v5614, %v5737
      %vm5740 = vcmp.eq.f32.partialorder %v5614, 0.0
      %v5741 = vand.u32 %v5614, 2147483648
      %v5742 = vsel %vm5740, %v5741, %v5739
      %v5743 = vrsqrt.pop %v5621
      %v5744 = vmul.f32 %v5621, %v5743
      %vm5745 = vcmp.eq.f32.partialorder %v5621, inf
      %v5746 = vsel %vm5745, %v5621, %v5744
      %vm5747 = vcmp.eq.f32.partialorder %v5621, 0.0
      %v5748 = vand.u32 %v5621, 2147483648
      %v5749 = vsel %vm5747, %v5748, %v5746
      %v5750 = vrsqrt.pop %v5628
      %v5751 = vmul.f32 %v5628, %v5750
      %vm5752 = vcmp.eq.f32.partialorder %v5628, inf
      %v5753 = vsel %vm5752, %v5628, %v5751
      %vm5754 = vcmp.eq.f32.partialorder %v5628, 0.0
      %v5755 = vand.u32 %v5628, 2147483648
      %v5756 = vsel %vm5754, %v5755, %v5753
      %v5757 = vrsqrt.pop %v5635
      %v5758 = vmul.f32 %v5635, %v5757
      %vm5759 = vcmp.eq.f32.partialorder %v5635, inf
      %v5760 = vsel %vm5759, %v5635, %v5758
      %vm5761 = vcmp.eq.f32.partialorder %v5635, 0.0
      %v5762 = vand.u32 %v5635, 2147483648
      %v5763 = vsel %vm5761, %v5762, %v5760
      %v5764 = vrsqrt.pop %v5642
      %v5765 = vmul.f32 %v5642, %v5764
      %vm5766 = vcmp.eq.f32.partialorder %v5642, inf
      %v5767 = vsel %vm5766, %v5642, %v5765
      %vm5768 = vcmp.eq.f32.partialorder %v5642, 0.0
      %v5769 = vand.u32 %v5642, 2147483648
      %v5770 = vsel %vm5768, %v5769, %v5767
      %v5771 = vrsqrt.pop %v5649
      %v5772 = vmul.f32 %v5649, %v5771
      %vm5773 = vcmp.eq.f32.partialorder %v5649, inf
      %v5774 = vsel %vm5773, %v5649, %v5772
      %vm5775 = vcmp.eq.f32.partialorder %v5649, 0.0
      %v5776 = vand.u32 %v5649, 2147483648
      %v5777 = vsel %vm5775, %v5776, %v5774
      %v5778 = vrsqrt.pop %v5656
      %v5779 = vmul.f32 %v5656, %v5778
      %vm5780 = vcmp.eq.f32.partialorder %v5656, inf
      %v5781 = vsel %vm5780, %v5656, %v5779
      %vm5782 = vcmp.eq.f32.partialorder %v5656, 0.0
      %v5783 = vand.u32 %v5656, 2147483648
      %v5784 = vsel %vm5782, %v5783, %v5781
      %v5785 = vrsqrt.pop %v5663
      %v5786 = vmul.f32 %v5663, %v5785
      %vm5787 = vcmp.eq.f32.partialorder %v5663, inf
      %v5788 = vsel %vm5787, %v5663, %v5786
      %vm5789 = vcmp.eq.f32.partialorder %v5663, 0.0
      %v5790 = vand.u32 %v5663, 2147483648
      %v5791 = vsel %vm5789, %v5790, %v5788
      %v5792 = vrsqrt.pop %v5670
      %v5793 = vmul.f32 %v5670, %v5792
      %vm5794 = vcmp.eq.f32.partialorder %v5670, inf
      %v5795 = vsel %vm5794, %v5670, %v5793
      %vm5796 = vcmp.eq.f32.partialorder %v5670, 0.0
      %v5797 = vand.u32 %v5670, 2147483648
      %v5798 = vsel %vm5796, %v5797, %v5795
      %v5799 = vrsqrt.pop %v5677
      %v5800 = vmul.f32 %v5677, %v5799
      %vm5801 = vcmp.eq.f32.partialorder %v5677, inf
      %v5802 = vsel %vm5801, %v5677, %v5800
      %vm5803 = vcmp.eq.f32.partialorder %v5677, 0.0
      %v5804 = vand.u32 %v5677, 2147483648
      %v5805 = vsel %vm5803, %v5804, %v5802
      %v5806 = vadd.f32 %v5700, 1e-08
      %v5807 = vadd.f32 %v5707, 1e-08
      %v5808 = vadd.f32 %v5714, 1e-08
      %v5809 = vadd.f32 %v5721, 1e-08
      %v5810 = vadd.f32 %v5728, 1e-08
      %v5811 = vadd.f32 %v5735, 1e-08
      %v5812 = vadd.f32 %v5742, 1e-08
      %v5813 = vadd.f32 %v5749, 1e-08
      %v5814 = vadd.f32 %v5756, 1e-08
      %v5815 = vadd.f32 %v5763, 1e-08
      %v5816 = vadd.f32 %v5770, 1e-08
      %v5817 = vadd.f32 %v5777, 1e-08
      %v5818 = vadd.f32 %v5784, 1e-08
      %v5819 = vadd.f32 %v5791, 1e-08
      %v5820 = vadd.f32 %v5798, 1e-08
      %v5821 = vadd.f32 %v5805, 1e-08
      %v5822 = vmul.f32 %v5678, %v5806
      %v5823 = vmul.f32 %v5679, %v5807
      %v5824 = vmul.f32 %v5680, %v5808
      %v5825 = vmul.f32 %v5681, %v5809
      %v5826 = vmul.f32 %v5682, %v5810
      %v5827 = vmul.f32 %v5683, %v5811
      %v5828 = vmul.f32 %v5684, %v5812
      %v5829 = vmul.f32 %v5685, %v5813
      %v5830 = vmul.f32 %v5686, %v5814
      %v5831 = vmul.f32 %v5687, %v5815
      %v5832 = vmul.f32 %v5688, %v5816
      %v5833 = vmul.f32 %v5689, %v5817
      %v5834 = vmul.f32 %v5690, %v5818
      %v5835 = vmul.f32 %v5691, %v5819
      %v5836 = vmul.f32 %v5692, %v5820
      %v5837 = vmul.f32 %v5693, %v5821
      %v5838 = vrcp.pop %v5822
      %v5839 = vrcp.pop %v5823
      %v5840 = vrcp.pop %v5824
      %v5841 = vrcp.pop %v5825
      %v5842 = vrcp.pop %v5826
      %v5843 = vrcp.pop %v5827
      %v5844 = vrcp.pop %v5828
      %v5845 = vrcp.pop %v5829
      %v5846 = vrcp.pop %v5830
      %v5847 = vrcp.pop %v5831
      %v5848 = vrcp.pop %v5832
      %v5849 = vrcp.pop %v5833
      %v5850 = vrcp.pop %v5834
      %v5851 = vrcp.pop %v5835
      %v5852 = vrcp.pop %v5836
      %v5853 = vrcp.pop %v5837
      %v5854 = vmul.f32 %v5572, %v5838
      %v5855 = vmul.f32 %v5579, %v5839
      %v5856 = vmul.f32 %v5586, %v5840
      %v5857 = vmul.f32 %v5593, %v5841
      %v5858 = vmul.f32 %v5600, %v5842
      %v5859 = vmul.f32 %v5607, %v5843
      %v5860 = vmul.f32 %v5614, %v5844
      %v5861 = vmul.f32 %v5621, %v5845
      %v5862 = vmul.f32 %v5628, %v5846
      %v5863 = vmul.f32 %v5635, %v5847
      %v5864 = vmul.f32 %v5642, %v5848
      %v5865 = vmul.f32 %v5649, %v5849
      %v5866 = vmul.f32 %v5656, %v5850
      %v5867 = vmul.f32 %v5663, %v5851
      %v5868 = vmul.f32 %v5670, %v5852
      %v5869 = vmul.f32 %v5677, %v5853
      %v5870 = vmul.f32 %v5440, %v5854
      %v5871 = vmul.f32 %v5443, %v5854
      %v5872 = vmul.f32 %v5446, %v5855
      %v5873 = vmul.f32 %v5449, %v5855
      %v5874 = vmul.f32 %v5452, %v5856
      %v5875 = vmul.f32 %v5455, %v5856
      %v5876 = vmul.f32 %v5458, %v5857
      %v5877 = vmul.f32 %v5461, %v5857
      %v5878 = vmul.f32 %v5464, %v5858
      %v5879 = vmul.f32 %v5467, %v5858
      %v5880 = vmul.f32 %v5470, %v5859
      %v5881 = vmul.f32 %v5473, %v5859
      %v5882 = vmul.f32 %v5476, %v5860
      %v5883 = vmul.f32 %v5479, %v5860
      %v5884 = vmul.f32 %v5482, %v5861
      %v5885 = vmul.f32 %v5485, %v5861
      %v5886 = vmul.f32 %v5488, %v5862
      %v5887 = vmul.f32 %v5491, %v5862
      %v5888 = vmul.f32 %v5494, %v5863
      %v5889 = vmul.f32 %v5497, %v5863
      %v5890 = vmul.f32 %v5500, %v5864
      %v5891 = vmul.f32 %v5503, %v5864
      %v5892 = vmul.f32 %v5506, %v5865
      %v5893 = vmul.f32 %v5509, %v5865
      %v5894 = vmul.f32 %v5512, %v5866
      %v5895 = vmul.f32 %v5515, %v5866
      %v5896 = vmul.f32 %v5518, %v5867
      %v5897 = vmul.f32 %v5521, %v5867
      %v5898 = vmul.f32 %v5524, %v5868
      %v5899 = vmul.f32 %v5527, %v5868
      %v5900 = vmul.f32 %v5530, %v5869
      %v5901 = vmul.f32 %v5533, %v5869
      %v5902 = vld [vmem:[%s2] sm:$0xff]
      %v5903 = vld [vmem:[%s2 + $0x8] sm:$0xff]
      %v5904 = vld [vmem:[%s2 + $0x10] sm:$0xff]
      %v5905 = vld [vmem:[%s2 + $0x18] sm:$0xff]
      %v5906 = vld [vmem:[%s2 + $0x20] sm:$0xff]
      %v5907 = vld [vmem:[%s2 + $0x28] sm:$0xff]
      %v5908 = vld [vmem:[%s2 + $0x30] sm:$0xff]
      %v5909 = vld [vmem:[%s2 + $0x38] sm:$0xff]
      %v5910 = vld [vmem:[%s2 + $0x40] sm:$0xff]
      %v5911 = vld [vmem:[%s2 + $0x48] sm:$0xff]
      %v5912 = vld [vmem:[%s2 + $0x50] sm:$0xff]
      %v5913 = vld [vmem:[%s2 + $0x58] sm:$0xff]
      %v5914 = vld [vmem:[%s2 + $0x60] sm:$0xff]
      %v5915 = vld [vmem:[%s2 + $0x68] sm:$0xff]
      %v5916 = vld [vmem:[%s2 + $0x70] sm:$0xff]
      %v5917 = vld [vmem:[%s2 + $0x78] sm:$0xff]
      %v5918 = vld [vmem:[%s2 + $0x80] sm:$0xff]
      %v5919 = vld [vmem:[%s2 + $0x88] sm:$0xff]
      %v5920 = vld [vmem:[%s2 + $0x90] sm:$0xff]
      %v5921 = vld [vmem:[%s2 + $0x98] sm:$0xff]
      %v5922 = vld [vmem:[%s2 + $0xa0] sm:$0xff]
      %v5923 = vld [vmem:[%s2 + $0xa8] sm:$0xff]
      %v5924 = vld [vmem:[%s2 + $0xb0] sm:$0xff]
      %v5925 = vld [vmem:[%s2 + $0xb8] sm:$0xff]
      %v5926 = vld [vmem:[%s2 + $0xc0] sm:$0xff]
      %v5927 = vld [vmem:[%s2 + $0xc8] sm:$0xff]
      %v5928 = vld [vmem:[%s2 + $0xd0] sm:$0xff]
      %v5929 = vld [vmem:[%s2 + $0xd8] sm:$0xff]
      %v5930 = vld [vmem:[%s2 + $0xe0] sm:$0xff]
      %v5931 = vld [vmem:[%s2 + $0xe8] sm:$0xff]
      %v5932 = vld [vmem:[%s2 + $0xf0] sm:$0xff]
      %v5933 = vld [vmem:[%s2 + $0xf8] sm:$0xff]
      %v5934 = vmul.f32 %v5870, %v5902
      %v5935 = vmul.f32 %v5871, %v5903
      %v5936 = vmul.f32 %v5872, %v5904
      %v5937 = vmul.f32 %v5873, %v5905
      %v5938 = vmul.f32 %v5874, %v5906
      %v5939 = vmul.f32 %v5875, %v5907
      %v5940 = vmul.f32 %v5876, %v5908
      %v5941 = vmul.f32 %v5877, %v5909
      %v5942 = vmul.f32 %v5878, %v5910
      %v5943 = vmul.f32 %v5879, %v5911
      %v5944 = vmul.f32 %v5880, %v5912
      %v5945 = vmul.f32 %v5881, %v5913
      %v5946 = vmul.f32 %v5882, %v5914
      %v5947 = vmul.f32 %v5883, %v5915
      %v5948 = vmul.f32 %v5884, %v5916
      %v5949 = vmul.f32 %v5885, %v5917
      %v5950 = vmul.f32 %v5886, %v5918
      %v5951 = vmul.f32 %v5887, %v5919
      %v5952 = vmul.f32 %v5888, %v5920
      %v5953 = vmul.f32 %v5889, %v5921
      %v5954 = vmul.f32 %v5890, %v5922
      %v5955 = vmul.f32 %v5891, %v5923
      %v5956 = vmul.f32 %v5892, %v5924
      %v5957 = vmul.f32 %v5893, %v5925
      %v5958 = vmul.f32 %v5894, %v5926
      %v5959 = vmul.f32 %v5895, %v5927
      %v5960 = vmul.f32 %v5896, %v5928
      %v5961 = vmul.f32 %v5897, %v5929
      %v5962 = vmul.f32 %v5898, %v5930
      %v5963 = vmul.f32 %v5899, %v5931
      %v5964 = vmul.f32 %v5900, %v5932
      %v5965 = vmul.f32 %v5901, %v5933
      %vm5966 = vcmask 7168
      %v5967 = vsel %vm5966, %v5934, 0.0
      %v5968 = vsel %vm5966, %v5935, 0.0
      %v5969 = vadd.f32 %v5967, %v5968
      %v5970 = vrot.slane %v5969, 4
      %v5971 = vadd.f32 %v5969, %v5970
      %v5972 = vrot.slane %v5971, 2
      %v5973 = vadd.f32 %v5971, %v5972
      %v5974 = vrot.slane %v5973, 1
      %v5975 = vadd.f32 %v5973, %v5974
      %v5976 = vsel %vm5966, %v5936, 0.0
      %v5977 = vsel %vm5966, %v5937, 0.0
      %v5978 = vadd.f32 %v5976, %v5977
      %v5979 = vrot.slane %v5978, 4
      %v5980 = vadd.f32 %v5978, %v5979
      %v5981 = vrot.slane %v5980, 2
      %v5982 = vadd.f32 %v5980, %v5981
      %v5983 = vrot.slane %v5982, 1
      %v5984 = vadd.f32 %v5982, %v5983
      %v5985 = vsel %vm5966, %v5938, 0.0
      %v5986 = vsel %vm5966, %v5939, 0.0
      %v5987 = vadd.f32 %v5985, %v5986
      %v5988 = vrot.slane %v5987, 4
      %v5989 = vadd.f32 %v5987, %v5988
      %v5990 = vrot.slane %v5989, 2
      %v5991 = vadd.f32 %v5989, %v5990
      %v5992 = vrot.slane %v5991, 1
      %v5993 = vadd.f32 %v5991, %v5992
      %v5994 = vsel %vm5966, %v5940, 0.0
      %v5995 = vsel %vm5966, %v5941, 0.0
      %v5996 = vadd.f32 %v5994, %v5995
      %v5997 = vrot.slane %v5996, 4
      %v5998 = vadd.f32 %v5996, %v5997
      %v5999 = vrot.slane %v5998, 2
      %v6000 = vadd.f32 %v5998, %v5999
      %v6001 = vrot.slane %v6000, 1
      %v6002 = vadd.f32 %v6000, %v6001
      %v6003 = vsel %vm5966, %v5942, 0.0
      %v6004 = vsel %vm5966, %v5943, 0.0
      %v6005 = vadd.f32 %v6003, %v6004
      %v6006 = vrot.slane %v6005, 4
      %v6007 = vadd.f32 %v6005, %v6006
      %v6008 = vrot.slane %v6007, 2
      %v6009 = vadd.f32 %v6007, %v6008
      %v6010 = vrot.slane %v6009, 1
      %v6011 = vadd.f32 %v6009, %v6010
      %v6012 = vsel %vm5966, %v5944, 0.0
      %v6013 = vsel %vm5966, %v5945, 0.0
      %v6014 = vadd.f32 %v6012, %v6013
      %v6015 = vrot.slane %v6014, 4
      %v6016 = vadd.f32 %v6014, %v6015
      %v6017 = vrot.slane %v6016, 2
      %v6018 = vadd.f32 %v6016, %v6017
      %v6019 = vrot.slane %v6018, 1
      %v6020 = vadd.f32 %v6018, %v6019
      %v6021 = vsel %vm5966, %v5946, 0.0
      %v6022 = vsel %vm5966, %v5947, 0.0
      %v6023 = vadd.f32 %v6021, %v6022
      %v6024 = vrot.slane %v6023, 4
      %v6025 = vadd.f32 %v6023, %v6024
      %v6026 = vrot.slane %v6025, 2
      %v6027 = vadd.f32 %v6025, %v6026
      %v6028 = vrot.slane %v6027, 1
      %v6029 = vadd.f32 %v6027, %v6028
      %v6030 = vsel %vm5966, %v5948, 0.0
      %v6031 = vsel %vm5966, %v5949, 0.0
      %v6032 = vadd.f32 %v6030, %v6031
      %v6033 = vrot.slane %v6032, 4
      %v6034 = vadd.f32 %v6032, %v6033
      %v6035 = vrot.slane %v6034, 2
      %v6036 = vadd.f32 %v6034, %v6035
      %v6037 = vrot.slane %v6036, 1
      %v6038 = vadd.f32 %v6036, %v6037
      %v6039 = vsel %vm5966, %v5950, 0.0
      %v6040 = vsel %vm5966, %v5951, 0.0
      %v6041 = vadd.f32 %v6039, %v6040
      %v6042 = vrot.slane %v6041, 4
      %v6043 = vadd.f32 %v6041, %v6042
      %v6044 = vrot.slane %v6043, 2
      %v6045 = vadd.f32 %v6043, %v6044
      %v6046 = vrot.slane %v6045, 1
      %v6047 = vadd.f32 %v6045, %v6046
      %v6048 = vsel %vm5966, %v5952, 0.0
      %v6049 = vsel %vm5966, %v5953, 0.0
      %v6050 = vadd.f32 %v6048, %v6049
      %v6051 = vrot.slane %v6050, 4
      %v6052 = vadd.f32 %v6050, %v6051
      %v6053 = vrot.slane %v6052, 2
      %v6054 = vadd.f32 %v6052, %v6053
      %v6055 = vrot.slane %v6054, 1
      %v6056 = vadd.f32 %v6054, %v6055
      %v6057 = vsel %vm5966, %v5954, 0.0
      %v6058 = vsel %vm5966, %v5955, 0.0
      %v6059 = vadd.f32 %v6057, %v6058
      %v6060 = vrot.slane %v6059, 4
      %v6061 = vadd.f32 %v6059, %v6060
      %v6062 = vrot.slane %v6061, 2
      %v6063 = vadd.f32 %v6061, %v6062
      %v6064 = vrot.slane %v6063, 1
      %v6065 = vadd.f32 %v6063, %v6064
      %v6066 = vsel %vm5966, %v5956, 0.0
      %v6067 = vsel %vm5966, %v5957, 0.0
      %v6068 = vadd.f32 %v6066, %v6067
      %v6069 = vrot.slane %v6068, 4
      %v6070 = vadd.f32 %v6068, %v6069
      %v6071 = vrot.slane %v6070, 2
      %v6072 = vadd.f32 %v6070, %v6071
      %v6073 = vrot.slane %v6072, 1
      %v6074 = vadd.f32 %v6072, %v6073
      %v6075 = vsel %vm5966, %v5958, 0.0
      %v6076 = vsel %vm5966, %v5959, 0.0
      %v6077 = vadd.f32 %v6075, %v6076
      %v6078 = vrot.slane %v6077, 4
      %v6079 = vadd.f32 %v6077, %v6078
      %v6080 = vrot.slane %v6079, 2
      %v6081 = vadd.f32 %v6079, %v6080
      %v6082 = vrot.slane %v6081, 1
      %v6083 = vadd.f32 %v6081, %v6082
      %v6084 = vsel %vm5966, %v5960, 0.0
      %v6085 = vsel %vm5966, %v5961, 0.0
      %v6086 = vadd.f32 %v6084, %v6085
      %v6087 = vrot.slane %v6086, 4
      %v6088 = vadd.f32 %v6086, %v6087
      %v6089 = vrot.slane %v6088, 2
      %v6090 = vadd.f32 %v6088, %v6089
      %v6091 = vrot.slane %v6090, 1
      %v6092 = vadd.f32 %v6090, %v6091
      %v6093 = vsel %vm5966, %v5962, 0.0
      %v6094 = vsel %vm5966, %v5963, 0.0
      %v6095 = vadd.f32 %v6093, %v6094
      %v6096 = vrot.slane %v6095, 4
      %v6097 = vadd.f32 %v6095, %v6096
      %v6098 = vrot.slane %v6097, 2
      %v6099 = vadd.f32 %v6097, %v6098
      %v6100 = vrot.slane %v6099, 1
      %v6101 = vadd.f32 %v6099, %v6100
      %v6102 = vsel %vm5966, %v5964, 0.0
      %v6103 = vsel %vm5966, %v5965, 0.0
      %v6104 = vadd.f32 %v6102, %v6103
      %v6105 = vrot.slane %v6104, 4
      %v6106 = vadd.f32 %v6104, %v6105
      %v6107 = vrot.slane %v6106, 2
      %v6108 = vadd.f32 %v6106, %v6107
      %v6109 = vrot.slane %v6108, 1
      %v6110 = vadd.f32 %v6108, %v6109
      %v6111 = vsel %vm5966, %v5975, 0.0
      %v6112 = vsel %vm5966, %v5984, 0.0
      %v6113 = vadd.f32 %v6111, %v6112
      %v6114 = vsel %vm5966, %v5993, 0.0
      %v6115 = vadd.f32 %v6113, %v6114
      %v6116 = vsel %vm5966, %v6002, 0.0
      %v6117 = vadd.f32 %v6115, %v6116
      %v6118 = vsel %vm5966, %v6011, 0.0
      %v6119 = vadd.f32 %v6117, %v6118
      %v6120 = vsel %vm5966, %v6020, 0.0
      %v6121 = vadd.f32 %v6119, %v6120
      %v6122 = vsel %vm5966, %v6029, 0.0
      %v6123 = vadd.f32 %v6121, %v6122
      %v6124 = vsel %vm5966, %v6038, 0.0
      %v6125 = vadd.f32 %v6123, %v6124
      %v6126 = vsel %vm5966, %v6047, 0.0
      %v6127 = vadd.f32 %v6125, %v6126
      %v6128 = vsel %vm5966, %v6056, 0.0
      %v6129 = vadd.f32 %v6127, %v6128
      %v6130 = vsel %vm5966, %v6065, 0.0
      %v6131 = vadd.f32 %v6129, %v6130
      %v6132 = vsel %vm5966, %v6074, 0.0
      %v6133 = vadd.f32 %v6131, %v6132
      %v6134 = vsel %vm5966, %v6083, 0.0
      %v6135 = vadd.f32 %v6133, %v6134
      %v6136 = vsel %vm5966, %v6092, 0.0
      %v6137 = vadd.f32 %v6135, %v6136
      %v6138 = vsel %vm5966, %v6101, 0.0
      %v6139 = vadd.f32 %v6137, %v6138
      %v6140 = vsel %vm5966, %v6110, 0.0
      %v6141 = vadd.f32 %v6139, %v6140
      %v6142 = vld [vmem:[#allocation2] sm:$0x1]
      %v6143 = vadd.f32 %v6141, %v6142
      %v6144 = vxor.u32 %v6143, 2147483648
      %v6145 = vmul.f32 %v6144, 1.442695
      %v6146 = vpow.pop %v6145
      %v6147 = vadd.f32 %v6146, 1.0
      %v6148 = vrcp.pop %v6147
      %v6149 = vmul.f32 1.0, %v6148
      %vm6150 = vcmask 0
      %6151 = vst.msk [vmem:[%s192] sm:$0x1] %vm6150, %v6149
      %p6152 = scmp.lt.s32.totalorder %s17, 1
      %s6153 = scalar_select %p6152, %s17, 1
      %s6154 = scalar_lea.vmem %s4, %s6153
      // Predicated region
      $region37: #{mtca_capsnet_forward.3} parent=35 // pred_check
        %p6155 = pneg %p124
      $region38: #{mtca_capsnet_forward.3} parent=35 // pred_check_branch
        %6157 = sbr.rel (%p6155) target = $region40
      $region39: #{mtca_capsnet_forward.3} parent=35 // pred_region
        _
      $region40: #{mtca_capsnet_forward.3} parent=35 // pred_fallthru
        _
    $region36: #{mtca_capsnet_forward.3} parent=5 // pred_fallthru
      _
    %p6158 = scmp.le.s32.totalorder 2, %s12
    // Predicated region
    $region41: #{mtca_capsnet_forward.3} parent=5 // pred_check
      %p6159 = pneg %p6158
    $region42: #{mtca_capsnet_forward.3} parent=5 // pred_check_branch
      %6161 = sbr.rel (%p6159) target = $region44
    $region43: #{mtca_capsnet_forward.3} parent=5 // pred_region
      %s6162 = ssub.s32 %s12, 2
      // Predicated region
      $region45: #{mtca_capsnet_forward.3} parent=43 // pred_check
        %p6163 = pneg %p130
      $region46: #{mtca_capsnet_forward.3} parent=43 // pred_check_branch
        %6165 = sbr.rel (%p6163) target = $region48
      $region47: #{mtca_capsnet_forward.3} parent=43 // pred_region
        %p6166 = scmp.lt.s32.totalorder %s18, 1
        %s6167 = scalar_select %p6166, %s18, 1
        %s6168 = scalar_lea.vmem %s4, %s6167
      $region48: #{mtca_capsnet_forward.3} parent=43 // pred_fallthru
        _
    $region44: #{mtca_capsnet_forward.3} parent=5 // pred_fallthru
      _
  $region6: #{mtca_capsnet_forward.3} parent=0 // loop_footer
    %s16 = sadd.s32 1, %s12
  $region7: #{mtca_capsnet_forward.3} parent=0 // loop_footer_branch
    %11 = sbr.rel target = $region3
  $region8: #{mtca_capsnet_forward.3} parent=0 // loop_exit
    _

</llo_original>
